<compile_context>
chip_gen: v7x
topology: tpu7x:2x2x1
jax: 0.10.0
libtpu: 0.0.40
codegen_flags: <defaults>
</compile_context>

<pallas_src>
import functools
import math

import jax
import jax.numpy as jnp
import numpy as np
from jax import lax
from jax.experimental import pallas as pl
from jax.experimental.pallas import tpu as pltpu


# ---------------------------------------------------------------------------
# Fused kernel (one batch element per grid step)
# ---------------------------------------------------------------------------

def _res2net_fused_kernel(
    x_ref, mask_ref,
    w_in_ref, b_in_ref,
    w1_ref, b1_ref, w2_ref, b2_ref, w3_ref, b3_ref,
    w_out_ref, b_out_ref,
    s1w_ref, s1b_ref, s12w_ref, s12b_ref,
    s2w_ref, s2b_ref, s22w_ref, s22b_ref,
    s3w_ref, s3b_ref,
    o_ref,
    *, split, offsets, iter_n, eps):
    """Res2net1.forward for a single batch element, entirely in VMEM."""
    f32 = jnp.float32
    X = x_ref[0]                                   # (C, M) -- also the residual
    C, M = X.shape
    s = split

    def mm(a, b):
        return jnp.dot(a, b, preferred_element_type=f32)

    # ---- input 1x1x1 conv + ReLU ------------------------------------------
    h = jnp.maximum(mm(w_in_ref[...], X) + b_in_ref[...], 0.0)

    out1 = h[0 * s:1 * s]
    out2 = h[1 * s:2 * s]
    out3 = h[2 * s:3 * s]
    out4 = h[3 * s:4 * s]

    # ---- 3x3x3 conv (padding=1): in-VMEM shifted im2col + one MXU matmul ---
    def conv3x3x3_relu(wc_ref, bc_ref, xin):
        cols = []
        for k, t in enumerate(offsets):
            sh = (-t) % M                          # static lane rotation amount
            shifted = xin if sh == 0 else pltpu.roll(xin, shift=sh, axis=1)
            cols.append(shifted * mask_ref[k])     # zero the out-of-bounds taps
        col = jnp.concatenate(cols, axis=0)        # (27*s, M), stays in VMEM
        return jnp.maximum(mm(wc_ref[...], col) + bc_ref[...], 0.0)

    out22 = conv3x3x3_relu(w1_ref, b1_ref, out2)
    out33 = conv3x3x3_relu(w2_ref, b2_ref, out3 + out22)
    out44 = conv3x3x3_relu(w3_ref, b3_ref, out4 + out33)

    cat = jnp.concatenate([out1, out22, out33, out44], axis=0)   # (C, M)

    # ---- output 1x1x1 conv + residual ---------------------------------------
    Y = X + mm(w_out_ref[...], cat) + b_out_ref[...]             # (C, M)

    # ---- se3D: global-average-pool branch -----------------------------------
    inv_m = 1.0 / M
    row_sum = jnp.sum(Y, axis=1, keepdims=True)                  # (C, 1)
    pooled = row_sum * inv_m                                     # adaptive_avg_pool3d

    x1 = mm(s1w_ref[...], pooled) + s1b_ref[...]
    x1 = mm(s12w_ref[...], x1) + s12b_ref[...]

    # ---- se3D: second-order branch (covariance + matrix square root) --------
    # cova = Y Y^T / M - (rowsum rowsum^T) / M^2   (== se3Da)
    gram = lax.dot_general(Y, Y, (((1,), (1,)), ((), ())),
                           preferred_element_type=f32)           # (C, C)
    outer = lax.dot_general(row_sum, row_sum, (((1,), (1,)), ((), ())),
                            preferred_element_type=f32)          # (C, C)
    cova = gram * inv_m - outer * (inv_m * inv_m)

    ri = lax.broadcasted_iota(jnp.int32, (C, C), 0)
    ci = lax.broadcasted_iota(jnp.int32, (C, C), 1)
    eye = (ri == ci).astype(f32)
    i3 = 3.0 * eye
    norm_a = jnp.sum(cova * eye) + eps                           # trace (+ eps guard)
    a = cova * (1.0 / norm_a)

    # TODO(synk): MPNCOV.SqrtmLayer source not provided; this is the standard
    # iSQRT-COV Newton-Schulz iteration (iterN = 5, requires iter_n >= 3).
    zy = 0.5 * (i3 - a)
    y = mm(a, zy)
    z = zy
    for _ in range(1, iter_n - 1):
        zy = 0.5 * (i3 - mm(z, y))
        y_next = mm(y, zy)
        z = mm(zy, z)
        y = y_next
    sqrtm = 0.5 * mm(y, i3 - mm(z, y)) * jnp.sqrt(norm_a)        # (C, C)

    # torch.mean(x2, 1): mean over the first matrix dim -> column means,
    # produced directly as a (C, 1) column via a contracted matmul (no transpose).
    ones_col = jnp.ones((C, 1), dtype=f32)
    covmean = lax.dot_general(sqrtm, ones_col, (((0,), (0,)), ((), ())),
                              preferred_element_type=f32) * (1.0 / C)

    x2 = mm(s2w_ref[...], covmean) + s2b_ref[...]
    x2 = mm(s22w_ref[...], x2) + s22b_ref[...]

    # ---- gate and re-scale ---------------------------------------------------
    gate_in = jnp.concatenate([x1, x2], axis=0)                  # (2C, 1)
    gate = jax.nn.sigmoid(mm(s3w_ref[...], gate_in) + s3b_ref[...])   # (C, 1)

    o_ref[0] = (Y * gate).astype(o_ref.dtype)


# ---------------------------------------------------------------------------
# Wrapper / glue
# ---------------------------------------------------------------------------

def _conv_offsets_and_masks(D, H, W):
    """Static lane shifts + validity masks for a 3x3x3 conv (padding=1) on a
    (D,H,W)->M flattened axis."""
    M = D * H * W
    m = np.arange(M)
    d = m // (H * W)
    h = (m // W) % H
    w = m % W
    offsets, masks = [], []
    for kd in range(3):
        for kh in range(3):
            for kw in range(3):
                od, oh, ow = kd - 1, kh - 1, kw - 1
                offsets.append(od * H * W + oh * W + ow)
                valid = ((d + od >= 0) & (d + od < D) &
                         (h + oh >= 0) & (h + oh < H) &
                         (w + ow >= 0) & (w + ow < W))
                masks.append(valid.astype(np.float32))
    masks = jnp.asarray(np.stack(masks)[:, None, :])             # (27, 1, M)
    return tuple(int(t) for t in offsets), masks


def res2net1_forward(params, x, *, iter_n=5):
    """x: (B, C, D, H, W) float32 -> (B, C, D, H, W)."""
    B, C, D, H, W = x.shape
    M = D * H * W
    s = C // 4
    xm = x.reshape(B, C, M)
    offsets, masks = _conv_offsets_and_masks(D, H, W)

    def wcol(w5):   # (Cout, Cin, 3, 3, 3) -> (Cout, 27*Cin) matching im2col order
        cout, cin = w5.shape[0], w5.shape[1]
        return jnp.transpose(w5, (0, 2, 3, 4, 1)).reshape(cout, 27 * cin)

    p = params
    weights = (
        p["input_w"], p["input_b"],
        wcol(p["conv1_w"]), p["conv1_b"],
        wcol(p["conv2_w"]), p["conv2_b"],
        wcol(p["conv3_w"]), p["conv3_b"],
        p["output_w"], p["output_b"],
        p["se_conv1_w"], p["se_conv1_b"],
        p["se_conv12_w"], p["se_conv12_b"],
        p["se_conv2_w"], p["se_conv2_b"],
        p["se_conv22_w"], p["se_conv22_b"],
        p["se_conv3_w"], p["se_conv3_b"],
    )

    def const_spec(a):   # whole array, same block every grid step (DMA'd once)
        nd = a.ndim
        return pl.BlockSpec(a.shape, lambda i, _nd=nd: (0,) * _nd)

    kern = functools.partial(_res2net_fused_kernel, split=s, offsets=offsets,
                             iter_n=iter_n, eps=1e-12)

    out = pl.pallas_call(
        kern,
        out_shape=jax.ShapeDtypeStruct((B, C, M), x.dtype),
        grid_spec=pltpu.PrefetchScalarGridSpec(
            num_scalar_prefetch=0,
            grid=(B,),
            in_specs=[
                pl.BlockSpec((1, C, M), lambda i: (i, 0, 0)),     # x (per batch)
                pl.BlockSpec((27, 1, M), lambda i: (0, 0, 0)),    # boundary masks
            ] + [const_spec(w) for w in weights],
            out_specs=pl.BlockSpec((1, C, M), lambda i: (i, 0, 0)),
        ),
        compiler_params=pltpu.CompilerParams(
            dimension_semantics=("parallel",),        # batch axis -> 2 TCs on v7x
            vmem_limit_bytes=64 * 1024 * 1024,
        ),
    )(xm, masks, *weights)
    return out.reshape(B, C, D, H, W)


# ---------------------------------------------------------------------------
# Parameter init (PyTorch-Conv3d-style uniform init)
# ---------------------------------------------------------------------------

def init_params(key):
    def pw(k, cout, cin):
        k1, k2 = jax.random.split(k)
        bound = 1.0 / math.sqrt(cin)
        w = jax.random.uniform(k1, (cout, cin), jnp.float32, -bound, bound)
        b = jax.random.uniform(k2, (cout, 1), jnp.float32, -bound, bound)
        return w, b

    def c3(k, cout, cin):
        k1, k2 = jax.random.split(k)
        bound = 1.0 / math.sqrt(cin * 27)
        w = jax.random.uniform(k1, (cout, cin, 3, 3, 3), jnp.float32, -bound, bound)
        b = jax.random.uniform(k2, (cout, 1), jnp.float32, -bound, bound)
        return w, b

    keys = jax.random.split(key, 10)
    p = {}
    p["input_w"], p["input_b"] = pw(keys[0], 64, 64)
    p["output_w"], p["output_b"] = pw(keys[1], 64, 64)
    p["conv1_w"], p["conv1_b"] = c3(keys[2], 16, 16)
    p["conv2_w"], p["conv2_b"] = c3(keys[3], 16, 16)
    p["conv3_w"], p["conv3_b"] = c3(keys[4], 16, 16)
    p["se_conv1_w"], p["se_conv1_b"] = pw(keys[5], 64, 64)
    p["se_conv12_w"], p["se_conv12_b"] = pw(keys[6], 64, 64)
    p["se_conv2_w"], p["se_conv2_b"] = pw(keys[7], 64, 64)
    p["se_conv22_w"], p["se_conv22_b"] = pw(keys[8], 64, 64)
    p["se_conv3_w"], p["se_conv3_b"] = pw(keys[9], 64, 128)
    return p


if __name__ == "__main__":
    key = jax.random.PRNGKey(0)
    pkey, xkey = jax.random.split(key)

    # Channels are fixed at 64 by the module architecture; small 3D spatial dims
    # (M = D*H*W = 256, lane dense).
    B, C, D, H, W = 2, 64, 4, 8, 8
    params = init_params(pkey)
    x = jax.random.normal(xkey, (B, C, D, H, W), jnp.float32)

    out = jax.jit(res2net1_forward)(params, x)
    out = jax.block_until_ready(out)
    assert out.shape == (B, C, D, H, W)
    assert bool(jnp.all(jnp.isfinite(out)))
    print("KERNEL_OK")
</pallas_src>

<mosaic_0001>
module attributes {stable_mosaic.version = 11 : i64} {
  func.func @_res2net_fused_kernel(%arg0: i32, %arg1: memref<1x64x256xf32, #tpu.memory_space<vmem>>, %arg2: memref<27x1x256xf32, #tpu.memory_space<vmem>>, %arg3: memref<64x64xf32, #tpu.memory_space<vmem>>, %arg4: memref<64x1xf32, #tpu.memory_space<vmem>>, %arg5: memref<16x432xf32, #tpu.memory_space<vmem>>, %arg6: memref<16x1xf32, #tpu.memory_space<vmem>>, %arg7: memref<16x432xf32, #tpu.memory_space<vmem>>, %arg8: memref<16x1xf32, #tpu.memory_space<vmem>>, %arg9: memref<16x432xf32, #tpu.memory_space<vmem>>, %arg10: memref<16x1xf32, #tpu.memory_space<vmem>>, %arg11: memref<64x64xf32, #tpu.memory_space<vmem>>, %arg12: memref<64x1xf32, #tpu.memory_space<vmem>>, %arg13: memref<64x64xf32, #tpu.memory_space<vmem>>, %arg14: memref<64x1xf32, #tpu.memory_space<vmem>>, %arg15: memref<64x64xf32, #tpu.memory_space<vmem>>, %arg16: memref<64x1xf32, #tpu.memory_space<vmem>>, %arg17: memref<64x64xf32, #tpu.memory_space<vmem>>, %arg18: memref<64x1xf32, #tpu.memory_space<vmem>>, %arg19: memref<64x64xf32, #tpu.memory_space<vmem>>, %arg20: memref<64x1xf32, #tpu.memory_space<vmem>>, %arg21: memref<64x128xf32, #tpu.memory_space<vmem>>, %arg22: memref<64x1xf32, #tpu.memory_space<vmem>>, %arg23: memref<1x64x256xf32, #tpu.memory_space<vmem>>) attributes {dimension_semantics = [#tpu.dimension_semantics<parallel>], iteration_bounds = array<i64: 2>, scalar_prefetch = 0 : i64, scratch_operands = 0 : i64, tpu.core_type = #tpu.core_type<tc>, window_params = [{transform_indices = @transform_0, window_bounds = array<i64: 1, 64, 256>}, {pipeline_mode = #tpu.pipeline_mode<synchronous>, transform_indices = @transform_1, window_bounds = array<i64: 27, 1, 256>}, {pipeline_mode = #tpu.pipeline_mode<synchronous>, transform_indices = @transform_2, window_bounds = array<i64: 64, 64>}, {pipeline_mode = #tpu.pipeline_mode<synchronous>, transform_indices = @transform_3, window_bounds = array<i64: 64, 1>}, {pipeline_mode = #tpu.pipeline_mode<synchronous>, transform_indices = @transform_4, window_bounds = array<i64: 16, 432>}, {pipeline_mode = #tpu.pipeline_mode<synchronous>, transform_indices = @transform_5, window_bounds = array<i64: 16, 1>}, {pipeline_mode = #tpu.pipeline_mode<synchronous>, transform_indices = @transform_6, window_bounds = array<i64: 16, 432>}, {pipeline_mode = #tpu.pipeline_mode<synchronous>, transform_indices = @transform_7, window_bounds = array<i64: 16, 1>}, {pipeline_mode = #tpu.pipeline_mode<synchronous>, transform_indices = @transform_8, window_bounds = array<i64: 16, 432>}, {pipeline_mode = #tpu.pipeline_mode<synchronous>, transform_indices = @transform_9, window_bounds = array<i64: 16, 1>}, {pipeline_mode = #tpu.pipeline_mode<synchronous>, transform_indices = @transform_10, window_bounds = array<i64: 64, 64>}, {pipeline_mode = #tpu.pipeline_mode<synchronous>, transform_indices = @transform_11, window_bounds = array<i64: 64, 1>}, {pipeline_mode = #tpu.pipeline_mode<synchronous>, transform_indices = @transform_12, window_bounds = array<i64: 64, 64>}, {pipeline_mode = #tpu.pipeline_mode<synchronous>, transform_indices = @transform_13, window_bounds = array<i64: 64, 1>}, {pipeline_mode = #tpu.pipeline_mode<synchronous>, transform_indices = @transform_14, window_bounds = array<i64: 64, 64>}, {pipeline_mode = #tpu.pipeline_mode<synchronous>, transform_indices = @transform_15, window_bounds = array<i64: 64, 1>}, {pipeline_mode = #tpu.pipeline_mode<synchronous>, transform_indices = @transform_16, window_bounds = array<i64: 64, 64>}, {pipeline_mode = #tpu.pipeline_mode<synchronous>, transform_indices = @transform_17, window_bounds = array<i64: 64, 1>}, {pipeline_mode = #tpu.pipeline_mode<synchronous>, transform_indices = @transform_18, window_bounds = array<i64: 64, 64>}, {pipeline_mode = #tpu.pipeline_mode<synchronous>, transform_indices = @transform_19, window_bounds = array<i64: 64, 1>}, {pipeline_mode = #tpu.pipeline_mode<synchronous>, transform_indices = @transform_20, window_bounds = array<i64: 64, 128>}, {pipeline_mode = #tpu.pipeline_mode<synchronous>, transform_indices = @transform_21, window_bounds = array<i64: 64, 1>}, {transform_indices = @transform_22, window_bounds = array<i64: 1, 64, 256>}]} {
    %c0 = arith.constant 0 : index
    %c0_0 = arith.constant 0 : index
    %c0_1 = arith.constant 0 : index
    %0 = vector.load %arg1[%c0, %c0_0, %c0_1] : memref<1x64x256xf32, #tpu.memory_space<vmem>>, vector<1x64x256xf32>
    %1 = vector.shape_cast %0 : vector<1x64x256xf32> to vector<64x256xf32>
    %c0_2 = arith.constant 0 : index
    %c0_3 = arith.constant 0 : index
    %2 = vector.load %arg3[%c0_2, %c0_3] : memref<64x64xf32, #tpu.memory_space<vmem>>, vector<64x64xf32>
    %cst = arith.constant dense<0.000000e+00> : vector<64x256xf32>
    %3 = tpu.matmul %2, %1, %cst {dimension_numbers = #tpu.dot_dimension_numbers<[1], [0], [0], [1], [0, 0, 1, 1], [], []>} : vector<64x64xf32>, vector<64x256xf32>, vector<64x256xf32> -> vector<64x256xf32>
    %c0_4 = arith.constant 0 : index
    %c0_5 = arith.constant 0 : index
    %4 = vector.load %arg4[%c0_4, %c0_5] : memref<64x1xf32, #tpu.memory_space<vmem>>, vector<64x1xf32>
    %5 = vector.broadcast %4 : vector<64x1xf32> to vector<64x256xf32>
    %6 = arith.addf %3, %5 : vector<64x256xf32>
    %cst_6 = arith.constant 0.000000e+00 : f32
    %7 = vector.broadcast %cst_6 : f32 to vector<64x256xf32>
    %8 = arith.maximumf %6, %7 : vector<64x256xf32>
    %9 = vector.extract_strided_slice %8 {offsets = [0, 0], sizes = [16, 256], strides = [1, 1]} : vector<64x256xf32> to vector<16x256xf32>
    %10 = vector.extract_strided_slice %8 {offsets = [16, 0], sizes = [16, 256], strides = [1, 1]} : vector<64x256xf32> to vector<16x256xf32>
    %11 = vector.extract_strided_slice %8 {offsets = [32, 0], sizes = [16, 256], strides = [1, 1]} : vector<64x256xf32> to vector<16x256xf32>
    %12 = vector.extract_strided_slice %8 {offsets = [48, 0], sizes = [16, 256], strides = [1, 1]} : vector<64x256xf32> to vector<16x256xf32>
    %c73_i32 = arith.constant 73 : i32
    %13 = tpu.dynamic_rotate %10 by %c73_i32 dim 1 : vector<16x256xf32>, i32 -> vector<16x256xf32>
    %c0_7 = arith.constant 0 : index
    %c0_8 = arith.constant 0 : index
    %c0_9 = arith.constant 0 : index
    %14 = vector.load %arg2[%c0_7, %c0_8, %c0_9] : memref<27x1x256xf32, #tpu.memory_space<vmem>>, vector<1x1x256xf32>
    %15 = vector.shape_cast %14 : vector<1x1x256xf32> to vector<1x256xf32>
    %16 = vector.broadcast %15 : vector<1x256xf32> to vector<16x256xf32>
    %17 = arith.mulf %13, %16 : vector<16x256xf32>
    %c72_i32 = arith.constant 72 : i32
    %18 = tpu.dynamic_rotate %10 by %c72_i32 dim 1 : vector<16x256xf32>, i32 -> vector<16x256xf32>
    %c1 = arith.constant 1 : index
    %c0_10 = arith.constant 0 : index
    %c0_11 = arith.constant 0 : index
    %19 = vector.load %arg2[%c1, %c0_10, %c0_11] : memref<27x1x256xf32, #tpu.memory_space<vmem>>, vector<1x1x256xf32>
    %20 = vector.shape_cast %19 : vector<1x1x256xf32> to vector<1x256xf32>
    %21 = vector.broadcast %20 : vector<1x256xf32> to vector<16x256xf32>
    %22 = arith.mulf %18, %21 : vector<16x256xf32>
    %c71_i32 = arith.constant 71 : i32
    %23 = tpu.dynamic_rotate %10 by %c71_i32 dim 1 : vector<16x256xf32>, i32 -> vector<16x256xf32>
    %c2 = arith.constant 2 : index
    %c0_12 = arith.constant 0 : index
    %c0_13 = arith.constant 0 : index
    %24 = vector.load %arg2[%c2, %c0_12, %c0_13] : memref<27x1x256xf32, #tpu.memory_space<vmem>>, vector<1x1x256xf32>
    %25 = vector.shape_cast %24 : vector<1x1x256xf32> to vector<1x256xf32>
    %26 = vector.broadcast %25 : vector<1x256xf32> to vector<16x256xf32>
    %27 = arith.mulf %23, %26 : vector<16x256xf32>
    %c65_i32 = arith.constant 65 : i32
    %28 = tpu.dynamic_rotate %10 by %c65_i32 dim 1 : vector<16x256xf32>, i32 -> vector<16x256xf32>
    %c3 = arith.constant 3 : index
    %c0_14 = arith.constant 0 : index
    %c0_15 = arith.constant 0 : index
    %29 = vector.load %arg2[%c3, %c0_14, %c0_15] : memref<27x1x256xf32, #tpu.memory_space<vmem>>, vector<1x1x256xf32>
    %30 = vector.shape_cast %29 : vector<1x1x256xf32> to vector<1x256xf32>
    %31 = vector.broadcast %30 : vector<1x256xf32> to vector<16x256xf32>
    %32 = arith.mulf %28, %31 : vector<16x256xf32>
    %c64_i32 = arith.constant 64 : i32
    %33 = tpu.dynamic_rotate %10 by %c64_i32 dim 1 : vector<16x256xf32>, i32 -> vector<16x256xf32>
    %c4 = arith.constant 4 : index
    %c0_16 = arith.constant 0 : index
    %c0_17 = arith.constant 0 : index
    %34 = vector.load %arg2[%c4, %c0_16, %c0_17] : memref<27x1x256xf32, #tpu.memory_space<vmem>>, vector<1x1x256xf32>
    %35 = vector.shape_cast %34 : vector<1x1x256xf32> to vector<1x256xf32>
    %36 = vector.broadcast %35 : vector<1x256xf32> to vector<16x256xf32>
    %37 = arith.mulf %33, %36 : vector<16x256xf32>
    %c63_i32 = arith.constant 63 : i32
    %38 = tpu.dynamic_rotate %10 by %c63_i32 dim 1 : vector<16x256xf32>, i32 -> vector<16x256xf32>
    %c5 = arith.constant 5 : index
    %c0_18 = arith.constant 0 : index
    %c0_19 = arith.constant 0 : index
    %39 = vector.load %arg2[%c5, %c0_18, %c0_19] : memref<27x1x256xf32, #tpu.memory_space<vmem>>, vector<1x1x256xf32>
    %40 = vector.shape_cast %39 : vector<1x1x256xf32> to vector<1x256xf32>
    %41 = vector.broadcast %40 : vector<1x256xf32> to vector<16x256xf32>
    %42 = arith.mulf %38, %41 : vector<16x256xf32>
    %c57_i32 = arith.constant 57 : i32
    %43 = tpu.dynamic_rotate %10 by %c57_i32 dim 1 : vector<16x256xf32>, i32 -> vector<16x256xf32>
    %c6 = arith.constant 6 : index
    %c0_20 = arith.constant 0 : index
    %c0_21 = arith.constant 0 : index
    %44 = vector.load %arg2[%c6, %c0_20, %c0_21] : memref<27x1x256xf32, #tpu.memory_space<vmem>>, vector<1x1x256xf32>
    %45 = vector.shape_cast %44 : vector<1x1x256xf32> to vector<1x256xf32>
    %46 = vector.broadcast %45 : vector<1x256xf32> to vector<16x256xf32>
    %47 = arith.mulf %43, %46 : vector<16x256xf32>
    %c56_i32 = arith.constant 56 : i32
    %48 = tpu.dynamic_rotate %10 by %c56_i32 dim 1 : vector<16x256xf32>, i32 -> vector<16x256xf32>
    %c7 = arith.constant 7 : index
    %c0_22 = arith.constant 0 : index
    %c0_23 = arith.constant 0 : index
    %49 = vector.load %arg2[%c7, %c0_22, %c0_23] : memref<27x1x256xf32, #tpu.memory_space<vmem>>, vector<1x1x256xf32>
    %50 = vector.shape_cast %49 : vector<1x1x256xf32> to vector<1x256xf32>
    %51 = vector.broadcast %50 : vector<1x256xf32> to vector<16x256xf32>
    %52 = arith.mulf %48, %51 : vector<16x256xf32>
    %c55_i32 = arith.constant 55 : i32
    %53 = tpu.dynamic_rotate %10 by %c55_i32 dim 1 : vector<16x256xf32>, i32 -> vector<16x256xf32>
    %c8 = arith.constant 8 : index
    %c0_24 = arith.constant 0 : index
    %c0_25 = arith.constant 0 : index
    %54 = vector.load %arg2[%c8, %c0_24, %c0_25] : memref<27x1x256xf32, #tpu.memory_space<vmem>>, vector<1x1x256xf32>
    %55 = vector.shape_cast %54 : vector<1x1x256xf32> to vector<1x256xf32>
    %56 = vector.broadcast %55 : vector<1x256xf32> to vector<16x256xf32>
    %57 = arith.mulf %53, %56 : vector<16x256xf32>
    %c9_i32 = arith.constant 9 : i32
    %58 = tpu.dynamic_rotate %10 by %c9_i32 dim 1 : vector<16x256xf32>, i32 -> vector<16x256xf32>
    %c9 = arith.constant 9 : index
    %c0_26 = arith.constant 0 : index
    %c0_27 = arith.constant 0 : index
    %59 = vector.load %arg2[%c9, %c0_26, %c0_27] : memref<27x1x256xf32, #tpu.memory_space<vmem>>, vector<1x1x256xf32>
    %60 = vector.shape_cast %59 : vector<1x1x256xf32> to vector<1x256xf32>
    %61 = vector.broadcast %60 : vector<1x256xf32> to vector<16x256xf32>
    %62 = arith.mulf %58, %61 : vector<16x256xf32>
    %c8_i32 = arith.constant 8 : i32
    %63 = tpu.dynamic_rotate %10 by %c8_i32 dim 1 : vector<16x256xf32>, i32 -> vector<16x256xf32>
    %c10 = arith.constant 10 : index
    %c0_28 = arith.constant 0 : index
    %c0_29 = arith.constant 0 : index
    %64 = vector.load %arg2[%c10, %c0_28, %c0_29] : memref<27x1x256xf32, #tpu.memory_space<vmem>>, vector<1x1x256xf32>
    %65 = vector.shape_cast %64 : vector<1x1x256xf32> to vector<1x256xf32>
    %66 = vector.broadcast %65 : vector<1x256xf32> to vector<16x256xf32>
    %67 = arith.mulf %63, %66 : vector<16x256xf32>
    %c7_i32 = arith.constant 7 : i32
    %68 = tpu.dynamic_rotate %10 by %c7_i32 dim 1 : vector<16x256xf32>, i32 -> vector<16x256xf32>
    %c11 = arith.constant 11 : index
    %c0_30 = arith.constant 0 : index
    %c0_31 = arith.constant 0 : index
    %69 = vector.load %arg2[%c11, %c0_30, %c0_31] : memref<27x1x256xf32, #tpu.memory_space<vmem>>, vector<1x1x256xf32>
    %70 = vector.shape_cast %69 : vector<1x1x256xf32> to vector<1x256xf32>
    %71 = vector.broadcast %70 : vector<1x256xf32> to vector<16x256xf32>
    %72 = arith.mulf %68, %71 : vector<16x256xf32>
    %c1_i32 = arith.constant 1 : i32
    %73 = tpu.dynamic_rotate %10 by %c1_i32 dim 1 : vector<16x256xf32>, i32 -> vector<16x256xf32>
    %c12 = arith.constant 12 : index
    %c0_32 = arith.constant 0 : index
    %c0_33 = arith.constant 0 : index
    %74 = vector.load %arg2[%c12, %c0_32, %c0_33] : memref<27x1x256xf32, #tpu.memory_space<vmem>>, vector<1x1x256xf32>
    %75 = vector.shape_cast %74 : vector<1x1x256xf32> to vector<1x256xf32>
    %76 = vector.broadcast %75 : vector<1x256xf32> to vector<16x256xf32>
    %77 = arith.mulf %73, %76 : vector<16x256xf32>
    %c13 = arith.constant 13 : index
    %c0_34 = arith.constant 0 : index
    %c0_35 = arith.constant 0 : index
    %78 = vector.load %arg2[%c13, %c0_34, %c0_35] : memref<27x1x256xf32, #tpu.memory_space<vmem>>, vector<1x1x256xf32>
    %79 = vector.shape_cast %78 : vector<1x1x256xf32> to vector<1x256xf32>
    %80 = vector.broadcast %79 : vector<1x256xf32> to vector<16x256xf32>
    %81 = arith.mulf %10, %80 : vector<16x256xf32>
    %c255_i32 = arith.constant 255 : i32
    %82 = tpu.dynamic_rotate %10 by %c255_i32 dim 1 : vector<16x256xf32>, i32 -> vector<16x256xf32>
    %c14 = arith.constant 14 : index
    %c0_36 = arith.constant 0 : index
    %c0_37 = arith.constant 0 : index
    %83 = vector.load %arg2[%c14, %c0_36, %c0_37] : memref<27x1x256xf32, #tpu.memory_space<vmem>>, vector<1x1x256xf32>
    %84 = vector.shape_cast %83 : vector<1x1x256xf32> to vector<1x256xf32>
    %85 = vector.broadcast %84 : vector<1x256xf32> to vector<16x256xf32>
    %86 = arith.mulf %82, %85 : vector<16x256xf32>
    %c249_i32 = arith.constant 249 : i32
    %87 = tpu.dynamic_rotate %10 by %c249_i32 dim 1 : vector<16x256xf32>, i32 -> vector<16x256xf32>
    %c15 = arith.constant 15 : index
    %c0_38 = arith.constant 0 : index
    %c0_39 = arith.constant 0 : index
    %88 = vector.load %arg2[%c15, %c0_38, %c0_39] : memref<27x1x256xf32, #tpu.memory_space<vmem>>, vector<1x1x256xf32>
    %89 = vector.shape_cast %88 : vector<1x1x256xf32> to vector<1x256xf32>
    %90 = vector.broadcast %89 : vector<1x256xf32> to vector<16x256xf32>
    %91 = arith.mulf %87, %90 : vector<16x256xf32>
    %c248_i32 = arith.constant 248 : i32
    %92 = tpu.dynamic_rotate %10 by %c248_i32 dim 1 : vector<16x256xf32>, i32 -> vector<16x256xf32>
    %c16 = arith.constant 16 : index
    %c0_40 = arith.constant 0 : index
    %c0_41 = arith.constant 0 : index
    %93 = vector.load %arg2[%c16, %c0_40, %c0_41] : memref<27x1x256xf32, #tpu.memory_space<vmem>>, vector<1x1x256xf32>
    %94 = vector.shape_cast %93 : vector<1x1x256xf32> to vector<1x256xf32>
    %95 = vector.broadcast %94 : vector<1x256xf32> to vector<16x256xf32>
    %96 = arith.mulf %92, %95 : vector<16x256xf32>
    %c247_i32 = arith.constant 247 : i32
    %97 = tpu.dynamic_rotate %10 by %c247_i32 dim 1 : vector<16x256xf32>, i32 -> vector<16x256xf32>
    %c17 = arith.constant 17 : index
    %c0_42 = arith.constant 0 : index
    %c0_43 = arith.constant 0 : index
    %98 = vector.load %arg2[%c17, %c0_42, %c0_43] : memref<27x1x256xf32, #tpu.memory_space<vmem>>, vector<1x1x256xf32>
    %99 = vector.shape_cast %98 : vector<1x1x256xf32> to vector<1x256xf32>
    %100 = vector.broadcast %99 : vector<1x256xf32> to vector<16x256xf32>
    %101 = arith.mulf %97, %100 : vector<16x256xf32>
    %c201_i32 = arith.constant 201 : i32
    %102 = tpu.dynamic_rotate %10 by %c201_i32 dim 1 : vector<16x256xf32>, i32 -> vector<16x256xf32>
    %c18 = arith.constant 18 : index
    %c0_44 = arith.constant 0 : index
    %c0_45 = arith.constant 0 : index
    %103 = vector.load %arg2[%c18, %c0_44, %c0_45] : memref<27x1x256xf32, #tpu.memory_space<vmem>>, vector<1x1x256xf32>
    %104 = vector.shape_cast %103 : vector<1x1x256xf32> to vector<1x256xf32>
    %105 = vector.broadcast %104 : vector<1x256xf32> to vector<16x256xf32>
    %106 = arith.mulf %102, %105 : vector<16x256xf32>
    %c200_i32 = arith.constant 200 : i32
    %107 = tpu.dynamic_rotate %10 by %c200_i32 dim 1 : vector<16x256xf32>, i32 -> vector<16x256xf32>
    %c19 = arith.constant 19 : index
    %c0_46 = arith.constant 0 : index
    %c0_47 = arith.constant 0 : index
    %108 = vector.load %arg2[%c19, %c0_46, %c0_47] : memref<27x1x256xf32, #tpu.memory_space<vmem>>, vector<1x1x256xf32>
    %109 = vector.shape_cast %108 : vector<1x1x256xf32> to vector<1x256xf32>
    %110 = vector.broadcast %109 : vector<1x256xf32> to vector<16x256xf32>
    %111 = arith.mulf %107, %110 : vector<16x256xf32>
    %c199_i32 = arith.constant 199 : i32
    %112 = tpu.dynamic_rotate %10 by %c199_i32 dim 1 : vector<16x256xf32>, i32 -> vector<16x256xf32>
    %c20 = arith.constant 20 : index
    %c0_48 = arith.constant 0 : index
    %c0_49 = arith.constant 0 : index
    %113 = vector.load %arg2[%c20, %c0_48, %c0_49] : memref<27x1x256xf32, #tpu.memory_space<vmem>>, vector<1x1x256xf32>
    %114 = vector.shape_cast %113 : vector<1x1x256xf32> to vector<1x256xf32>
    %115 = vector.broadcast %114 : vector<1x256xf32> to vector<16x256xf32>
    %116 = arith.mulf %112, %115 : vector<16x256xf32>
    %c193_i32 = arith.constant 193 : i32
    %117 = tpu.dynamic_rotate %10 by %c193_i32 dim 1 : vector<16x256xf32>, i32 -> vector<16x256xf32>
    %c21 = arith.constant 21 : index
    %c0_50 = arith.constant 0 : index
    %c0_51 = arith.constant 0 : index
    %118 = vector.load %arg2[%c21, %c0_50, %c0_51] : memref<27x1x256xf32, #tpu.memory_space<vmem>>, vector<1x1x256xf32>
    %119 = vector.shape_cast %118 : vector<1x1x256xf32> to vector<1x256xf32>
    %120 = vector.broadcast %119 : vector<1x256xf32> to vector<16x256xf32>
    %121 = arith.mulf %117, %120 : vector<16x256xf32>
    %c192_i32 = arith.constant 192 : i32
    %122 = tpu.dynamic_rotate %10 by %c192_i32 dim 1 : vector<16x256xf32>, i32 -> vector<16x256xf32>
    %c22 = arith.constant 22 : index
    %c0_52 = arith.constant 0 : index
    %c0_53 = arith.constant 0 : index
    %123 = vector.load %arg2[%c22, %c0_52, %c0_53] : memref<27x1x256xf32, #tpu.memory_space<vmem>>, vector<1x1x256xf32>
    %124 = vector.shape_cast %123 : vector<1x1x256xf32> to vector<1x256xf32>
    %125 = vector.broadcast %124 : vector<1x256xf32> to vector<16x256xf32>
    %126 = arith.mulf %122, %125 : vector<16x256xf32>
    %c191_i32 = arith.constant 191 : i32
    %127 = tpu.dynamic_rotate %10 by %c191_i32 dim 1 : vector<16x256xf32>, i32 -> vector<16x256xf32>
    %c23 = arith.constant 23 : index
    %c0_54 = arith.constant 0 : index
    %c0_55 = arith.constant 0 : index
    %128 = vector.load %arg2[%c23, %c0_54, %c0_55] : memref<27x1x256xf32, #tpu.memory_space<vmem>>, vector<1x1x256xf32>
    %129 = vector.shape_cast %128 : vector<1x1x256xf32> to vector<1x256xf32>
    %130 = vector.broadcast %129 : vector<1x256xf32> to vector<16x256xf32>
    %131 = arith.mulf %127, %130 : vector<16x256xf32>
    %c185_i32 = arith.constant 185 : i32
    %132 = tpu.dynamic_rotate %10 by %c185_i32 dim 1 : vector<16x256xf32>, i32 -> vector<16x256xf32>
    %c24 = arith.constant 24 : index
    %c0_56 = arith.constant 0 : index
    %c0_57 = arith.constant 0 : index
    %133 = vector.load %arg2[%c24, %c0_56, %c0_57] : memref<27x1x256xf32, #tpu.memory_space<vmem>>, vector<1x1x256xf32>
    %134 = vector.shape_cast %133 : vector<1x1x256xf32> to vector<1x256xf32>
    %135 = vector.broadcast %134 : vector<1x256xf32> to vector<16x256xf32>
    %136 = arith.mulf %132, %135 : vector<16x256xf32>
    %c184_i32 = arith.constant 184 : i32
    %137 = tpu.dynamic_rotate %10 by %c184_i32 dim 1 : vector<16x256xf32>, i32 -> vector<16x256xf32>
    %c25 = arith.constant 25 : index
    %c0_58 = arith.constant 0 : index
    %c0_59 = arith.constant 0 : index
    %138 = vector.load %arg2[%c25, %c0_58, %c0_59] : memref<27x1x256xf32, #tpu.memory_space<vmem>>, vector<1x1x256xf32>
    %139 = vector.shape_cast %138 : vector<1x1x256xf32> to vector<1x256xf32>
    %140 = vector.broadcast %139 : vector<1x256xf32> to vector<16x256xf32>
    %141 = arith.mulf %137, %140 : vector<16x256xf32>
    %c183_i32 = arith.constant 183 : i32
    %142 = tpu.dynamic_rotate %10 by %c183_i32 dim 1 : vector<16x256xf32>, i32 -> vector<16x256xf32>
    %c26 = arith.constant 26 : index
    %c0_60 = arith.constant 0 : index
    %c0_61 = arith.constant 0 : index
    %143 = vector.load %arg2[%c26, %c0_60, %c0_61] : memref<27x1x256xf32, #tpu.memory_space<vmem>>, vector<1x1x256xf32>
    %144 = vector.shape_cast %143 : vector<1x1x256xf32> to vector<1x256xf32>
    %145 = vector.broadcast %144 : vector<1x256xf32> to vector<16x256xf32>
    %146 = arith.mulf %142, %145 : vector<16x256xf32>
    %147 = tpu.concatenate %17, %22, %27, %32, %37, %42, %47, %52, %57, %62, %67, %72, %77, %81, %86, %91 in 0 : vector<16x256xf32>, vector<16x256xf32>, vector<16x256xf32>, vector<16x256xf32>, vector<16x256xf32>, vector<16x256xf32>, vector<16x256xf32>, vector<16x256xf32>, vector<16x256xf32>, vector<16x256xf32>, vector<16x256xf32>, vector<16x256xf32>, vector<16x256xf32>, vector<16x256xf32>, vector<16x256xf32>, vector<16x256xf32> -> vector<256x256xf32>
    %148 = tpu.concatenate %96, %101, %106, %111, %116, %121, %126, %131, %136, %141, %146 in 0 : vector<16x256xf32>, vector<16x256xf32>, vector<16x256xf32>, vector<16x256xf32>, vector<16x256xf32>, vector<16x256xf32>, vector<16x256xf32>, vector<16x256xf32>, vector<16x256xf32>, vector<16x256xf32>, vector<16x256xf32> -> vector<176x256xf32>
    %149 = tpu.concatenate %147, %148 in 0 : vector<256x256xf32>, vector<176x256xf32> -> vector<432x256xf32>
    %c0_62 = arith.constant 0 : index
    %c0_63 = arith.constant 0 : index
    %150 = vector.load %arg5[%c0_62, %c0_63] : memref<16x432xf32, #tpu.memory_space<vmem>>, vector<16x432xf32>
    %cst_64 = arith.constant dense<0.000000e+00> : vector<16x256xf32>
    %151 = tpu.matmul %150, %149, %cst_64 {dimension_numbers = #tpu.dot_dimension_numbers<[1], [0], [0], [1], [0, 0, 1, 1], [], []>} : vector<16x432xf32>, vector<432x256xf32>, vector<16x256xf32> -> vector<16x256xf32>
    %c0_65 = arith.constant 0 : index
    %c0_66 = arith.constant 0 : index
    %152 = vector.load %arg6[%c0_65, %c0_66] : memref<16x1xf32, #tpu.memory_space<vmem>>, vector<16x1xf32>
    %153 = vector.broadcast %152 : vector<16x1xf32> to vector<16x256xf32>
    %154 = arith.addf %151, %153 : vector<16x256xf32>
    %cst_67 = arith.constant 0.000000e+00 : f32
    %155 = vector.broadcast %cst_67 : f32 to vector<16x256xf32>
    %156 = arith.maximumf %154, %155 : vector<16x256xf32>
    %157 = arith.addf %11, %156 : vector<16x256xf32>
    %c73_i32_68 = arith.constant 73 : i32
    %158 = tpu.dynamic_rotate %157 by %c73_i32_68 dim 1 : vector<16x256xf32>, i32 -> vector<16x256xf32>
    %c0_69 = arith.constant 0 : index
    %c0_70 = arith.constant 0 : index
    %c0_71 = arith.constant 0 : index
    %159 = vector.load %arg2[%c0_69, %c0_70, %c0_71] : memref<27x1x256xf32, #tpu.memory_space<vmem>>, vector<1x1x256xf32>
    %160 = vector.shape_cast %159 : vector<1x1x256xf32> to vector<1x256xf32>
    %161 = vector.broadcast %160 : vector<1x256xf32> to vector<16x256xf32>
    %162 = arith.mulf %158, %161 : vector<16x256xf32>
    %c72_i32_72 = arith.constant 72 : i32
    %163 = tpu.dynamic_rotate %157 by %c72_i32_72 dim 1 : vector<16x256xf32>, i32 -> vector<16x256xf32>
    %c1_73 = arith.constant 1 : index
    %c0_74 = arith.constant 0 : index
    %c0_75 = arith.constant 0 : index
    %164 = vector.load %arg2[%c1_73, %c0_74, %c0_75] : memref<27x1x256xf32, #tpu.memory_space<vmem>>, vector<1x1x256xf32>
    %165 = vector.shape_cast %164 : vector<1x1x256xf32> to vector<1x256xf32>
    %166 = vector.broadcast %165 : vector<1x256xf32> to vector<16x256xf32>
    %167 = arith.mulf %163, %166 : vector<16x256xf32>
    %c71_i32_76 = arith.constant 71 : i32
    %168 = tpu.dynamic_rotate %157 by %c71_i32_76 dim 1 : vector<16x256xf32>, i32 -> vector<16x256xf32>
    %c2_77 = arith.constant 2 : index
    %c0_78 = arith.constant 0 : index
    %c0_79 = arith.constant 0 : index
    %169 = vector.load %arg2[%c2_77, %c0_78, %c0_79] : memref<27x1x256xf32, #tpu.memory_space<vmem>>, vector<1x1x256xf32>
    %170 = vector.shape_cast %169 : vector<1x1x256xf32> to vector<1x256xf32>
    %171 = vector.broadcast %170 : vector<1x256xf32> to vector<16x256xf32>
    %172 = arith.mulf %168, %171 : vector<16x256xf32>
    %c65_i32_80 = arith.constant 65 : i32
    %173 = tpu.dynamic_rotate %157 by %c65_i32_80 dim 1 : vector<16x256xf32>, i32 -> vector<16x256xf32>
    %c3_81 = arith.constant 3 : index
    %c0_82 = arith.constant 0 : index
    %c0_83 = arith.constant 0 : index
    %174 = vector.load %arg2[%c3_81, %c0_82, %c0_83] : memref<27x1x256xf32, #tpu.memory_space<vmem>>, vector<1x1x256xf32>
    %175 = vector.shape_cast %174 : vector<1x1x256xf32> to vector<1x256xf32>
    %176 = vector.broadcast %175 : vector<1x256xf32> to vector<16x256xf32>
    %177 = arith.mulf %173, %176 : vector<16x256xf32>
    %c64_i32_84 = arith.constant 64 : i32
    %178 = tpu.dynamic_rotate %157 by %c64_i32_84 dim 1 : vector<16x256xf32>, i32 -> vector<16x256xf32>
    %c4_85 = arith.constant 4 : index
    %c0_86 = arith.constant 0 : index
    %c0_87 = arith.constant 0 : index
    %179 = vector.load %arg2[%c4_85, %c0_86, %c0_87] : memref<27x1x256xf32, #tpu.memory_space<vmem>>, vector<1x1x256xf32>
    %180 = vector.shape_cast %179 : vector<1x1x256xf32> to vector<1x256xf32>
    %181 = vector.broadcast %180 : vector<1x256xf32> to vector<16x256xf32>
    %182 = arith.mulf %178, %181 : vector<16x256xf32>
    %c63_i32_88 = arith.constant 63 : i32
    %183 = tpu.dynamic_rotate %157 by %c63_i32_88 dim 1 : vector<16x256xf32>, i32 -> vector<16x256xf32>
    %c5_89 = arith.constant 5 : index
    %c0_90 = arith.constant 0 : index
    %c0_91 = arith.constant 0 : index
    %184 = vector.load %arg2[%c5_89, %c0_90, %c0_91] : memref<27x1x256xf32, #tpu.memory_space<vmem>>, vector<1x1x256xf32>
    %185 = vector.shape_cast %184 : vector<1x1x256xf32> to vector<1x256xf32>
    %186 = vector.broadcast %185 : vector<1x256xf32> to vector<16x256xf32>
    %187 = arith.mulf %183, %186 : vector<16x256xf32>
    %c57_i32_92 = arith.constant 57 : i32
    %188 = tpu.dynamic_rotate %157 by %c57_i32_92 dim 1 : vector<16x256xf32>, i32 -> vector<16x256xf32>
    %c6_93 = arith.constant 6 : index
    %c0_94 = arith.constant 0 : index
    %c0_95 = arith.constant 0 : index
    %189 = vector.load %arg2[%c6_93, %c0_94, %c0_95] : memref<27x1x256xf32, #tpu.memory_space<vmem>>, vector<1x1x256xf32>
    %190 = vector.shape_cast %189 : vector<1x1x256xf32> to vector<1x256xf32>
    %191 = vector.broadcast %190 : vector<1x256xf32> to vector<16x256xf32>
    %192 = arith.mulf %188, %191 : vector<16x256xf32>
    %c56_i32_96 = arith.constant 56 : i32
    %193 = tpu.dynamic_rotate %157 by %c56_i32_96 dim 1 : vector<16x256xf32>, i32 -> vector<16x256xf32>
    %c7_97 = arith.constant 7 : index
    %c0_98 = arith.constant 0 : index
    %c0_99 = arith.constant 0 : index
    %194 = vector.load %arg2[%c7_97, %c0_98, %c0_99] : memref<27x1x256xf32, #tpu.memory_space<vmem>>, vector<1x1x256xf32>
    %195 = vector.shape_cast %194 : vector<1x1x256xf32> to vector<1x256xf32>
    %196 = vector.broadcast %195 : vector<1x256xf32> to vector<16x256xf32>
    %197 = arith.mulf %193, %196 : vector<16x256xf32>
    %c55_i32_100 = arith.constant 55 : i32
    %198 = tpu.dynamic_rotate %157 by %c55_i32_100 dim 1 : vector<16x256xf32>, i32 -> vector<16x256xf32>
    %c8_101 = arith.constant 8 : index
    %c0_102 = arith.constant 0 : index
    %c0_103 = arith.constant 0 : index
    %199 = vector.load %arg2[%c8_101, %c0_102, %c0_103] : memref<27x1x256xf32, #tpu.memory_space<vmem>>, vector<1x1x256xf32>
    %200 = vector.shape_cast %199 : vector<1x1x256xf32> to vector<1x256xf32>
    %201 = vector.broadcast %200 : vector<1x256xf32> to vector<16x256xf32>
    %202 = arith.mulf %198, %201 : vector<16x256xf32>
    %c9_i32_104 = arith.constant 9 : i32
    %203 = tpu.dynamic_rotate %157 by %c9_i32_104 dim 1 : vector<16x256xf32>, i32 -> vector<16x256xf32>
    %c9_105 = arith.constant 9 : index
    %c0_106 = arith.constant 0 : index
    %c0_107 = arith.constant 0 : index
    %204 = vector.load %arg2[%c9_105, %c0_106, %c0_107] : memref<27x1x256xf32, #tpu.memory_space<vmem>>, vector<1x1x256xf32>
    %205 = vector.shape_cast %204 : vector<1x1x256xf32> to vector<1x256xf32>
    %206 = vector.broadcast %205 : vector<1x256xf32> to vector<16x256xf32>
    %207 = arith.mulf %203, %206 : vector<16x256xf32>
    %c8_i32_108 = arith.constant 8 : i32
    %208 = tpu.dynamic_rotate %157 by %c8_i32_108 dim 1 : vector<16x256xf32>, i32 -> vector<16x256xf32>
    %c10_109 = arith.constant 10 : index
    %c0_110 = arith.constant 0 : index
    %c0_111 = arith.constant 0 : index
    %209 = vector.load %arg2[%c10_109, %c0_110, %c0_111] : memref<27x1x256xf32, #tpu.memory_space<vmem>>, vector<1x1x256xf32>
    %210 = vector.shape_cast %209 : vector<1x1x256xf32> to vector<1x256xf32>
    %211 = vector.broadcast %210 : vector<1x256xf32> to vector<16x256xf32>
    %212 = arith.mulf %208, %211 : vector<16x256xf32>
    %c7_i32_112 = arith.constant 7 : i32
    %213 = tpu.dynamic_rotate %157 by %c7_i32_112 dim 1 : vector<16x256xf32>, i32 -> vector<16x256xf32>
    %c11_113 = arith.constant 11 : index
    %c0_114 = arith.constant 0 : index
    %c0_115 = arith.constant 0 : index
    %214 = vector.load %arg2[%c11_113, %c0_114, %c0_115] : memref<27x1x256xf32, #tpu.memory_space<vmem>>, vector<1x1x256xf32>
    %215 = vector.shape_cast %214 : vector<1x1x256xf32> to vector<1x256xf32>
    %216 = vector.broadcast %215 : vector<1x256xf32> to vector<16x256xf32>
    %217 = arith.mulf %213, %216 : vector<16x256xf32>
    %c1_i32_116 = arith.constant 1 : i32
    %218 = tpu.dynamic_rotate %157 by %c1_i32_116 dim 1 : vector<16x256xf32>, i32 -> vector<16x256xf32>
    %c12_117 = arith.constant 12 : index
    %c0_118 = arith.constant 0 : index
    %c0_119 = arith.constant 0 : index
    %219 = vector.load %arg2[%c12_117, %c0_118, %c0_119] : memref<27x1x256xf32, #tpu.memory_space<vmem>>, vector<1x1x256xf32>
    %220 = vector.shape_cast %219 : vector<1x1x256xf32> to vector<1x256xf32>
    %221 = vector.broadcast %220 : vector<1x256xf32> to vector<16x256xf32>
    %222 = arith.mulf %218, %221 : vector<16x256xf32>
    %c13_120 = arith.constant 13 : index
    %c0_121 = arith.constant 0 : index
    %c0_122 = arith.constant 0 : index
    %223 = vector.load %arg2[%c13_120, %c0_121, %c0_122] : memref<27x1x256xf32, #tpu.memory_space<vmem>>, vector<1x1x256xf32>
    %224 = vector.shape_cast %223 : vector<1x1x256xf32> to vector<1x256xf32>
    %225 = vector.broadcast %224 : vector<1x256xf32> to vector<16x256xf32>
    %226 = arith.mulf %157, %225 : vector<16x256xf32>
    %c255_i32_123 = arith.constant 255 : i32
    %227 = tpu.dynamic_rotate %157 by %c255_i32_123 dim 1 : vector<16x256xf32>, i32 -> vector<16x256xf32>
    %c14_124 = arith.constant 14 : index
    %c0_125 = arith.constant 0 : index
    %c0_126 = arith.constant 0 : index
    %228 = vector.load %arg2[%c14_124, %c0_125, %c0_126] : memref<27x1x256xf32, #tpu.memory_space<vmem>>, vector<1x1x256xf32>
    %229 = vector.shape_cast %228 : vector<1x1x256xf32> to vector<1x256xf32>
    %230 = vector.broadcast %229 : vector<1x256xf32> to vector<16x256xf32>
    %231 = arith.mulf %227, %230 : vector<16x256xf32>
    %c249_i32_127 = arith.constant 249 : i32
    %232 = tpu.dynamic_rotate %157 by %c249_i32_127 dim 1 : vector<16x256xf32>, i32 -> vector<16x256xf32>
    %c15_128 = arith.constant 15 : index
    %c0_129 = arith.constant 0 : index
    %c0_130 = arith.constant 0 : index
    %233 = vector.load %arg2[%c15_128, %c0_129, %c0_130] : memref<27x1x256xf32, #tpu.memory_space<vmem>>, vector<1x1x256xf32>
    %234 = vector.shape_cast %233 : vector<1x1x256xf32> to vector<1x256xf32>
    %235 = vector.broadcast %234 : vector<1x256xf32> to vector<16x256xf32>
    %236 = arith.mulf %232, %235 : vector<16x256xf32>
    %c248_i32_131 = arith.constant 248 : i32
    %237 = tpu.dynamic_rotate %157 by %c248_i32_131 dim 1 : vector<16x256xf32>, i32 -> vector<16x256xf32>
    %c16_132 = arith.constant 16 : index
    %c0_133 = arith.constant 0 : index
    %c0_134 = arith.constant 0 : index
    %238 = vector.load %arg2[%c16_132, %c0_133, %c0_134] : memref<27x1x256xf32, #tpu.memory_space<vmem>>, vector<1x1x256xf32>
    %239 = vector.shape_cast %238 : vector<1x1x256xf32> to vector<1x256xf32>
    %240 = vector.broadcast %239 : vector<1x256xf32> to vector<16x256xf32>
    %241 = arith.mulf %237, %240 : vector<16x256xf32>
    %c247_i32_135 = arith.constant 247 : i32
    %242 = tpu.dynamic_rotate %157 by %c247_i32_135 dim 1 : vector<16x256xf32>, i32 -> vector<16x256xf32>
    %c17_136 = arith.constant 17 : index
    %c0_137 = arith.constant 0 : index
    %c0_138 = arith.constant 0 : index
    %243 = vector.load %arg2[%c17_136, %c0_137, %c0_138] : memref<27x1x256xf32, #tpu.memory_space<vmem>>, vector<1x1x256xf32>
    %244 = vector.shape_cast %243 : vector<1x1x256xf32> to vector<1x256xf32>
    %245 = vector.broadcast %244 : vector<1x256xf32> to vector<16x256xf32>
    %246 = arith.mulf %242, %245 : vector<16x256xf32>
    %c201_i32_139 = arith.constant 201 : i32
    %247 = tpu.dynamic_rotate %157 by %c201_i32_139 dim 1 : vector<16x256xf32>, i32 -> vector<16x256xf32>
    %c18_140 = arith.constant 18 : index
    %c0_141 = arith.constant 0 : index
    %c0_142 = arith.constant 0 : index
    %248 = vector.load %arg2[%c18_140, %c0_141, %c0_142] : memref<27x1x256xf32, #tpu.memory_space<vmem>>, vector<1x1x256xf32>
    %249 = vector.shape_cast %248 : vector<1x1x256xf32> to vector<1x256xf32>
    %250 = vector.broadcast %249 : vector<1x256xf32> to vector<16x256xf32>
    %251 = arith.mulf %247, %250 : vector<16x256xf32>
    %c200_i32_143 = arith.constant 200 : i32
    %252 = tpu.dynamic_rotate %157 by %c200_i32_143 dim 1 : vector<16x256xf32>, i32 -> vector<16x256xf32>
    %c19_144 = arith.constant 19 : index
    %c0_145 = arith.constant 0 : index
    %c0_146 = arith.constant 0 : index
    %253 = vector.load %arg2[%c19_144, %c0_145, %c0_146] : memref<27x1x256xf32, #tpu.memory_space<vmem>>, vector<1x1x256xf32>
    %254 = vector.shape_cast %253 : vector<1x1x256xf32> to vector<1x256xf32>
    %255 = vector.broadcast %254 : vector<1x256xf32> to vector<16x256xf32>
    %256 = arith.mulf %252, %255 : vector<16x256xf32>
    %c199_i32_147 = arith.constant 199 : i32
    %257 = tpu.dynamic_rotate %157 by %c199_i32_147 dim 1 : vector<16x256xf32>, i32 -> vector<16x256xf32>
    %c20_148 = arith.constant 20 : index
    %c0_149 = arith.constant 0 : index
    %c0_150 = arith.constant 0 : index
    %258 = vector.load %arg2[%c20_148, %c0_149, %c0_150] : memref<27x1x256xf32, #tpu.memory_space<vmem>>, vector<1x1x256xf32>
    %259 = vector.shape_cast %258 : vector<1x1x256xf32> to vector<1x256xf32>
    %260 = vector.broadcast %259 : vector<1x256xf32> to vector<16x256xf32>
    %261 = arith.mulf %257, %260 : vector<16x256xf32>
    %c193_i32_151 = arith.constant 193 : i32
    %262 = tpu.dynamic_rotate %157 by %c193_i32_151 dim 1 : vector<16x256xf32>, i32 -> vector<16x256xf32>
    %c21_152 = arith.constant 21 : index
    %c0_153 = arith.constant 0 : index
    %c0_154 = arith.constant 0 : index
    %263 = vector.load %arg2[%c21_152, %c0_153, %c0_154] : memref<27x1x256xf32, #tpu.memory_space<vmem>>, vector<1x1x256xf32>
    %264 = vector.shape_cast %263 : vector<1x1x256xf32> to vector<1x256xf32>
    %265 = vector.broadcast %264 : vector<1x256xf32> to vector<16x256xf32>
    %266 = arith.mulf %262, %265 : vector<16x256xf32>
    %c192_i32_155 = arith.constant 192 : i32
    %267 = tpu.dynamic_rotate %157 by %c192_i32_155 dim 1 : vector<16x256xf32>, i32 -> vector<16x256xf32>
    %c22_156 = arith.constant 22 : index
    %c0_157 = arith.constant 0 : index
    %c0_158 = arith.constant 0 : index
    %268 = vector.load %arg2[%c22_156, %c0_157, %c0_158] : memref<27x1x256xf32, #tpu.memory_space<vmem>>, vector<1x1x256xf32>
    %269 = vector.shape_cast %268 : vector<1x1x256xf32> to vector<1x256xf32>
    %270 = vector.broadcast %269 : vector<1x256xf32> to vector<16x256xf32>
    %271 = arith.mulf %267, %270 : vector<16x256xf32>
    %c191_i32_159 = arith.constant 191 : i32
    %272 = tpu.dynamic_rotate %157 by %c191_i32_159 dim 1 : vector<16x256xf32>, i32 -> vector<16x256xf32>
    %c23_160 = arith.constant 23 : index
    %c0_161 = arith.constant 0 : index
    %c0_162 = arith.constant 0 : index
    %273 = vector.load %arg2[%c23_160, %c0_161, %c0_162] : memref<27x1x256xf32, #tpu.memory_space<vmem>>, vector<1x1x256xf32>
    %274 = vector.shape_cast %273 : vector<1x1x256xf32> to vector<1x256xf32>
    %275 = vector.broadcast %274 : vector<1x256xf32> to vector<16x256xf32>
    %276 = arith.mulf %272, %275 : vector<16x256xf32>
    %c185_i32_163 = arith.constant 185 : i32
    %277 = tpu.dynamic_rotate %157 by %c185_i32_163 dim 1 : vector<16x256xf32>, i32 -> vector<16x256xf32>
    %c24_164 = arith.constant 24 : index
    %c0_165 = arith.constant 0 : index
    %c0_166 = arith.constant 0 : index
    %278 = vector.load %arg2[%c24_164, %c0_165, %c0_166] : memref<27x1x256xf32, #tpu.memory_space<vmem>>, vector<1x1x256xf32>
    %279 = vector.shape_cast %278 : vector<1x1x256xf32> to vector<1x256xf32>
    %280 = vector.broadcast %279 : vector<1x256xf32> to vector<16x256xf32>
    %281 = arith.mulf %277, %280 : vector<16x256xf32>
    %c184_i32_167 = arith.constant 184 : i32
    %282 = tpu.dynamic_rotate %157 by %c184_i32_167 dim 1 : vector<16x256xf32>, i32 -> vector<16x256xf32>
    %c25_168 = arith.constant 25 : index
    %c0_169 = arith.constant 0 : index
    %c0_170 = arith.constant 0 : index
    %283 = vector.load %arg2[%c25_168, %c0_169, %c0_170] : memref<27x1x256xf32, #tpu.memory_space<vmem>>, vector<1x1x256xf32>
    %284 = vector.shape_cast %283 : vector<1x1x256xf32> to vector<1x256xf32>
    %285 = vector.broadcast %284 : vector<1x256xf32> to vector<16x256xf32>
    %286 = arith.mulf %282, %285 : vector<16x256xf32>
    %c183_i32_171 = arith.constant 183 : i32
    %287 = tpu.dynamic_rotate %157 by %c183_i32_171 dim 1 : vector<16x256xf32>, i32 -> vector<16x256xf32>
    %c26_172 = arith.constant 26 : index
    %c0_173 = arith.constant 0 : index
    %c0_174 = arith.constant 0 : index
    %288 = vector.load %arg2[%c26_172, %c0_173, %c0_174] : memref<27x1x256xf32, #tpu.memory_space<vmem>>, vector<1x1x256xf32>
    %289 = vector.shape_cast %288 : vector<1x1x256xf32> to vector<1x256xf32>
    %290 = vector.broadcast %289 : vector<1x256xf32> to vector<16x256xf32>
    %291 = arith.mulf %287, %290 : vector<16x256xf32>
    %292 = tpu.concatenate %162, %167, %172, %177, %182, %187, %192, %197, %202, %207, %212, %217, %222, %226, %231, %236 in 0 : vector<16x256xf32>, vector<16x256xf32>, vector<16x256xf32>, vector<16x256xf32>, vector<16x256xf32>, vector<16x256xf32>, vector<16x256xf32>, vector<16x256xf32>, vector<16x256xf32>, vector<16x256xf32>, vector<16x256xf32>, vector<16x256xf32>, vector<16x256xf32>, vector<16x256xf32>, vector<16x256xf32>, vector<16x256xf32> -> vector<256x256xf32>
    %293 = tpu.concatenate %241, %246, %251, %256, %261, %266, %271, %276, %281, %286, %291 in 0 : vector<16x256xf32>, vector<16x256xf32>, vector<16x256xf32>, vector<16x256xf32>, vector<16x256xf32>, vector<16x256xf32>, vector<16x256xf32>, vector<16x256xf32>, vector<16x256xf32>, vector<16x256xf32>, vector<16x256xf32> -> vector<176x256xf32>
    %294 = tpu.concatenate %292, %293 in 0 : vector<256x256xf32>, vector<176x256xf32> -> vector<432x256xf32>
    %c0_175 = arith.constant 0 : index
    %c0_176 = arith.constant 0 : index
    %295 = vector.load %arg7[%c0_175, %c0_176] : memref<16x432xf32, #tpu.memory_space<vmem>>, vector<16x432xf32>
    %cst_177 = arith.constant dense<0.000000e+00> : vector<16x256xf32>
    %296 = tpu.matmul %295, %294, %cst_177 {dimension_numbers = #tpu.dot_dimension_numbers<[1], [0], [0], [1], [0, 0, 1, 1], [], []>} : vector<16x432xf32>, vector<432x256xf32>, vector<16x256xf32> -> vector<16x256xf32>
    %c0_178 = arith.constant 0 : index
    %c0_179 = arith.constant 0 : index
    %297 = vector.load %arg8[%c0_178, %c0_179] : memref<16x1xf32, #tpu.memory_space<vmem>>, vector<16x1xf32>
    %298 = vector.broadcast %297 : vector<16x1xf32> to vector<16x256xf32>
    %299 = arith.addf %296, %298 : vector<16x256xf32>
    %cst_180 = arith.constant 0.000000e+00 : f32
    %300 = vector.broadcast %cst_180 : f32 to vector<16x256xf32>
    %301 = arith.maximumf %299, %300 : vector<16x256xf32>
    %302 = arith.addf %12, %301 : vector<16x256xf32>
    %c73_i32_181 = arith.constant 73 : i32
    %303 = tpu.dynamic_rotate %302 by %c73_i32_181 dim 1 : vector<16x256xf32>, i32 -> vector<16x256xf32>
    %c0_182 = arith.constant 0 : index
    %c0_183 = arith.constant 0 : index
    %c0_184 = arith.constant 0 : index
    %304 = vector.load %arg2[%c0_182, %c0_183, %c0_184] : memref<27x1x256xf32, #tpu.memory_space<vmem>>, vector<1x1x256xf32>
    %305 = vector.shape_cast %304 : vector<1x1x256xf32> to vector<1x256xf32>
    %306 = vector.broadcast %305 : vector<1x256xf32> to vector<16x256xf32>
    %307 = arith.mulf %303, %306 : vector<16x256xf32>
    %c72_i32_185 = arith.constant 72 : i32
    %308 = tpu.dynamic_rotate %302 by %c72_i32_185 dim 1 : vector<16x256xf32>, i32 -> vector<16x256xf32>
    %c1_186 = arith.constant 1 : index
    %c0_187 = arith.constant 0 : index
    %c0_188 = arith.constant 0 : index
    %309 = vector.load %arg2[%c1_186, %c0_187, %c0_188] : memref<27x1x256xf32, #tpu.memory_space<vmem>>, vector<1x1x256xf32>
    %310 = vector.shape_cast %309 : vector<1x1x256xf32> to vector<1x256xf32>
    %311 = vector.broadcast %310 : vector<1x256xf32> to vector<16x256xf32>
    %312 = arith.mulf %308, %311 : vector<16x256xf32>
    %c71_i32_189 = arith.constant 71 : i32
    %313 = tpu.dynamic_rotate %302 by %c71_i32_189 dim 1 : vector<16x256xf32>, i32 -> vector<16x256xf32>
    %c2_190 = arith.constant 2 : index
    %c0_191 = arith.constant 0 : index
    %c0_192 = arith.constant 0 : index
    %314 = vector.load %arg2[%c2_190, %c0_191, %c0_192] : memref<27x1x256xf32, #tpu.memory_space<vmem>>, vector<1x1x256xf32>
    %315 = vector.shape_cast %314 : vector<1x1x256xf32> to vector<1x256xf32>
    %316 = vector.broadcast %315 : vector<1x256xf32> to vector<16x256xf32>
    %317 = arith.mulf %313, %316 : vector<16x256xf32>
    %c65_i32_193 = arith.constant 65 : i32
    %318 = tpu.dynamic_rotate %302 by %c65_i32_193 dim 1 : vector<16x256xf32>, i32 -> vector<16x256xf32>
    %c3_194 = arith.constant 3 : index
    %c0_195 = arith.constant 0 : index
    %c0_196 = arith.constant 0 : index
    %319 = vector.load %arg2[%c3_194, %c0_195, %c0_196] : memref<27x1x256xf32, #tpu.memory_space<vmem>>, vector<1x1x256xf32>
    %320 = vector.shape_cast %319 : vector<1x1x256xf32> to vector<1x256xf32>
    %321 = vector.broadcast %320 : vector<1x256xf32> to vector<16x256xf32>
    %322 = arith.mulf %318, %321 : vector<16x256xf32>
    %c64_i32_197 = arith.constant 64 : i32
    %323 = tpu.dynamic_rotate %302 by %c64_i32_197 dim 1 : vector<16x256xf32>, i32 -> vector<16x256xf32>
    %c4_198 = arith.constant 4 : index
    %c0_199 = arith.constant 0 : index
    %c0_200 = arith.constant 0 : index
    %324 = vector.load %arg2[%c4_198, %c0_199, %c0_200] : memref<27x1x256xf32, #tpu.memory_space<vmem>>, vector<1x1x256xf32>
    %325 = vector.shape_cast %324 : vector<1x1x256xf32> to vector<1x256xf32>
    %326 = vector.broadcast %325 : vector<1x256xf32> to vector<16x256xf32>
    %327 = arith.mulf %323, %326 : vector<16x256xf32>
    %c63_i32_201 = arith.constant 63 : i32
    %328 = tpu.dynamic_rotate %302 by %c63_i32_201 dim 1 : vector<16x256xf32>, i32 -> vector<16x256xf32>
    %c5_202 = arith.constant 5 : index
    %c0_203 = arith.constant 0 : index
    %c0_204 = arith.constant 0 : index
    %329 = vector.load %arg2[%c5_202, %c0_203, %c0_204] : memref<27x1x256xf32, #tpu.memory_space<vmem>>, vector<1x1x256xf32>
    %330 = vector.shape_cast %329 : vector<1x1x256xf32> to vector<1x256xf32>
    %331 = vector.broadcast %330 : vector<1x256xf32> to vector<16x256xf32>
    %332 = arith.mulf %328, %331 : vector<16x256xf32>
    %c57_i32_205 = arith.constant 57 : i32
    %333 = tpu.dynamic_rotate %302 by %c57_i32_205 dim 1 : vector<16x256xf32>, i32 -> vector<16x256xf32>
    %c6_206 = arith.constant 6 : index
    %c0_207 = arith.constant 0 : index
    %c0_208 = arith.constant 0 : index
    %334 = vector.load %arg2[%c6_206, %c0_207, %c0_208] : memref<27x1x256xf32, #tpu.memory_space<vmem>>, vector<1x1x256xf32>
    %335 = vector.shape_cast %334 : vector<1x1x256xf32> to vector<1x256xf32>
    %336 = vector.broadcast %335 : vector<1x256xf32> to vector<16x256xf32>
    %337 = arith.mulf %333, %336 : vector<16x256xf32>
    %c56_i32_209 = arith.constant 56 : i32
    %338 = tpu.dynamic_rotate %302 by %c56_i32_209 dim 1 : vector<16x256xf32>, i32 -> vector<16x256xf32>
    %c7_210 = arith.constant 7 : index
    %c0_211 = arith.constant 0 : index
    %c0_212 = arith.constant 0 : index
    %339 = vector.load %arg2[%c7_210, %c0_211, %c0_212] : memref<27x1x256xf32, #tpu.memory_space<vmem>>, vector<1x1x256xf32>
    %340 = vector.shape_cast %339 : vector<1x1x256xf32> to vector<1x256xf32>
    %341 = vector.broadcast %340 : vector<1x256xf32> to vector<16x256xf32>
    %342 = arith.mulf %338, %341 : vector<16x256xf32>
    %c55_i32_213 = arith.constant 55 : i32
    %343 = tpu.dynamic_rotate %302 by %c55_i32_213 dim 1 : vector<16x256xf32>, i32 -> vector<16x256xf32>
    %c8_214 = arith.constant 8 : index
    %c0_215 = arith.constant 0 : index
    %c0_216 = arith.constant 0 : index
    %344 = vector.load %arg2[%c8_214, %c0_215, %c0_216] : memref<27x1x256xf32, #tpu.memory_space<vmem>>, vector<1x1x256xf32>
    %345 = vector.shape_cast %344 : vector<1x1x256xf32> to vector<1x256xf32>
    %346 = vector.broadcast %345 : vector<1x256xf32> to vector<16x256xf32>
    %347 = arith.mulf %343, %346 : vector<16x256xf32>
    %c9_i32_217 = arith.constant 9 : i32
    %348 = tpu.dynamic_rotate %302 by %c9_i32_217 dim 1 : vector<16x256xf32>, i32 -> vector<16x256xf32>
    %c9_218 = arith.constant 9 : index
    %c0_219 = arith.constant 0 : index
    %c0_220 = arith.constant 0 : index
    %349 = vector.load %arg2[%c9_218, %c0_219, %c0_220] : memref<27x1x256xf32, #tpu.memory_space<vmem>>, vector<1x1x256xf32>
    %350 = vector.shape_cast %349 : vector<1x1x256xf32> to vector<1x256xf32>
    %351 = vector.broadcast %350 : vector<1x256xf32> to vector<16x256xf32>
    %352 = arith.mulf %348, %351 : vector<16x256xf32>
    %c8_i32_221 = arith.constant 8 : i32
    %353 = tpu.dynamic_rotate %302 by %c8_i32_221 dim 1 : vector<16x256xf32>, i32 -> vector<16x256xf32>
    %c10_222 = arith.constant 10 : index
    %c0_223 = arith.constant 0 : index
    %c0_224 = arith.constant 0 : index
    %354 = vector.load %arg2[%c10_222, %c0_223, %c0_224] : memref<27x1x256xf32, #tpu.memory_space<vmem>>, vector<1x1x256xf32>
    %355 = vector.shape_cast %354 : vector<1x1x256xf32> to vector<1x256xf32>
    %356 = vector.broadcast %355 : vector<1x256xf32> to vector<16x256xf32>
    %357 = arith.mulf %353, %356 : vector<16x256xf32>
    %c7_i32_225 = arith.constant 7 : i32
    %358 = tpu.dynamic_rotate %302 by %c7_i32_225 dim 1 : vector<16x256xf32>, i32 -> vector<16x256xf32>
    %c11_226 = arith.constant 11 : index
    %c0_227 = arith.constant 0 : index
    %c0_228 = arith.constant 0 : index
    %359 = vector.load %arg2[%c11_226, %c0_227, %c0_228] : memref<27x1x256xf32, #tpu.memory_space<vmem>>, vector<1x1x256xf32>
    %360 = vector.shape_cast %359 : vector<1x1x256xf32> to vector<1x256xf32>
    %361 = vector.broadcast %360 : vector<1x256xf32> to vector<16x256xf32>
    %362 = arith.mulf %358, %361 : vector<16x256xf32>
    %c1_i32_229 = arith.constant 1 : i32
    %363 = tpu.dynamic_rotate %302 by %c1_i32_229 dim 1 : vector<16x256xf32>, i32 -> vector<16x256xf32>
    %c12_230 = arith.constant 12 : index
    %c0_231 = arith.constant 0 : index
    %c0_232 = arith.constant 0 : index
    %364 = vector.load %arg2[%c12_230, %c0_231, %c0_232] : memref<27x1x256xf32, #tpu.memory_space<vmem>>, vector<1x1x256xf32>
    %365 = vector.shape_cast %364 : vector<1x1x256xf32> to vector<1x256xf32>
    %366 = vector.broadcast %365 : vector<1x256xf32> to vector<16x256xf32>
    %367 = arith.mulf %363, %366 : vector<16x256xf32>
    %c13_233 = arith.constant 13 : index
    %c0_234 = arith.constant 0 : index
    %c0_235 = arith.constant 0 : index
    %368 = vector.load %arg2[%c13_233, %c0_234, %c0_235] : memref<27x1x256xf32, #tpu.memory_space<vmem>>, vector<1x1x256xf32>
    %369 = vector.shape_cast %368 : vector<1x1x256xf32> to vector<1x256xf32>
    %370 = vector.broadcast %369 : vector<1x256xf32> to vector<16x256xf32>
    %371 = arith.mulf %302, %370 : vector<16x256xf32>
    %c255_i32_236 = arith.constant 255 : i32
    %372 = tpu.dynamic_rotate %302 by %c255_i32_236 dim 1 : vector<16x256xf32>, i32 -> vector<16x256xf32>
    %c14_237 = arith.constant 14 : index
    %c0_238 = arith.constant 0 : index
    %c0_239 = arith.constant 0 : index
    %373 = vector.load %arg2[%c14_237, %c0_238, %c0_239] : memref<27x1x256xf32, #tpu.memory_space<vmem>>, vector<1x1x256xf32>
    %374 = vector.shape_cast %373 : vector<1x1x256xf32> to vector<1x256xf32>
    %375 = vector.broadcast %374 : vector<1x256xf32> to vector<16x256xf32>
    %376 = arith.mulf %372, %375 : vector<16x256xf32>
    %c249_i32_240 = arith.constant 249 : i32
    %377 = tpu.dynamic_rotate %302 by %c249_i32_240 dim 1 : vector<16x256xf32>, i32 -> vector<16x256xf32>
    %c15_241 = arith.constant 15 : index
    %c0_242 = arith.constant 0 : index
    %c0_243 = arith.constant 0 : index
    %378 = vector.load %arg2[%c15_241, %c0_242, %c0_243] : memref<27x1x256xf32, #tpu.memory_space<vmem>>, vector<1x1x256xf32>
    %379 = vector.shape_cast %378 : vector<1x1x256xf32> to vector<1x256xf32>
    %380 = vector.broadcast %379 : vector<1x256xf32> to vector<16x256xf32>
    %381 = arith.mulf %377, %380 : vector<16x256xf32>
    %c248_i32_244 = arith.constant 248 : i32
    %382 = tpu.dynamic_rotate %302 by %c248_i32_244 dim 1 : vector<16x256xf32>, i32 -> vector<16x256xf32>
    %c16_245 = arith.constant 16 : index
    %c0_246 = arith.constant 0 : index
    %c0_247 = arith.constant 0 : index
    %383 = vector.load %arg2[%c16_245, %c0_246, %c0_247] : memref<27x1x256xf32, #tpu.memory_space<vmem>>, vector<1x1x256xf32>
    %384 = vector.shape_cast %383 : vector<1x1x256xf32> to vector<1x256xf32>
    %385 = vector.broadcast %384 : vector<1x256xf32> to vector<16x256xf32>
    %386 = arith.mulf %382, %385 : vector<16x256xf32>
    %c247_i32_248 = arith.constant 247 : i32
    %387 = tpu.dynamic_rotate %302 by %c247_i32_248 dim 1 : vector<16x256xf32>, i32 -> vector<16x256xf32>
    %c17_249 = arith.constant 17 : index
    %c0_250 = arith.constant 0 : index
    %c0_251 = arith.constant 0 : index
    %388 = vector.load %arg2[%c17_249, %c0_250, %c0_251] : memref<27x1x256xf32, #tpu.memory_space<vmem>>, vector<1x1x256xf32>
    %389 = vector.shape_cast %388 : vector<1x1x256xf32> to vector<1x256xf32>
    %390 = vector.broadcast %389 : vector<1x256xf32> to vector<16x256xf32>
    %391 = arith.mulf %387, %390 : vector<16x256xf32>
    %c201_i32_252 = arith.constant 201 : i32
    %392 = tpu.dynamic_rotate %302 by %c201_i32_252 dim 1 : vector<16x256xf32>, i32 -> vector<16x256xf32>
    %c18_253 = arith.constant 18 : index
    %c0_254 = arith.constant 0 : index
    %c0_255 = arith.constant 0 : index
    %393 = vector.load %arg2[%c18_253, %c0_254, %c0_255] : memref<27x1x256xf32, #tpu.memory_space<vmem>>, vector<1x1x256xf32>
    %394 = vector.shape_cast %393 : vector<1x1x256xf32> to vector<1x256xf32>
    %395 = vector.broadcast %394 : vector<1x256xf32> to vector<16x256xf32>
    %396 = arith.mulf %392, %395 : vector<16x256xf32>
    %c200_i32_256 = arith.constant 200 : i32
    %397 = tpu.dynamic_rotate %302 by %c200_i32_256 dim 1 : vector<16x256xf32>, i32 -> vector<16x256xf32>
    %c19_257 = arith.constant 19 : index
    %c0_258 = arith.constant 0 : index
    %c0_259 = arith.constant 0 : index
    %398 = vector.load %arg2[%c19_257, %c0_258, %c0_259] : memref<27x1x256xf32, #tpu.memory_space<vmem>>, vector<1x1x256xf32>
    %399 = vector.shape_cast %398 : vector<1x1x256xf32> to vector<1x256xf32>
    %400 = vector.broadcast %399 : vector<1x256xf32> to vector<16x256xf32>
    %401 = arith.mulf %397, %400 : vector<16x256xf32>
    %c199_i32_260 = arith.constant 199 : i32
    %402 = tpu.dynamic_rotate %302 by %c199_i32_260 dim 1 : vector<16x256xf32>, i32 -> vector<16x256xf32>
    %c20_261 = arith.constant 20 : index
    %c0_262 = arith.constant 0 : index
    %c0_263 = arith.constant 0 : index
    %403 = vector.load %arg2[%c20_261, %c0_262, %c0_263] : memref<27x1x256xf32, #tpu.memory_space<vmem>>, vector<1x1x256xf32>
    %404 = vector.shape_cast %403 : vector<1x1x256xf32> to vector<1x256xf32>
    %405 = vector.broadcast %404 : vector<1x256xf32> to vector<16x256xf32>
    %406 = arith.mulf %402, %405 : vector<16x256xf32>
    %c193_i32_264 = arith.constant 193 : i32
    %407 = tpu.dynamic_rotate %302 by %c193_i32_264 dim 1 : vector<16x256xf32>, i32 -> vector<16x256xf32>
    %c21_265 = arith.constant 21 : index
    %c0_266 = arith.constant 0 : index
    %c0_267 = arith.constant 0 : index
    %408 = vector.load %arg2[%c21_265, %c0_266, %c0_267] : memref<27x1x256xf32, #tpu.memory_space<vmem>>, vector<1x1x256xf32>
    %409 = vector.shape_cast %408 : vector<1x1x256xf32> to vector<1x256xf32>
    %410 = vector.broadcast %409 : vector<1x256xf32> to vector<16x256xf32>
    %411 = arith.mulf %407, %410 : vector<16x256xf32>
    %c192_i32_268 = arith.constant 192 : i32
    %412 = tpu.dynamic_rotate %302 by %c192_i32_268 dim 1 : vector<16x256xf32>, i32 -> vector<16x256xf32>
    %c22_269 = arith.constant 22 : index
    %c0_270 = arith.constant 0 : index
    %c0_271 = arith.constant 0 : index
    %413 = vector.load %arg2[%c22_269, %c0_270, %c0_271] : memref<27x1x256xf32, #tpu.memory_space<vmem>>, vector<1x1x256xf32>
    %414 = vector.shape_cast %413 : vector<1x1x256xf32> to vector<1x256xf32>
    %415 = vector.broadcast %414 : vector<1x256xf32> to vector<16x256xf32>
    %416 = arith.mulf %412, %415 : vector<16x256xf32>
    %c191_i32_272 = arith.constant 191 : i32
    %417 = tpu.dynamic_rotate %302 by %c191_i32_272 dim 1 : vector<16x256xf32>, i32 -> vector<16x256xf32>
    %c23_273 = arith.constant 23 : index
    %c0_274 = arith.constant 0 : index
    %c0_275 = arith.constant 0 : index
    %418 = vector.load %arg2[%c23_273, %c0_274, %c0_275] : memref<27x1x256xf32, #tpu.memory_space<vmem>>, vector<1x1x256xf32>
    %419 = vector.shape_cast %418 : vector<1x1x256xf32> to vector<1x256xf32>
    %420 = vector.broadcast %419 : vector<1x256xf32> to vector<16x256xf32>
    %421 = arith.mulf %417, %420 : vector<16x256xf32>
    %c185_i32_276 = arith.constant 185 : i32
    %422 = tpu.dynamic_rotate %302 by %c185_i32_276 dim 1 : vector<16x256xf32>, i32 -> vector<16x256xf32>
    %c24_277 = arith.constant 24 : index
    %c0_278 = arith.constant 0 : index
    %c0_279 = arith.constant 0 : index
    %423 = vector.load %arg2[%c24_277, %c0_278, %c0_279] : memref<27x1x256xf32, #tpu.memory_space<vmem>>, vector<1x1x256xf32>
    %424 = vector.shape_cast %423 : vector<1x1x256xf32> to vector<1x256xf32>
    %425 = vector.broadcast %424 : vector<1x256xf32> to vector<16x256xf32>
    %426 = arith.mulf %422, %425 : vector<16x256xf32>
    %c184_i32_280 = arith.constant 184 : i32
    %427 = tpu.dynamic_rotate %302 by %c184_i32_280 dim 1 : vector<16x256xf32>, i32 -> vector<16x256xf32>
    %c25_281 = arith.constant 25 : index
    %c0_282 = arith.constant 0 : index
    %c0_283 = arith.constant 0 : index
    %428 = vector.load %arg2[%c25_281, %c0_282, %c0_283] : memref<27x1x256xf32, #tpu.memory_space<vmem>>, vector<1x1x256xf32>
    %429 = vector.shape_cast %428 : vector<1x1x256xf32> to vector<1x256xf32>
    %430 = vector.broadcast %429 : vector<1x256xf32> to vector<16x256xf32>
    %431 = arith.mulf %427, %430 : vector<16x256xf32>
    %c183_i32_284 = arith.constant 183 : i32
    %432 = tpu.dynamic_rotate %302 by %c183_i32_284 dim 1 : vector<16x256xf32>, i32 -> vector<16x256xf32>
    %c26_285 = arith.constant 26 : index
    %c0_286 = arith.constant 0 : index
    %c0_287 = arith.constant 0 : index
    %433 = vector.load %arg2[%c26_285, %c0_286, %c0_287] : memref<27x1x256xf32, #tpu.memory_space<vmem>>, vector<1x1x256xf32>
    %434 = vector.shape_cast %433 : vector<1x1x256xf32> to vector<1x256xf32>
    %435 = vector.broadcast %434 : vector<1x256xf32> to vector<16x256xf32>
    %436 = arith.mulf %432, %435 : vector<16x256xf32>
    %437 = tpu.concatenate %307, %312, %317, %322, %327, %332, %337, %342, %347, %352, %357, %362, %367, %371, %376, %381 in 0 : vector<16x256xf32>, vector<16x256xf32>, vector<16x256xf32>, vector<16x256xf32>, vector<16x256xf32>, vector<16x256xf32>, vector<16x256xf32>, vector<16x256xf32>, vector<16x256xf32>, vector<16x256xf32>, vector<16x256xf32>, vector<16x256xf32>, vector<16x256xf32>, vector<16x256xf32>, vector<16x256xf32>, vector<16x256xf32> -> vector<256x256xf32>
    %438 = tpu.concatenate %386, %391, %396, %401, %406, %411, %416, %421, %426, %431, %436 in 0 : vector<16x256xf32>, vector<16x256xf32>, vector<16x256xf32>, vector<16x256xf32>, vector<16x256xf32>, vector<16x256xf32>, vector<16x256xf32>, vector<16x256xf32>, vector<16x256xf32>, vector<16x256xf32>, vector<16x256xf32> -> vector<176x256xf32>
    %439 = tpu.concatenate %437, %438 in 0 : vector<256x256xf32>, vector<176x256xf32> -> vector<432x256xf32>
    %c0_288 = arith.constant 0 : index
    %c0_289 = arith.constant 0 : index
    %440 = vector.load %arg9[%c0_288, %c0_289] : memref<16x432xf32, #tpu.memory_space<vmem>>, vector<16x432xf32>
    %cst_290 = arith.constant dense<0.000000e+00> : vector<16x256xf32>
    %441 = tpu.matmul %440, %439, %cst_290 {dimension_numbers = #tpu.dot_dimension_numbers<[1], [0], [0], [1], [0, 0, 1, 1], [], []>} : vector<16x432xf32>, vector<432x256xf32>, vector<16x256xf32> -> vector<16x256xf32>
    %c0_291 = arith.constant 0 : index
    %c0_292 = arith.constant 0 : index
    %442 = vector.load %arg10[%c0_291, %c0_292] : memref<16x1xf32, #tpu.memory_space<vmem>>, vector<16x1xf32>
    %443 = vector.broadcast %442 : vector<16x1xf32> to vector<16x256xf32>
    %444 = arith.addf %441, %443 : vector<16x256xf32>
    %cst_293 = arith.constant 0.000000e+00 : f32
    %445 = vector.broadcast %cst_293 : f32 to vector<16x256xf32>
    %446 = arith.maximumf %444, %445 : vector<16x256xf32>
    %447 = tpu.concatenate %9, %156, %301, %446 in 0 : vector<16x256xf32>, vector<16x256xf32>, vector<16x256xf32>, vector<16x256xf32> -> vector<64x256xf32>
    %c0_294 = arith.constant 0 : index
    %c0_295 = arith.constant 0 : index
    %448 = vector.load %arg11[%c0_294, %c0_295] : memref<64x64xf32, #tpu.memory_space<vmem>>, vector<64x64xf32>
    %cst_296 = arith.constant dense<0.000000e+00> : vector<64x256xf32>
    %449 = tpu.matmul %448, %447, %cst_296 {dimension_numbers = #tpu.dot_dimension_numbers<[1], [0], [0], [1], [0, 0, 1, 1], [], []>} : vector<64x64xf32>, vector<64x256xf32>, vector<64x256xf32> -> vector<64x256xf32>
    %450 = arith.addf %1, %449 : vector<64x256xf32>
    %c0_297 = arith.constant 0 : index
    %c0_298 = arith.constant 0 : index
    %451 = vector.load %arg12[%c0_297, %c0_298] : memref<64x1xf32, #tpu.memory_space<vmem>>, vector<64x1xf32>
    %452 = vector.broadcast %451 : vector<64x1xf32> to vector<64x256xf32>
    %453 = arith.addf %450, %452 : vector<64x256xf32>
    %cst_299 = arith.constant dense<0.000000e+00> : vector<64xf32>
    %454 = vector.multi_reduction <add>, %453, %cst_299 [1] : vector<64x256xf32> to vector<64xf32>
    %455 = vector.shape_cast %454 : vector<64xf32> to vector<64x1xf32>
    %cst_300 = arith.constant 3.906250e-03 : f32
    %456 = vector.broadcast %cst_300 : f32 to vector<64x1xf32>
    %457 = arith.mulf %455, %456 : vector<64x1xf32>
    %c0_301 = arith.constant 0 : index
    %c0_302 = arith.constant 0 : index
    %458 = vector.load %arg13[%c0_301, %c0_302] : memref<64x64xf32, #tpu.memory_space<vmem>>, vector<64x64xf32>
    %cst_303 = arith.constant dense<0.000000e+00> : vector<64x1xf32>
    %459 = tpu.matmul %458, %457, %cst_303 {dimension_numbers = #tpu.dot_dimension_numbers<[1], [0], [0], [1], [0, 0, 1, 1], [], []>} : vector<64x64xf32>, vector<64x1xf32>, vector<64x1xf32> -> vector<64x1xf32>
    %c0_304 = arith.constant 0 : index
    %c0_305 = arith.constant 0 : index
    %460 = vector.load %arg14[%c0_304, %c0_305] : memref<64x1xf32, #tpu.memory_space<vmem>>, vector<64x1xf32>
    %461 = arith.addf %459, %460 : vector<64x1xf32>
    %c0_306 = arith.constant 0 : index
    %c0_307 = arith.constant 0 : index
    %462 = vector.load %arg15[%c0_306, %c0_307] : memref<64x64xf32, #tpu.memory_space<vmem>>, vector<64x64xf32>
    %cst_308 = arith.constant dense<0.000000e+00> : vector<64x1xf32>
    %463 = tpu.matmul %462, %461, %cst_308 {dimension_numbers = #tpu.dot_dimension_numbers<[1], [0], [0], [1], [0, 0, 1, 1], [], []>} : vector<64x64xf32>, vector<64x1xf32>, vector<64x1xf32> -> vector<64x1xf32>
    %c0_309 = arith.constant 0 : index
    %c0_310 = arith.constant 0 : index
    %464 = vector.load %arg16[%c0_309, %c0_310] : memref<64x1xf32, #tpu.memory_space<vmem>>, vector<64x1xf32>
    %465 = arith.addf %463, %464 : vector<64x1xf32>
    %cst_311 = arith.constant dense<0.000000e+00> : vector<64x64xf32>
    %466 = tpu.matmul %453, %453, %cst_311 {dimension_numbers = #tpu.dot_dimension_numbers<[1], [1], [0], [0], [0, 0, 1, 0], [], []>} : vector<64x256xf32>, vector<64x256xf32>, vector<64x64xf32> -> vector<64x64xf32>
    %cst_312 = arith.constant dense<0.000000e+00> : vector<64x64xf32>
    %467 = tpu.matmul %455, %455, %cst_312 {dimension_numbers = #tpu.dot_dimension_numbers<[1], [1], [0], [0], [0, 0, 1, 0], [], []>} : vector<64x1xf32>, vector<64x1xf32>, vector<64x64xf32> -> vector<64x64xf32>
    %cst_313 = arith.constant 3.906250e-03 : f32
    %468 = vector.broadcast %cst_313 : f32 to vector<64x64xf32>
    %469 = arith.mulf %466, %468 : vector<64x64xf32>
    %cst_314 = arith.constant 1.52587891E-5 : f32
    %470 = vector.broadcast %cst_314 : f32 to vector<64x64xf32>
    %471 = arith.mulf %467, %470 : vector<64x64xf32>
    %472 = arith.subf %469, %471 : vector<64x64xf32>
    %473 = tpu.iota {dimensions = array<i32: 0>} : vector<64x64xi32>
    %474 = tpu.iota {dimensions = array<i32: 1>} : vector<64x64xi32>
    %475 = arith.cmpi eq, %473, %474 : vector<64x64xi32>
    %476 = arith.extui %475 : vector<64x64xi1> to vector<64x64xi32>
    %477 = arith.sitofp %476 : vector<64x64xi32> to vector<64x64xf32>
    %cst_315 = arith.constant 3.000000e+00 : f32
    %478 = vector.broadcast %cst_315 : f32 to vector<64x64xf32>
    %479 = arith.mulf %478, %477 : vector<64x64xf32>
    %480 = arith.mulf %472, %477 : vector<64x64xf32>
    %481 = vector.shape_cast %480 : vector<64x64xf32> to vector<1x64x64xf32>
    %cst_316 = arith.constant dense<0.000000e+00> : vector<1xf32>
    %482 = vector.multi_reduction <add>, %481, %cst_316 [1, 2] : vector<1x64x64xf32> to vector<1xf32>
    %483 = vector.shape_cast %482 : vector<1xf32> to vector<1x1x1xf32>
    %484 = vector.extract %483[0, 0, 0] : f32 from vector<1x1x1xf32>
    %cst_317 = arith.constant 9.99999996E-13 : f32
    %485 = arith.addf %484, %cst_317 : f32
    %cst_318 = arith.constant 1.000000e+00 : f32
    %486 = arith.divf %cst_318, %485 : f32
    %487 = vector.broadcast %486 : f32 to vector<64x64xf32>
    %488 = arith.mulf %472, %487 : vector<64x64xf32>
    %489 = arith.subf %479, %488 : vector<64x64xf32>
    %cst_319 = arith.constant 5.000000e-01 : f32
    %490 = vector.broadcast %cst_319 : f32 to vector<64x64xf32>
    %491 = arith.mulf %490, %489 : vector<64x64xf32>
    %cst_320 = arith.constant dense<0.000000e+00> : vector<64x64xf32>
    %492 = tpu.matmul %488, %491, %cst_320 {dimension_numbers = #tpu.dot_dimension_numbers<[1], [0], [0], [1], [0, 0, 1, 1], [], []>} : vector<64x64xf32>, vector<64x64xf32>, vector<64x64xf32> -> vector<64x64xf32>
    %cst_321 = arith.constant dense<0.000000e+00> : vector<64x64xf32>
    %493 = tpu.matmul %491, %492, %cst_321 {dimension_numbers = #tpu.dot_dimension_numbers<[1], [0], [0], [1], [0, 0, 1, 1], [], []>} : vector<64x64xf32>, vector<64x64xf32>, vector<64x64xf32> -> vector<64x64xf32>
    %494 = arith.subf %479, %493 : vector<64x64xf32>
    %cst_322 = arith.constant 5.000000e-01 : f32
    %495 = vector.broadcast %cst_322 : f32 to vector<64x64xf32>
    %496 = arith.mulf %495, %494 : vector<64x64xf32>
    %cst_323 = arith.constant dense<0.000000e+00> : vector<64x64xf32>
    %497 = tpu.matmul %492, %496, %cst_323 {dimension_numbers = #tpu.dot_dimension_numbers<[1], [0], [0], [1], [0, 0, 1, 1], [], []>} : vector<64x64xf32>, vector<64x64xf32>, vector<64x64xf32> -> vector<64x64xf32>
    %cst_324 = arith.constant dense<0.000000e+00> : vector<64x64xf32>
    %498 = tpu.matmul %496, %491, %cst_324 {dimension_numbers = #tpu.dot_dimension_numbers<[1], [0], [0], [1], [0, 0, 1, 1], [], []>} : vector<64x64xf32>, vector<64x64xf32>, vector<64x64xf32> -> vector<64x64xf32>
    %cst_325 = arith.constant dense<0.000000e+00> : vector<64x64xf32>
    %499 = tpu.matmul %498, %497, %cst_325 {dimension_numbers = #tpu.dot_dimension_numbers<[1], [0], [0], [1], [0, 0, 1, 1], [], []>} : vector<64x64xf32>, vector<64x64xf32>, vector<64x64xf32> -> vector<64x64xf32>
    %500 = arith.subf %479, %499 : vector<64x64xf32>
    %cst_326 = arith.constant 5.000000e-01 : f32
    %501 = vector.broadcast %cst_326 : f32 to vector<64x64xf32>
    %502 = arith.mulf %501, %500 : vector<64x64xf32>
    %cst_327 = arith.constant dense<0.000000e+00> : vector<64x64xf32>
    %503 = tpu.matmul %497, %502, %cst_327 {dimension_numbers = #tpu.dot_dimension_numbers<[1], [0], [0], [1], [0, 0, 1, 1], [], []>} : vector<64x64xf32>, vector<64x64xf32>, vector<64x64xf32> -> vector<64x64xf32>
    %cst_328 = arith.constant dense<0.000000e+00> : vector<64x64xf32>
    %504 = tpu.matmul %502, %498, %cst_328 {dimension_numbers = #tpu.dot_dimension_numbers<[1], [0], [0], [1], [0, 0, 1, 1], [], []>} : vector<64x64xf32>, vector<64x64xf32>, vector<64x64xf32> -> vector<64x64xf32>
    %cst_329 = arith.constant dense<0.000000e+00> : vector<64x64xf32>
    %505 = tpu.matmul %504, %503, %cst_329 {dimension_numbers = #tpu.dot_dimension_numbers<[1], [0], [0], [1], [0, 0, 1, 1], [], []>} : vector<64x64xf32>, vector<64x64xf32>, vector<64x64xf32> -> vector<64x64xf32>
    %506 = arith.subf %479, %505 : vector<64x64xf32>
    %cst_330 = arith.constant 5.000000e-01 : f32
    %507 = vector.broadcast %cst_330 : f32 to vector<64x64xf32>
    %508 = arith.mulf %507, %506 : vector<64x64xf32>
    %cst_331 = arith.constant dense<0.000000e+00> : vector<64x64xf32>
    %509 = tpu.matmul %503, %508, %cst_331 {dimension_numbers = #tpu.dot_dimension_numbers<[1], [0], [0], [1], [0, 0, 1, 1], [], []>} : vector<64x64xf32>, vector<64x64xf32>, vector<64x64xf32> -> vector<64x64xf32>
    %cst_332 = arith.constant dense<0.000000e+00> : vector<64x64xf32>
    %510 = tpu.matmul %508, %504, %cst_332 {dimension_numbers = #tpu.dot_dimension_numbers<[1], [0], [0], [1], [0, 0, 1, 1], [], []>} : vector<64x64xf32>, vector<64x64xf32>, vector<64x64xf32> -> vector<64x64xf32>
    %cst_333 = arith.constant dense<0.000000e+00> : vector<64x64xf32>
    %511 = tpu.matmul %510, %509, %cst_333 {dimension_numbers = #tpu.dot_dimension_numbers<[1], [0], [0], [1], [0, 0, 1, 1], [], []>} : vector<64x64xf32>, vector<64x64xf32>, vector<64x64xf32> -> vector<64x64xf32>
    %512 = arith.subf %479, %511 : vector<64x64xf32>
    %cst_334 = arith.constant dense<0.000000e+00> : vector<64x64xf32>
    %513 = tpu.matmul %509, %512, %cst_334 {dimension_numbers = #tpu.dot_dimension_numbers<[1], [0], [0], [1], [0, 0, 1, 1], [], []>} : vector<64x64xf32>, vector<64x64xf32>, vector<64x64xf32> -> vector<64x64xf32>
    %cst_335 = arith.constant 5.000000e-01 : f32
    %514 = vector.broadcast %cst_335 : f32 to vector<64x64xf32>
    %515 = arith.mulf %514, %513 : vector<64x64xf32>
    %516 = math.sqrt %485 : f32
    %517 = vector.broadcast %516 : f32 to vector<64x64xf32>
    %518 = arith.mulf %515, %517 : vector<64x64xf32>
    %cst_336 = arith.constant 1.000000e+00 : f32
    %519 = vector.broadcast %cst_336 : f32 to vector<64x1xf32>
    %cst_337 = arith.constant dense<0.000000e+00> : vector<64x1xf32>
    %520 = tpu.matmul %518, %519, %cst_337 {dimension_numbers = #tpu.dot_dimension_numbers<[0], [0], [1], [1], [0, 1, 1, 1], [], []>} : vector<64x64xf32>, vector<64x1xf32>, vector<64x1xf32> -> vector<64x1xf32>
    %cst_338 = arith.constant 1.562500e-02 : f32
    %521 = vector.broadcast %cst_338 : f32 to vector<64x1xf32>
    %522 = arith.mulf %520, %521 : vector<64x1xf32>
    %c0_339 = arith.constant 0 : index
    %c0_340 = arith.constant 0 : index
    %523 = vector.load %arg17[%c0_339, %c0_340] : memref<64x64xf32, #tpu.memory_space<vmem>>, vector<64x64xf32>
    %cst_341 = arith.constant dense<0.000000e+00> : vector<64x1xf32>
    %524 = tpu.matmul %523, %522, %cst_341 {dimension_numbers = #tpu.dot_dimension_numbers<[1], [0], [0], [1], [0, 0, 1, 1], [], []>} : vector<64x64xf32>, vector<64x1xf32>, vector<64x1xf32> -> vector<64x1xf32>
    %c0_342 = arith.constant 0 : index
    %c0_343 = arith.constant 0 : index
    %525 = vector.load %arg18[%c0_342, %c0_343] : memref<64x1xf32, #tpu.memory_space<vmem>>, vector<64x1xf32>
    %526 = arith.addf %524, %525 : vector<64x1xf32>
    %c0_344 = arith.constant 0 : index
    %c0_345 = arith.constant 0 : index
    %527 = vector.load %arg19[%c0_344, %c0_345] : memref<64x64xf32, #tpu.memory_space<vmem>>, vector<64x64xf32>
    %cst_346 = arith.constant dense<0.000000e+00> : vector<64x1xf32>
    %528 = tpu.matmul %527, %526, %cst_346 {dimension_numbers = #tpu.dot_dimension_numbers<[1], [0], [0], [1], [0, 0, 1, 1], [], []>} : vector<64x64xf32>, vector<64x1xf32>, vector<64x1xf32> -> vector<64x1xf32>
    %c0_347 = arith.constant 0 : index
    %c0_348 = arith.constant 0 : index
    %529 = vector.load %arg20[%c0_347, %c0_348] : memref<64x1xf32, #tpu.memory_space<vmem>>, vector<64x1xf32>
    %530 = arith.addf %528, %529 : vector<64x1xf32>
    %531 = tpu.concatenate %465, %530 in 0 : vector<64x1xf32>, vector<64x1xf32> -> vector<128x1xf32>
    %c0_349 = arith.constant 0 : index
    %c0_350 = arith.constant 0 : index
    %532 = vector.load %arg21[%c0_349, %c0_350] : memref<64x128xf32, #tpu.memory_space<vmem>>, vector<64x128xf32>
    %cst_351 = arith.constant dense<0.000000e+00> : vector<64x1xf32>
    %533 = tpu.matmul %532, %531, %cst_351 {dimension_numbers = #tpu.dot_dimension_numbers<[1], [0], [0], [1], [0, 0, 1, 1], [], []>} : vector<64x128xf32>, vector<128x1xf32>, vector<64x1xf32> -> vector<64x1xf32>
    %c0_352 = arith.constant 0 : index
    %c0_353 = arith.constant 0 : index
    %534 = vector.load %arg22[%c0_352, %c0_353] : memref<64x1xf32, #tpu.memory_space<vmem>>, vector<64x1xf32>
    %535 = arith.addf %533, %534 : vector<64x1xf32>
    %536 = arith.negf %535 : vector<64x1xf32>
    %537 = math.exp %536 : vector<64x1xf32>
    %cst_354 = arith.constant 1.000000e+00 : f32
    %538 = vector.broadcast %cst_354 : f32 to vector<64x1xf32>
    %539 = arith.addf %538, %537 : vector<64x1xf32>
    %540 = arith.divf %538, %539 : vector<64x1xf32>
    %541 = vector.broadcast %540 : vector<64x1xf32> to vector<64x256xf32>
    %542 = arith.mulf %453, %541 : vector<64x256xf32>
    %c0_355 = arith.constant 0 : index
    %c0_356 = arith.constant 0 : index
    %c0_357 = arith.constant 0 : index
    %543 = vector.load %arg23[%c0_355, %c0_356, %c0_357] : memref<1x64x256xf32, #tpu.memory_space<vmem>>, vector<1x64x256xf32>
    %544 = vector.shape_cast %543 : vector<1x64x256xf32> to vector<64x256xf32>
    %545 = vector.shape_cast %542 : vector<64x256xf32> to vector<1x64x256xf32>
    tpu.vector_store %arg23[%c0_355, %c0_356, %c0_357], %545 {strides = array<i32>} : memref<1x64x256xf32, #tpu.memory_space<vmem>>, vector<1x64x256xf32>,
    return
  }
  func.func @transform_0(%arg0: i32) -> (i32, i32, i32) {
    %c0_i32 = arith.constant 0 : i32
    %c0_i32_0 = arith.constant 0 : i32
    %c0_i32_1 = arith.constant 0 : i32
    return %arg0, %c0_i32, %c0_i32_0 : i32, i32, i32
  }
  func.func @transform_1(%arg0: i32) -> (i32, i32, i32) {
    %c0_i32 = arith.constant 0 : i32
    %c0_i32_0 = arith.constant 0 : i32
    %c0_i32_1 = arith.constant 0 : i32
    %c0_i32_2 = arith.constant 0 : i32
    return %c0_i32, %c0_i32_0, %c0_i32_1 : i32, i32, i32
  }
  func.func @transform_2(%arg0: i32) -> (i32, i32) {
    %c0_i32 = arith.constant 0 : i32
    %c0_i32_0 = arith.constant 0 : i32
    %c0_i32_1 = arith.constant 0 : i32
    return %c0_i32, %c0_i32_0 : i32, i32
  }
  func.func @transform_3(%arg0: i32) -> (i32, i32) {
    %c0_i32 = arith.constant 0 : i32
    %c0_i32_0 = arith.constant 0 : i32
    %c0_i32_1 = arith.constant 0 : i32
    return %c0_i32, %c0_i32_0 : i32, i32
  }
  func.func @transform_4(%arg0: i32) -> (i32, i32) {
    %c0_i32 = arith.constant 0 : i32
    %c0_i32_0 = arith.constant 0 : i32
    %c0_i32_1 = arith.constant 0 : i32
    return %c0_i32, %c0_i32_0 : i32, i32
  }
  func.func @transform_5(%arg0: i32) -> (i32, i32) {
    %c0_i32 = arith.constant 0 : i32
    %c0_i32_0 = arith.constant 0 : i32
    %c0_i32_1 = arith.constant 0 : i32
    return %c0_i32, %c0_i32_0 : i32, i32
  }
  func.func @transform_6(%arg0: i32) -> (i32, i32) {
    %c0_i32 = arith.constant 0 : i32
    %c0_i32_0 = arith.constant 0 : i32
    %c0_i32_1 = arith.constant 0 : i32
    return %c0_i32, %c0_i32_0 : i32, i32
  }
  func.func @transform_7(%arg0: i32) -> (i32, i32) {
    %c0_i32 = arith.constant 0 : i32
    %c0_i32_0 = arith.constant 0 : i32
    %c0_i32_1 = arith.constant 0 : i32
    return %c0_i32, %c0_i32_0 : i32, i32
  }
  func.func @transform_8(%arg0: i32) -> (i32, i32) {
    %c0_i32 = arith.constant 0 : i32
    %c0_i32_0 = arith.constant 0 : i32
    %c0_i32_1 = arith.constant 0 : i32
    return %c0_i32, %c0_i32_0 : i32, i32
  }
  func.func @transform_9(%arg0: i32) -> (i32, i32) {
    %c0_i32 = arith.constant 0 : i32
    %c0_i32_0 = arith.constant 0 : i32
    %c0_i32_1 = arith.constant 0 : i32
    return %c0_i32, %c0_i32_0 : i32, i32
  }
  func.func @transform_10(%arg0: i32) -> (i32, i32) {
    %c0_i32 = arith.constant 0 : i32
    %c0_i32_0 = arith.constant 0 : i32
    %c0_i32_1 = arith.constant 0 : i32
    return %c0_i32, %c0_i32_0 : i32, i32
  }
  func.func @transform_11(%arg0: i32) -> (i32, i32) {
    %c0_i32 = arith.constant 0 : i32
    %c0_i32_0 = arith.constant 0 : i32
    %c0_i32_1 = arith.constant 0 : i32
    return %c0_i32, %c0_i32_0 : i32, i32
  }
  func.func @transform_12(%arg0: i32) -> (i32, i32) {
    %c0_i32 = arith.constant 0 : i32
    %c0_i32_0 = arith.constant 0 : i32
    %c0_i32_1 = arith.constant 0 : i32
    return %c0_i32, %c0_i32_0 : i32, i32
  }
  func.func @transform_13(%arg0: i32) -> (i32, i32) {
    %c0_i32 = arith.constant 0 : i32
    %c0_i32_0 = arith.constant 0 : i32
    %c0_i32_1 = arith.constant 0 : i32
    return %c0_i32, %c0_i32_0 : i32, i32
  }
  func.func @transform_14(%arg0: i32) -> (i32, i32) {
    %c0_i32 = arith.constant 0 : i32
    %c0_i32_0 = arith.constant 0 : i32
    %c0_i32_1 = arith.constant 0 : i32
    return %c0_i32, %c0_i32_0 : i32, i32
  }
  func.func @transform_15(%arg0: i32) -> (i32, i32) {
    %c0_i32 = arith.constant 0 : i32
    %c0_i32_0 = arith.constant 0 : i32
    %c0_i32_1 = arith.constant 0 : i32
    return %c0_i32, %c0_i32_0 : i32, i32
  }
  func.func @transform_16(%arg0: i32) -> (i32, i32) {
    %c0_i32 = arith.constant 0 : i32
    %c0_i32_0 = arith.constant 0 : i32
    %c0_i32_1 = arith.constant 0 : i32
    return %c0_i32, %c0_i32_0 : i32, i32
  }
  func.func @transform_17(%arg0: i32) -> (i32, i32) {
    %c0_i32 = arith.constant 0 : i32
    %c0_i32_0 = arith.constant 0 : i32
    %c0_i32_1 = arith.constant 0 : i32
    return %c0_i32, %c0_i32_0 : i32, i32
  }
  func.func @transform_18(%arg0: i32) -> (i32, i32) {
    %c0_i32 = arith.constant 0 : i32
    %c0_i32_0 = arith.constant 0 : i32
    %c0_i32_1 = arith.constant 0 : i32
    return %c0_i32, %c0_i32_0 : i32, i32
  }
  func.func @transform_19(%arg0: i32) -> (i32, i32) {
    %c0_i32 = arith.constant 0 : i32
    %c0_i32_0 = arith.constant 0 : i32
    %c0_i32_1 = arith.constant 0 : i32
    return %c0_i32, %c0_i32_0 : i32, i32
  }
  func.func @transform_20(%arg0: i32) -> (i32, i32) {
    %c0_i32 = arith.constant 0 : i32
    %c0_i32_0 = arith.constant 0 : i32
    %c0_i32_1 = arith.constant 0 : i32
    return %c0_i32, %c0_i32_0 : i32, i32
  }
  func.func @transform_21(%arg0: i32) -> (i32, i32) {
    %c0_i32 = arith.constant 0 : i32
    %c0_i32_0 = arith.constant 0 : i32
    %c0_i32_1 = arith.constant 0 : i32
    return %c0_i32, %c0_i32_0 : i32, i32
  }
  func.func @transform_22(%arg0: i32) -> (i32, i32, i32) {
    %c0_i32 = arith.constant 0 : i32
    %c0_i32_0 = arith.constant 0 : i32
    %c0_i32_1 = arith.constant 0 : i32
    return %arg0, %c0_i32, %c0_i32_0 : i32, i32, i32
  }
}

</mosaic_0001>

<llo_original>
// kernel: res2net1_forward.1
$region0: #{res2net1_forward.1}
  #allocation0 [shape = 'u32[]', space=smem, size = 0x4, offset = 0x4, fixed_abs, tag = 'smem constant byte address 0x4 - core index']
  #allocation1 [shape = 'u32[144,128]{1,0:T(1,128)}', space=vmem, size = 0x12000, scoped, tag = 'internal scratch']
  %s0 = inlined_call_operand.hbm [shape: f32[2,64,256], index: 0, kind: input, shape index: {}]
  %s1 = inlined_call_operand.hbm [shape: f32[27,1,256], index: 1, kind: input, shape index: {}]
  %s2 = inlined_call_operand.hbm [shape: f32[64,64], index: 2, kind: input, shape index: {}]
  %s3 = inlined_call_operand.hbm [shape: f32[64,1], index: 3, kind: input, shape index: {}]
  %s4 = inlined_call_operand.hbm [shape: f32[16,432], index: 4, kind: input, shape index: {}]
  %s5 = inlined_call_operand.hbm [shape: f32[16,1], index: 5, kind: input, shape index: {}]
  %s6 = inlined_call_operand.hbm [shape: f32[16,432], index: 6, kind: input, shape index: {}]
  %s7 = inlined_call_operand.hbm [shape: f32[16,1], index: 7, kind: input, shape index: {}]
  %s8 = inlined_call_operand.hbm [shape: f32[16,432], index: 8, kind: input, shape index: {}]
  %s9 = inlined_call_operand.hbm [shape: f32[16,1], index: 9, kind: input, shape index: {}]
  %s10 = inlined_call_operand.hbm [shape: f32[64,64], index: 10, kind: input, shape index: {}]
  %s11 = inlined_call_operand.hbm [shape: f32[64,1], index: 11, kind: input, shape index: {}]
  %s12 = inlined_call_operand.hbm [shape: f32[64,64], index: 12, kind: input, shape index: {}]
  %s13 = inlined_call_operand.hbm [shape: f32[64,1], index: 13, kind: input, shape index: {}]
  %s14 = inlined_call_operand.hbm [shape: f32[64,64], index: 14, kind: input, shape index: {}]
  %s15 = inlined_call_operand.hbm [shape: f32[64,1], index: 15, kind: input, shape index: {}]
  %s16 = inlined_call_operand.hbm [shape: f32[64,64], index: 16, kind: input, shape index: {}]
  %s17 = inlined_call_operand.hbm [shape: f32[64,1], index: 17, kind: input, shape index: {}]
  %s18 = inlined_call_operand.hbm [shape: f32[64,64], index: 18, kind: input, shape index: {}]
  %s19 = inlined_call_operand.hbm [shape: f32[64,1], index: 19, kind: input, shape index: {}]
  %s20 = inlined_call_operand.hbm [shape: f32[64,128], index: 20, kind: input, shape index: {}]
  %s21 = inlined_call_operand.hbm [shape: f32[64,1], index: 21, kind: input, shape index: {}]
  %s22 = inlined_call_operand.hbm [shape: f32[2,64,256], index: 22, kind: output, shape index: {}]
  %s23 = sld [smem:[#allocation0]]
  $region209: #{res2net1_forward.1} parent=0
    _
  %s25 = ssub.s32 1, %s23
  %s26 = scalar_select 0, %s25, %s23
  $region1: #{res2net1_forward.1} parent=0
    #allocation2 [shape = 'u8[131072]{0}', space=vmem, size = 0x20000, scoped, tag = 'input window, operand 0']
    #allocation3 [shape = 's32[2]{0}', space=sflag, size = 0x8, scoped, tag = 'scoped memory for res2net1_forward.1']
    #allocation4 [shape = 's32[2]{0}', space=sflag, size = 0x8, scoped, tag = 'scoped memory for res2net1_forward.1']
    #allocation5 [shape = 'u8[27648]{0}', space=vmem, size = 0x6c00, scoped, tag = 'input window, operand 1, single buffered']
    #allocation6 [shape = 's32[1]{0}', space=sflag, size = 0x4, scoped, tag = 'scoped memory for res2net1_forward.1']
    #allocation7 [shape = 'u8[32768]{0}', space=vmem, size = 0x8000, scoped, tag = 'input window, operand 2, single buffered']
    #allocation8 [shape = 'u8[32768]{0}', space=vmem, size = 0x8000, scoped, tag = 'input window, operand 3, single buffered']
    #allocation9 [shape = 's32[1]{0}', space=sflag, size = 0x4, scoped, tag = 'scoped memory for res2net1_forward.1']
    #allocation10 [shape = 'u8[32768]{0}', space=vmem, size = 0x8000, scoped, tag = 'input window, operand 4, single buffered']
    #allocation11 [shape = 'u8[8192]{0}', space=vmem, size = 0x2000, scoped, tag = 'input window, operand 5, single buffered']
    #allocation12 [shape = 's32[1]{0}', space=sflag, size = 0x4, scoped, tag = 'scoped memory for res2net1_forward.1']
    #allocation13 [shape = 'u8[32768]{0}', space=vmem, size = 0x8000, scoped, tag = 'input window, operand 6, single buffered']
    #allocation14 [shape = 'u8[8192]{0}', space=vmem, size = 0x2000, scoped, tag = 'input window, operand 7, single buffered']
    #allocation15 [shape = 's32[1]{0}', space=sflag, size = 0x4, scoped, tag = 'scoped memory for res2net1_forward.1']
    #allocation16 [shape = 'u8[32768]{0}', space=vmem, size = 0x8000, scoped, tag = 'input window, operand 8, single buffered']
    #allocation17 [shape = 'u8[8192]{0}', space=vmem, size = 0x2000, scoped, tag = 'input window, operand 9, single buffered']
    #allocation18 [shape = 's32[1]{0}', space=sflag, size = 0x4, scoped, tag = 'scoped memory for res2net1_forward.1']
    #allocation19 [shape = 'u8[32768]{0}', space=vmem, size = 0x8000, scoped, tag = 'input window, operand 10, single buffered']
    #allocation20 [shape = 'u8[32768]{0}', space=vmem, size = 0x8000, scoped, tag = 'input window, operand 11, single buffered']
    #allocation21 [shape = 's32[1]{0}', space=sflag, size = 0x4, scoped, tag = 'scoped memory for res2net1_forward.1']
    #allocation22 [shape = 'u8[32768]{0}', space=vmem, size = 0x8000, scoped, tag = 'input window, operand 12, single buffered']
    #allocation23 [shape = 'u8[32768]{0}', space=vmem, size = 0x8000, scoped, tag = 'input window, operand 13, single buffered']
    #allocation24 [shape = 's32[1]{0}', space=sflag, size = 0x4, scoped, tag = 'scoped memory for res2net1_forward.1']
    #allocation25 [shape = 'u8[32768]{0}', space=vmem, size = 0x8000, scoped, tag = 'input window, operand 14, single buffered']
    #allocation26 [shape = 'u8[32768]{0}', space=vmem, size = 0x8000, scoped, tag = 'input window, operand 15, single buffered']
    #allocation27 [shape = 's32[1]{0}', space=sflag, size = 0x4, scoped, tag = 'scoped memory for res2net1_forward.1']
    #allocation28 [shape = 'u8[32768]{0}', space=vmem, size = 0x8000, scoped, tag = 'input window, operand 16, single buffered']
    #allocation29 [shape = 'u8[32768]{0}', space=vmem, size = 0x8000, scoped, tag = 'input window, operand 17, single buffered']
    #allocation30 [shape = 's32[1]{0}', space=sflag, size = 0x4, scoped, tag = 'scoped memory for res2net1_forward.1']
    #allocation31 [shape = 'u8[32768]{0}', space=vmem, size = 0x8000, scoped, tag = 'input window, operand 18, single buffered']
    #allocation32 [shape = 'u8[32768]{0}', space=vmem, size = 0x8000, scoped, tag = 'input window, operand 19, single buffered']
    #allocation33 [shape = 's32[1]{0}', space=sflag, size = 0x4, scoped, tag = 'scoped memory for res2net1_forward.1']
    #allocation34 [shape = 'u8[32768]{0}', space=vmem, size = 0x8000, scoped, tag = 'input window, operand 20, single buffered']
    #allocation35 [shape = 'u8[32768]{0}', space=vmem, size = 0x8000, scoped, tag = 'input window, operand 21, single buffered']
    #allocation36 [shape = 's32[1]{0}', space=sflag, size = 0x4, scoped, tag = 'scoped memory for res2net1_forward.1']
    #allocation37 [shape = 'u8[131072]{0}', space=vmem, size = 0x20000, scoped, tag = 'output window, operand 0']
    %27 = vsyncpa [#allocation3], 0
    %s28 = scalar_lea.sflag [#allocation3], 1
    %29 = vsyncpa %s28, 0
    %30 = vsyncpa [#allocation6], 0
    %31 = vsyncpa [#allocation9], 0
    %32 = vsyncpa [#allocation12], 0
    %33 = vsyncpa [#allocation15], 0
    %34 = vsyncpa [#allocation18], 0
    %35 = vsyncpa [#allocation21], 0
    %36 = vsyncpa [#allocation24], 0
    %37 = vsyncpa [#allocation27], 0
    %38 = vsyncpa [#allocation30], 0
    %39 = vsyncpa [#allocation33], 0
    %40 = vsyncpa [#allocation36], 0
    %41 = vsyncpa [#allocation4], 0
    %s42 = scalar_lea.sflag [#allocation4], 1
    %43 = vsyncpa %s42, 0
    loop: start=0, step=1, limit=4
    $region2: #{res2net1_forward.1} parent=1 // loop_pre_header
      _
    $region3: #{res2net1_forward.1} parent=1 // loop_header
      %s45 = sphi 0, %s49
      %p46 = scmp.ge.s32.totalorder %s45, 4
      %s55 = sphi 0, %s57
      %s58 = sphi 0, %s55
      %s59 = sphi 0, %s58
      %s75 = sphi 0, %s59
      %s79 = sphi 0, %s79
      %s81 = sphi 0, %s79
      %s82 = sphi 0, %s81
      %s96 = sphi 0, %s82
      %s100 = sphi 0, %s100
      %s102 = sphi 0, %s100
      %s103 = sphi 0, %s102
      %s117 = sphi 0, %s103
      %s121 = sphi 0, %s121
      %s123 = sphi 0, %s121
      %s124 = sphi 0, %s123
      %s138 = sphi 0, %s124
      %s142 = sphi 0, %s142
      %s144 = sphi 0, %s142
      %s145 = sphi 0, %s144
      %s159 = sphi 0, %s145
      %s163 = sphi 0, %s163
      %s165 = sphi 0, %s163
      %s166 = sphi 0, %s165
      %s180 = sphi 0, %s166
      %s184 = sphi 0, %s184
      %s186 = sphi 0, %s184
      %s187 = sphi 0, %s186
      %s201 = sphi 0, %s187
      %s205 = sphi 0, %s205
      %s207 = sphi 0, %s205
      %s208 = sphi 0, %s207
      %s222 = sphi 0, %s208
      %s226 = sphi 0, %s226
      %s228 = sphi 0, %s226
      %s229 = sphi 0, %s228
      %s243 = sphi 0, %s229
      %s247 = sphi 0, %s247
      %s249 = sphi 0, %s247
      %s250 = sphi 0, %s249
      %s264 = sphi 0, %s250
      %s268 = sphi 0, %s268
      %s270 = sphi 0, %s268
      %s271 = sphi 0, %s270
      %s285 = sphi 0, %s271
      %s289 = sphi 0, %s289
      %s291 = sphi 0, %s289
      %s292 = sphi 0, %s291
      %s306 = sphi 0, %s292
      %s310 = sphi 0, %s310
      %s312 = sphi 0, %s310
      %s313 = sphi 0, %s312
      %s327 = sphi 0, %s313
      %s331 = sphi 0, %s331
      %s333 = sphi 0, %s331
      %s334 = sphi 0, %s333
      %s348 = sphi 0, %s334
      %s352 = sphi 0, %s352
      %s354 = sphi 0, %s352
      %s355 = sphi 0, %s354
      %s369 = sphi 0, %s355
      %s373 = sphi 0, %s373
      %s375 = sphi 0, %s373
      %s376 = sphi 0, %s375
      %s390 = sphi 0, %s376
      %s394 = sphi 0, %s394
      %s396 = sphi 0, %s394
      %s397 = sphi 0, %s396
      %s411 = sphi 0, %s397
      %s415 = sphi 0, %s415
      %s417 = sphi 0, %s415
      %s418 = sphi 0, %s417
      %s432 = sphi 0, %s418
      %s436 = sphi 0, %s436
      %s438 = sphi 0, %s436
      %s439 = sphi 0, %s438
      %s453 = sphi 0, %s439
      %s457 = sphi 0, %s457
      %s459 = sphi 0, %s457
      %s460 = sphi 0, %s459
      %s474 = sphi 0, %s460
      %s478 = sphi 0, %s478
      %s480 = sphi 0, %s478
      %s481 = sphi 0, %s480
      %s495 = sphi 0, %s481
      %s499 = sphi 0, %s499
      %s501 = sphi 0, %s499
      %s502 = sphi 0, %s501
      %s516 = sphi 0, %s502
      %s522 = sphi 0, %s524
      %s525 = sphi 0, %s522
      %s526 = sphi 0, %s525
      %s542 = sphi 0, %s526
    $region4: #{res2net1_forward.1} parent=1 // loop_header_branch
      %48 = sbr.rel (%p46) target = $region8
    $region5: #{res2net1_forward.1} parent=1 // loop_body
      %s50 = ssub.s32 %s45, 1
      %s51 = ssub.s32 %s45, 2
      %s52 = sadd.s32 %s45, 1
      %s53 = ssub.s32 %s45, %s52
      %p54 = scmp.eq.s32.totalorder %s53, 0
      %s56 = sadd.s32 %s55, 1
      %s57 = scalar_select %p54, %s55, %s56
      %p60 = pneg %p54
      %p61 = scmp.eq.s32.totalorder %s45, 1
      %p62 = por %p60, %p61
      %p63 = scmp.ne.s32.totalorder %s55, %s58
      %p64 = scmp.eq.s32.totalorder %s45, 0
      %p65 = por %p63, %p64
      %p66 = scmp.ne.s32.totalorder %s55, %s58
      %p67 = scmp.eq.s32.totalorder %s50, 1
      %p68 = por %p66, %p67
      %p69 = scmp.ne.s32.totalorder %s58, %s59
      %p70 = scmp.eq.s32.totalorder %s50, 0
      %p71 = por %p69, %p70
      %p72 = scmp.ne.s32.totalorder %s58, %s59
      %p73 = scmp.eq.s32.totalorder %s51, 1
      %p74 = por %p72, %p73
      %p76 = scmp.ne.s32.totalorder %s59, %s75
      %p77 = scmp.eq.s32.totalorder %s51, 0
      %p78 = por %p76, %p77
      %s80 = sadd.s32 %s79, 1
      %p83 = scmp.eq.s32.totalorder %s45, 1
      %p84 = scmp.ne.s32.totalorder %s79, %s81
      %p85 = scmp.eq.s32.totalorder %s45, 0
      %p86 = por %p84, %p85
      %p87 = scmp.ne.s32.totalorder %s79, %s81
      %p88 = scmp.eq.s32.totalorder %s50, 1
      %p89 = por %p87, %p88
      %p90 = scmp.ne.s32.totalorder %s81, %s82
      %p91 = scmp.eq.s32.totalorder %s50, 0
      %p92 = por %p90, %p91
      %p93 = scmp.ne.s32.totalorder %s81, %s82
      %p94 = scmp.eq.s32.totalorder %s51, 1
      %p95 = por %p93, %p94
      %p97 = scmp.ne.s32.totalorder %s82, %s96
      %p98 = scmp.eq.s32.totalorder %s51, 0
      %p99 = por %p97, %p98
      %s101 = sadd.s32 %s100, 1
      %p104 = scmp.eq.s32.totalorder %s45, 1
      %p105 = scmp.ne.s32.totalorder %s100, %s102
      %p106 = scmp.eq.s32.totalorder %s45, 0
      %p107 = por %p105, %p106
      %p108 = scmp.ne.s32.totalorder %s100, %s102
      %p109 = scmp.eq.s32.totalorder %s50, 1
      %p110 = por %p108, %p109
      %p111 = scmp.ne.s32.totalorder %s102, %s103
      %p112 = scmp.eq.s32.totalorder %s50, 0
      %p113 = por %p111, %p112
      %p114 = scmp.ne.s32.totalorder %s102, %s103
      %p115 = scmp.eq.s32.totalorder %s51, 1
      %p116 = por %p114, %p115
      %p118 = scmp.ne.s32.totalorder %s103, %s117
      %p119 = scmp.eq.s32.totalorder %s51, 0
      %p120 = por %p118, %p119
      %s122 = sadd.s32 %s121, 1
      %p125 = scmp.eq.s32.totalorder %s45, 1
      %p126 = scmp.ne.s32.totalorder %s121, %s123
      %p127 = scmp.eq.s32.totalorder %s45, 0
      %p128 = por %p126, %p127
      %p129 = scmp.ne.s32.totalorder %s121, %s123
      %p130 = scmp.eq.s32.totalorder %s50, 1
      %p131 = por %p129, %p130
      %p132 = scmp.ne.s32.totalorder %s123, %s124
      %p133 = scmp.eq.s32.totalorder %s50, 0
      %p134 = por %p132, %p133
      %p135 = scmp.ne.s32.totalorder %s123, %s124
      %p136 = scmp.eq.s32.totalorder %s51, 1
      %p137 = por %p135, %p136
      %p139 = scmp.ne.s32.totalorder %s124, %s138
      %p140 = scmp.eq.s32.totalorder %s51, 0
      %p141 = por %p139, %p140
      %s143 = sadd.s32 %s142, 1
      %p146 = scmp.eq.s32.totalorder %s45, 1
      %p147 = scmp.ne.s32.totalorder %s142, %s144
      %p148 = scmp.eq.s32.totalorder %s45, 0
      %p149 = por %p147, %p148
      %p150 = scmp.ne.s32.totalorder %s142, %s144
      %p151 = scmp.eq.s32.totalorder %s50, 1
      %p152 = por %p150, %p151
      %p153 = scmp.ne.s32.totalorder %s144, %s145
      %p154 = scmp.eq.s32.totalorder %s50, 0
      %p155 = por %p153, %p154
      %p156 = scmp.ne.s32.totalorder %s144, %s145
      %p157 = scmp.eq.s32.totalorder %s51, 1
      %p158 = por %p156, %p157
      %p160 = scmp.ne.s32.totalorder %s145, %s159
      %p161 = scmp.eq.s32.totalorder %s51, 0
      %p162 = por %p160, %p161
      %s164 = sadd.s32 %s163, 1
      %p167 = scmp.eq.s32.totalorder %s45, 1
      %p168 = scmp.ne.s32.totalorder %s163, %s165
      %p169 = scmp.eq.s32.totalorder %s45, 0
      %p170 = por %p168, %p169
      %p171 = scmp.ne.s32.totalorder %s163, %s165
      %p172 = scmp.eq.s32.totalorder %s50, 1
      %p173 = por %p171, %p172
      %p174 = scmp.ne.s32.totalorder %s165, %s166
      %p175 = scmp.eq.s32.totalorder %s50, 0
      %p176 = por %p174, %p175
      %p177 = scmp.ne.s32.totalorder %s165, %s166
      %p178 = scmp.eq.s32.totalorder %s51, 1
      %p179 = por %p177, %p178
      %p181 = scmp.ne.s32.totalorder %s166, %s180
      %p182 = scmp.eq.s32.totalorder %s51, 0
      %p183 = por %p181, %p182
      %s185 = sadd.s32 %s184, 1
      %p188 = scmp.eq.s32.totalorder %s45, 1
      %p189 = scmp.ne.s32.totalorder %s184, %s186
      %p190 = scmp.eq.s32.totalorder %s45, 0
      %p191 = por %p189, %p190
      %p192 = scmp.ne.s32.totalorder %s184, %s186
      %p193 = scmp.eq.s32.totalorder %s50, 1
      %p194 = por %p192, %p193
      %p195 = scmp.ne.s32.totalorder %s186, %s187
      %p196 = scmp.eq.s32.totalorder %s50, 0
      %p197 = por %p195, %p196
      %p198 = scmp.ne.s32.totalorder %s186, %s187
      %p199 = scmp.eq.s32.totalorder %s51, 1
      %p200 = por %p198, %p199
      %p202 = scmp.ne.s32.totalorder %s187, %s201
      %p203 = scmp.eq.s32.totalorder %s51, 0
      %p204 = por %p202, %p203
      %s206 = sadd.s32 %s205, 1
      %p209 = scmp.eq.s32.totalorder %s45, 1
      %p210 = scmp.ne.s32.totalorder %s205, %s207
      %p211 = scmp.eq.s32.totalorder %s45, 0
      %p212 = por %p210, %p211
      %p213 = scmp.ne.s32.totalorder %s205, %s207
      %p214 = scmp.eq.s32.totalorder %s50, 1
      %p215 = por %p213, %p214
      %p216 = scmp.ne.s32.totalorder %s207, %s208
      %p217 = scmp.eq.s32.totalorder %s50, 0
      %p218 = por %p216, %p217
      %p219 = scmp.ne.s32.totalorder %s207, %s208
      %p220 = scmp.eq.s32.totalorder %s51, 1
      %p221 = por %p219, %p220
      %p223 = scmp.ne.s32.totalorder %s208, %s222
      %p224 = scmp.eq.s32.totalorder %s51, 0
      %p225 = por %p223, %p224
      %s227 = sadd.s32 %s226, 1
      %p230 = scmp.eq.s32.totalorder %s45, 1
      %p231 = scmp.ne.s32.totalorder %s226, %s228
      %p232 = scmp.eq.s32.totalorder %s45, 0
      %p233 = por %p231, %p232
      %p234 = scmp.ne.s32.totalorder %s226, %s228
      %p235 = scmp.eq.s32.totalorder %s50, 1
      %p236 = por %p234, %p235
      %p237 = scmp.ne.s32.totalorder %s228, %s229
      %p238 = scmp.eq.s32.totalorder %s50, 0
      %p239 = por %p237, %p238
      %p240 = scmp.ne.s32.totalorder %s228, %s229
      %p241 = scmp.eq.s32.totalorder %s51, 1
      %p242 = por %p240, %p241
      %p244 = scmp.ne.s32.totalorder %s229, %s243
      %p245 = scmp.eq.s32.totalorder %s51, 0
      %p246 = por %p244, %p245
      %s248 = sadd.s32 %s247, 1
      %p251 = scmp.eq.s32.totalorder %s45, 1
      %p252 = scmp.ne.s32.totalorder %s247, %s249
      %p253 = scmp.eq.s32.totalorder %s45, 0
      %p254 = por %p252, %p253
      %p255 = scmp.ne.s32.totalorder %s247, %s249
      %p256 = scmp.eq.s32.totalorder %s50, 1
      %p257 = por %p255, %p256
      %p258 = scmp.ne.s32.totalorder %s249, %s250
      %p259 = scmp.eq.s32.totalorder %s50, 0
      %p260 = por %p258, %p259
      %p261 = scmp.ne.s32.totalorder %s249, %s250
      %p262 = scmp.eq.s32.totalorder %s51, 1
      %p263 = por %p261, %p262
      %p265 = scmp.ne.s32.totalorder %s250, %s264
      %p266 = scmp.eq.s32.totalorder %s51, 0
      %p267 = por %p265, %p266
      %s269 = sadd.s32 %s268, 1
      %p272 = scmp.eq.s32.totalorder %s45, 1
      %p273 = scmp.ne.s32.totalorder %s268, %s270
      %p274 = scmp.eq.s32.totalorder %s45, 0
      %p275 = por %p273, %p274
      %p276 = scmp.ne.s32.totalorder %s268, %s270
      %p277 = scmp.eq.s32.totalorder %s50, 1
      %p278 = por %p276, %p277
      %p279 = scmp.ne.s32.totalorder %s270, %s271
      %p280 = scmp.eq.s32.totalorder %s50, 0
      %p281 = por %p279, %p280
      %p282 = scmp.ne.s32.totalorder %s270, %s271
      %p283 = scmp.eq.s32.totalorder %s51, 1
      %p284 = por %p282, %p283
      %p286 = scmp.ne.s32.totalorder %s271, %s285
      %p287 = scmp.eq.s32.totalorder %s51, 0
      %p288 = por %p286, %p287
      %s290 = sadd.s32 %s289, 1
      %p293 = scmp.eq.s32.totalorder %s45, 1
      %p294 = scmp.ne.s32.totalorder %s289, %s291
      %p295 = scmp.eq.s32.totalorder %s45, 0
      %p296 = por %p294, %p295
      %p297 = scmp.ne.s32.totalorder %s289, %s291
      %p298 = scmp.eq.s32.totalorder %s50, 1
      %p299 = por %p297, %p298
      %p300 = scmp.ne.s32.totalorder %s291, %s292
      %p301 = scmp.eq.s32.totalorder %s50, 0
      %p302 = por %p300, %p301
      %p303 = scmp.ne.s32.totalorder %s291, %s292
      %p304 = scmp.eq.s32.totalorder %s51, 1
      %p305 = por %p303, %p304
      %p307 = scmp.ne.s32.totalorder %s292, %s306
      %p308 = scmp.eq.s32.totalorder %s51, 0
      %p309 = por %p307, %p308
      %s311 = sadd.s32 %s310, 1
      %p314 = scmp.eq.s32.totalorder %s45, 1
      %p315 = scmp.ne.s32.totalorder %s310, %s312
      %p316 = scmp.eq.s32.totalorder %s45, 0
      %p317 = por %p315, %p316
      %p318 = scmp.ne.s32.totalorder %s310, %s312
      %p319 = scmp.eq.s32.totalorder %s50, 1
      %p320 = por %p318, %p319
      %p321 = scmp.ne.s32.totalorder %s312, %s313
      %p322 = scmp.eq.s32.totalorder %s50, 0
      %p323 = por %p321, %p322
      %p324 = scmp.ne.s32.totalorder %s312, %s313
      %p325 = scmp.eq.s32.totalorder %s51, 1
      %p326 = por %p324, %p325
      %p328 = scmp.ne.s32.totalorder %s313, %s327
      %p329 = scmp.eq.s32.totalorder %s51, 0
      %p330 = por %p328, %p329
      %s332 = sadd.s32 %s331, 1
      %p335 = scmp.eq.s32.totalorder %s45, 1
      %p336 = scmp.ne.s32.totalorder %s331, %s333
      %p337 = scmp.eq.s32.totalorder %s45, 0
      %p338 = por %p336, %p337
      %p339 = scmp.ne.s32.totalorder %s331, %s333
      %p340 = scmp.eq.s32.totalorder %s50, 1
      %p341 = por %p339, %p340
      %p342 = scmp.ne.s32.totalorder %s333, %s334
      %p343 = scmp.eq.s32.totalorder %s50, 0
      %p344 = por %p342, %p343
      %p345 = scmp.ne.s32.totalorder %s333, %s334
      %p346 = scmp.eq.s32.totalorder %s51, 1
      %p347 = por %p345, %p346
      %p349 = scmp.ne.s32.totalorder %s334, %s348
      %p350 = scmp.eq.s32.totalorder %s51, 0
      %p351 = por %p349, %p350
      %s353 = sadd.s32 %s352, 1
      %p356 = scmp.eq.s32.totalorder %s45, 1
      %p357 = scmp.ne.s32.totalorder %s352, %s354
      %p358 = scmp.eq.s32.totalorder %s45, 0
      %p359 = por %p357, %p358
      %p360 = scmp.ne.s32.totalorder %s352, %s354
      %p361 = scmp.eq.s32.totalorder %s50, 1
      %p362 = por %p360, %p361
      %p363 = scmp.ne.s32.totalorder %s354, %s355
      %p364 = scmp.eq.s32.totalorder %s50, 0
      %p365 = por %p363, %p364
      %p366 = scmp.ne.s32.totalorder %s354, %s355
      %p367 = scmp.eq.s32.totalorder %s51, 1
      %p368 = por %p366, %p367
      %p370 = scmp.ne.s32.totalorder %s355, %s369
      %p371 = scmp.eq.s32.totalorder %s51, 0
      %p372 = por %p370, %p371
      %s374 = sadd.s32 %s373, 1
      %p377 = scmp.eq.s32.totalorder %s45, 1
      %p378 = scmp.ne.s32.totalorder %s373, %s375
      %p379 = scmp.eq.s32.totalorder %s45, 0
      %p380 = por %p378, %p379
      %p381 = scmp.ne.s32.totalorder %s373, %s375
      %p382 = scmp.eq.s32.totalorder %s50, 1
      %p383 = por %p381, %p382
      %p384 = scmp.ne.s32.totalorder %s375, %s376
      %p385 = scmp.eq.s32.totalorder %s50, 0
      %p386 = por %p384, %p385
      %p387 = scmp.ne.s32.totalorder %s375, %s376
      %p388 = scmp.eq.s32.totalorder %s51, 1
      %p389 = por %p387, %p388
      %p391 = scmp.ne.s32.totalorder %s376, %s390
      %p392 = scmp.eq.s32.totalorder %s51, 0
      %p393 = por %p391, %p392
      %s395 = sadd.s32 %s394, 1
      %p398 = scmp.eq.s32.totalorder %s45, 1
      %p399 = scmp.ne.s32.totalorder %s394, %s396
      %p400 = scmp.eq.s32.totalorder %s45, 0
      %p401 = por %p399, %p400
      %p402 = scmp.ne.s32.totalorder %s394, %s396
      %p403 = scmp.eq.s32.totalorder %s50, 1
      %p404 = por %p402, %p403
      %p405 = scmp.ne.s32.totalorder %s396, %s397
      %p406 = scmp.eq.s32.totalorder %s50, 0
      %p407 = por %p405, %p406
      %p408 = scmp.ne.s32.totalorder %s396, %s397
      %p409 = scmp.eq.s32.totalorder %s51, 1
      %p410 = por %p408, %p409
      %p412 = scmp.ne.s32.totalorder %s397, %s411
      %p413 = scmp.eq.s32.totalorder %s51, 0
      %p414 = por %p412, %p413
      %s416 = sadd.s32 %s415, 1
      %p419 = scmp.eq.s32.totalorder %s45, 1
      %p420 = scmp.ne.s32.totalorder %s415, %s417
      %p421 = scmp.eq.s32.totalorder %s45, 0
      %p422 = por %p420, %p421
      %p423 = scmp.ne.s32.totalorder %s415, %s417
      %p424 = scmp.eq.s32.totalorder %s50, 1
      %p425 = por %p423, %p424
      %p426 = scmp.ne.s32.totalorder %s417, %s418
      %p427 = scmp.eq.s32.totalorder %s50, 0
      %p428 = por %p426, %p427
      %p429 = scmp.ne.s32.totalorder %s417, %s418
      %p430 = scmp.eq.s32.totalorder %s51, 1
      %p431 = por %p429, %p430
      %p433 = scmp.ne.s32.totalorder %s418, %s432
      %p434 = scmp.eq.s32.totalorder %s51, 0
      %p435 = por %p433, %p434
      %s437 = sadd.s32 %s436, 1
      %p440 = scmp.eq.s32.totalorder %s45, 1
      %p441 = scmp.ne.s32.totalorder %s436, %s438
      %p442 = scmp.eq.s32.totalorder %s45, 0
      %p443 = por %p441, %p442
      %p444 = scmp.ne.s32.totalorder %s436, %s438
      %p445 = scmp.eq.s32.totalorder %s50, 1
      %p446 = por %p444, %p445
      %p447 = scmp.ne.s32.totalorder %s438, %s439
      %p448 = scmp.eq.s32.totalorder %s50, 0
      %p449 = por %p447, %p448
      %p450 = scmp.ne.s32.totalorder %s438, %s439
      %p451 = scmp.eq.s32.totalorder %s51, 1
      %p452 = por %p450, %p451
      %p454 = scmp.ne.s32.totalorder %s439, %s453
      %p455 = scmp.eq.s32.totalorder %s51, 0
      %p456 = por %p454, %p455
      %s458 = sadd.s32 %s457, 1
      %p461 = scmp.eq.s32.totalorder %s45, 1
      %p462 = scmp.ne.s32.totalorder %s457, %s459
      %p463 = scmp.eq.s32.totalorder %s45, 0
      %p464 = por %p462, %p463
      %p465 = scmp.ne.s32.totalorder %s457, %s459
      %p466 = scmp.eq.s32.totalorder %s50, 1
      %p467 = por %p465, %p466
      %p468 = scmp.ne.s32.totalorder %s459, %s460
      %p469 = scmp.eq.s32.totalorder %s50, 0
      %p470 = por %p468, %p469
      %p471 = scmp.ne.s32.totalorder %s459, %s460
      %p472 = scmp.eq.s32.totalorder %s51, 1
      %p473 = por %p471, %p472
      %p475 = scmp.ne.s32.totalorder %s460, %s474
      %p476 = scmp.eq.s32.totalorder %s51, 0
      %p477 = por %p475, %p476
      %s479 = sadd.s32 %s478, 1
      %p482 = scmp.eq.s32.totalorder %s45, 1
      %p483 = scmp.ne.s32.totalorder %s478, %s480
      %p484 = scmp.eq.s32.totalorder %s45, 0
      %p485 = por %p483, %p484
      %p486 = scmp.ne.s32.totalorder %s478, %s480
      %p487 = scmp.eq.s32.totalorder %s50, 1
      %p488 = por %p486, %p487
      %p489 = scmp.ne.s32.totalorder %s480, %s481
      %p490 = scmp.eq.s32.totalorder %s50, 0
      %p491 = por %p489, %p490
      %p492 = scmp.ne.s32.totalorder %s480, %s481
      %p493 = scmp.eq.s32.totalorder %s51, 1
      %p494 = por %p492, %p493
      %p496 = scmp.ne.s32.totalorder %s481, %s495
      %p497 = scmp.eq.s32.totalorder %s51, 0
      %p498 = por %p496, %p497
      %s500 = sadd.s32 %s499, 1
      %p503 = scmp.eq.s32.totalorder %s45, 1
      %p504 = scmp.ne.s32.totalorder %s499, %s501
      %p505 = scmp.eq.s32.totalorder %s45, 0
      %p506 = por %p504, %p505
      %p507 = scmp.ne.s32.totalorder %s499, %s501
      %p508 = scmp.eq.s32.totalorder %s50, 1
      %p509 = por %p507, %p508
      %p510 = scmp.ne.s32.totalorder %s501, %s502
      %p511 = scmp.eq.s32.totalorder %s50, 0
      %p512 = por %p510, %p511
      %p513 = scmp.ne.s32.totalorder %s501, %s502
      %p514 = scmp.eq.s32.totalorder %s51, 1
      %p515 = por %p513, %p514
      %p517 = scmp.ne.s32.totalorder %s502, %s516
      %p518 = scmp.eq.s32.totalorder %s51, 0
      %p519 = por %p517, %p518
      %s520 = ssub.s32 %s45, %s52
      %p521 = scmp.eq.s32.totalorder %s520, 0
      %s523 = sadd.s32 %s522, 1
      %s524 = scalar_select %p521, %s522, %s523
      %p527 = pneg %p521
      %p528 = scmp.eq.s32.totalorder %s45, 1
      %p529 = por %p527, %p528
      %p530 = scmp.ne.s32.totalorder %s522, %s525
      %p531 = scmp.eq.s32.totalorder %s45, 0
      %p532 = por %p530, %p531
      %p533 = scmp.ne.s32.totalorder %s522, %s525
      %p534 = scmp.eq.s32.totalorder %s50, 1
      %p535 = por %p533, %p534
      %p536 = scmp.ne.s32.totalorder %s525, %s526
      %p537 = scmp.eq.s32.totalorder %s50, 0
      %p538 = por %p536, %p537
      %p539 = scmp.ne.s32.totalorder %s525, %s526
      %p540 = scmp.eq.s32.totalorder %s51, 1
      %p541 = por %p539, %p540
      %p543 = scmp.ne.s32.totalorder %s526, %s542
      %p544 = scmp.eq.s32.totalorder %s51, 0
      %p545 = por %p543, %p544
      %p546 = scmp.le.s32.totalorder 1, %s45
      %p547 = scmp.lt.s32.totalorder %s45, 3
      %p548 = pnand %p546, %p547
      %p549 = pneg %p548
      // Predicated region
      $region9: #{res2net1_forward.1} parent=5 // pred_check
        _
      $region10: #{res2net1_forward.1} parent=5 // pred_check_branch
        %551 = sbr.rel (%p548) target = $region12
      $region11: #{res2net1_forward.1} parent=5 // pred_region
        %s552 = ssub.s32 %s45, 1
        // Predicated region
        $region13: #{res2net1_forward.1} parent=11 // pred_check
          %p553 = pneg %p92
        $region14: #{res2net1_forward.1} parent=11 // pred_check_branch
          %555 = sbr.rel (%p553) target = $region16
        $region15: #{res2net1_forward.1} parent=11 // pred_region
          %s557 = ssub.s32 864, 864
          %558 = vsyncadd [#allocation6], %s557
          %s559 = sshll.u32 [#allocation5], 4
          %s560 = int_to_ptr.vmem [resolvable:$true] %s559
          %565 = dma.hbm_to_vmem [thread:$0]  %s1, 864, %s560, [#allocation6], 32, 32, 2
        $region16: #{res2net1_forward.1} parent=11 // pred_fallthru
          _
        // Predicated region
        $region17: #{res2net1_forward.1} parent=11 // pred_check
          %p566 = pneg %p113
        $region18: #{res2net1_forward.1} parent=11 // pred_check_branch
          %568 = sbr.rel (%p566) target = $region20
        $region19: #{res2net1_forward.1} parent=11 // pred_region
          %s570 = ssub.s32 1024, 1024
          %571 = vsyncadd [#allocation6], %s570
          %s572 = sshll.u32 [#allocation7], 4
          %s573 = int_to_ptr.vmem [resolvable:$true] %s572
          %578 = dma.hbm_to_vmem [thread:$0]  %s2, 1024, %s573, [#allocation6], 128, 128, 8
        $region20: #{res2net1_forward.1} parent=11 // pred_fallthru
          _
        // Predicated region
        $region21: #{res2net1_forward.1} parent=11 // pred_check
          %p579 = pneg %p134
        $region22: #{res2net1_forward.1} parent=11 // pred_check_branch
          %581 = sbr.rel (%p579) target = $region24
        $region23: #{res2net1_forward.1} parent=11 // pred_region
          %s583 = ssub.s32 1024, 1024
          %584 = vsyncadd [#allocation9], %s583
          %s585 = sshll.u32 [#allocation8], 4
          %s586 = int_to_ptr.vmem [resolvable:$true] %s585
          %591 = dma.hbm_to_vmem [thread:$0]  %s3, 1024, %s586, [#allocation9], 128, 128, 8
        $region24: #{res2net1_forward.1} parent=11 // pred_fallthru
          _
        // Predicated region
        $region25: #{res2net1_forward.1} parent=11 // pred_check
          %p592 = pneg %p155
        $region26: #{res2net1_forward.1} parent=11 // pred_check_branch
          %594 = sbr.rel (%p592) target = $region28
        $region27: #{res2net1_forward.1} parent=11 // pred_region
          %s596 = ssub.s32 1024, 1024
          %597 = vsyncadd [#allocation9], %s596
          %s598 = sshll.u32 [#allocation10], 4
          %s599 = int_to_ptr.vmem [resolvable:$true] %s598
          %604 = dma.hbm_to_vmem [thread:$0]  %s4, 1024, %s599, [#allocation9], 512, 512, 32
        $region28: #{res2net1_forward.1} parent=11 // pred_fallthru
          _
        // Predicated region
        $region29: #{res2net1_forward.1} parent=11 // pred_check
          %p605 = pneg %p176
        $region30: #{res2net1_forward.1} parent=11 // pred_check_branch
          %607 = sbr.rel (%p605) target = $region32
        $region31: #{res2net1_forward.1} parent=11 // pred_region
          %s609 = ssub.s32 256, 256
          %610 = vsyncadd [#allocation12], %s609
          %s611 = sshll.u32 [#allocation11], 4
          %s612 = int_to_ptr.vmem [resolvable:$true] %s611
          %617 = dma.hbm_to_vmem [thread:$0]  %s5, 256, %s612, [#allocation12], 128, 128, 8
        $region32: #{res2net1_forward.1} parent=11 // pred_fallthru
          _
        // Predicated region
        $region33: #{res2net1_forward.1} parent=11 // pred_check
          %p618 = pneg %p197
        $region34: #{res2net1_forward.1} parent=11 // pred_check_branch
          %620 = sbr.rel (%p618) target = $region36
        $region35: #{res2net1_forward.1} parent=11 // pred_region
          %s622 = ssub.s32 1024, 1024
          %623 = vsyncadd [#allocation12], %s622
          %s624 = sshll.u32 [#allocation13], 4
          %s625 = int_to_ptr.vmem [resolvable:$true] %s624
          %630 = dma.hbm_to_vmem [thread:$0]  %s6, 1024, %s625, [#allocation12], 512, 512, 32
        $region36: #{res2net1_forward.1} parent=11 // pred_fallthru
          _
        // Predicated region
        $region37: #{res2net1_forward.1} parent=11 // pred_check
          %p631 = pneg %p218
        $region38: #{res2net1_forward.1} parent=11 // pred_check_branch
          %633 = sbr.rel (%p631) target = $region40
        $region39: #{res2net1_forward.1} parent=11 // pred_region
          %s635 = ssub.s32 256, 256
          %636 = vsyncadd [#allocation15], %s635
          %s637 = sshll.u32 [#allocation14], 4
          %s638 = int_to_ptr.vmem [resolvable:$true] %s637
          %643 = dma.hbm_to_vmem [thread:$0]  %s7, 256, %s638, [#allocation15], 128, 128, 8
        $region40: #{res2net1_forward.1} parent=11 // pred_fallthru
          _
        // Predicated region
        $region41: #{res2net1_forward.1} parent=11 // pred_check
          %p644 = pneg %p239
        $region42: #{res2net1_forward.1} parent=11 // pred_check_branch
          %646 = sbr.rel (%p644) target = $region44
        $region43: #{res2net1_forward.1} parent=11 // pred_region
          %s648 = ssub.s32 1024, 1024
          %649 = vsyncadd [#allocation15], %s648
          %s650 = sshll.u32 [#allocation16], 4
          %s651 = int_to_ptr.vmem [resolvable:$true] %s650
          %656 = dma.hbm_to_vmem [thread:$0]  %s8, 1024, %s651, [#allocation15], 512, 512, 32
        $region44: #{res2net1_forward.1} parent=11 // pred_fallthru
          _
        // Predicated region
        $region45: #{res2net1_forward.1} parent=11 // pred_check
          %p657 = pneg %p260
        $region46: #{res2net1_forward.1} parent=11 // pred_check_branch
          %659 = sbr.rel (%p657) target = $region48
        $region47: #{res2net1_forward.1} parent=11 // pred_region
          %s661 = ssub.s32 256, 256
          %662 = vsyncadd [#allocation18], %s661
          %s663 = sshll.u32 [#allocation17], 4
          %s664 = int_to_ptr.vmem [resolvable:$true] %s663
          %669 = dma.hbm_to_vmem [thread:$0]  %s9, 256, %s664, [#allocation18], 128, 128, 8
        $region48: #{res2net1_forward.1} parent=11 // pred_fallthru
          _
        // Predicated region
        $region49: #{res2net1_forward.1} parent=11 // pred_check
          %p670 = pneg %p281
        $region50: #{res2net1_forward.1} parent=11 // pred_check_branch
          %672 = sbr.rel (%p670) target = $region52
        $region51: #{res2net1_forward.1} parent=11 // pred_region
          %s674 = ssub.s32 1024, 1024
          %675 = vsyncadd [#allocation18], %s674
          %s676 = sshll.u32 [#allocation19], 4
          %s677 = int_to_ptr.vmem [resolvable:$true] %s676
          %682 = dma.hbm_to_vmem [thread:$0]  %s10, 1024, %s677, [#allocation18], 128, 128, 8
        $region52: #{res2net1_forward.1} parent=11 // pred_fallthru
          _
        // Predicated region
        $region53: #{res2net1_forward.1} parent=11 // pred_check
          %p683 = pneg %p302
        $region54: #{res2net1_forward.1} parent=11 // pred_check_branch
          %685 = sbr.rel (%p683) target = $region56
        $region55: #{res2net1_forward.1} parent=11 // pred_region
          %s687 = ssub.s32 1024, 1024
          %688 = vsyncadd [#allocation21], %s687
          %s689 = sshll.u32 [#allocation20], 4
          %s690 = int_to_ptr.vmem [resolvable:$true] %s689
          %695 = dma.hbm_to_vmem [thread:$0]  %s11, 1024, %s690, [#allocation21], 128, 128, 8
        $region56: #{res2net1_forward.1} parent=11 // pred_fallthru
          _
        // Predicated region
        $region57: #{res2net1_forward.1} parent=11 // pred_check
          %p696 = pneg %p323
        $region58: #{res2net1_forward.1} parent=11 // pred_check_branch
          %698 = sbr.rel (%p696) target = $region60
        $region59: #{res2net1_forward.1} parent=11 // pred_region
          %s700 = ssub.s32 1024, 1024
          %701 = vsyncadd [#allocation21], %s700
          %s702 = sshll.u32 [#allocation22], 4
          %s703 = int_to_ptr.vmem [resolvable:$true] %s702
          %708 = dma.hbm_to_vmem [thread:$0]  %s12, 1024, %s703, [#allocation21], 128, 128, 8
        $region60: #{res2net1_forward.1} parent=11 // pred_fallthru
          _
        // Predicated region
        $region61: #{res2net1_forward.1} parent=11 // pred_check
          %p709 = pneg %p344
        $region62: #{res2net1_forward.1} parent=11 // pred_check_branch
          %711 = sbr.rel (%p709) target = $region64
        $region63: #{res2net1_forward.1} parent=11 // pred_region
          %s713 = ssub.s32 1024, 1024
          %714 = vsyncadd [#allocation24], %s713
          %s715 = sshll.u32 [#allocation23], 4
          %s716 = int_to_ptr.vmem [resolvable:$true] %s715
          %721 = dma.hbm_to_vmem [thread:$0]  %s13, 1024, %s716, [#allocation24], 128, 128, 8
        $region64: #{res2net1_forward.1} parent=11 // pred_fallthru
          _
        // Predicated region
        $region65: #{res2net1_forward.1} parent=11 // pred_check
          %p722 = pneg %p365
        $region66: #{res2net1_forward.1} parent=11 // pred_check_branch
          %724 = sbr.rel (%p722) target = $region68
        $region67: #{res2net1_forward.1} parent=11 // pred_region
          %s726 = ssub.s32 1024, 1024
          %727 = vsyncadd [#allocation24], %s726
          %s728 = sshll.u32 [#allocation25], 4
          %s729 = int_to_ptr.vmem [resolvable:$true] %s728
          %734 = dma.hbm_to_vmem [thread:$0]  %s14, 1024, %s729, [#allocation24], 128, 128, 8
        $region68: #{res2net1_forward.1} parent=11 // pred_fallthru
          _
        // Predicated region
        $region69: #{res2net1_forward.1} parent=11 // pred_check
          %p735 = pneg %p386
        $region70: #{res2net1_forward.1} parent=11 // pred_check_branch
          %737 = sbr.rel (%p735) target = $region72
        $region71: #{res2net1_forward.1} parent=11 // pred_region
          %s739 = ssub.s32 1024, 1024
          %740 = vsyncadd [#allocation27], %s739
          %s741 = sshll.u32 [#allocation26], 4
          %s742 = int_to_ptr.vmem [resolvable:$true] %s741
          %747 = dma.hbm_to_vmem [thread:$0]  %s15, 1024, %s742, [#allocation27], 128, 128, 8
        $region72: #{res2net1_forward.1} parent=11 // pred_fallthru
          _
        // Predicated region
        $region73: #{res2net1_forward.1} parent=11 // pred_check
          %p748 = pneg %p407
        $region74: #{res2net1_forward.1} parent=11 // pred_check_branch
          %750 = sbr.rel (%p748) target = $region76
        $region75: #{res2net1_forward.1} parent=11 // pred_region
          %s752 = ssub.s32 1024, 1024
          %753 = vsyncadd [#allocation27], %s752
          %s754 = sshll.u32 [#allocation28], 4
          %s755 = int_to_ptr.vmem [resolvable:$true] %s754
          %760 = dma.hbm_to_vmem [thread:$0]  %s16, 1024, %s755, [#allocation27], 128, 128, 8
        $region76: #{res2net1_forward.1} parent=11 // pred_fallthru
          _
        // Predicated region
        $region77: #{res2net1_forward.1} parent=11 // pred_check
          %p761 = pneg %p428
        $region78: #{res2net1_forward.1} parent=11 // pred_check_branch
          %763 = sbr.rel (%p761) target = $region80
        $region79: #{res2net1_forward.1} parent=11 // pred_region
          %s765 = ssub.s32 1024, 1024
          %766 = vsyncadd [#allocation30], %s765
          %s767 = sshll.u32 [#allocation29], 4
          %s768 = int_to_ptr.vmem [resolvable:$true] %s767
          %773 = dma.hbm_to_vmem [thread:$0]  %s17, 1024, %s768, [#allocation30], 128, 128, 8
        $region80: #{res2net1_forward.1} parent=11 // pred_fallthru
          _
        // Predicated region
        $region81: #{res2net1_forward.1} parent=11 // pred_check
          %p774 = pneg %p449
        $region82: #{res2net1_forward.1} parent=11 // pred_check_branch
          %776 = sbr.rel (%p774) target = $region84
        $region83: #{res2net1_forward.1} parent=11 // pred_region
          %s778 = ssub.s32 1024, 1024
          %779 = vsyncadd [#allocation30], %s778
          %s780 = sshll.u32 [#allocation31], 4
          %s781 = int_to_ptr.vmem [resolvable:$true] %s780
          %786 = dma.hbm_to_vmem [thread:$0]  %s18, 1024, %s781, [#allocation30], 128, 128, 8
        $region84: #{res2net1_forward.1} parent=11 // pred_fallthru
          _
        // Predicated region
        $region85: #{res2net1_forward.1} parent=11 // pred_check
          %p787 = pneg %p470
        $region86: #{res2net1_forward.1} parent=11 // pred_check_branch
          %789 = sbr.rel (%p787) target = $region88
        $region87: #{res2net1_forward.1} parent=11 // pred_region
          %s791 = ssub.s32 1024, 1024
          %792 = vsyncadd [#allocation33], %s791
          %s793 = sshll.u32 [#allocation32], 4
          %s794 = int_to_ptr.vmem [resolvable:$true] %s793
          %799 = dma.hbm_to_vmem [thread:$0]  %s19, 1024, %s794, [#allocation33], 128, 128, 8
        $region88: #{res2net1_forward.1} parent=11 // pred_fallthru
          _
        // Predicated region
        $region89: #{res2net1_forward.1} parent=11 // pred_check
          %p800 = pneg %p491
        $region90: #{res2net1_forward.1} parent=11 // pred_check_branch
          %802 = sbr.rel (%p800) target = $region92
        $region91: #{res2net1_forward.1} parent=11 // pred_region
          %s804 = ssub.s32 1024, 1024
          %805 = vsyncadd [#allocation33], %s804
          %s806 = sshll.u32 [#allocation34], 4
          %s807 = int_to_ptr.vmem [resolvable:$true] %s806
          %812 = dma.hbm_to_vmem [thread:$0]  %s20, 1024, %s807, [#allocation33], 128, 128, 8
        $region92: #{res2net1_forward.1} parent=11 // pred_fallthru
          _
        // Predicated region
        $region93: #{res2net1_forward.1} parent=11 // pred_check
          %p813 = pneg %p512
        $region94: #{res2net1_forward.1} parent=11 // pred_check_branch
          %815 = sbr.rel (%p813) target = $region96
        $region95: #{res2net1_forward.1} parent=11 // pred_region
          %s817 = ssub.s32 1024, 1024
          %818 = vsyncadd [#allocation36], %s817
          %s819 = sshll.u32 [#allocation35], 4
          %s820 = int_to_ptr.vmem [resolvable:$true] %s819
          %825 = dma.hbm_to_vmem [thread:$0]  %s21, 1024, %s820, [#allocation36], 128, 128, 8
        $region96: #{res2net1_forward.1} parent=11 // pred_fallthru
          _
      $region12: #{res2net1_forward.1} parent=5 // pred_fallthru
        _
      %p826 = scmp.lt.s32.totalorder %s45, 2
      // Predicated region
      $region97: #{res2net1_forward.1} parent=5 // pred_check
        %p827 = pneg %p826
      $region98: #{res2net1_forward.1} parent=5 // pred_check_branch
        %829 = sbr.rel (%p827) target = $region100
      $region99: #{res2net1_forward.1} parent=5 // pred_region
        // Predicated region
        $region101: #{res2net1_forward.1} parent=99 // pred_check
          %p830 = pneg %p65
        $region102: #{res2net1_forward.1} parent=99 // pred_check_branch
          %832 = sbr.rel (%p830) target = $region104
        $region103: #{res2net1_forward.1} parent=99 // pred_region
          %s833 = sand.u32 %s55, 1
          %s834 = scalar_lea.sflag [#allocation3], %s833
          %s835 = sand.u32 %s55, 1
          %s836 = smul.addr %s835, 128
          %s837 = scalar_lea.vmem [#allocation2], %s836
          %s839 = ssub.s32 2048, 2048
          %840 = vsyncadd %s834, %s839
          %s841 = smul.addr %s45, 16
          %s842 = smul.addr %s841, 128
          %s843 = scalar_lea.hbm %s0, %s842
          %s844 = sshll.u32 %s837, 4
          %s845 = int_to_ptr.vmem [resolvable:$true] %s844
          %850 = dma.hbm_to_vmem [thread:$0]  %s843, 2048, %s845, %s834, 256, 256, 16
        $region104: #{res2net1_forward.1} parent=99 // pred_fallthru
          _
      $region100: #{res2net1_forward.1} parent=5 // pred_fallthru
        _
      %p851 = scmp.le.s32.totalorder 1, %s45
      %p852 = scmp.lt.s32.totalorder %s45, 3
      %p853 = pnand %p851, %p852
      %p854 = pneg %p853
      // Predicated region
      $region105: #{res2net1_forward.1} parent=5 // pred_check
        _
      $region106: #{res2net1_forward.1} parent=5 // pred_check_branch
        %856 = sbr.rel (%p853) target = $region108
      $region107: #{res2net1_forward.1} parent=5 // pred_region
        %s857 = ssub.s32 %s45, 1
        %s858 = sand.u32 %s58, 1
        %s859 = scalar_lea.sflag [#allocation3], %s858
        %s860 = sand.u32 %s58, 1
        %s861 = smul.addr %s860, 128
        %s862 = scalar_lea.vmem [#allocation2], %s861
        // Predicated region
        $region109: #{res2net1_forward.1} parent=107 // pred_check
          %p863 = pneg %p71
        $region110: #{res2net1_forward.1} parent=107 // pred_check_branch
          %865 = sbr.rel (%p863) target = $region112
        $region111: #{res2net1_forward.1} parent=107 // pred_region
          %866 = dma.done %s859, 2048
        $region112: #{res2net1_forward.1} parent=107 // pred_fallthru
          _
        // Predicated region
        $region113: #{res2net1_forward.1} parent=107 // pred_check
          %p867 = pneg %p92
        $region114: #{res2net1_forward.1} parent=107 // pred_check_branch
          %869 = sbr.rel (%p867) target = $region116
        $region115: #{res2net1_forward.1} parent=107 // pred_region
          %870 = dma.done [#allocation6], 864
        $region116: #{res2net1_forward.1} parent=107 // pred_fallthru
          _
        // Predicated region
        $region117: #{res2net1_forward.1} parent=107 // pred_check
          %p871 = pneg %p113
        $region118: #{res2net1_forward.1} parent=107 // pred_check_branch
          %873 = sbr.rel (%p871) target = $region120
        $region119: #{res2net1_forward.1} parent=107 // pred_region
          %874 = dma.done [#allocation6], 1024
        $region120: #{res2net1_forward.1} parent=107 // pred_fallthru
          _
        // Predicated region
        $region121: #{res2net1_forward.1} parent=107 // pred_check
          %p875 = pneg %p134
        $region122: #{res2net1_forward.1} parent=107 // pred_check_branch
          %877 = sbr.rel (%p875) target = $region124
        $region123: #{res2net1_forward.1} parent=107 // pred_region
          %878 = dma.done [#allocation9], 1024
        $region124: #{res2net1_forward.1} parent=107 // pred_fallthru
          _
        // Predicated region
        $region125: #{res2net1_forward.1} parent=107 // pred_check
          %p879 = pneg %p155
        $region126: #{res2net1_forward.1} parent=107 // pred_check_branch
          %881 = sbr.rel (%p879) target = $region128
        $region127: #{res2net1_forward.1} parent=107 // pred_region
          %882 = dma.done [#allocation9], 1024
        $region128: #{res2net1_forward.1} parent=107 // pred_fallthru
          _
        // Predicated region
        $region129: #{res2net1_forward.1} parent=107 // pred_check
          %p883 = pneg %p176
        $region130: #{res2net1_forward.1} parent=107 // pred_check_branch
          %885 = sbr.rel (%p883) target = $region132
        $region131: #{res2net1_forward.1} parent=107 // pred_region
          %886 = dma.done [#allocation12], 256
        $region132: #{res2net1_forward.1} parent=107 // pred_fallthru
          _
        // Predicated region
        $region133: #{res2net1_forward.1} parent=107 // pred_check
          %p887 = pneg %p197
        $region134: #{res2net1_forward.1} parent=107 // pred_check_branch
          %889 = sbr.rel (%p887) target = $region136
        $region135: #{res2net1_forward.1} parent=107 // pred_region
          %890 = dma.done [#allocation12], 1024
        $region136: #{res2net1_forward.1} parent=107 // pred_fallthru
          _
        // Predicated region
        $region137: #{res2net1_forward.1} parent=107 // pred_check
          %p891 = pneg %p218
        $region138: #{res2net1_forward.1} parent=107 // pred_check_branch
          %893 = sbr.rel (%p891) target = $region140
        $region139: #{res2net1_forward.1} parent=107 // pred_region
          %894 = dma.done [#allocation15], 256
        $region140: #{res2net1_forward.1} parent=107 // pred_fallthru
          _
        // Predicated region
        $region141: #{res2net1_forward.1} parent=107 // pred_check
          %p895 = pneg %p239
        $region142: #{res2net1_forward.1} parent=107 // pred_check_branch
          %897 = sbr.rel (%p895) target = $region144
        $region143: #{res2net1_forward.1} parent=107 // pred_region
          %898 = dma.done [#allocation15], 1024
        $region144: #{res2net1_forward.1} parent=107 // pred_fallthru
          _
        // Predicated region
        $region145: #{res2net1_forward.1} parent=107 // pred_check
          %p899 = pneg %p260
        $region146: #{res2net1_forward.1} parent=107 // pred_check_branch
          %901 = sbr.rel (%p899) target = $region148
        $region147: #{res2net1_forward.1} parent=107 // pred_region
          %902 = dma.done [#allocation18], 256
        $region148: #{res2net1_forward.1} parent=107 // pred_fallthru
          _
        // Predicated region
        $region149: #{res2net1_forward.1} parent=107 // pred_check
          %p903 = pneg %p281
        $region150: #{res2net1_forward.1} parent=107 // pred_check_branch
          %905 = sbr.rel (%p903) target = $region152
        $region151: #{res2net1_forward.1} parent=107 // pred_region
          %906 = dma.done [#allocation18], 1024
        $region152: #{res2net1_forward.1} parent=107 // pred_fallthru
          _
        // Predicated region
        $region153: #{res2net1_forward.1} parent=107 // pred_check
          %p907 = pneg %p302
        $region154: #{res2net1_forward.1} parent=107 // pred_check_branch
          %909 = sbr.rel (%p907) target = $region156
        $region155: #{res2net1_forward.1} parent=107 // pred_region
          %910 = dma.done [#allocation21], 1024
        $region156: #{res2net1_forward.1} parent=107 // pred_fallthru
          _
        // Predicated region
        $region157: #{res2net1_forward.1} parent=107 // pred_check
          %p911 = pneg %p323
        $region158: #{res2net1_forward.1} parent=107 // pred_check_branch
          %913 = sbr.rel (%p911) target = $region160
        $region159: #{res2net1_forward.1} parent=107 // pred_region
          %914 = dma.done [#allocation21], 1024
        $region160: #{res2net1_forward.1} parent=107 // pred_fallthru
          _
        // Predicated region
        $region161: #{res2net1_forward.1} parent=107 // pred_check
          %p915 = pneg %p344
        $region162: #{res2net1_forward.1} parent=107 // pred_check_branch
          %917 = sbr.rel (%p915) target = $region164
        $region163: #{res2net1_forward.1} parent=107 // pred_region
          %918 = dma.done [#allocation24], 1024
        $region164: #{res2net1_forward.1} parent=107 // pred_fallthru
          _
        // Predicated region
        $region165: #{res2net1_forward.1} parent=107 // pred_check
          %p919 = pneg %p365
        $region166: #{res2net1_forward.1} parent=107 // pred_check_branch
          %921 = sbr.rel (%p919) target = $region168
        $region167: #{res2net1_forward.1} parent=107 // pred_region
          %922 = dma.done [#allocation24], 1024
        $region168: #{res2net1_forward.1} parent=107 // pred_fallthru
          _
        // Predicated region
        $region169: #{res2net1_forward.1} parent=107 // pred_check
          %p923 = pneg %p386
        $region170: #{res2net1_forward.1} parent=107 // pred_check_branch
          %925 = sbr.rel (%p923) target = $region172
        $region171: #{res2net1_forward.1} parent=107 // pred_region
          %926 = dma.done [#allocation27], 1024
        $region172: #{res2net1_forward.1} parent=107 // pred_fallthru
          _
        // Predicated region
        $region173: #{res2net1_forward.1} parent=107 // pred_check
          %p927 = pneg %p407
        $region174: #{res2net1_forward.1} parent=107 // pred_check_branch
          %929 = sbr.rel (%p927) target = $region176
        $region175: #{res2net1_forward.1} parent=107 // pred_region
          %930 = dma.done [#allocation27], 1024
        $region176: #{res2net1_forward.1} parent=107 // pred_fallthru
          _
        // Predicated region
        $region177: #{res2net1_forward.1} parent=107 // pred_check
          %p931 = pneg %p428
        $region178: #{res2net1_forward.1} parent=107 // pred_check_branch
          %933 = sbr.rel (%p931) target = $region180
        $region179: #{res2net1_forward.1} parent=107 // pred_region
          %934 = dma.done [#allocation30], 1024
        $region180: #{res2net1_forward.1} parent=107 // pred_fallthru
          _
        // Predicated region
        $region181: #{res2net1_forward.1} parent=107 // pred_check
          %p935 = pneg %p449
        $region182: #{res2net1_forward.1} parent=107 // pred_check_branch
          %937 = sbr.rel (%p935) target = $region184
        $region183: #{res2net1_forward.1} parent=107 // pred_region
          %938 = dma.done [#allocation30], 1024
        $region184: #{res2net1_forward.1} parent=107 // pred_fallthru
          _
        // Predicated region
        $region185: #{res2net1_forward.1} parent=107 // pred_check
          %p939 = pneg %p470
        $region186: #{res2net1_forward.1} parent=107 // pred_check_branch
          %941 = sbr.rel (%p939) target = $region188
        $region187: #{res2net1_forward.1} parent=107 // pred_region
          %942 = dma.done [#allocation33], 1024
        $region188: #{res2net1_forward.1} parent=107 // pred_fallthru
          _
        // Predicated region
        $region189: #{res2net1_forward.1} parent=107 // pred_check
          %p943 = pneg %p491
        $region190: #{res2net1_forward.1} parent=107 // pred_check_branch
          %945 = sbr.rel (%p943) target = $region192
        $region191: #{res2net1_forward.1} parent=107 // pred_region
          %946 = dma.done [#allocation33], 1024
        $region192: #{res2net1_forward.1} parent=107 // pred_fallthru
          _
        // Predicated region
        $region193: #{res2net1_forward.1} parent=107 // pred_check
          %p947 = pneg %p512
        $region194: #{res2net1_forward.1} parent=107 // pred_check_branch
          %949 = sbr.rel (%p947) target = $region196
        $region195: #{res2net1_forward.1} parent=107 // pred_region
          %950 = dma.done [#allocation36], 1024
        $region196: #{res2net1_forward.1} parent=107 // pred_fallthru
          _
        %s951 = sand.u32 %s58, 1
        %s952 = scalar_lea.sflag [#allocation3], %s951
        %s953 = sand.u32 %s58, 1
        %s954 = smul.addr %s953, 128
        %s955 = scalar_lea.vmem [#allocation2], %s954
        %p956 = pneg %p71
        %p957 = pneg %p68
        %p958 = pneg %p92
        %p959 = pneg %p89
        %p960 = pneg %p113
        %p961 = pneg %p110
        %p962 = pneg %p134
        %p963 = pneg %p131
        %p964 = pneg %p155
        %p965 = pneg %p152
        %p966 = pneg %p176
        %p967 = pneg %p173
        %p968 = pneg %p197
        %p969 = pneg %p194
        %p970 = pneg %p218
        %p971 = pneg %p215
        %p972 = pneg %p239
        %p973 = pneg %p236
        %p974 = pneg %p260
        %p975 = pneg %p257
        %p976 = pneg %p281
        %p977 = pneg %p278
        %p978 = pneg %p302
        %p979 = pneg %p299
        %p980 = pneg %p323
        %p981 = pneg %p320
        %p982 = pneg %p344
        %p983 = pneg %p341
        %p984 = pneg %p365
        %p985 = pneg %p362
        %p986 = pneg %p386
        %p987 = pneg %p383
        %p988 = pneg %p407
        %p989 = pneg %p404
        %p990 = pneg %p428
        %p991 = pneg %p425
        %p992 = pneg %p449
        %p993 = pneg %p446
        %p994 = pneg %p470
        %p995 = pneg %p467
        %p996 = pneg %p491
        %p997 = pneg %p488
        %p998 = pneg %p512
        %p999 = pneg %p509
        %p1000 = pneg %p538
        %p1001 = pneg %p535
        %s1002 = sand.u32 %s525, 1
        %s1003 = scalar_lea.sflag [#allocation4], %s1002
        %s1004 = sand.u32 %s525, 1
        %s1005 = smul.addr %s1004, 128
        %s1006 = scalar_lea.vmem [#allocation37], %s1005
        %v1007 = vld [vmem:[%s862] sm:$0xff]
        %v1008 = vld [vmem:[%s862 + $0x8] sm:$0xff]
        %v1009 = vld [vmem:[%s862 + $0x10] sm:$0xff]
        %v1010 = vld [vmem:[%s862 + $0x18] sm:$0xff]
        %v1011 = vld [vmem:[%s862 + $0x20] sm:$0xff]
        %v1012 = vld [vmem:[%s862 + $0x28] sm:$0xff]
        %v1013 = vld [vmem:[%s862 + $0x30] sm:$0xff]
        %v1014 = vld [vmem:[%s862 + $0x38] sm:$0xff]
        %v1015 = vld [vmem:[%s862 + $0x40] sm:$0xff]
        %v1016 = vld [vmem:[%s862 + $0x48] sm:$0xff]
        %v1017 = vld [vmem:[%s862 + $0x50] sm:$0xff]
        %v1018 = vld [vmem:[%s862 + $0x58] sm:$0xff]
        %v1019 = vld [vmem:[%s862 + $0x60] sm:$0xff]
        %v1020 = vld [vmem:[%s862 + $0x68] sm:$0xff]
        %v1021 = vld [vmem:[%s862 + $0x70] sm:$0xff]
        %v1022 = vld [vmem:[%s862 + $0x78] sm:$0xff]
        %v1023 = vld [vmem:[#allocation7] sm:$0xff]
        %v1024 = vld [vmem:[#allocation7 + $0x8] sm:$0xff]
        %v1025 = vld [vmem:[#allocation7 + $0x10] sm:$0xff]
        %v1026 = vld [vmem:[#allocation7 + $0x18] sm:$0xff]
        %v1027 = vld [vmem:[#allocation7 + $0x20] sm:$0xff]
        %v1028 = vld [vmem:[#allocation7 + $0x28] sm:$0xff]
        %v1029 = vld [vmem:[#allocation7 + $0x30] sm:$0xff]
        %v1030 = vld [vmem:[#allocation7 + $0x38] sm:$0xff]
        %v1031 = vld [vmem:[#allocation8] sm:$0xff]
        %v1032 = vld [vmem:[#allocation8 + $0x8] sm:$0xff]
        %v1033 = vld [vmem:[#allocation8 + $0x10] sm:$0xff]
        %v1034 = vld [vmem:[#allocation8 + $0x18] sm:$0xff]
        %v1035 = vld [vmem:[#allocation8 + $0x20] sm:$0xff]
        %v1036 = vld [vmem:[#allocation8 + $0x28] sm:$0xff]
        %v1037 = vld [vmem:[#allocation8 + $0x30] sm:$0xff]
        %v1038 = vld [vmem:[#allocation8 + $0x38] sm:$0xff]
        %1040 = vset.pattern.permute.xlu0 0
        %1041 = vperm.xlu0 %1040, %v1031
        %v1042 = vpop.permute.xlu0 %1041
        %1045 = vset.pattern.permute.xlu0 0
        %1046 = vperm.xlu0 %1045, %v1032
        %v1047 = vpop.permute.xlu0 %1046
        %1050 = vset.pattern.permute.xlu0 0
        %1051 = vperm.xlu0 %1050, %v1033
        %v1052 = vpop.permute.xlu0 %1051
        %1055 = vset.pattern.permute.xlu0 0
        %1056 = vperm.xlu0 %1055, %v1034
        %v1057 = vpop.permute.xlu0 %1056
        %1060 = vset.pattern.permute.xlu0 0
        %1061 = vperm.xlu0 %1060, %v1035
        %v1062 = vpop.permute.xlu0 %1061
        %1065 = vset.pattern.permute.xlu0 0
        %1066 = vperm.xlu0 %1065, %v1036
        %v1067 = vpop.permute.xlu0 %1066
        %1070 = vset.pattern.permute.xlu0 0
        %1071 = vperm.xlu0 %1070, %v1037
        %v1072 = vpop.permute.xlu0 %1071
        %1075 = vset.pattern.permute.xlu0 0
        %1076 = vperm.xlu0 %1075, %v1038
        %v1077 = vpop.permute.xlu0 %1076
        %vm1079 = vcmask 523264
        %v1081 = vsel %vm1079, %v1023, 0
        %v1084 = vsel %vm1079, %v1024, 0
        %v1087 = vsel %vm1079, %v1025, 0
        %v1090 = vsel %vm1079, %v1026, 0
        %v1093 = vsel %vm1079, %v1027, 0
        %v1096 = vsel %vm1079, %v1028, 0
        %v1099 = vsel %vm1079, %v1029, 0
        %v1102 = vsel %vm1079, %v1030, 0
        %1104 = vmatprep.subr.mxu0 %v1008
        %1105 = vmatpush1.msra.mxu0 %v1007
        %1106 = vmatprep.subr.mxu0 %v1010
        %1107 = vmatpush1.msra.mxu0 %v1009
        %1108 = vmatprep.subr.mxu0 %v1012
        %1109 = vmatpush1.msra.mxu0 %v1011
        %1110 = vmatprep.subr.mxu0 %v1014
        %1111 = vmatpush1.msra.mxu0 %v1013
        %1112 = vmatprep.subr.mxu0 %v1016
        %1113 = vmatpush1.msra.mxu0 %v1015
        %1114 = vmatprep.subr.mxu0 %v1018
        %1115 = vmatpush1.msra.mxu0 %v1017
        %1116 = vmatprep.subr.mxu0 %v1020
        %1117 = vmatpush1.msra.mxu0 %v1019
        %1118 = vmatprep.subr.mxu0 %v1022
        %1119 = vmatpush1.msra.mxu0 %v1021
        %1120 = vmatprep.subr.mxu0 0.0
        %1121 = vmatpush1.msra.mxu0 0.0
        %1122 = vmatprep.subr.mxu0 0.0
        %1123 = vmatpush1.msra.mxu0 0.0
        %1124 = vmatprep.subr.mxu0 0.0
        %1125 = vmatpush1.msra.mxu0 0.0
        %1126 = vmatprep.subr.mxu0 0.0
        %1127 = vmatpush1.msra.mxu0 0.0
        %1128 = vmatprep.subr.mxu0 0.0
        %1129 = vmatpush1.msra.mxu0 0.0
        %1130 = vmatprep.subr.mxu0 0.0
        %1131 = vmatpush1.msra.mxu0 0.0
        %1132 = vmatprep.subr.mxu0 0.0
        %1133 = vmatpush1.msra.mxu0 0.0
        %1134 = vmatprep.subr.mxu0 0.0
        %1135 = vmatpush1.msra.mxu0 0.0
        %1136 = vmatprep.subr.mxu0 0.0
        %1137 = vmatpush1.msra.mxu0 0.0
        %1138 = vmatprep.subr.mxu0 0.0
        %1139 = vmatpush1.msra.mxu0 0.0
        %1140 = vmatprep.subr.mxu0 0.0
        %1141 = vmatpush1.msra.mxu0 0.0
        %1142 = vmatprep.subr.mxu0 0.0
        %1143 = vmatpush1.msra.mxu0 0.0
        %1144 = vmatprep.subr.mxu0 0.0
        %1145 = vmatpush1.msra.mxu0 0.0
        %1146 = vmatprep.subr.mxu0 0.0
        %1147 = vmatpush1.msra.mxu0 0.0
        %1148 = vmatprep.subr.mxu0 0.0
        %1149 = vmatpush1.msra.mxu0 0.0
        %1150 = vmatprep.subr.mxu0 0.0
        %1151 = vmatpush1.msra.mxu0 0.0
        %1152 = vmatprep.subr.mxu0 0.0
        %1153 = vmatpush1.msra.mxu0 0.0
        %1154 = vmatprep.subr.mxu0 0.0
        %1155 = vmatpush1.msra.mxu0 0.0
        %1156 = vmatprep.subr.mxu0 0.0
        %1157 = vmatpush1.msra.mxu0 0.0
        %1158 = vmatprep.subr.mxu0 0.0
        %1159 = vmatpush1.msra.mxu0 0.0
        %1160 = vmatprep.subr.mxu0 0.0
        %1161 = vmatpush1.msra.mxu0 0.0
        %1162 = vmatprep.subr.mxu0 0.0
        %1163 = vmatpush1.msra.mxu0 0.0
        %1164 = vmatprep.subr.mxu0 0.0
        %1165 = vmatpush1.msra.mxu0 0.0
        %1166 = vmatprep.subr.mxu0 0.0
        %1167 = vmatpush1.msra.mxu0 0.0
        %1168 = vmatprep.mubr.f32.mxu0 0.0
        %1169 = vmatmul.mubr.f32.gmra.mrb[0].mxu0 %v1081
        %v1170 = vpop.f32.mrb[0].mxu0
        %v1171 = vadd.f32 %v1042, %v1170
        %v1172 = vpop.f32.mrb[0].mxu0
        %v1173 = vadd.f32 %v1042, %v1172
        %1174 = vmatprep.mubr.f32.mxu0 0.0
        %1175 = vmatmul.mubr.f32.gmra.mrb[0].mxu0 %v1084
        %v1176 = vpop.f32.mrb[0].mxu0
        %v1177 = vadd.f32 %v1047, %v1176
        %v1178 = vpop.f32.mrb[0].mxu0
        %v1179 = vadd.f32 %v1047, %v1178
        %1180 = vmatprep.mubr.f32.mxu0 0.0
        %1181 = vmatmul.mubr.f32.gmra.mrb[0].mxu0 %v1087
        %v1182 = vpop.f32.mrb[0].mxu0
        %v1183 = vadd.f32 %v1052, %v1182
        %v1184 = vpop.f32.mrb[0].mxu0
        %v1185 = vadd.f32 %v1052, %v1184
        %1186 = vmatprep.mubr.f32.mxu0 0.0
        %1187 = vmatmul.mubr.f32.gmra.mrb[0].mxu0 %v1090
        %v1188 = vpop.f32.mrb[0].mxu0
        %v1189 = vadd.f32 %v1057, %v1188
        %v1190 = vpop.f32.mrb[0].mxu0
        %v1191 = vadd.f32 %v1057, %v1190
        %1192 = vmatprep.mubr.f32.mxu0 0.0
        %1193 = vmatmul.mubr.f32.gmra.mrb[0].mxu0 %v1093
        %v1194 = vpop.f32.mrb[0].mxu0
        %v1195 = vadd.f32 %v1062, %v1194
        %v1196 = vpop.f32.mrb[0].mxu0
        %v1197 = vadd.f32 %v1062, %v1196
        %1198 = vmatprep.mubr.f32.mxu0 0.0
        %1199 = vmatmul.mubr.f32.gmra.mrb[0].mxu0 %v1096
        %v1200 = vpop.f32.mrb[0].mxu0
        %v1201 = vadd.f32 %v1067, %v1200
        %v1202 = vpop.f32.mrb[0].mxu0
        %v1203 = vadd.f32 %v1067, %v1202
        %1204 = vmatprep.mubr.f32.mxu0 0.0
        %1205 = vmatmul.mubr.f32.gmra.mrb[0].mxu0 %v1099
        %v1206 = vpop.f32.mrb[0].mxu0
        %v1207 = vadd.f32 %v1072, %v1206
        %v1208 = vpop.f32.mrb[0].mxu0
        %v1209 = vadd.f32 %v1072, %v1208
        %1210 = vmatprep.mubr.f32.mxu0 0.0
        %1211 = vmatmul.mubr.f32.gmra.mrb[0].mxu0 %v1102
        %v1212 = vpop.f32.mrb[0].mxu0
        %v1213 = vadd.f32 %v1077, %v1212
        %v1214 = vpop.f32.mrb[0].mxu0
        %v1215 = vadd.f32 %v1077, %v1214
        %1216 = vdwg.mxu0
        %v1217 = vmax.f32 %v1171, 0.0
        %v1218 = vmax.f32 %v1173, 0.0
        %v1219 = vmax.f32 %v1177, 0.0
        %v1220 = vmax.f32 %v1179, 0.0
        %v1221 = vmax.f32 %v1183, 0.0
        %v1222 = vmax.f32 %v1185, 0.0
        %v1223 = vmax.f32 %v1189, 0.0
        %v1224 = vmax.f32 %v1191, 0.0
        %v1225 = vmax.f32 %v1195, 0.0
        %v1226 = vmax.f32 %v1197, 0.0
        %v1227 = vmax.f32 %v1201, 0.0
        %v1228 = vmax.f32 %v1203, 0.0
        %v1229 = vmax.f32 %v1207, 0.0
        %v1230 = vmax.f32 %v1209, 0.0
        %v1231 = vmax.f32 %v1213, 0.0
        %v1232 = vmax.f32 %v1215, 0.0
        %1233 = vrot.lane.b32.xlu0 %v1221, 73
        %v1234 = vpop.permute.xlu0 %1233
        %1235 = vrot.lane.b32.xlu0 %v1223, 73
        %v1236 = vpop.permute.xlu0 %1235
        %1237 = vrot.lane.b32.xlu0 %v1222, 73
        %v1238 = vpop.permute.xlu0 %1237
        %1239 = vrot.lane.b32.xlu0 %v1224, 73
        %v1240 = vpop.permute.xlu0 %1239
        %v1241 = vlaneseq
        %v1242 = vand.u32 %v1241, 127
        %vm1243 = vcmp.lt.s32.totalorder %v1242, 73
        %v1244 = vsel %vm1243, %v1234, %v1238
        %v1245 = vsel %vm1243, %v1236, %v1240
        %v1246 = vsel %vm1243, %v1238, %v1234
        %v1247 = vsel %vm1243, %v1240, %v1236
        %v1248 = vld [vmem:[#allocation5] sm:$0x3]
        %v1250 = vlaneseq
        %v1251 = vshrl.u32 %v1250, 7
        %v1252 = vsub.s32 0, %v1251
        %v1253 = vrot.slane %v1248, %v1252
        %v1254 = vlaneseq
        %v1255 = vshrl.u32 %v1254, 7
        %v1256 = vsub.s32 1, %v1255
        %v1257 = vrot.slane %v1248, %v1256
        %v1260 = vmul.f32 %v1246, %v1253
        %v1261 = vmul.f32 %v1244, %v1257
        %v1262 = vmul.f32 %v1247, %v1253
        %v1263 = vmul.f32 %v1245, %v1257
        %1264 = vrot.lane.b32.xlu0 %v1221, 72
        %v1265 = vpop.permute.xlu0 %1264
        %1266 = vrot.lane.b32.xlu0 %v1223, 72
        %v1267 = vpop.permute.xlu0 %1266
        %1268 = vrot.lane.b32.xlu0 %v1222, 72
        %v1269 = vpop.permute.xlu0 %1268
        %1270 = vrot.lane.b32.xlu0 %v1224, 72
        %v1271 = vpop.permute.xlu0 %1270
        %vm1272 = vcmp.lt.s32.totalorder %v1242, 72
        %v1273 = vsel %vm1272, %v1265, %v1269
        %v1274 = vsel %vm1272, %v1267, %v1271
        %v1275 = vsel %vm1272, %v1269, %v1265
        %v1276 = vsel %vm1272, %v1271, %v1267
        %s1277 = scalar_lea.vmem [#allocation5], 2
        %v1278 = vld [vmem:[%s1277] sm:$0x3]
        %v1280 = vlaneseq
        %v1281 = vshrl.u32 %v1280, 7
        %v1282 = vsub.s32 0, %v1281
        %v1283 = vrot.slane %v1278, %v1282
        %v1284 = vlaneseq
        %v1285 = vshrl.u32 %v1284, 7
        %v1286 = vsub.s32 1, %v1285
        %v1287 = vrot.slane %v1278, %v1286
        %v1290 = vmul.f32 %v1275, %v1283
        %v1291 = vmul.f32 %v1273, %v1287
        %v1292 = vmul.f32 %v1276, %v1283
        %v1293 = vmul.f32 %v1274, %v1287
        %1294 = vrot.lane.b32.xlu0 %v1221, 71
        %v1295 = vpop.permute.xlu0 %1294
        %1296 = vrot.lane.b32.xlu0 %v1223, 71
        %v1297 = vpop.permute.xlu0 %1296
        %1298 = vrot.lane.b32.xlu0 %v1222, 71
        %v1299 = vpop.permute.xlu0 %1298
        %1300 = vrot.lane.b32.xlu0 %v1224, 71
        %v1301 = vpop.permute.xlu0 %1300
        %vm1302 = vcmp.lt.s32.totalorder %v1242, 71
        %v1303 = vsel %vm1302, %v1295, %v1299
        %v1304 = vsel %vm1302, %v1297, %v1301
        %v1305 = vsel %vm1302, %v1299, %v1295
        %v1306 = vsel %vm1302, %v1301, %v1297
        %s1307 = scalar_lea.vmem [#allocation5], 4
        %v1308 = vld [vmem:[%s1307] sm:$0x3]
        %v1310 = vlaneseq
        %v1311 = vshrl.u32 %v1310, 7
        %v1312 = vsub.s32 0, %v1311
        %v1313 = vrot.slane %v1308, %v1312
        %v1314 = vlaneseq
        %v1315 = vshrl.u32 %v1314, 7
        %v1316 = vsub.s32 1, %v1315
        %v1317 = vrot.slane %v1308, %v1316
        %v1320 = vmul.f32 %v1305, %v1313
        %v1321 = vmul.f32 %v1303, %v1317
        %v1322 = vmul.f32 %v1306, %v1313
        %v1323 = vmul.f32 %v1304, %v1317
        %1324 = vrot.lane.b32.xlu0 %v1221, 65
        %v1325 = vpop.permute.xlu0 %1324
        %1326 = vrot.lane.b32.xlu0 %v1223, 65
        %v1327 = vpop.permute.xlu0 %1326
        %1328 = vrot.lane.b32.xlu0 %v1222, 65
        %v1329 = vpop.permute.xlu0 %1328
        %1330 = vrot.lane.b32.xlu0 %v1224, 65
        %v1331 = vpop.permute.xlu0 %1330
        %vm1332 = vcmp.lt.s32.totalorder %v1242, 65
        %v1333 = vsel %vm1332, %v1325, %v1329
        %v1334 = vsel %vm1332, %v1327, %v1331
        %v1335 = vsel %vm1332, %v1329, %v1325
        %v1336 = vsel %vm1332, %v1331, %v1327
        %s1337 = scalar_lea.vmem [#allocation5], 6
        %v1338 = vld [vmem:[%s1337] sm:$0x3]
        %v1340 = vlaneseq
        %v1341 = vshrl.u32 %v1340, 7
        %v1342 = vsub.s32 0, %v1341
        %v1343 = vrot.slane %v1338, %v1342
        %v1344 = vlaneseq
        %v1345 = vshrl.u32 %v1344, 7
        %v1346 = vsub.s32 1, %v1345
        %v1347 = vrot.slane %v1338, %v1346
        %v1350 = vmul.f32 %v1335, %v1343
        %v1351 = vmul.f32 %v1333, %v1347
        %v1352 = vmul.f32 %v1336, %v1343
        %v1353 = vmul.f32 %v1334, %v1347
        %1354 = vrot.lane.b32.xlu0 %v1221, 64
        %v1355 = vpop.permute.xlu0 %1354
        %1356 = vrot.lane.b32.xlu0 %v1223, 64
        %v1357 = vpop.permute.xlu0 %1356
        %1358 = vrot.lane.b32.xlu0 %v1222, 64
        %v1359 = vpop.permute.xlu0 %1358
        %1360 = vrot.lane.b32.xlu0 %v1224, 64
        %v1361 = vpop.permute.xlu0 %1360
        %vm1362 = vcmp.lt.s32.totalorder %v1242, 64
        %v1363 = vsel %vm1362, %v1355, %v1359
        %v1364 = vsel %vm1362, %v1357, %v1361
        %v1365 = vsel %vm1362, %v1359, %v1355
        %v1366 = vsel %vm1362, %v1361, %v1357
        %s1367 = scalar_lea.vmem [#allocation5], 8
        %v1368 = vld [vmem:[%s1367] sm:$0x3]
        %v1370 = vlaneseq
        %v1371 = vshrl.u32 %v1370, 7
        %v1372 = vsub.s32 0, %v1371
        %v1373 = vrot.slane %v1368, %v1372
        %v1374 = vlaneseq
        %v1375 = vshrl.u32 %v1374, 7
        %v1376 = vsub.s32 1, %v1375
        %v1377 = vrot.slane %v1368, %v1376
        %v1380 = vmul.f32 %v1365, %v1373
        %v1381 = vmul.f32 %v1363, %v1377
        %v1382 = vmul.f32 %v1366, %v1373
        %v1383 = vmul.f32 %v1364, %v1377
        %1384 = vrot.lane.b32.xlu0 %v1221, 63
        %v1385 = vpop.permute.xlu0 %1384
        %1386 = vrot.lane.b32.xlu0 %v1223, 63
        %v1387 = vpop.permute.xlu0 %1386
        %1388 = vrot.lane.b32.xlu0 %v1222, 63
        %v1389 = vpop.permute.xlu0 %1388
        %1390 = vrot.lane.b32.xlu0 %v1224, 63
        %v1391 = vpop.permute.xlu0 %1390
        %vm1392 = vcmp.lt.s32.totalorder %v1242, 63
        %v1393 = vsel %vm1392, %v1385, %v1389
        %v1394 = vsel %vm1392, %v1387, %v1391
        %v1395 = vsel %vm1392, %v1389, %v1385
        %v1396 = vsel %vm1392, %v1391, %v1387
        %s1397 = scalar_lea.vmem [#allocation5], 10
        %v1398 = vld [vmem:[%s1397] sm:$0x3]
        %v1400 = vlaneseq
        %v1401 = vshrl.u32 %v1400, 7
        %v1402 = vsub.s32 0, %v1401
        %v1403 = vrot.slane %v1398, %v1402
        %v1404 = vlaneseq
        %v1405 = vshrl.u32 %v1404, 7
        %v1406 = vsub.s32 1, %v1405
        %v1407 = vrot.slane %v1398, %v1406
        %v1410 = vmul.f32 %v1395, %v1403
        %v1411 = vmul.f32 %v1393, %v1407
        %v1412 = vmul.f32 %v1396, %v1403
        %v1413 = vmul.f32 %v1394, %v1407
        %1414 = vrot.lane.b32.xlu0 %v1221, 57
        %v1415 = vpop.permute.xlu0 %1414
        %1416 = vrot.lane.b32.xlu0 %v1223, 57
        %v1417 = vpop.permute.xlu0 %1416
        %1418 = vrot.lane.b32.xlu0 %v1222, 57
        %v1419 = vpop.permute.xlu0 %1418
        %1420 = vrot.lane.b32.xlu0 %v1224, 57
        %v1421 = vpop.permute.xlu0 %1420
        %vm1422 = vcmp.lt.s32.totalorder %v1242, 57
        %v1423 = vsel %vm1422, %v1415, %v1419
        %v1424 = vsel %vm1422, %v1417, %v1421
        %v1425 = vsel %vm1422, %v1419, %v1415
        %v1426 = vsel %vm1422, %v1421, %v1417
        %s1427 = scalar_lea.vmem [#allocation5], 12
        %v1428 = vld [vmem:[%s1427] sm:$0x3]
        %v1430 = vlaneseq
        %v1431 = vshrl.u32 %v1430, 7
        %v1432 = vsub.s32 0, %v1431
        %v1433 = vrot.slane %v1428, %v1432
        %v1434 = vlaneseq
        %v1435 = vshrl.u32 %v1434, 7
        %v1436 = vsub.s32 1, %v1435
        %v1437 = vrot.slane %v1428, %v1436
        %v1440 = vmul.f32 %v1425, %v1433
        %v1441 = vmul.f32 %v1423, %v1437
        %v1442 = vmul.f32 %v1426, %v1433
        %v1443 = vmul.f32 %v1424, %v1437
        %1444 = vrot.lane.b32.xlu0 %v1221, 56
        %v1445 = vpop.permute.xlu0 %1444
        %1446 = vrot.lane.b32.xlu0 %v1223, 56
        %v1447 = vpop.permute.xlu0 %1446
        %1448 = vrot.lane.b32.xlu0 %v1222, 56
        %v1449 = vpop.permute.xlu0 %1448
        %1450 = vrot.lane.b32.xlu0 %v1224, 56
        %v1451 = vpop.permute.xlu0 %1450
        %vm1452 = vcmp.lt.s32.totalorder %v1242, 56
        %v1453 = vsel %vm1452, %v1445, %v1449
        %v1454 = vsel %vm1452, %v1447, %v1451
        %v1455 = vsel %vm1452, %v1449, %v1445
        %v1456 = vsel %vm1452, %v1451, %v1447
        %s1457 = scalar_lea.vmem [#allocation5], 14
        %v1458 = vld [vmem:[%s1457] sm:$0x3]
        %v1460 = vlaneseq
        %v1461 = vshrl.u32 %v1460, 7
        %v1462 = vsub.s32 0, %v1461
        %v1463 = vrot.slane %v1458, %v1462
        %v1464 = vlaneseq
        %v1465 = vshrl.u32 %v1464, 7
        %v1466 = vsub.s32 1, %v1465
        %v1467 = vrot.slane %v1458, %v1466
        %v1470 = vmul.f32 %v1455, %v1463
        %v1471 = vmul.f32 %v1453, %v1467
        %v1472 = vmul.f32 %v1456, %v1463
        %v1473 = vmul.f32 %v1454, %v1467
        %1474 = vrot.lane.b32.xlu0 %v1221, 55
        %v1475 = vpop.permute.xlu0 %1474
        %1476 = vrot.lane.b32.xlu0 %v1223, 55
        %v1477 = vpop.permute.xlu0 %1476
        %1478 = vrot.lane.b32.xlu0 %v1222, 55
        %v1479 = vpop.permute.xlu0 %1478
        %1480 = vrot.lane.b32.xlu0 %v1224, 55
        %v1481 = vpop.permute.xlu0 %1480
        %vm1482 = vcmp.lt.s32.totalorder %v1242, 55
        %v1483 = vsel %vm1482, %v1475, %v1479
        %v1484 = vsel %vm1482, %v1477, %v1481
        %v1485 = vsel %vm1482, %v1479, %v1475
        %v1486 = vsel %vm1482, %v1481, %v1477
        %s1487 = scalar_lea.vmem [#allocation5], 16
        %v1488 = vld [vmem:[%s1487] sm:$0x3]
        %v1490 = vlaneseq
        %v1491 = vshrl.u32 %v1490, 7
        %v1492 = vsub.s32 0, %v1491
        %v1493 = vrot.slane %v1488, %v1492
        %v1494 = vlaneseq
        %v1495 = vshrl.u32 %v1494, 7
        %v1496 = vsub.s32 1, %v1495
        %v1497 = vrot.slane %v1488, %v1496
        %v1500 = vmul.f32 %v1485, %v1493
        %v1501 = vmul.f32 %v1483, %v1497
        %v1502 = vmul.f32 %v1486, %v1493
        %v1503 = vmul.f32 %v1484, %v1497
        %1504 = vrot.lane.b32.xlu0 %v1221, 9
        %v1505 = vpop.permute.xlu0 %1504
        %1506 = vrot.lane.b32.xlu0 %v1223, 9
        %v1507 = vpop.permute.xlu0 %1506
        %1508 = vrot.lane.b32.xlu0 %v1222, 9
        %v1509 = vpop.permute.xlu0 %1508
        %1510 = vrot.lane.b32.xlu0 %v1224, 9
        %v1511 = vpop.permute.xlu0 %1510
        %vm1512 = vcmp.lt.s32.totalorder %v1242, 9
        %v1513 = vsel %vm1512, %v1505, %v1509
        %v1514 = vsel %vm1512, %v1507, %v1511
        %v1515 = vsel %vm1512, %v1509, %v1505
        %v1516 = vsel %vm1512, %v1511, %v1507
        %s1517 = scalar_lea.vmem [#allocation5], 18
        %v1518 = vld [vmem:[%s1517] sm:$0x3]
        %v1520 = vlaneseq
        %v1521 = vshrl.u32 %v1520, 7
        %v1522 = vsub.s32 0, %v1521
        %v1523 = vrot.slane %v1518, %v1522
        %v1524 = vlaneseq
        %v1525 = vshrl.u32 %v1524, 7
        %v1526 = vsub.s32 1, %v1525
        %v1527 = vrot.slane %v1518, %v1526
        %v1530 = vmul.f32 %v1515, %v1523
        %v1531 = vmul.f32 %v1513, %v1527
        %v1532 = vmul.f32 %v1516, %v1523
        %v1533 = vmul.f32 %v1514, %v1527
        %1534 = vrot.lane.b32.xlu0 %v1221, 8
        %v1535 = vpop.permute.xlu0 %1534
        %1536 = vrot.lane.b32.xlu0 %v1223, 8
        %v1537 = vpop.permute.xlu0 %1536
        %1538 = vrot.lane.b32.xlu0 %v1222, 8
        %v1539 = vpop.permute.xlu0 %1538
        %1540 = vrot.lane.b32.xlu0 %v1224, 8
        %v1541 = vpop.permute.xlu0 %1540
        %vm1542 = vcmp.lt.s32.totalorder %v1242, 8
        %v1543 = vsel %vm1542, %v1535, %v1539
        %v1544 = vsel %vm1542, %v1537, %v1541
        %v1545 = vsel %vm1542, %v1539, %v1535
        %v1546 = vsel %vm1542, %v1541, %v1537
        %s1547 = scalar_lea.vmem [#allocation5], 20
        %v1548 = vld [vmem:[%s1547] sm:$0x3]
        %v1550 = vlaneseq
        %v1551 = vshrl.u32 %v1550, 7
        %v1552 = vsub.s32 0, %v1551
        %v1553 = vrot.slane %v1548, %v1552
        %v1554 = vlaneseq
        %v1555 = vshrl.u32 %v1554, 7
        %v1556 = vsub.s32 1, %v1555
        %v1557 = vrot.slane %v1548, %v1556
        %v1560 = vmul.f32 %v1545, %v1553
        %v1561 = vmul.f32 %v1543, %v1557
        %v1562 = vmul.f32 %v1546, %v1553
        %v1563 = vmul.f32 %v1544, %v1557
        %1564 = vrot.lane.b32.xlu0 %v1221, 7
        %v1565 = vpop.permute.xlu0 %1564
        %1566 = vrot.lane.b32.xlu0 %v1223, 7
        %v1567 = vpop.permute.xlu0 %1566
        %1568 = vrot.lane.b32.xlu0 %v1222, 7
        %v1569 = vpop.permute.xlu0 %1568
        %1570 = vrot.lane.b32.xlu0 %v1224, 7
        %v1571 = vpop.permute.xlu0 %1570
        %vm1572 = vcmp.lt.s32.totalorder %v1242, 7
        %v1573 = vsel %vm1572, %v1565, %v1569
        %v1574 = vsel %vm1572, %v1567, %v1571
        %v1575 = vsel %vm1572, %v1569, %v1565
        %v1576 = vsel %vm1572, %v1571, %v1567
        %s1577 = scalar_lea.vmem [#allocation5], 22
        %v1578 = vld [vmem:[%s1577] sm:$0x3]
        %v1580 = vlaneseq
        %v1581 = vshrl.u32 %v1580, 7
        %v1582 = vsub.s32 0, %v1581
        %v1583 = vrot.slane %v1578, %v1582
        %v1584 = vlaneseq
        %v1585 = vshrl.u32 %v1584, 7
        %v1586 = vsub.s32 1, %v1585
        %v1587 = vrot.slane %v1578, %v1586
        %v1590 = vmul.f32 %v1575, %v1583
        %v1591 = vmul.f32 %v1573, %v1587
        %v1592 = vmul.f32 %v1576, %v1583
        %v1593 = vmul.f32 %v1574, %v1587
        %1594 = vrot.lane.b32.xlu0 %v1221, 1
        %v1595 = vpop.permute.xlu0 %1594
        %1596 = vrot.lane.b32.xlu0 %v1223, 1
        %v1597 = vpop.permute.xlu0 %1596
        %1598 = vrot.lane.b32.xlu0 %v1222, 1
        %v1599 = vpop.permute.xlu0 %1598
        %1600 = vrot.lane.b32.xlu0 %v1224, 1
        %v1601 = vpop.permute.xlu0 %1600
        %vm1602 = vcmp.lt.s32.totalorder %v1242, 1
        %v1603 = vsel %vm1602, %v1595, %v1599
        %v1604 = vsel %vm1602, %v1597, %v1601
        %v1605 = vsel %vm1602, %v1599, %v1595
        %v1606 = vsel %vm1602, %v1601, %v1597
        %s1607 = scalar_lea.vmem [#allocation5], 24
        %v1608 = vld [vmem:[%s1607] sm:$0x3]
        %v1610 = vlaneseq
        %v1611 = vshrl.u32 %v1610, 7
        %v1612 = vsub.s32 0, %v1611
        %v1613 = vrot.slane %v1608, %v1612
        %v1614 = vlaneseq
        %v1615 = vshrl.u32 %v1614, 7
        %v1616 = vsub.s32 1, %v1615
        %v1617 = vrot.slane %v1608, %v1616
        %v1620 = vmul.f32 %v1605, %v1613
        %v1621 = vmul.f32 %v1603, %v1617
        %v1622 = vmul.f32 %v1606, %v1613
        %v1623 = vmul.f32 %v1604, %v1617
        %s1624 = scalar_lea.vmem [#allocation5], 26
        %v1625 = vld [vmem:[%s1624] sm:$0x3]
        %v1627 = vlaneseq
        %v1628 = vshrl.u32 %v1627, 7
        %v1629 = vsub.s32 0, %v1628
        %v1630 = vrot.slane %v1625, %v1629
        %v1631 = vlaneseq
        %v1632 = vshrl.u32 %v1631, 7
        %v1633 = vsub.s32 1, %v1632
        %v1634 = vrot.slane %v1625, %v1633
        %v1637 = vmul.f32 %v1221, %v1630
        %v1638 = vmul.f32 %v1222, %v1634
        %v1639 = vmul.f32 %v1223, %v1630
        %v1640 = vmul.f32 %v1224, %v1634
        %1641 = vrot.lane.b32.xlu0 %v1221, 127
        %v1642 = vpop.permute.xlu0 %1641
        %1643 = vrot.lane.b32.xlu0 %v1223, 127
        %v1644 = vpop.permute.xlu0 %1643
        %1645 = vrot.lane.b32.xlu0 %v1222, 127
        %v1646 = vpop.permute.xlu0 %1645
        %1647 = vrot.lane.b32.xlu0 %v1224, 127
        %v1648 = vpop.permute.xlu0 %1647
        %vm1649 = vcmp.lt.s32.totalorder %v1242, 127
        %v1650 = vsel %vm1649, %v1642, %v1646
        %v1651 = vsel %vm1649, %v1644, %v1648
        %v1652 = vsel %vm1649, %v1646, %v1642
        %v1653 = vsel %vm1649, %v1648, %v1644
        %s1654 = scalar_lea.vmem [#allocation5], 28
        %v1655 = vld [vmem:[%s1654] sm:$0x3]
        %v1657 = vlaneseq
        %v1658 = vshrl.u32 %v1657, 7
        %v1659 = vsub.s32 0, %v1658
        %v1660 = vrot.slane %v1655, %v1659
        %v1661 = vlaneseq
        %v1662 = vshrl.u32 %v1661, 7
        %v1663 = vsub.s32 1, %v1662
        %v1664 = vrot.slane %v1655, %v1663
        %v1667 = vmul.f32 %v1650, %v1660
        %v1668 = vmul.f32 %v1652, %v1664
        %v1669 = vmul.f32 %v1651, %v1660
        %v1670 = vmul.f32 %v1653, %v1664
        %1671 = vrot.lane.b32.xlu0 %v1221, 121
        %v1672 = vpop.permute.xlu0 %1671
        %1673 = vrot.lane.b32.xlu0 %v1223, 121
        %v1674 = vpop.permute.xlu0 %1673
        %1675 = vrot.lane.b32.xlu0 %v1222, 121
        %v1676 = vpop.permute.xlu0 %1675
        %1677 = vrot.lane.b32.xlu0 %v1224, 121
        %v1678 = vpop.permute.xlu0 %1677
        %vm1679 = vcmp.lt.s32.totalorder %v1242, 121
        %v1680 = vsel %vm1679, %v1672, %v1676
        %v1681 = vsel %vm1679, %v1674, %v1678
        %v1682 = vsel %vm1679, %v1676, %v1672
        %v1683 = vsel %vm1679, %v1678, %v1674
        %s1684 = scalar_lea.vmem [#allocation5], 30
        %v1685 = vld [vmem:[%s1684] sm:$0x3]
        %v1687 = vlaneseq
        %v1688 = vshrl.u32 %v1687, 7
        %v1689 = vsub.s32 0, %v1688
        %v1690 = vrot.slane %v1685, %v1689
        %v1691 = vlaneseq
        %v1692 = vshrl.u32 %v1691, 7
        %v1693 = vsub.s32 1, %v1692
        %v1694 = vrot.slane %v1685, %v1693
        %v1697 = vmul.f32 %v1680, %v1690
        %v1698 = vmul.f32 %v1682, %v1694
        %v1699 = vmul.f32 %v1681, %v1690
        %v1700 = vmul.f32 %v1683, %v1694
        %1701 = vrot.lane.b32.xlu0 %v1221, 120
        %v1702 = vpop.permute.xlu0 %1701
        %1703 = vrot.lane.b32.xlu0 %v1223, 120
        %v1704 = vpop.permute.xlu0 %1703
        %1705 = vrot.lane.b32.xlu0 %v1222, 120
        %v1706 = vpop.permute.xlu0 %1705
        %1707 = vrot.lane.b32.xlu0 %v1224, 120
        %v1708 = vpop.permute.xlu0 %1707
        %vm1709 = vcmp.lt.s32.totalorder %v1242, 120
        %v1710 = vsel %vm1709, %v1702, %v1706
        %v1711 = vsel %vm1709, %v1704, %v1708
        %v1712 = vsel %vm1709, %v1706, %v1702
        %v1713 = vsel %vm1709, %v1708, %v1704
        %s1714 = scalar_lea.vmem [#allocation5], 32
        %v1715 = vld [vmem:[%s1714] sm:$0x3]
        %v1717 = vlaneseq
        %v1718 = vshrl.u32 %v1717, 7
        %v1719 = vsub.s32 0, %v1718
        %v1720 = vrot.slane %v1715, %v1719
        %v1721 = vlaneseq
        %v1722 = vshrl.u32 %v1721, 7
        %v1723 = vsub.s32 1, %v1722
        %v1724 = vrot.slane %v1715, %v1723
        %v1727 = vmul.f32 %v1710, %v1720
        %v1728 = vmul.f32 %v1712, %v1724
        %v1729 = vmul.f32 %v1711, %v1720
        %v1730 = vmul.f32 %v1713, %v1724
        %1731 = vrot.lane.b32.xlu0 %v1221, 119
        %v1732 = vpop.permute.xlu0 %1731
        %1733 = vrot.lane.b32.xlu0 %v1223, 119
        %v1734 = vpop.permute.xlu0 %1733
        %1735 = vrot.lane.b32.xlu0 %v1222, 119
        %v1736 = vpop.permute.xlu0 %1735
        %1737 = vrot.lane.b32.xlu0 %v1224, 119
        %v1738 = vpop.permute.xlu0 %1737
        %vm1739 = vcmp.lt.s32.totalorder %v1242, 119
        %v1740 = vsel %vm1739, %v1732, %v1736
        %v1741 = vsel %vm1739, %v1734, %v1738
        %v1742 = vsel %vm1739, %v1736, %v1732
        %v1743 = vsel %vm1739, %v1738, %v1734
        %s1744 = scalar_lea.vmem [#allocation5], 34
        %v1745 = vld [vmem:[%s1744] sm:$0x3]
        %v1747 = vlaneseq
        %v1748 = vshrl.u32 %v1747, 7
        %v1749 = vsub.s32 0, %v1748
        %v1750 = vrot.slane %v1745, %v1749
        %v1751 = vlaneseq
        %v1752 = vshrl.u32 %v1751, 7
        %v1753 = vsub.s32 1, %v1752
        %v1754 = vrot.slane %v1745, %v1753
        %v1757 = vmul.f32 %v1740, %v1750
        %v1758 = vmul.f32 %v1742, %v1754
        %v1759 = vmul.f32 %v1741, %v1750
        %v1760 = vmul.f32 %v1743, %v1754
        %s1761 = scalar_lea.vmem [#allocation5], 36
        %v1762 = vld [vmem:[%s1761] sm:$0x3]
        %v1764 = vlaneseq
        %v1765 = vshrl.u32 %v1764, 7
        %v1766 = vsub.s32 0, %v1765
        %v1767 = vrot.slane %v1762, %v1766
        %v1768 = vlaneseq
        %v1769 = vshrl.u32 %v1768, 7
        %v1770 = vsub.s32 1, %v1769
        %v1771 = vrot.slane %v1762, %v1770
        %v1774 = vmul.f32 %v1244, %v1767
        %v1775 = vmul.f32 %v1246, %v1771
        %v1776 = vmul.f32 %v1245, %v1767
        %v1777 = vmul.f32 %v1247, %v1771
        %s1778 = scalar_lea.vmem [#allocation5], 38
        %v1779 = vld [vmem:[%s1778] sm:$0x3]
        %v1781 = vlaneseq
        %v1782 = vshrl.u32 %v1781, 7
        %v1783 = vsub.s32 0, %v1782
        %v1784 = vrot.slane %v1779, %v1783
        %v1785 = vlaneseq
        %v1786 = vshrl.u32 %v1785, 7
        %v1787 = vsub.s32 1, %v1786
        %v1788 = vrot.slane %v1779, %v1787
        %v1791 = vmul.f32 %v1273, %v1784
        %v1792 = vmul.f32 %v1275, %v1788
        %v1793 = vmul.f32 %v1274, %v1784
        %v1794 = vmul.f32 %v1276, %v1788
        %s1795 = scalar_lea.vmem [#allocation5], 40
        %v1796 = vld [vmem:[%s1795] sm:$0x3]
        %v1798 = vlaneseq
        %v1799 = vshrl.u32 %v1798, 7
        %v1800 = vsub.s32 0, %v1799
        %v1801 = vrot.slane %v1796, %v1800
        %v1802 = vlaneseq
        %v1803 = vshrl.u32 %v1802, 7
        %v1804 = vsub.s32 1, %v1803
        %v1805 = vrot.slane %v1796, %v1804
        %v1808 = vmul.f32 %v1303, %v1801
        %v1809 = vmul.f32 %v1305, %v1805
        %v1810 = vmul.f32 %v1304, %v1801
        %v1811 = vmul.f32 %v1306, %v1805
        %s1812 = scalar_lea.vmem [#allocation5], 42
        %v1813 = vld [vmem:[%s1812] sm:$0x3]
        %v1815 = vlaneseq
        %v1816 = vshrl.u32 %v1815, 7
        %v1817 = vsub.s32 0, %v1816
        %v1818 = vrot.slane %v1813, %v1817
        %v1819 = vlaneseq
        %v1820 = vshrl.u32 %v1819, 7
        %v1821 = vsub.s32 1, %v1820
        %v1822 = vrot.slane %v1813, %v1821
        %v1825 = vmul.f32 %v1333, %v1818
        %v1826 = vmul.f32 %v1335, %v1822
        %v1827 = vmul.f32 %v1334, %v1818
        %v1828 = vmul.f32 %v1336, %v1822
        %s1829 = scalar_lea.vmem [#allocation5], 44
        %v1830 = vld [vmem:[%s1829] sm:$0x3]
        %v1832 = vlaneseq
        %v1833 = vshrl.u32 %v1832, 7
        %v1834 = vsub.s32 0, %v1833
        %v1835 = vrot.slane %v1830, %v1834
        %v1836 = vlaneseq
        %v1837 = vshrl.u32 %v1836, 7
        %v1838 = vsub.s32 1, %v1837
        %v1839 = vrot.slane %v1830, %v1838
        %v1842 = vmul.f32 %v1363, %v1835
        %v1843 = vmul.f32 %v1365, %v1839
        %v1844 = vmul.f32 %v1364, %v1835
        %v1845 = vmul.f32 %v1366, %v1839
        %s1846 = scalar_lea.vmem [#allocation5], 46
        %v1847 = vld [vmem:[%s1846] sm:$0x3]
        %v1849 = vlaneseq
        %v1850 = vshrl.u32 %v1849, 7
        %v1851 = vsub.s32 0, %v1850
        %v1852 = vrot.slane %v1847, %v1851
        %v1853 = vlaneseq
        %v1854 = vshrl.u32 %v1853, 7
        %v1855 = vsub.s32 1, %v1854
        %v1856 = vrot.slane %v1847, %v1855
        %v1859 = vmul.f32 %v1393, %v1852
        %v1860 = vmul.f32 %v1395, %v1856
        %v1861 = vmul.f32 %v1394, %v1852
        %v1862 = vmul.f32 %v1396, %v1856
        %s1863 = scalar_lea.vmem [#allocation5], 48
        %v1864 = vld [vmem:[%s1863] sm:$0x3]
        %v1866 = vlaneseq
        %v1867 = vshrl.u32 %v1866, 7
        %v1868 = vsub.s32 0, %v1867
        %v1869 = vrot.slane %v1864, %v1868
        %v1870 = vlaneseq
        %v1871 = vshrl.u32 %v1870, 7
        %v1872 = vsub.s32 1, %v1871
        %v1873 = vrot.slane %v1864, %v1872
        %v1876 = vmul.f32 %v1423, %v1869
        %v1877 = vmul.f32 %v1425, %v1873
        %v1878 = vmul.f32 %v1424, %v1869
        %v1879 = vmul.f32 %v1426, %v1873
        %s1880 = scalar_lea.vmem [#allocation5], 50
        %v1881 = vld [vmem:[%s1880] sm:$0x3]
        %v1883 = vlaneseq
        %v1884 = vshrl.u32 %v1883, 7
        %v1885 = vsub.s32 0, %v1884
        %v1886 = vrot.slane %v1881, %v1885
        %v1887 = vlaneseq
        %v1888 = vshrl.u32 %v1887, 7
        %v1889 = vsub.s32 1, %v1888
        %v1890 = vrot.slane %v1881, %v1889
        %v1893 = vmul.f32 %v1453, %v1886
        %v1894 = vmul.f32 %v1455, %v1890
        %v1895 = vmul.f32 %v1454, %v1886
        %v1896 = vmul.f32 %v1456, %v1890
        %s1897 = scalar_lea.vmem [#allocation5], 52
        %v1898 = vld [vmem:[%s1897] sm:$0x3]
        %v1900 = vlaneseq
        %v1901 = vshrl.u32 %v1900, 7
        %v1902 = vsub.s32 0, %v1901
        %v1903 = vrot.slane %v1898, %v1902
        %v1904 = vlaneseq
        %v1905 = vshrl.u32 %v1904, 7
        %v1906 = vsub.s32 1, %v1905
        %v1907 = vrot.slane %v1898, %v1906
        %v1910 = vmul.f32 %v1483, %v1903
        %v1911 = vmul.f32 %v1485, %v1907
        %v1912 = vmul.f32 %v1484, %v1903
        %v1913 = vmul.f32 %v1486, %v1907
        %v1914 = vld [vmem:[#allocation10] sm:$0xff]
        %v1915 = vld [vmem:[#allocation10 + $0x8] sm:$0xff]
        %v1916 = vld [vmem:[#allocation10 + $0x10] sm:$0xff]
        %v1917 = vld [vmem:[#allocation10 + $0x18] sm:$0xff]
        %v1918 = vld [vmem:[#allocation10 + $0x20] sm:$0xff]
        %v1919 = vld [vmem:[#allocation10 + $0x28] sm:$0xff]
        %v1920 = vld [vmem:[#allocation10 + $0x30] sm:$0xff]
        %v1921 = vld [vmem:[#allocation10 + $0x38] sm:$0xff]
        %v1922 = vld [vmem:[#allocation11] sm:$0xff]
        %v1923 = vld [vmem:[#allocation11 + $0x8] sm:$0xff]
        %1925 = vset.pattern.permute.xlu0 0
        %1926 = vperm.xlu0 %1925, %v1922
        %v1927 = vpop.permute.xlu0 %1926
        %1930 = vset.pattern.permute.xlu0 0
        %1931 = vperm.xlu0 %1930, %v1923
        %v1932 = vpop.permute.xlu0 %1931
        %vm1934 = vcmask 392192
        %v1936 = vsel %vm1934, %v1917, 0
        %v1939 = vsel %vm1934, %v1921, 0
        %1941 = vmatprep.subr.mxu0 %v1261
        %1942 = vmatpush1.msra.mxu0 %v1260
        %1943 = vmatprep.subr.mxu0 %v1263
        %1944 = vmatpush1.msra.mxu0 %v1262
        %1945 = vmatprep.subr.mxu0 %v1291
        %1946 = vmatpush1.msra.mxu0 %v1290
        %1947 = vmatprep.subr.mxu0 %v1293
        %1948 = vmatpush1.msra.mxu0 %v1292
        %1949 = vmatprep.subr.mxu0 %v1321
        %1950 = vmatpush1.msra.mxu0 %v1320
        %1951 = vmatprep.subr.mxu0 %v1323
        %1952 = vmatpush1.msra.mxu0 %v1322
        %1953 = vmatprep.subr.mxu0 %v1351
        %1954 = vmatpush1.msra.mxu0 %v1350
        %1955 = vmatprep.subr.mxu0 %v1353
        %1956 = vmatpush1.msra.mxu0 %v1352
        %1957 = vmatprep.subr.mxu0 %v1381
        %1958 = vmatpush1.msra.mxu0 %v1380
        %1959 = vmatprep.subr.mxu0 %v1383
        %1960 = vmatpush1.msra.mxu0 %v1382
        %1961 = vmatprep.subr.mxu0 %v1411
        %1962 = vmatpush1.msra.mxu0 %v1410
        %1963 = vmatprep.subr.mxu0 %v1413
        %1964 = vmatpush1.msra.mxu0 %v1412
        %1965 = vmatprep.subr.mxu0 %v1441
        %1966 = vmatpush1.msra.mxu0 %v1440
        %1967 = vmatprep.subr.mxu0 %v1443
        %1968 = vmatpush1.msra.mxu0 %v1442
        %1969 = vmatprep.subr.mxu0 %v1471
        %1970 = vmatpush1.msra.mxu0 %v1470
        %1971 = vmatprep.subr.mxu0 %v1473
        %1972 = vmatpush1.msra.mxu0 %v1472
        %1973 = vmatprep.subr.mxu0 %v1501
        %1974 = vmatpush1.msra.mxu0 %v1500
        %1975 = vmatprep.subr.mxu0 %v1503
        %1976 = vmatpush1.msra.mxu0 %v1502
        %1977 = vmatprep.subr.mxu0 %v1531
        %1978 = vmatpush1.msra.mxu0 %v1530
        %1979 = vmatprep.subr.mxu0 %v1533
        %1980 = vmatpush1.msra.mxu0 %v1532
        %1981 = vmatprep.subr.mxu0 %v1561
        %1982 = vmatpush1.msra.mxu0 %v1560
        %1983 = vmatprep.subr.mxu0 %v1563
        %1984 = vmatpush1.msra.mxu0 %v1562
        %1985 = vmatprep.subr.mxu0 %v1591
        %1986 = vmatpush1.msra.mxu0 %v1590
        %1987 = vmatprep.subr.mxu0 %v1593
        %1988 = vmatpush1.msra.mxu0 %v1592
        %1989 = vmatprep.subr.mxu0 %v1621
        %1990 = vmatpush1.msra.mxu0 %v1620
        %1991 = vmatprep.subr.mxu0 %v1623
        %1992 = vmatpush1.msra.mxu0 %v1622
        %1993 = vmatprep.subr.mxu0 %v1638
        %1994 = vmatpush1.msra.mxu0 %v1637
        %1995 = vmatprep.subr.mxu0 %v1640
        %1996 = vmatpush1.msra.mxu0 %v1639
        %1997 = vmatprep.subr.mxu0 %v1668
        %1998 = vmatpush1.msra.mxu0 %v1667
        %1999 = vmatprep.subr.mxu0 %v1670
        %2000 = vmatpush1.msra.mxu0 %v1669
        %2001 = vmatprep.subr.mxu0 %v1698
        %2002 = vmatpush1.msra.mxu0 %v1697
        %2003 = vmatprep.subr.mxu0 %v1700
        %2004 = vmatpush1.msra.mxu0 %v1699
        %2005 = vmatprep.mubr.f32.mxu0 %v1915
        %2006 = vmatmul.mubr.f32.gmra.mrb[0].mxu0 %v1914
        %v2007 = vpop.f32.mrb[0].mxu0
        %v2008 = vadd.f32 %v1927, %v2007
        %v2009 = vpop.f32.mrb[0].mxu0
        %v2010 = vadd.f32 %v1927, %v2009
        %2011 = vmatprep.mubr.f32.mxu0 %v1919
        %2012 = vmatmul.mubr.f32.gmra.mrb[0].mxu0 %v1918
        %v2013 = vpop.f32.mrb[0].mxu0
        %v2014 = vadd.f32 %v1932, %v2013
        %v2015 = vpop.f32.mrb[0].mxu0
        %v2016 = vadd.f32 %v1932, %v2015
        %2017 = vdwg.mxu0
        %2018 = vmatprep.subr.mxu0 %v1728
        %2019 = vmatpush1.msra.mxu0 %v1727
        %2020 = vmatprep.subr.mxu0 %v1730
        %2021 = vmatpush1.msra.mxu0 %v1729
        %2022 = vmatprep.subr.mxu0 %v1758
        %2023 = vmatpush1.msra.mxu0 %v1757
        %2024 = vmatprep.subr.mxu0 %v1760
        %2025 = vmatpush1.msra.mxu0 %v1759
        %2026 = vmatprep.subr.mxu0 %v1775
        %2027 = vmatpush1.msra.mxu0 %v1774
        %2028 = vmatprep.subr.mxu0 %v1777
        %2029 = vmatpush1.msra.mxu0 %v1776
        %2030 = vmatprep.subr.mxu0 %v1792
        %2031 = vmatpush1.msra.mxu0 %v1791
        %2032 = vmatprep.subr.mxu0 %v1794
        %2033 = vmatpush1.msra.mxu0 %v1793
        %2034 = vmatprep.subr.mxu0 %v1809
        %2035 = vmatpush1.msra.mxu0 %v1808
        %2036 = vmatprep.subr.mxu0 %v1811
        %2037 = vmatpush1.msra.mxu0 %v1810
        %2038 = vmatprep.subr.mxu0 %v1826
        %2039 = vmatpush1.msra.mxu0 %v1825
        %2040 = vmatprep.subr.mxu0 %v1828
        %2041 = vmatpush1.msra.mxu0 %v1827
        %2042 = vmatprep.subr.mxu0 %v1843
        %2043 = vmatpush1.msra.mxu0 %v1842
        %2044 = vmatprep.subr.mxu0 %v1845
        %2045 = vmatpush1.msra.mxu0 %v1844
        %2046 = vmatprep.subr.mxu0 %v1860
        %2047 = vmatpush1.msra.mxu0 %v1859
        %2048 = vmatprep.subr.mxu0 %v1862
        %2049 = vmatpush1.msra.mxu0 %v1861
        %2050 = vmatprep.subr.mxu0 %v1877
        %2051 = vmatpush1.msra.mxu0 %v1876
        %2052 = vmatprep.subr.mxu0 %v1879
        %2053 = vmatpush1.msra.mxu0 %v1878
        %2054 = vmatprep.subr.mxu0 %v1894
        %2055 = vmatpush1.msra.mxu0 %v1893
        %2056 = vmatprep.subr.mxu0 %v1896
        %2057 = vmatpush1.msra.mxu0 %v1895
        %2058 = vmatprep.subr.mxu0 %v1911
        %2059 = vmatpush1.msra.mxu0 %v1910
        %2060 = vmatprep.subr.mxu0 %v1913
        %2061 = vmatpush1.msra.mxu0 %v1912
        %2062 = vmatprep.subr.mxu0 0.0
        %2063 = vmatpush1.msra.mxu0 0.0
        %2064 = vmatprep.subr.mxu0 0.0
        %2065 = vmatpush1.msra.mxu0 0.0
        %2066 = vmatprep.subr.mxu0 0.0
        %2067 = vmatpush1.msra.mxu0 0.0
        %2068 = vmatprep.subr.mxu0 0.0
        %2069 = vmatpush1.msra.mxu0 0.0
        %2070 = vmatprep.subr.mxu0 0.0
        %2071 = vmatpush1.msra.mxu0 0.0
        %2072 = vmatprep.subr.mxu0 0.0
        %2073 = vmatpush1.msra.mxu0 0.0
        %2074 = vmatprep.subr.mxu0 0.0
        %2075 = vmatpush1.msra.mxu0 0.0
        %2076 = vmatprep.subr.mxu0 0.0
        %2077 = vmatpush1.msra.mxu0 0.0
        %2078 = vmatprep.subr.mxu0 0.0
        %2079 = vmatpush1.msra.mxu0 0.0
        %2080 = vmatprep.subr.mxu0 0.0
        %2081 = vmatpush1.msra.mxu0 0.0
        %2082 = vmatprep.mubr.f32.mxu0 %v1936
        %2083 = vmatmul.mubr.f32.gmra.mrb[0].mxu0 %v1916
        %v2084 = vpop.f32.mrb[0].mxu0
        %v2085 = vadd.f32 %v2008, %v2084
        %v2086 = vpop.f32.mrb[0].mxu0
        %v2087 = vadd.f32 %v2010, %v2086
        %2088 = vmatprep.mubr.f32.mxu0 %v1939
        %2089 = vmatmul.mubr.f32.gmra.mrb[0].mxu0 %v1920
        %v2090 = vpop.f32.mrb[0].mxu0
        %v2091 = vadd.f32 %v2014, %v2090
        %v2092 = vpop.f32.mrb[0].mxu0
        %v2093 = vadd.f32 %v2016, %v2092
        %2094 = vdwg.mxu0
        %v2095 = vmax.f32 %v2085, 0.0
        %v2096 = vmax.f32 %v2087, 0.0
        %v2097 = vmax.f32 %v2091, 0.0
        %v2098 = vmax.f32 %v2093, 0.0
        %v2099 = vadd.f32 %v1225, %v2095
        %v2100 = vadd.f32 %v1226, %v2096
        %v2101 = vadd.f32 %v1227, %v2097
        %v2102 = vadd.f32 %v1228, %v2098
        %2103 = vrot.lane.b32.xlu0 %v2099, 73
        %v2104 = vpop.permute.xlu0 %2103
        %2105 = vrot.lane.b32.xlu0 %v2101, 73
        %v2106 = vpop.permute.xlu0 %2105
        %2107 = vrot.lane.b32.xlu0 %v2100, 73
        %v2108 = vpop.permute.xlu0 %2107
        %2109 = vrot.lane.b32.xlu0 %v2102, 73
        %v2110 = vpop.permute.xlu0 %2109
        %v2111 = vsel %vm1243, %v2104, %v2108
        %v2112 = vsel %vm1243, %v2106, %v2110
        %v2113 = vsel %vm1243, %v2108, %v2104
        %v2114 = vsel %vm1243, %v2110, %v2106
        %v2115 = vmul.f32 %v2113, %v1253
        %v2116 = vmul.f32 %v2111, %v1257
        %v2117 = vmul.f32 %v2114, %v1253
        %v2118 = vmul.f32 %v2112, %v1257
        %2119 = vrot.lane.b32.xlu0 %v2099, 72
        %v2120 = vpop.permute.xlu0 %2119
        %2121 = vrot.lane.b32.xlu0 %v2101, 72
        %v2122 = vpop.permute.xlu0 %2121
        %2123 = vrot.lane.b32.xlu0 %v2100, 72
        %v2124 = vpop.permute.xlu0 %2123
        %2125 = vrot.lane.b32.xlu0 %v2102, 72
        %v2126 = vpop.permute.xlu0 %2125
        %v2127 = vsel %vm1272, %v2120, %v2124
        %v2128 = vsel %vm1272, %v2122, %v2126
        %v2129 = vsel %vm1272, %v2124, %v2120
        %v2130 = vsel %vm1272, %v2126, %v2122
        %v2131 = vmul.f32 %v2129, %v1283
        %v2132 = vmul.f32 %v2127, %v1287
        %v2133 = vmul.f32 %v2130, %v1283
        %v2134 = vmul.f32 %v2128, %v1287
        %2135 = vrot.lane.b32.xlu0 %v2099, 71
        %v2136 = vpop.permute.xlu0 %2135
        %2137 = vrot.lane.b32.xlu0 %v2101, 71
        %v2138 = vpop.permute.xlu0 %2137
        %2139 = vrot.lane.b32.xlu0 %v2100, 71
        %v2140 = vpop.permute.xlu0 %2139
        %2141 = vrot.lane.b32.xlu0 %v2102, 71
        %v2142 = vpop.permute.xlu0 %2141
        %v2143 = vsel %vm1302, %v2136, %v2140
        %v2144 = vsel %vm1302, %v2138, %v2142
        %v2145 = vsel %vm1302, %v2140, %v2136
        %v2146 = vsel %vm1302, %v2142, %v2138
        %v2147 = vmul.f32 %v2145, %v1313
        %v2148 = vmul.f32 %v2143, %v1317
        %v2149 = vmul.f32 %v2146, %v1313
        %v2150 = vmul.f32 %v2144, %v1317
        %2151 = vrot.lane.b32.xlu0 %v2099, 65
        %v2152 = vpop.permute.xlu0 %2151
        %2153 = vrot.lane.b32.xlu0 %v2101, 65
        %v2154 = vpop.permute.xlu0 %2153
        %2155 = vrot.lane.b32.xlu0 %v2100, 65
        %v2156 = vpop.permute.xlu0 %2155
        %2157 = vrot.lane.b32.xlu0 %v2102, 65
        %v2158 = vpop.permute.xlu0 %2157
        %v2159 = vsel %vm1332, %v2152, %v2156
        %v2160 = vsel %vm1332, %v2154, %v2158
        %v2161 = vsel %vm1332, %v2156, %v2152
        %v2162 = vsel %vm1332, %v2158, %v2154
        %v2163 = vmul.f32 %v2161, %v1343
        %v2164 = vmul.f32 %v2159, %v1347
        %v2165 = vmul.f32 %v2162, %v1343
        %v2166 = vmul.f32 %v2160, %v1347
        %2167 = vrot.lane.b32.xlu0 %v2099, 64
        %v2168 = vpop.permute.xlu0 %2167
        %2169 = vrot.lane.b32.xlu0 %v2101, 64
        %v2170 = vpop.permute.xlu0 %2169
        %2171 = vrot.lane.b32.xlu0 %v2100, 64
        %v2172 = vpop.permute.xlu0 %2171
        %2173 = vrot.lane.b32.xlu0 %v2102, 64
        %v2174 = vpop.permute.xlu0 %2173
        %v2175 = vsel %vm1362, %v2168, %v2172
        %v2176 = vsel %vm1362, %v2170, %v2174
        %v2177 = vsel %vm1362, %v2172, %v2168
        %v2178 = vsel %vm1362, %v2174, %v2170
        %v2179 = vmul.f32 %v2177, %v1373
        %v2180 = vmul.f32 %v2175, %v1377
        %v2181 = vmul.f32 %v2178, %v1373
        %v2182 = vmul.f32 %v2176, %v1377
        %2183 = vrot.lane.b32.xlu0 %v2099, 63
        %v2184 = vpop.permute.xlu0 %2183
        %2185 = vrot.lane.b32.xlu0 %v2101, 63
        %v2186 = vpop.permute.xlu0 %2185
        %2187 = vrot.lane.b32.xlu0 %v2100, 63
        %v2188 = vpop.permute.xlu0 %2187
        %2189 = vrot.lane.b32.xlu0 %v2102, 63
        %v2190 = vpop.permute.xlu0 %2189
        %v2191 = vsel %vm1392, %v2184, %v2188
        %v2192 = vsel %vm1392, %v2186, %v2190
        %v2193 = vsel %vm1392, %v2188, %v2184
        %v2194 = vsel %vm1392, %v2190, %v2186
        %v2195 = vmul.f32 %v2193, %v1403
        %v2196 = vmul.f32 %v2191, %v1407
        %v2197 = vmul.f32 %v2194, %v1403
        %v2198 = vmul.f32 %v2192, %v1407
        %2199 = vrot.lane.b32.xlu0 %v2099, 57
        %v2200 = vpop.permute.xlu0 %2199
        %2201 = vrot.lane.b32.xlu0 %v2101, 57
        %v2202 = vpop.permute.xlu0 %2201
        %2203 = vrot.lane.b32.xlu0 %v2100, 57
        %v2204 = vpop.permute.xlu0 %2203
        %2205 = vrot.lane.b32.xlu0 %v2102, 57
        %v2206 = vpop.permute.xlu0 %2205
        %v2207 = vsel %vm1422, %v2200, %v2204
        %v2208 = vsel %vm1422, %v2202, %v2206
        %v2209 = vsel %vm1422, %v2204, %v2200
        %v2210 = vsel %vm1422, %v2206, %v2202
        %v2211 = vmul.f32 %v2209, %v1433
        %v2212 = vmul.f32 %v2207, %v1437
        %v2213 = vmul.f32 %v2210, %v1433
        %v2214 = vmul.f32 %v2208, %v1437
        %2215 = vrot.lane.b32.xlu0 %v2099, 56
        %v2216 = vpop.permute.xlu0 %2215
        %2217 = vrot.lane.b32.xlu0 %v2101, 56
        %v2218 = vpop.permute.xlu0 %2217
        %2219 = vrot.lane.b32.xlu0 %v2100, 56
        %v2220 = vpop.permute.xlu0 %2219
        %2221 = vrot.lane.b32.xlu0 %v2102, 56
        %v2222 = vpop.permute.xlu0 %2221
        %v2223 = vsel %vm1452, %v2216, %v2220
        %v2224 = vsel %vm1452, %v2218, %v2222
        %v2225 = vsel %vm1452, %v2220, %v2216
        %v2226 = vsel %vm1452, %v2222, %v2218
        %v2227 = vmul.f32 %v2225, %v1463
        %v2228 = vmul.f32 %v2223, %v1467
        %v2229 = vmul.f32 %v2226, %v1463
        %v2230 = vmul.f32 %v2224, %v1467
        %2231 = vrot.lane.b32.xlu0 %v2099, 55
        %v2232 = vpop.permute.xlu0 %2231
        %2233 = vrot.lane.b32.xlu0 %v2101, 55
        %v2234 = vpop.permute.xlu0 %2233
        %2235 = vrot.lane.b32.xlu0 %v2100, 55
        %v2236 = vpop.permute.xlu0 %2235
        %2237 = vrot.lane.b32.xlu0 %v2102, 55
        %v2238 = vpop.permute.xlu0 %2237
        %v2239 = vsel %vm1482, %v2232, %v2236
        %v2240 = vsel %vm1482, %v2234, %v2238
        %v2241 = vsel %vm1482, %v2236, %v2232
        %v2242 = vsel %vm1482, %v2238, %v2234
        %v2243 = vmul.f32 %v2241, %v1493
        %v2244 = vmul.f32 %v2239, %v1497
        %v2245 = vmul.f32 %v2242, %v1493
        %v2246 = vmul.f32 %v2240, %v1497
        %2247 = vrot.lane.b32.xlu0 %v2099, 9
        %v2248 = vpop.permute.xlu0 %2247
        %2249 = vrot.lane.b32.xlu0 %v2101, 9
        %v2250 = vpop.permute.xlu0 %2249
        %2251 = vrot.lane.b32.xlu0 %v2100, 9
        %v2252 = vpop.permute.xlu0 %2251
        %2253 = vrot.lane.b32.xlu0 %v2102, 9
        %v2254 = vpop.permute.xlu0 %2253
        %v2255 = vsel %vm1512, %v2248, %v2252
        %v2256 = vsel %vm1512, %v2250, %v2254
        %v2257 = vsel %vm1512, %v2252, %v2248
        %v2258 = vsel %vm1512, %v2254, %v2250
        %v2259 = vmul.f32 %v2257, %v1523
        %v2260 = vmul.f32 %v2255, %v1527
        %v2261 = vmul.f32 %v2258, %v1523
        %v2262 = vmul.f32 %v2256, %v1527
        %2263 = vrot.lane.b32.xlu0 %v2099, 8
        %v2264 = vpop.permute.xlu0 %2263
        %2265 = vrot.lane.b32.xlu0 %v2101, 8
        %v2266 = vpop.permute.xlu0 %2265
        %2267 = vrot.lane.b32.xlu0 %v2100, 8
        %v2268 = vpop.permute.xlu0 %2267
        %2269 = vrot.lane.b32.xlu0 %v2102, 8
        %v2270 = vpop.permute.xlu0 %2269
        %v2271 = vsel %vm1542, %v2264, %v2268
        %v2272 = vsel %vm1542, %v2266, %v2270
        %v2273 = vsel %vm1542, %v2268, %v2264
        %v2274 = vsel %vm1542, %v2270, %v2266
        %v2275 = vmul.f32 %v2273, %v1553
        %v2276 = vmul.f32 %v2271, %v1557
        %v2277 = vmul.f32 %v2274, %v1553
        %v2278 = vmul.f32 %v2272, %v1557
        %2279 = vrot.lane.b32.xlu0 %v2099, 7
        %v2280 = vpop.permute.xlu0 %2279
        %2281 = vrot.lane.b32.xlu0 %v2101, 7
        %v2282 = vpop.permute.xlu0 %2281
        %2283 = vrot.lane.b32.xlu0 %v2100, 7
        %v2284 = vpop.permute.xlu0 %2283
        %2285 = vrot.lane.b32.xlu0 %v2102, 7
        %v2286 = vpop.permute.xlu0 %2285
        %v2287 = vsel %vm1572, %v2280, %v2284
        %v2288 = vsel %vm1572, %v2282, %v2286
        %v2289 = vsel %vm1572, %v2284, %v2280
        %v2290 = vsel %vm1572, %v2286, %v2282
        %v2291 = vmul.f32 %v2289, %v1583
        %v2292 = vmul.f32 %v2287, %v1587
        %v2293 = vmul.f32 %v2290, %v1583
        %v2294 = vmul.f32 %v2288, %v1587
        %2295 = vrot.lane.b32.xlu0 %v2099, 1
        %v2296 = vpop.permute.xlu0 %2295
        %2297 = vrot.lane.b32.xlu0 %v2101, 1
        %v2298 = vpop.permute.xlu0 %2297
        %2299 = vrot.lane.b32.xlu0 %v2100, 1
        %v2300 = vpop.permute.xlu0 %2299
        %2301 = vrot.lane.b32.xlu0 %v2102, 1
        %v2302 = vpop.permute.xlu0 %2301
        %v2303 = vsel %vm1602, %v2296, %v2300
        %v2304 = vsel %vm1602, %v2298, %v2302
        %v2305 = vsel %vm1602, %v2300, %v2296
        %v2306 = vsel %vm1602, %v2302, %v2298
        %v2307 = vmul.f32 %v2305, %v1613
        %v2308 = vmul.f32 %v2303, %v1617
        %v2309 = vmul.f32 %v2306, %v1613
        %v2310 = vmul.f32 %v2304, %v1617
        %v2311 = vmul.f32 %v2099, %v1630
        %v2312 = vmul.f32 %v2100, %v1634
        %v2313 = vmul.f32 %v2101, %v1630
        %v2314 = vmul.f32 %v2102, %v1634
        %2315 = vrot.lane.b32.xlu0 %v2099, 127
        %v2316 = vpop.permute.xlu0 %2315
        %2317 = vrot.lane.b32.xlu0 %v2101, 127
        %v2318 = vpop.permute.xlu0 %2317
        %2319 = vrot.lane.b32.xlu0 %v2100, 127
        %v2320 = vpop.permute.xlu0 %2319
        %2321 = vrot.lane.b32.xlu0 %v2102, 127
        %v2322 = vpop.permute.xlu0 %2321
        %v2323 = vsel %vm1649, %v2316, %v2320
        %v2324 = vsel %vm1649, %v2318, %v2322
        %v2325 = vsel %vm1649, %v2320, %v2316
        %v2326 = vsel %vm1649, %v2322, %v2318
        %v2327 = vmul.f32 %v2323, %v1660
        %v2328 = vmul.f32 %v2325, %v1664
        %v2329 = vmul.f32 %v2324, %v1660
        %v2330 = vmul.f32 %v2326, %v1664
        %2331 = vrot.lane.b32.xlu0 %v2099, 121
        %v2332 = vpop.permute.xlu0 %2331
        %2333 = vrot.lane.b32.xlu0 %v2101, 121
        %v2334 = vpop.permute.xlu0 %2333
        %2335 = vrot.lane.b32.xlu0 %v2100, 121
        %v2336 = vpop.permute.xlu0 %2335
        %2337 = vrot.lane.b32.xlu0 %v2102, 121
        %v2338 = vpop.permute.xlu0 %2337
        %v2339 = vsel %vm1679, %v2332, %v2336
        %v2340 = vsel %vm1679, %v2334, %v2338
        %v2341 = vsel %vm1679, %v2336, %v2332
        %v2342 = vsel %vm1679, %v2338, %v2334
        %v2343 = vmul.f32 %v2339, %v1690
        %v2344 = vmul.f32 %v2341, %v1694
        %v2345 = vmul.f32 %v2340, %v1690
        %v2346 = vmul.f32 %v2342, %v1694
        %2347 = vrot.lane.b32.xlu0 %v2099, 120
        %v2348 = vpop.permute.xlu0 %2347
        %2349 = vrot.lane.b32.xlu0 %v2101, 120
        %v2350 = vpop.permute.xlu0 %2349
        %2351 = vrot.lane.b32.xlu0 %v2100, 120
        %v2352 = vpop.permute.xlu0 %2351
        %2353 = vrot.lane.b32.xlu0 %v2102, 120
        %v2354 = vpop.permute.xlu0 %2353
        %v2355 = vsel %vm1709, %v2348, %v2352
        %v2356 = vsel %vm1709, %v2350, %v2354
        %v2357 = vsel %vm1709, %v2352, %v2348
        %v2358 = vsel %vm1709, %v2354, %v2350
        %v2359 = vmul.f32 %v2355, %v1720
        %v2360 = vmul.f32 %v2357, %v1724
        %v2361 = vmul.f32 %v2356, %v1720
        %v2362 = vmul.f32 %v2358, %v1724
        %2363 = vrot.lane.b32.xlu0 %v2099, 119
        %v2364 = vpop.permute.xlu0 %2363
        %2365 = vrot.lane.b32.xlu0 %v2101, 119
        %v2366 = vpop.permute.xlu0 %2365
        %2367 = vrot.lane.b32.xlu0 %v2100, 119
        %v2368 = vpop.permute.xlu0 %2367
        %2369 = vrot.lane.b32.xlu0 %v2102, 119
        %v2370 = vpop.permute.xlu0 %2369
        %v2371 = vsel %vm1739, %v2364, %v2368
        %v2372 = vsel %vm1739, %v2366, %v2370
        %v2373 = vsel %vm1739, %v2368, %v2364
        %v2374 = vsel %vm1739, %v2370, %v2366
        %v2375 = vmul.f32 %v2371, %v1750
        %v2376 = vmul.f32 %v2373, %v1754
        %v2377 = vmul.f32 %v2372, %v1750
        %v2378 = vmul.f32 %v2374, %v1754
        %v2379 = vmul.f32 %v2111, %v1767
        %v2380 = vmul.f32 %v2113, %v1771
        %v2381 = vmul.f32 %v2112, %v1767
        %v2382 = vmul.f32 %v2114, %v1771
        %v2383 = vmul.f32 %v2127, %v1784
        %v2384 = vmul.f32 %v2129, %v1788
        %v2385 = vmul.f32 %v2128, %v1784
        %v2386 = vmul.f32 %v2130, %v1788
        %v2387 = vmul.f32 %v2143, %v1801
        %v2388 = vmul.f32 %v2145, %v1805
        %v2389 = vmul.f32 %v2144, %v1801
        %v2390 = vmul.f32 %v2146, %v1805
        %v2391 = vmul.f32 %v2159, %v1818
        %v2392 = vmul.f32 %v2161, %v1822
        %v2393 = vmul.f32 %v2160, %v1818
        %v2394 = vmul.f32 %v2162, %v1822
        %v2395 = vmul.f32 %v2175, %v1835
        %v2396 = vmul.f32 %v2177, %v1839
        %v2397 = vmul.f32 %v2176, %v1835
        %v2398 = vmul.f32 %v2178, %v1839
        %v2399 = vmul.f32 %v2191, %v1852
        %v2400 = vmul.f32 %v2193, %v1856
        %v2401 = vmul.f32 %v2192, %v1852
        %v2402 = vmul.f32 %v2194, %v1856
        %v2403 = vmul.f32 %v2207, %v1869
        %v2404 = vmul.f32 %v2209, %v1873
        %v2405 = vmul.f32 %v2208, %v1869
        %v2406 = vmul.f32 %v2210, %v1873
        %v2407 = vmul.f32 %v2223, %v1886
        %v2408 = vmul.f32 %v2225, %v1890
        %v2409 = vmul.f32 %v2224, %v1886
        %v2410 = vmul.f32 %v2226, %v1890
        %v2411 = vmul.f32 %v2239, %v1903
        %v2412 = vmul.f32 %v2241, %v1907
        %v2413 = vmul.f32 %v2240, %v1903
        %v2414 = vmul.f32 %v2242, %v1907
        %v2415 = vld [vmem:[#allocation13] sm:$0xff]
        %v2416 = vld [vmem:[#allocation13 + $0x8] sm:$0xff]
        %v2417 = vld [vmem:[#allocation13 + $0x10] sm:$0xff]
        %v2418 = vld [vmem:[#allocation13 + $0x18] sm:$0xff]
        %v2419 = vld [vmem:[#allocation13 + $0x20] sm:$0xff]
        %v2420 = vld [vmem:[#allocation13 + $0x28] sm:$0xff]
        %v2421 = vld [vmem:[#allocation13 + $0x30] sm:$0xff]
        %v2422 = vld [vmem:[#allocation13 + $0x38] sm:$0xff]
        %v2423 = vld [vmem:[#allocation14] sm:$0xff]
        %v2424 = vld [vmem:[#allocation14 + $0x8] sm:$0xff]
        %2426 = vset.pattern.permute.xlu0 0
        %2427 = vperm.xlu0 %2426, %v2423
        %v2428 = vpop.permute.xlu0 %2427
        %2431 = vset.pattern.permute.xlu0 0
        %2432 = vperm.xlu0 %2431, %v2424
        %v2433 = vpop.permute.xlu0 %2432
        %v2436 = vsel %vm1934, %v2418, 0
        %v2439 = vsel %vm1934, %v2422, 0
        %2441 = vmatprep.subr.mxu0 %v2116
        %2442 = vmatpush1.msra.mxu0 %v2115
        %2443 = vmatprep.subr.mxu0 %v2118
        %2444 = vmatpush1.msra.mxu0 %v2117
        %2445 = vmatprep.subr.mxu0 %v2132
        %2446 = vmatpush1.msra.mxu0 %v2131
        %2447 = vmatprep.subr.mxu0 %v2134
        %2448 = vmatpush1.msra.mxu0 %v2133
        %2449 = vmatprep.subr.mxu0 %v2148
        %2450 = vmatpush1.msra.mxu0 %v2147
        %2451 = vmatprep.subr.mxu0 %v2150
        %2452 = vmatpush1.msra.mxu0 %v2149
        %2453 = vmatprep.subr.mxu0 %v2164
        %2454 = vmatpush1.msra.mxu0 %v2163
        %2455 = vmatprep.subr.mxu0 %v2166
        %2456 = vmatpush1.msra.mxu0 %v2165
        %2457 = vmatprep.subr.mxu0 %v2180
        %2458 = vmatpush1.msra.mxu0 %v2179
        %2459 = vmatprep.subr.mxu0 %v2182
        %2460 = vmatpush1.msra.mxu0 %v2181
        %2461 = vmatprep.subr.mxu0 %v2196
        %2462 = vmatpush1.msra.mxu0 %v2195
        %2463 = vmatprep.subr.mxu0 %v2198
        %2464 = vmatpush1.msra.mxu0 %v2197
        %2465 = vmatprep.subr.mxu0 %v2212
        %2466 = vmatpush1.msra.mxu0 %v2211
        %2467 = vmatprep.subr.mxu0 %v2214
        %2468 = vmatpush1.msra.mxu0 %v2213
        %2469 = vmatprep.subr.mxu0 %v2228
        %2470 = vmatpush1.msra.mxu0 %v2227
        %2471 = vmatprep.subr.mxu0 %v2230
        %2472 = vmatpush1.msra.mxu0 %v2229
        %2473 = vmatprep.subr.mxu0 %v2244
        %2474 = vmatpush1.msra.mxu0 %v2243
        %2475 = vmatprep.subr.mxu0 %v2246
        %2476 = vmatpush1.msra.mxu0 %v2245
        %2477 = vmatprep.subr.mxu0 %v2260
        %2478 = vmatpush1.msra.mxu0 %v2259
        %2479 = vmatprep.subr.mxu0 %v2262
        %2480 = vmatpush1.msra.mxu0 %v2261
        %2481 = vmatprep.subr.mxu0 %v2276
        %2482 = vmatpush1.msra.mxu0 %v2275
        %2483 = vmatprep.subr.mxu0 %v2278
        %2484 = vmatpush1.msra.mxu0 %v2277
        %2485 = vmatprep.subr.mxu0 %v2292
        %2486 = vmatpush1.msra.mxu0 %v2291
        %2487 = vmatprep.subr.mxu0 %v2294
        %2488 = vmatpush1.msra.mxu0 %v2293
        %2489 = vmatprep.subr.mxu0 %v2308
        %2490 = vmatpush1.msra.mxu0 %v2307
        %2491 = vmatprep.subr.mxu0 %v2310
        %2492 = vmatpush1.msra.mxu0 %v2309
        %2493 = vmatprep.subr.mxu0 %v2312
        %2494 = vmatpush1.msra.mxu0 %v2311
        %2495 = vmatprep.subr.mxu0 %v2314
        %2496 = vmatpush1.msra.mxu0 %v2313
        %2497 = vmatprep.subr.mxu0 %v2328
        %2498 = vmatpush1.msra.mxu0 %v2327
        %2499 = vmatprep.subr.mxu0 %v2330
        %2500 = vmatpush1.msra.mxu0 %v2329
        %2501 = vmatprep.subr.mxu0 %v2344
        %2502 = vmatpush1.msra.mxu0 %v2343
        %2503 = vmatprep.subr.mxu0 %v2346
        %2504 = vmatpush1.msra.mxu0 %v2345
        %2505 = vmatprep.mubr.f32.mxu0 %v2416
        %2506 = vmatmul.mubr.f32.gmra.mrb[0].mxu0 %v2415
        %v2507 = vpop.f32.mrb[0].mxu0
        %v2508 = vadd.f32 %v2428, %v2507
        %v2509 = vpop.f32.mrb[0].mxu0
        %v2510 = vadd.f32 %v2428, %v2509
        %2511 = vmatprep.mubr.f32.mxu0 %v2420
        %2512 = vmatmul.mubr.f32.gmra.mrb[0].mxu0 %v2419
        %v2513 = vpop.f32.mrb[0].mxu0
        %v2514 = vadd.f32 %v2433, %v2513
        %v2515 = vpop.f32.mrb[0].mxu0
        %v2516 = vadd.f32 %v2433, %v2515
        %2517 = vdwg.mxu0
        %2518 = vmatprep.subr.mxu0 %v2360
        %2519 = vmatpush1.msra.mxu0 %v2359
        %2520 = vmatprep.subr.mxu0 %v2362
        %2521 = vmatpush1.msra.mxu0 %v2361
        %2522 = vmatprep.subr.mxu0 %v2376
        %2523 = vmatpush1.msra.mxu0 %v2375
        %2524 = vmatprep.subr.mxu0 %v2378
        %2525 = vmatpush1.msra.mxu0 %v2377
        %2526 = vmatprep.subr.mxu0 %v2380
        %2527 = vmatpush1.msra.mxu0 %v2379
        %2528 = vmatprep.subr.mxu0 %v2382
        %2529 = vmatpush1.msra.mxu0 %v2381
        %2530 = vmatprep.subr.mxu0 %v2384
        %2531 = vmatpush1.msra.mxu0 %v2383
        %2532 = vmatprep.subr.mxu0 %v2386
        %2533 = vmatpush1.msra.mxu0 %v2385
        %2534 = vmatprep.subr.mxu0 %v2388
        %2535 = vmatpush1.msra.mxu0 %v2387
        %2536 = vmatprep.subr.mxu0 %v2390
        %2537 = vmatpush1.msra.mxu0 %v2389
        %2538 = vmatprep.subr.mxu0 %v2392
        %2539 = vmatpush1.msra.mxu0 %v2391
        %2540 = vmatprep.subr.mxu0 %v2394
        %2541 = vmatpush1.msra.mxu0 %v2393
        %2542 = vmatprep.subr.mxu0 %v2396
        %2543 = vmatpush1.msra.mxu0 %v2395
        %2544 = vmatprep.subr.mxu0 %v2398
        %2545 = vmatpush1.msra.mxu0 %v2397
        %2546 = vmatprep.subr.mxu0 %v2400
        %2547 = vmatpush1.msra.mxu0 %v2399
        %2548 = vmatprep.subr.mxu0 %v2402
        %2549 = vmatpush1.msra.mxu0 %v2401
        %2550 = vmatprep.subr.mxu0 %v2404
        %2551 = vmatpush1.msra.mxu0 %v2403
        %2552 = vmatprep.subr.mxu0 %v2406
        %2553 = vmatpush1.msra.mxu0 %v2405
        %2554 = vmatprep.subr.mxu0 %v2408
        %2555 = vmatpush1.msra.mxu0 %v2407
        %2556 = vmatprep.subr.mxu0 %v2410
        %2557 = vmatpush1.msra.mxu0 %v2409
        %2558 = vmatprep.subr.mxu0 %v2412
        %2559 = vmatpush1.msra.mxu0 %v2411
        %2560 = vmatprep.subr.mxu0 %v2414
        %2561 = vmatpush1.msra.mxu0 %v2413
        %2562 = vmatprep.subr.mxu0 0.0
        %2563 = vmatpush1.msra.mxu0 0.0
        %2564 = vmatprep.subr.mxu0 0.0
        %2565 = vmatpush1.msra.mxu0 0.0
        %2566 = vmatprep.subr.mxu0 0.0
        %2567 = vmatpush1.msra.mxu0 0.0
        %2568 = vmatprep.subr.mxu0 0.0
        %2569 = vmatpush1.msra.mxu0 0.0
        %2570 = vmatprep.subr.mxu0 0.0
        %2571 = vmatpush1.msra.mxu0 0.0
        %2572 = vmatprep.subr.mxu0 0.0
        %2573 = vmatpush1.msra.mxu0 0.0
        %2574 = vmatprep.subr.mxu0 0.0
        %2575 = vmatpush1.msra.mxu0 0.0
        %2576 = vmatprep.subr.mxu0 0.0
        %2577 = vmatpush1.msra.mxu0 0.0
        %2578 = vmatprep.subr.mxu0 0.0
        %2579 = vmatpush1.msra.mxu0 0.0
        %2580 = vmatprep.subr.mxu0 0.0
        %2581 = vmatpush1.msra.mxu0 0.0
        %2582 = vmatprep.mubr.f32.mxu0 %v2436
        %2583 = vmatmul.mubr.f32.gmra.mrb[0].mxu0 %v2417
        %v2584 = vpop.f32.mrb[0].mxu0
        %v2585 = vadd.f32 %v2508, %v2584
        %v2586 = vpop.f32.mrb[0].mxu0
        %v2587 = vadd.f32 %v2510, %v2586
        %2588 = vmatprep.mubr.f32.mxu0 %v2439
        %2589 = vmatmul.mubr.f32.gmra.mrb[0].mxu0 %v2421
        %v2590 = vpop.f32.mrb[0].mxu0
        %v2591 = vadd.f32 %v2514, %v2590
        %v2592 = vpop.f32.mrb[0].mxu0
        %v2593 = vadd.f32 %v2516, %v2592
        %2594 = vdwg.mxu0
        %v2595 = vmax.f32 %v2585, 0.0
        %v2596 = vmax.f32 %v2587, 0.0
        %v2597 = vmax.f32 %v2591, 0.0
        %v2598 = vmax.f32 %v2593, 0.0
        %v2599 = vadd.f32 %v1229, %v2595
        %v2600 = vadd.f32 %v1230, %v2596
        %v2601 = vadd.f32 %v1231, %v2597
        %v2602 = vadd.f32 %v1232, %v2598
        %2603 = vrot.lane.b32.xlu0 %v2599, 73
        %v2604 = vpop.permute.xlu0 %2603
        %2605 = vrot.lane.b32.xlu0 %v2601, 73
        %v2606 = vpop.permute.xlu0 %2605
        %2607 = vrot.lane.b32.xlu0 %v2600, 73
        %v2608 = vpop.permute.xlu0 %2607
        %2609 = vrot.lane.b32.xlu0 %v2602, 73
        %v2610 = vpop.permute.xlu0 %2609
        %v2611 = vsel %vm1243, %v2604, %v2608
        %v2612 = vsel %vm1243, %v2606, %v2610
        %v2613 = vsel %vm1243, %v2608, %v2604
        %v2614 = vsel %vm1243, %v2610, %v2606
        %v2615 = vmul.f32 %v2613, %v1253
        %v2616 = vmul.f32 %v2611, %v1257
        %v2617 = vmul.f32 %v2614, %v1253
        %v2618 = vmul.f32 %v2612, %v1257
        %2619 = vrot.lane.b32.xlu0 %v2599, 72
        %v2620 = vpop.permute.xlu0 %2619
        %2621 = vrot.lane.b32.xlu0 %v2601, 72
        %v2622 = vpop.permute.xlu0 %2621
        %2623 = vrot.lane.b32.xlu0 %v2600, 72
        %v2624 = vpop.permute.xlu0 %2623
        %2625 = vrot.lane.b32.xlu0 %v2602, 72
        %v2626 = vpop.permute.xlu0 %2625
        %v2627 = vsel %vm1272, %v2620, %v2624
        %v2628 = vsel %vm1272, %v2622, %v2626
        %v2629 = vsel %vm1272, %v2624, %v2620
        %v2630 = vsel %vm1272, %v2626, %v2622
        %v2631 = vmul.f32 %v2629, %v1283
        %v2632 = vmul.f32 %v2627, %v1287
        %v2633 = vmul.f32 %v2630, %v1283
        %v2634 = vmul.f32 %v2628, %v1287
        %2635 = vrot.lane.b32.xlu0 %v2599, 71
        %v2636 = vpop.permute.xlu0 %2635
        %2637 = vrot.lane.b32.xlu0 %v2601, 71
        %v2638 = vpop.permute.xlu0 %2637
        %2639 = vrot.lane.b32.xlu0 %v2600, 71
        %v2640 = vpop.permute.xlu0 %2639
        %2641 = vrot.lane.b32.xlu0 %v2602, 71
        %v2642 = vpop.permute.xlu0 %2641
        %v2643 = vsel %vm1302, %v2636, %v2640
        %v2644 = vsel %vm1302, %v2638, %v2642
        %v2645 = vsel %vm1302, %v2640, %v2636
        %v2646 = vsel %vm1302, %v2642, %v2638
        %v2647 = vmul.f32 %v2645, %v1313
        %v2648 = vmul.f32 %v2643, %v1317
        %v2649 = vmul.f32 %v2646, %v1313
        %v2650 = vmul.f32 %v2644, %v1317
        %2651 = vrot.lane.b32.xlu0 %v2599, 65
        %v2652 = vpop.permute.xlu0 %2651
        %2653 = vrot.lane.b32.xlu0 %v2601, 65
        %v2654 = vpop.permute.xlu0 %2653
        %2655 = vrot.lane.b32.xlu0 %v2600, 65
        %v2656 = vpop.permute.xlu0 %2655
        %2657 = vrot.lane.b32.xlu0 %v2602, 65
        %v2658 = vpop.permute.xlu0 %2657
        %v2659 = vsel %vm1332, %v2652, %v2656
        %v2660 = vsel %vm1332, %v2654, %v2658
        %v2661 = vsel %vm1332, %v2656, %v2652
        %v2662 = vsel %vm1332, %v2658, %v2654
        %v2663 = vmul.f32 %v2661, %v1343
        %v2664 = vmul.f32 %v2659, %v1347
        %v2665 = vmul.f32 %v2662, %v1343
        %v2666 = vmul.f32 %v2660, %v1347
        %2667 = vrot.lane.b32.xlu0 %v2599, 64
        %v2668 = vpop.permute.xlu0 %2667
        %2669 = vrot.lane.b32.xlu0 %v2601, 64
        %v2670 = vpop.permute.xlu0 %2669
        %2671 = vrot.lane.b32.xlu0 %v2600, 64
        %v2672 = vpop.permute.xlu0 %2671
        %2673 = vrot.lane.b32.xlu0 %v2602, 64
        %v2674 = vpop.permute.xlu0 %2673
        %v2675 = vsel %vm1362, %v2668, %v2672
        %v2676 = vsel %vm1362, %v2670, %v2674
        %v2677 = vsel %vm1362, %v2672, %v2668
        %v2678 = vsel %vm1362, %v2674, %v2670
        %v2679 = vmul.f32 %v2677, %v1373
        %v2680 = vmul.f32 %v2675, %v1377
        %v2681 = vmul.f32 %v2678, %v1373
        %v2682 = vmul.f32 %v2676, %v1377
        %2683 = vrot.lane.b32.xlu0 %v2599, 63
        %v2684 = vpop.permute.xlu0 %2683
        %2685 = vrot.lane.b32.xlu0 %v2601, 63
        %v2686 = vpop.permute.xlu0 %2685
        %2687 = vrot.lane.b32.xlu0 %v2600, 63
        %v2688 = vpop.permute.xlu0 %2687
        %2689 = vrot.lane.b32.xlu0 %v2602, 63
        %v2690 = vpop.permute.xlu0 %2689
        %v2691 = vsel %vm1392, %v2684, %v2688
        %v2692 = vsel %vm1392, %v2686, %v2690
        %v2693 = vsel %vm1392, %v2688, %v2684
        %v2694 = vsel %vm1392, %v2690, %v2686
        %v2695 = vmul.f32 %v2693, %v1403
        %v2696 = vmul.f32 %v2691, %v1407
        %v2697 = vmul.f32 %v2694, %v1403
        %v2698 = vmul.f32 %v2692, %v1407
        %2699 = vrot.lane.b32.xlu0 %v2599, 57
        %v2700 = vpop.permute.xlu0 %2699
        %2701 = vrot.lane.b32.xlu0 %v2601, 57
        %v2702 = vpop.permute.xlu0 %2701
        %2703 = vrot.lane.b32.xlu0 %v2600, 57
        %v2704 = vpop.permute.xlu0 %2703
        %2705 = vrot.lane.b32.xlu0 %v2602, 57
        %v2706 = vpop.permute.xlu0 %2705
        %v2707 = vsel %vm1422, %v2700, %v2704
        %v2708 = vsel %vm1422, %v2702, %v2706
        %v2709 = vsel %vm1422, %v2704, %v2700
        %v2710 = vsel %vm1422, %v2706, %v2702
        %v2711 = vmul.f32 %v2709, %v1433
        %v2712 = vmul.f32 %v2707, %v1437
        %v2713 = vmul.f32 %v2710, %v1433
        %v2714 = vmul.f32 %v2708, %v1437
        %2715 = vrot.lane.b32.xlu0 %v2599, 56
        %v2716 = vpop.permute.xlu0 %2715
        %2717 = vrot.lane.b32.xlu0 %v2601, 56
        %v2718 = vpop.permute.xlu0 %2717
        %2719 = vrot.lane.b32.xlu0 %v2600, 56
        %v2720 = vpop.permute.xlu0 %2719
        %2721 = vrot.lane.b32.xlu0 %v2602, 56
        %v2722 = vpop.permute.xlu0 %2721
        %v2723 = vsel %vm1452, %v2716, %v2720
        %v2724 = vsel %vm1452, %v2718, %v2722
        %v2725 = vsel %vm1452, %v2720, %v2716
        %v2726 = vsel %vm1452, %v2722, %v2718
        %v2727 = vmul.f32 %v2725, %v1463
        %v2728 = vmul.f32 %v2723, %v1467
        %v2729 = vmul.f32 %v2726, %v1463
        %v2730 = vmul.f32 %v2724, %v1467
        %2731 = vrot.lane.b32.xlu0 %v2599, 55
        %v2732 = vpop.permute.xlu0 %2731
        %2733 = vrot.lane.b32.xlu0 %v2601, 55
        %v2734 = vpop.permute.xlu0 %2733
        %2735 = vrot.lane.b32.xlu0 %v2600, 55
        %v2736 = vpop.permute.xlu0 %2735
        %2737 = vrot.lane.b32.xlu0 %v2602, 55
        %v2738 = vpop.permute.xlu0 %2737
        %v2739 = vsel %vm1482, %v2732, %v2736
        %v2740 = vsel %vm1482, %v2734, %v2738
        %v2741 = vsel %vm1482, %v2736, %v2732
        %v2742 = vsel %vm1482, %v2738, %v2734
        %v2743 = vmul.f32 %v2741, %v1493
        %v2744 = vmul.f32 %v2739, %v1497
        %v2745 = vmul.f32 %v2742, %v1493
        %v2746 = vmul.f32 %v2740, %v1497
        %2747 = vrot.lane.b32.xlu0 %v2599, 9
        %v2748 = vpop.permute.xlu0 %2747
        %2749 = vrot.lane.b32.xlu0 %v2601, 9
        %v2750 = vpop.permute.xlu0 %2749
        %2751 = vrot.lane.b32.xlu0 %v2600, 9
        %v2752 = vpop.permute.xlu0 %2751
        %2753 = vrot.lane.b32.xlu0 %v2602, 9
        %v2754 = vpop.permute.xlu0 %2753
        %v2755 = vsel %vm1512, %v2748, %v2752
        %v2756 = vsel %vm1512, %v2750, %v2754
        %v2757 = vsel %vm1512, %v2752, %v2748
        %v2758 = vsel %vm1512, %v2754, %v2750
        %v2759 = vmul.f32 %v2757, %v1523
        %v2760 = vmul.f32 %v2755, %v1527
        %v2761 = vmul.f32 %v2758, %v1523
        %v2762 = vmul.f32 %v2756, %v1527
        %2763 = vrot.lane.b32.xlu0 %v2599, 8
        %v2764 = vpop.permute.xlu0 %2763
        %2765 = vrot.lane.b32.xlu0 %v2601, 8
        %v2766 = vpop.permute.xlu0 %2765
        %2767 = vrot.lane.b32.xlu0 %v2600, 8
        %v2768 = vpop.permute.xlu0 %2767
        %2769 = vrot.lane.b32.xlu0 %v2602, 8
        %v2770 = vpop.permute.xlu0 %2769
        %v2771 = vsel %vm1542, %v2764, %v2768
        %v2772 = vsel %vm1542, %v2766, %v2770
        %v2773 = vsel %vm1542, %v2768, %v2764
        %v2774 = vsel %vm1542, %v2770, %v2766
        %v2775 = vmul.f32 %v2773, %v1553
        %v2776 = vmul.f32 %v2771, %v1557
        %v2777 = vmul.f32 %v2774, %v1553
        %v2778 = vmul.f32 %v2772, %v1557
        %2779 = vrot.lane.b32.xlu0 %v2599, 7
        %v2780 = vpop.permute.xlu0 %2779
        %2781 = vrot.lane.b32.xlu0 %v2601, 7
        %v2782 = vpop.permute.xlu0 %2781
        %2783 = vrot.lane.b32.xlu0 %v2600, 7
        %v2784 = vpop.permute.xlu0 %2783
        %2785 = vrot.lane.b32.xlu0 %v2602, 7
        %v2786 = vpop.permute.xlu0 %2785
        %v2787 = vsel %vm1572, %v2780, %v2784
        %v2788 = vsel %vm1572, %v2782, %v2786
        %v2789 = vsel %vm1572, %v2784, %v2780
        %v2790 = vsel %vm1572, %v2786, %v2782
        %v2791 = vmul.f32 %v2789, %v1583
        %v2792 = vmul.f32 %v2787, %v1587
        %v2793 = vmul.f32 %v2790, %v1583
        %v2794 = vmul.f32 %v2788, %v1587
        %2795 = vrot.lane.b32.xlu0 %v2599, 1
        %v2796 = vpop.permute.xlu0 %2795
        %2797 = vrot.lane.b32.xlu0 %v2601, 1
        %v2798 = vpop.permute.xlu0 %2797
        %2799 = vrot.lane.b32.xlu0 %v2600, 1
        %v2800 = vpop.permute.xlu0 %2799
        %2801 = vrot.lane.b32.xlu0 %v2602, 1
        %v2802 = vpop.permute.xlu0 %2801
        %v2803 = vsel %vm1602, %v2796, %v2800
        %v2804 = vsel %vm1602, %v2798, %v2802
        %v2805 = vsel %vm1602, %v2800, %v2796
        %v2806 = vsel %vm1602, %v2802, %v2798
        %v2807 = vmul.f32 %v2805, %v1613
        %v2808 = vmul.f32 %v2803, %v1617
        %v2809 = vmul.f32 %v2806, %v1613
        %v2810 = vmul.f32 %v2804, %v1617
        %v2811 = vmul.f32 %v2599, %v1630
        %v2812 = vmul.f32 %v2600, %v1634
        %v2813 = vmul.f32 %v2601, %v1630
        %v2814 = vmul.f32 %v2602, %v1634
        %2815 = vrot.lane.b32.xlu0 %v2599, 127
        %v2816 = vpop.permute.xlu0 %2815
        %2817 = vrot.lane.b32.xlu0 %v2601, 127
        %v2818 = vpop.permute.xlu0 %2817
        %2819 = vrot.lane.b32.xlu0 %v2600, 127
        %v2820 = vpop.permute.xlu0 %2819
        %2821 = vrot.lane.b32.xlu0 %v2602, 127
        %v2822 = vpop.permute.xlu0 %2821
        %v2823 = vsel %vm1649, %v2816, %v2820
        %v2824 = vsel %vm1649, %v2818, %v2822
        %v2825 = vsel %vm1649, %v2820, %v2816
        %v2826 = vsel %vm1649, %v2822, %v2818
        %v2827 = vmul.f32 %v2823, %v1660
        %v2828 = vmul.f32 %v2825, %v1664
        %v2829 = vmul.f32 %v2824, %v1660
        %v2830 = vmul.f32 %v2826, %v1664
        %2831 = vrot.lane.b32.xlu0 %v2599, 121
        %v2832 = vpop.permute.xlu0 %2831
        %2833 = vrot.lane.b32.xlu0 %v2601, 121
        %v2834 = vpop.permute.xlu0 %2833
        %2835 = vrot.lane.b32.xlu0 %v2600, 121
        %v2836 = vpop.permute.xlu0 %2835
        %2837 = vrot.lane.b32.xlu0 %v2602, 121
        %v2838 = vpop.permute.xlu0 %2837
        %v2839 = vsel %vm1679, %v2832, %v2836
        %v2840 = vsel %vm1679, %v2834, %v2838
        %v2841 = vsel %vm1679, %v2836, %v2832
        %v2842 = vsel %vm1679, %v2838, %v2834
        %v2843 = vmul.f32 %v2839, %v1690
        %v2844 = vmul.f32 %v2841, %v1694
        %v2845 = vmul.f32 %v2840, %v1690
        %v2846 = vmul.f32 %v2842, %v1694
        %2847 = vrot.lane.b32.xlu0 %v2599, 120
        %v2848 = vpop.permute.xlu0 %2847
        %2849 = vrot.lane.b32.xlu0 %v2601, 120
        %v2850 = vpop.permute.xlu0 %2849
        %2851 = vrot.lane.b32.xlu0 %v2600, 120
        %v2852 = vpop.permute.xlu0 %2851
        %2853 = vrot.lane.b32.xlu0 %v2602, 120
        %v2854 = vpop.permute.xlu0 %2853
        %v2855 = vsel %vm1709, %v2848, %v2852
        %v2856 = vsel %vm1709, %v2850, %v2854
        %v2857 = vsel %vm1709, %v2852, %v2848
        %v2858 = vsel %vm1709, %v2854, %v2850
        %v2859 = vmul.f32 %v2855, %v1720
        %v2860 = vmul.f32 %v2857, %v1724
        %v2861 = vmul.f32 %v2856, %v1720
        %v2862 = vmul.f32 %v2858, %v1724
        %2863 = vrot.lane.b32.xlu0 %v2599, 119
        %v2864 = vpop.permute.xlu0 %2863
        %2865 = vrot.lane.b32.xlu0 %v2601, 119
        %v2866 = vpop.permute.xlu0 %2865
        %2867 = vrot.lane.b32.xlu0 %v2600, 119
        %v2868 = vpop.permute.xlu0 %2867
        %2869 = vrot.lane.b32.xlu0 %v2602, 119
        %v2870 = vpop.permute.xlu0 %2869
        %v2871 = vsel %vm1739, %v2864, %v2868
        %v2872 = vsel %vm1739, %v2866, %v2870
        %v2873 = vsel %vm1739, %v2868, %v2864
        %v2874 = vsel %vm1739, %v2870, %v2866
        %v2875 = vmul.f32 %v2871, %v1750
        %v2876 = vmul.f32 %v2873, %v1754
        %v2877 = vmul.f32 %v2872, %v1750
        %v2878 = vmul.f32 %v2874, %v1754
        %v2879 = vmul.f32 %v2611, %v1767
        %v2880 = vmul.f32 %v2613, %v1771
        %v2881 = vmul.f32 %v2612, %v1767
        %v2882 = vmul.f32 %v2614, %v1771
        %v2883 = vmul.f32 %v2627, %v1784
        %v2884 = vmul.f32 %v2629, %v1788
        %v2885 = vmul.f32 %v2628, %v1784
        %v2886 = vmul.f32 %v2630, %v1788
        %v2887 = vmul.f32 %v2643, %v1801
        %v2888 = vmul.f32 %v2645, %v1805
        %v2889 = vmul.f32 %v2644, %v1801
        %v2890 = vmul.f32 %v2646, %v1805
        %v2891 = vmul.f32 %v2659, %v1818
        %v2892 = vmul.f32 %v2661, %v1822
        %v2893 = vmul.f32 %v2660, %v1818
        %v2894 = vmul.f32 %v2662, %v1822
        %v2895 = vmul.f32 %v2675, %v1835
        %v2896 = vmul.f32 %v2677, %v1839
        %v2897 = vmul.f32 %v2676, %v1835
        %v2898 = vmul.f32 %v2678, %v1839
        %v2899 = vmul.f32 %v2691, %v1852
        %v2900 = vmul.f32 %v2693, %v1856
        %v2901 = vmul.f32 %v2692, %v1852
        %v2902 = vmul.f32 %v2694, %v1856
        %v2903 = vmul.f32 %v2707, %v1869
        %v2904 = vmul.f32 %v2709, %v1873
        %v2905 = vmul.f32 %v2708, %v1869
        %v2906 = vmul.f32 %v2710, %v1873
        %v2907 = vmul.f32 %v2723, %v1886
        %v2908 = vmul.f32 %v2725, %v1890
        %v2909 = vmul.f32 %v2724, %v1886
        %v2910 = vmul.f32 %v2726, %v1890
        %v2911 = vmul.f32 %v2739, %v1903
        %v2912 = vmul.f32 %v2741, %v1907
        %v2913 = vmul.f32 %v2740, %v1903
        %v2914 = vmul.f32 %v2742, %v1907
        %v2915 = vld [vmem:[#allocation16] sm:$0xff]
        %v2916 = vld [vmem:[#allocation16 + $0x8] sm:$0xff]
        %v2917 = vld [vmem:[#allocation16 + $0x10] sm:$0xff]
        %v2918 = vld [vmem:[#allocation16 + $0x18] sm:$0xff]
        %v2919 = vld [vmem:[#allocation16 + $0x20] sm:$0xff]
        %v2920 = vld [vmem:[#allocation16 + $0x28] sm:$0xff]
        %v2921 = vld [vmem:[#allocation16 + $0x30] sm:$0xff]
        %v2922 = vld [vmem:[#allocation16 + $0x38] sm:$0xff]
        %v2923 = vld [vmem:[#allocation17] sm:$0xff]
        %v2924 = vld [vmem:[#allocation17 + $0x8] sm:$0xff]
        %2926 = vset.pattern.permute.xlu0 0
        %2927 = vperm.xlu0 %2926, %v2923
        %v2928 = vpop.permute.xlu0 %2927
        %2931 = vset.pattern.permute.xlu0 0
        %2932 = vperm.xlu0 %2931, %v2924
        %v2933 = vpop.permute.xlu0 %2932
        %v2936 = vsel %vm1934, %v2918, 0
        %v2939 = vsel %vm1934, %v2922, 0
        %2941 = vmatprep.subr.mxu0 %v2616
        %2942 = vmatpush1.msra.mxu0 %v2615
        %2943 = vmatprep.subr.mxu0 %v2618
        %2944 = vmatpush1.msra.mxu0 %v2617
        %2945 = vmatprep.subr.mxu0 %v2632
        %2946 = vmatpush1.msra.mxu0 %v2631
        %2947 = vmatprep.subr.mxu0 %v2634
        %2948 = vmatpush1.msra.mxu0 %v2633
        %2949 = vmatprep.subr.mxu0 %v2648
        %2950 = vmatpush1.msra.mxu0 %v2647
        %2951 = vmatprep.subr.mxu0 %v2650
        %2952 = vmatpush1.msra.mxu0 %v2649
        %2953 = vmatprep.subr.mxu0 %v2664
        %2954 = vmatpush1.msra.mxu0 %v2663
        %2955 = vmatprep.subr.mxu0 %v2666
        %2956 = vmatpush1.msra.mxu0 %v2665
        %2957 = vmatprep.subr.mxu0 %v2680
        %2958 = vmatpush1.msra.mxu0 %v2679
        %2959 = vmatprep.subr.mxu0 %v2682
        %2960 = vmatpush1.msra.mxu0 %v2681
        %2961 = vmatprep.subr.mxu0 %v2696
        %2962 = vmatpush1.msra.mxu0 %v2695
        %2963 = vmatprep.subr.mxu0 %v2698
        %2964 = vmatpush1.msra.mxu0 %v2697
        %2965 = vmatprep.subr.mxu0 %v2712
        %2966 = vmatpush1.msra.mxu0 %v2711
        %2967 = vmatprep.subr.mxu0 %v2714
        %2968 = vmatpush1.msra.mxu0 %v2713
        %2969 = vmatprep.subr.mxu0 %v2728
        %2970 = vmatpush1.msra.mxu0 %v2727
        %2971 = vmatprep.subr.mxu0 %v2730
        %2972 = vmatpush1.msra.mxu0 %v2729
        %2973 = vmatprep.subr.mxu0 %v2744
        %2974 = vmatpush1.msra.mxu0 %v2743
        %2975 = vmatprep.subr.mxu0 %v2746
        %2976 = vmatpush1.msra.mxu0 %v2745
        %2977 = vmatprep.subr.mxu0 %v2760
        %2978 = vmatpush1.msra.mxu0 %v2759
        %2979 = vmatprep.subr.mxu0 %v2762
        %2980 = vmatpush1.msra.mxu0 %v2761
        %2981 = vmatprep.subr.mxu0 %v2776
        %2982 = vmatpush1.msra.mxu0 %v2775
        %2983 = vmatprep.subr.mxu0 %v2778
        %2984 = vmatpush1.msra.mxu0 %v2777
        %2985 = vmatprep.subr.mxu0 %v2792
        %2986 = vmatpush1.msra.mxu0 %v2791
        %2987 = vmatprep.subr.mxu0 %v2794
        %2988 = vmatpush1.msra.mxu0 %v2793
        %2989 = vmatprep.subr.mxu0 %v2808
        %2990 = vmatpush1.msra.mxu0 %v2807
        %2991 = vmatprep.subr.mxu0 %v2810
        %2992 = vmatpush1.msra.mxu0 %v2809
        %2993 = vmatprep.subr.mxu0 %v2812
        %2994 = vmatpush1.msra.mxu0 %v2811
        %2995 = vmatprep.subr.mxu0 %v2814
        %2996 = vmatpush1.msra.mxu0 %v2813
        %2997 = vmatprep.subr.mxu0 %v2828
        %2998 = vmatpush1.msra.mxu0 %v2827
        %2999 = vmatprep.subr.mxu0 %v2830
        %3000 = vmatpush1.msra.mxu0 %v2829
        %3001 = vmatprep.subr.mxu0 %v2844
        %3002 = vmatpush1.msra.mxu0 %v2843
        %3003 = vmatprep.subr.mxu0 %v2846
        %3004 = vmatpush1.msra.mxu0 %v2845
        %3005 = vmatprep.mubr.f32.mxu0 %v2916
        %3006 = vmatmul.mubr.f32.gmra.mrb[0].mxu0 %v2915
        %v3007 = vpop.f32.mrb[0].mxu0
        %v3008 = vadd.f32 %v2928, %v3007
        %v3009 = vpop.f32.mrb[0].mxu0
        %v3010 = vadd.f32 %v2928, %v3009
        %3011 = vmatprep.mubr.f32.mxu0 %v2920
        %3012 = vmatmul.mubr.f32.gmra.mrb[0].mxu0 %v2919
        %v3013 = vpop.f32.mrb[0].mxu0
        %v3014 = vadd.f32 %v2933, %v3013
        %v3015 = vpop.f32.mrb[0].mxu0
        %v3016 = vadd.f32 %v2933, %v3015
        %3017 = vdwg.mxu0
        %3018 = vmatprep.subr.mxu0 %v2860
        %3019 = vmatpush1.msra.mxu0 %v2859
        %3020 = vmatprep.subr.mxu0 %v2862
        %3021 = vmatpush1.msra.mxu0 %v2861
        %3022 = vmatprep.subr.mxu0 %v2876
        %3023 = vmatpush1.msra.mxu0 %v2875
        %3024 = vmatprep.subr.mxu0 %v2878
        %3025 = vmatpush1.msra.mxu0 %v2877
        %3026 = vmatprep.subr.mxu0 %v2880
        %3027 = vmatpush1.msra.mxu0 %v2879
        %3028 = vmatprep.subr.mxu0 %v2882
        %3029 = vmatpush1.msra.mxu0 %v2881
        %3030 = vmatprep.subr.mxu0 %v2884
        %3031 = vmatpush1.msra.mxu0 %v2883
        %3032 = vmatprep.subr.mxu0 %v2886
        %3033 = vmatpush1.msra.mxu0 %v2885
        %3034 = vmatprep.subr.mxu0 %v2888
        %3035 = vmatpush1.msra.mxu0 %v2887
        %3036 = vmatprep.subr.mxu0 %v2890
        %3037 = vmatpush1.msra.mxu0 %v2889
        %3038 = vmatprep.subr.mxu0 %v2892
        %3039 = vmatpush1.msra.mxu0 %v2891
        %3040 = vmatprep.subr.mxu0 %v2894
        %3041 = vmatpush1.msra.mxu0 %v2893
        %3042 = vmatprep.subr.mxu0 %v2896
        %3043 = vmatpush1.msra.mxu0 %v2895
        %3044 = vmatprep.subr.mxu0 %v2898
        %3045 = vmatpush1.msra.mxu0 %v2897
        %3046 = vmatprep.subr.mxu0 %v2900
        %3047 = vmatpush1.msra.mxu0 %v2899
        %3048 = vmatprep.subr.mxu0 %v2902
        %3049 = vmatpush1.msra.mxu0 %v2901
        %3050 = vmatprep.subr.mxu0 %v2904
        %3051 = vmatpush1.msra.mxu0 %v2903
        %3052 = vmatprep.subr.mxu0 %v2906
        %3053 = vmatpush1.msra.mxu0 %v2905
        %3054 = vmatprep.subr.mxu0 %v2908
        %3055 = vmatpush1.msra.mxu0 %v2907
        %3056 = vmatprep.subr.mxu0 %v2910
        %3057 = vmatpush1.msra.mxu0 %v2909
        %3058 = vmatprep.subr.mxu0 %v2912
        %3059 = vmatpush1.msra.mxu0 %v2911
        %3060 = vmatprep.subr.mxu0 %v2914
        %3061 = vmatpush1.msra.mxu0 %v2913
        %3062 = vmatprep.subr.mxu0 0.0
        %3063 = vmatpush1.msra.mxu0 0.0
        %3064 = vmatprep.subr.mxu0 0.0
        %3065 = vmatpush1.msra.mxu0 0.0
        %3066 = vmatprep.subr.mxu0 0.0
        %3067 = vmatpush1.msra.mxu0 0.0
        %3068 = vmatprep.subr.mxu0 0.0
        %3069 = vmatpush1.msra.mxu0 0.0
        %3070 = vmatprep.subr.mxu0 0.0
        %3071 = vmatpush1.msra.mxu0 0.0
        %3072 = vmatprep.subr.mxu0 0.0
        %3073 = vmatpush1.msra.mxu0 0.0
        %3074 = vmatprep.subr.mxu0 0.0
        %3075 = vmatpush1.msra.mxu0 0.0
        %3076 = vmatprep.subr.mxu0 0.0
        %3077 = vmatpush1.msra.mxu0 0.0
        %3078 = vmatprep.subr.mxu0 0.0
        %3079 = vmatpush1.msra.mxu0 0.0
        %3080 = vmatprep.subr.mxu0 0.0
        %3081 = vmatpush1.msra.mxu0 0.0
        %3082 = vmatprep.mubr.f32.mxu0 %v2936
        %3083 = vmatmul.mubr.f32.gmra.mrb[0].mxu0 %v2917
        %v3084 = vpop.f32.mrb[0].mxu0
        %v3085 = vadd.f32 %v3008, %v3084
        %v3086 = vpop.f32.mrb[0].mxu0
        %v3087 = vadd.f32 %v3010, %v3086
        %3088 = vmatprep.mubr.f32.mxu0 %v2939
        %3089 = vmatmul.mubr.f32.gmra.mrb[0].mxu0 %v2921
        %v3090 = vpop.f32.mrb[0].mxu0
        %v3091 = vadd.f32 %v3014, %v3090
        %v3092 = vpop.f32.mrb[0].mxu0
        %v3093 = vadd.f32 %v3016, %v3092
        %3094 = vdwg.mxu0
        %v3095 = vmax.f32 %v3085, 0.0
        %v3096 = vmax.f32 %v3087, 0.0
        %v3097 = vmax.f32 %v3091, 0.0
        %v3098 = vmax.f32 %v3093, 0.0
        %v3099 = vld [vmem:[#allocation19] sm:$0xff]
        %v3100 = vld [vmem:[#allocation19 + $0x8] sm:$0xff]
        %v3101 = vld [vmem:[#allocation19 + $0x10] sm:$0xff]
        %v3102 = vld [vmem:[#allocation19 + $0x18] sm:$0xff]
        %v3103 = vld [vmem:[#allocation19 + $0x20] sm:$0xff]
        %v3104 = vld [vmem:[#allocation19 + $0x28] sm:$0xff]
        %v3105 = vld [vmem:[#allocation19 + $0x30] sm:$0xff]
        %v3106 = vld [vmem:[#allocation19 + $0x38] sm:$0xff]
        %v3108 = vsel %vm1079, %v3099, 0
        %v3111 = vsel %vm1079, %v3100, 0
        %v3114 = vsel %vm1079, %v3101, 0
        %v3117 = vsel %vm1079, %v3102, 0
        %v3120 = vsel %vm1079, %v3103, 0
        %v3123 = vsel %vm1079, %v3104, 0
        %v3126 = vsel %vm1079, %v3105, 0
        %v3129 = vsel %vm1079, %v3106, 0
        %3131 = vmatprep.subr.mxu0 %v1218
        %3132 = vmatpush1.msra.mxu0 %v1217
        %3133 = vmatprep.subr.mxu0 %v1220
        %3134 = vmatpush1.msra.mxu0 %v1219
        %3135 = vmatprep.subr.mxu0 %v2096
        %3136 = vmatpush1.msra.mxu0 %v2095
        %3137 = vmatprep.subr.mxu0 %v2098
        %3138 = vmatpush1.msra.mxu0 %v2097
        %3139 = vmatprep.subr.mxu0 %v2596
        %3140 = vmatpush1.msra.mxu0 %v2595
        %3141 = vmatprep.subr.mxu0 %v2598
        %3142 = vmatpush1.msra.mxu0 %v2597
        %3143 = vmatprep.subr.mxu0 %v3096
        %3144 = vmatpush1.msra.mxu0 %v3095
        %3145 = vmatprep.subr.mxu0 %v3098
        %3146 = vmatpush1.msra.mxu0 %v3097
        %3147 = vmatprep.subr.mxu0 0.0
        %3148 = vmatpush1.msra.mxu0 0.0
        %3149 = vmatprep.subr.mxu0 0.0
        %3150 = vmatpush1.msra.mxu0 0.0
        %3151 = vmatprep.subr.mxu0 0.0
        %3152 = vmatpush1.msra.mxu0 0.0
        %3153 = vmatprep.subr.mxu0 0.0
        %3154 = vmatpush1.msra.mxu0 0.0
        %3155 = vmatprep.subr.mxu0 0.0
        %3156 = vmatpush1.msra.mxu0 0.0
        %3157 = vmatprep.subr.mxu0 0.0
        %3158 = vmatpush1.msra.mxu0 0.0
        %3159 = vmatprep.subr.mxu0 0.0
        %3160 = vmatpush1.msra.mxu0 0.0
        %3161 = vmatprep.subr.mxu0 0.0
        %3162 = vmatpush1.msra.mxu0 0.0
        %3163 = vmatprep.subr.mxu0 0.0
        %3164 = vmatpush1.msra.mxu0 0.0
        %3165 = vmatprep.subr.mxu0 0.0
        %3166 = vmatpush1.msra.mxu0 0.0
        %3167 = vmatprep.subr.mxu0 0.0
        %3168 = vmatpush1.msra.mxu0 0.0
        %3169 = vmatprep.subr.mxu0 0.0
        %3170 = vmatpush1.msra.mxu0 0.0
        %3171 = vmatprep.subr.mxu0 0.0
        %3172 = vmatpush1.msra.mxu0 0.0
        %3173 = vmatprep.subr.mxu0 0.0
        %3174 = vmatpush1.msra.mxu0 0.0
        %3175 = vmatprep.subr.mxu0 0.0
        %3176 = vmatpush1.msra.mxu0 0.0
        %3177 = vmatprep.subr.mxu0 0.0
        %3178 = vmatpush1.msra.mxu0 0.0
        %3179 = vmatprep.subr.mxu0 0.0
        %3180 = vmatpush1.msra.mxu0 0.0
        %3181 = vmatprep.subr.mxu0 0.0
        %3182 = vmatpush1.msra.mxu0 0.0
        %3183 = vmatprep.subr.mxu0 0.0
        %3184 = vmatpush1.msra.mxu0 0.0
        %3185 = vmatprep.subr.mxu0 0.0
        %3186 = vmatpush1.msra.mxu0 0.0
        %3187 = vmatprep.subr.mxu0 0.0
        %3188 = vmatpush1.msra.mxu0 0.0
        %3189 = vmatprep.subr.mxu0 0.0
        %3190 = vmatpush1.msra.mxu0 0.0
        %3191 = vmatprep.subr.mxu0 0.0
        %3192 = vmatpush1.msra.mxu0 0.0
        %3193 = vmatprep.subr.mxu0 0.0
        %3194 = vmatpush1.msra.mxu0 0.0
        %3195 = vmatprep.mubr.f32.mxu0 0.0
        %3196 = vmatmul.mubr.f32.gmra.mrb[0].mxu0 %v3108
        %v3197 = vpop.f32.mrb[0].mxu0
        %v3198 = vadd.f32 0.0, %v3197
        %v3199 = vpop.f32.mrb[0].mxu0
        %v3200 = vadd.f32 0.0, %v3199
        %3201 = vmatprep.mubr.f32.mxu0 0.0
        %3202 = vmatmul.mubr.f32.gmra.mrb[0].mxu0 %v3111
        %v3203 = vpop.f32.mrb[0].mxu0
        %v3204 = vadd.f32 0.0, %v3203
        %v3205 = vpop.f32.mrb[0].mxu0
        %v3206 = vadd.f32 0.0, %v3205
        %3207 = vmatprep.mubr.f32.mxu0 0.0
        %3208 = vmatmul.mubr.f32.gmra.mrb[0].mxu0 %v3114
        %v3209 = vpop.f32.mrb[0].mxu0
        %v3210 = vadd.f32 0.0, %v3209
        %v3211 = vpop.f32.mrb[0].mxu0
        %v3212 = vadd.f32 0.0, %v3211
        %3213 = vmatprep.mubr.f32.mxu0 0.0
        %3214 = vmatmul.mubr.f32.gmra.mrb[0].mxu0 %v3117
        %v3215 = vpop.f32.mrb[0].mxu0
        %v3216 = vadd.f32 0.0, %v3215
        %v3217 = vpop.f32.mrb[0].mxu0
        %v3218 = vadd.f32 0.0, %v3217
        %3219 = vmatprep.mubr.f32.mxu0 0.0
        %3220 = vmatmul.mubr.f32.gmra.mrb[0].mxu0 %v3120
        %v3221 = vpop.f32.mrb[0].mxu0
        %v3222 = vadd.f32 0.0, %v3221
        %v3223 = vpop.f32.mrb[0].mxu0
        %v3224 = vadd.f32 0.0, %v3223
        %3225 = vmatprep.mubr.f32.mxu0 0.0
        %3226 = vmatmul.mubr.f32.gmra.mrb[0].mxu0 %v3123
        %v3227 = vpop.f32.mrb[0].mxu0
        %v3228 = vadd.f32 0.0, %v3227
        %v3229 = vpop.f32.mrb[0].mxu0
        %v3230 = vadd.f32 0.0, %v3229
        %3231 = vmatprep.mubr.f32.mxu0 0.0
        %3232 = vmatmul.mubr.f32.gmra.mrb[0].mxu0 %v3126
        %v3233 = vpop.f32.mrb[0].mxu0
        %v3234 = vadd.f32 0.0, %v3233
        %v3235 = vpop.f32.mrb[0].mxu0
        %v3236 = vadd.f32 0.0, %v3235
        %3237 = vmatprep.mubr.f32.mxu0 0.0
        %3238 = vmatmul.mubr.f32.gmra.mrb[0].mxu0 %v3129
        %v3239 = vpop.f32.mrb[0].mxu0
        %v3240 = vadd.f32 0.0, %v3239
        %v3241 = vpop.f32.mrb[0].mxu0
        %v3242 = vadd.f32 0.0, %v3241
        %3243 = vdwg.mxu0
        %v3244 = vadd.f32 %v1007, %v3198
        %v3245 = vadd.f32 %v1008, %v3200
        %v3246 = vadd.f32 %v1009, %v3204
        %v3247 = vadd.f32 %v1010, %v3206
        %v3248 = vadd.f32 %v1011, %v3210
        %v3249 = vadd.f32 %v1012, %v3212
        %v3250 = vadd.f32 %v1013, %v3216
        %v3251 = vadd.f32 %v1014, %v3218
        %v3252 = vadd.f32 %v1015, %v3222
        %v3253 = vadd.f32 %v1016, %v3224
        %v3254 = vadd.f32 %v1017, %v3228
        %v3255 = vadd.f32 %v1018, %v3230
        %v3256 = vadd.f32 %v1019, %v3234
        %v3257 = vadd.f32 %v1020, %v3236
        %v3258 = vadd.f32 %v1021, %v3240
        %v3259 = vadd.f32 %v1022, %v3242
        %v3260 = vld [vmem:[#allocation20] sm:$0xff]
        %v3261 = vld [vmem:[#allocation20 + $0x8] sm:$0xff]
        %v3262 = vld [vmem:[#allocation20 + $0x10] sm:$0xff]
        %v3263 = vld [vmem:[#allocation20 + $0x18] sm:$0xff]
        %v3264 = vld [vmem:[#allocation20 + $0x20] sm:$0xff]
        %v3265 = vld [vmem:[#allocation20 + $0x28] sm:$0xff]
        %v3266 = vld [vmem:[#allocation20 + $0x30] sm:$0xff]
        %v3267 = vld [vmem:[#allocation20 + $0x38] sm:$0xff]
        %3269 = vset.pattern.permute.xlu0 0
        %3270 = vperm.xlu0 %3269, %v3260
        %v3271 = vpop.permute.xlu0 %3270
        %3274 = vset.pattern.permute.xlu0 0
        %3275 = vperm.xlu0 %3274, %v3261
        %v3276 = vpop.permute.xlu0 %3275
        %3279 = vset.pattern.permute.xlu0 0
        %3280 = vperm.xlu0 %3279, %v3262
        %v3281 = vpop.permute.xlu0 %3280
        %3284 = vset.pattern.permute.xlu0 0
        %3285 = vperm.xlu0 %3284, %v3263
        %v3286 = vpop.permute.xlu0 %3285
        %3289 = vset.pattern.permute.xlu0 0
        %3290 = vperm.xlu0 %3289, %v3264
        %v3291 = vpop.permute.xlu0 %3290
        %3294 = vset.pattern.permute.xlu0 0
        %3295 = vperm.xlu0 %3294, %v3265
        %v3296 = vpop.permute.xlu0 %3295
        %3299 = vset.pattern.permute.xlu0 0
        %3300 = vperm.xlu0 %3299, %v3266
        %v3301 = vpop.permute.xlu0 %3300
        %3304 = vset.pattern.permute.xlu0 0
        %3305 = vperm.xlu0 %3304, %v3267
        %v3306 = vpop.permute.xlu0 %3305
        %v3308 = vadd.f32 %v3244, %v3271
        %v3309 = vadd.f32 %v3245, %v3271
        %v3310 = vadd.f32 %v3246, %v3276
        %v3311 = vadd.f32 %v3247, %v3276
        %v3312 = vadd.f32 %v3248, %v3281
        %v3313 = vadd.f32 %v3249, %v3281
        %v3314 = vadd.f32 %v3250, %v3286
        %v3315 = vadd.f32 %v3251, %v3286
        %v3316 = vadd.f32 %v3252, %v3291
        %v3317 = vadd.f32 %v3253, %v3291
        %v3318 = vadd.f32 %v3254, %v3296
        %v3319 = vadd.f32 %v3255, %v3296
        %v3320 = vadd.f32 %v3256, %v3301
        %v3321 = vadd.f32 %v3257, %v3301
        %v3322 = vadd.f32 %v3258, %v3306
        %v3323 = vadd.f32 %v3259, %v3306
        %v3324 = vadd.f32 %v3308, %v3309
        %3325 = vadd.xlane.f32.xlu0 %v3324
        %v3326 = vpop.xlane.xlu0 %3325
        %v3327 = vadd.f32 %v3310, %v3311
        %3328 = vadd.xlane.f32.xlu0 %v3327
        %v3329 = vpop.xlane.xlu0 %3328
        %v3330 = vadd.f32 %v3312, %v3313
        %3331 = vadd.xlane.f32.xlu0 %v3330
        %v3332 = vpop.xlane.xlu0 %3331
        %v3333 = vadd.f32 %v3314, %v3315
        %3334 = vadd.xlane.f32.xlu0 %v3333
        %v3335 = vpop.xlane.xlu0 %3334
        %v3336 = vadd.f32 %v3316, %v3317
        %3337 = vadd.xlane.f32.xlu0 %v3336
        %v3338 = vpop.xlane.xlu0 %3337
        %v3339 = vadd.f32 %v3318, %v3319
        %3340 = vadd.xlane.f32.xlu0 %v3339
        %v3341 = vpop.xlane.xlu0 %3340
        %v3342 = vadd.f32 %v3320, %v3321
        %3343 = vadd.xlane.f32.xlu0 %v3342
        %v3344 = vpop.xlane.xlu0 %3343
        %v3345 = vadd.f32 %v3322, %v3323
        %3346 = vadd.xlane.f32.xlu0 %v3345
        %v3347 = vpop.xlane.xlu0 %3346
        %v3348 = vmul.f32 %v3326, 0.00390625
        %v3349 = vmul.f32 %v3329, 0.00390625
        %v3350 = vmul.f32 %v3332, 0.00390625
        %v3351 = vmul.f32 %v3335, 0.00390625
        %v3352 = vmul.f32 %v3338, 0.00390625
        %v3353 = vmul.f32 %v3341, 0.00390625
        %v3354 = vmul.f32 %v3344, 0.00390625
        %v3355 = vmul.f32 %v3347, 0.00390625
        %v3356 = vld [vmem:[#allocation22] sm:$0xff]
        %v3357 = vld [vmem:[#allocation22 + $0x8] sm:$0xff]
        %v3358 = vld [vmem:[#allocation22 + $0x10] sm:$0xff]
        %v3359 = vld [vmem:[#allocation22 + $0x18] sm:$0xff]
        %v3360 = vld [vmem:[#allocation22 + $0x20] sm:$0xff]
        %v3361 = vld [vmem:[#allocation22 + $0x28] sm:$0xff]
        %v3362 = vld [vmem:[#allocation22 + $0x30] sm:$0xff]
        %v3363 = vld [vmem:[#allocation22 + $0x38] sm:$0xff]
        %v3364 = vld [vmem:[#allocation23] sm:$0xff]
        %v3365 = vld [vmem:[#allocation23 + $0x8] sm:$0xff]
        %v3366 = vld [vmem:[#allocation23 + $0x10] sm:$0xff]
        %v3367 = vld [vmem:[#allocation23 + $0x18] sm:$0xff]
        %v3368 = vld [vmem:[#allocation23 + $0x20] sm:$0xff]
        %v3369 = vld [vmem:[#allocation23 + $0x28] sm:$0xff]
        %v3370 = vld [vmem:[#allocation23 + $0x30] sm:$0xff]
        %v3371 = vld [vmem:[#allocation23 + $0x38] sm:$0xff]
        %v3373 = vsel %vm1079, %v3356, 0
        %v3376 = vsel %vm1079, %v3357, 0
        %v3379 = vsel %vm1079, %v3358, 0
        %v3382 = vsel %vm1079, %v3359, 0
        %v3385 = vsel %vm1079, %v3360, 0
        %v3388 = vsel %vm1079, %v3361, 0
        %v3391 = vsel %vm1079, %v3362, 0
        %v3394 = vsel %vm1079, %v3363, 0
        %3396 = vmatprep.subr.mxu0 0.0
        %3397 = vmatpush1.msra.mxu0 %v3348
        %3398 = vmatprep.subr.mxu0 0.0
        %3399 = vmatpush1.msra.mxu0 %v3349
        %3400 = vmatprep.subr.mxu0 0.0
        %3401 = vmatpush1.msra.mxu0 %v3350
        %3402 = vmatprep.subr.mxu0 0.0
        %3403 = vmatpush1.msra.mxu0 %v3351
        %3404 = vmatprep.subr.mxu0 0.0
        %3405 = vmatpush1.msra.mxu0 %v3352
        %3406 = vmatprep.subr.mxu0 0.0
        %3407 = vmatpush1.msra.mxu0 %v3353
        %3408 = vmatprep.subr.mxu0 0.0
        %3409 = vmatpush1.msra.mxu0 %v3354
        %3410 = vmatprep.subr.mxu0 0.0
        %3411 = vmatpush1.msra.mxu0 %v3355
        %3412 = vmatprep.subr.mxu0 0.0
        %3413 = vmatpush1.msra.mxu0 0.0
        %3414 = vmatprep.subr.mxu0 0.0
        %3415 = vmatpush1.msra.mxu0 0.0
        %3416 = vmatprep.subr.mxu0 0.0
        %3417 = vmatpush1.msra.mxu0 0.0
        %3418 = vmatprep.subr.mxu0 0.0
        %3419 = vmatpush1.msra.mxu0 0.0
        %3420 = vmatprep.subr.mxu0 0.0
        %3421 = vmatpush1.msra.mxu0 0.0
        %3422 = vmatprep.subr.mxu0 0.0
        %3423 = vmatpush1.msra.mxu0 0.0
        %3424 = vmatprep.subr.mxu0 0.0
        %3425 = vmatpush1.msra.mxu0 0.0
        %3426 = vmatprep.subr.mxu0 0.0
        %3427 = vmatpush1.msra.mxu0 0.0
        %3428 = vmatprep.subr.mxu0 0.0
        %3429 = vmatpush1.msra.mxu0 0.0
        %3430 = vmatprep.subr.mxu0 0.0
        %3431 = vmatpush1.msra.mxu0 0.0
        %3432 = vmatprep.subr.mxu0 0.0
        %3433 = vmatpush1.msra.mxu0 0.0
        %3434 = vmatprep.subr.mxu0 0.0
        %3435 = vmatpush1.msra.mxu0 0.0
        %3436 = vmatprep.subr.mxu0 0.0
        %3437 = vmatpush1.msra.mxu0 0.0
        %3438 = vmatprep.subr.mxu0 0.0
        %3439 = vmatpush1.msra.mxu0 0.0
        %3440 = vmatprep.subr.mxu0 0.0
        %3441 = vmatpush1.msra.mxu0 0.0
        %3442 = vmatprep.subr.mxu0 0.0
        %3443 = vmatpush1.msra.mxu0 0.0
        %3444 = vmatprep.subr.mxu0 0.0
        %3445 = vmatpush1.msra.mxu0 0.0
        %3446 = vmatprep.subr.mxu0 0.0
        %3447 = vmatpush1.msra.mxu0 0.0
        %3448 = vmatprep.subr.mxu0 0.0
        %3449 = vmatpush1.msra.mxu0 0.0
        %3450 = vmatprep.subr.mxu0 0.0
        %3451 = vmatpush1.msra.mxu0 0.0
        %3452 = vmatprep.subr.mxu0 0.0
        %3453 = vmatpush1.msra.mxu0 0.0
        %3454 = vmatprep.subr.mxu0 0.0
        %3455 = vmatpush1.msra.mxu0 0.0
        %3456 = vmatprep.subr.mxu0 0.0
        %3457 = vmatpush1.msra.mxu0 0.0
        %3458 = vmatprep.subr.mxu0 0.0
        %3459 = vmatpush1.msra.mxu0 0.0
        %3460 = vmatprep.mubr.f32.mxu0 0.0
        %3461 = vmatmul.mubr.f32.gmra.mrb[0].mxu0 %v3373
        %v3462 = vpop.f32.mrb[0].mxu0
        %v3463 = vadd.f32 %v3364, %v3462
        %v3464 = vpop.f32.mrb[0].mxu0
        %3465 = vmatprep.mubr.f32.mxu0 0.0
        %3466 = vmatmul.mubr.f32.gmra.mrb[0].mxu0 %v3376
        %v3467 = vpop.f32.mrb[0].mxu0
        %v3468 = vadd.f32 %v3365, %v3467
        %v3469 = vpop.f32.mrb[0].mxu0
        %3470 = vmatprep.mubr.f32.mxu0 0.0
        %3471 = vmatmul.mubr.f32.gmra.mrb[0].mxu0 %v3379
        %v3472 = vpop.f32.mrb[0].mxu0
        %v3473 = vadd.f32 %v3366, %v3472
        %v3474 = vpop.f32.mrb[0].mxu0
        %3475 = vmatprep.mubr.f32.mxu0 0.0
        %3476 = vmatmul.mubr.f32.gmra.mrb[0].mxu0 %v3382
        %v3477 = vpop.f32.mrb[0].mxu0
        %v3478 = vadd.f32 %v3367, %v3477
        %v3479 = vpop.f32.mrb[0].mxu0
        %3480 = vmatprep.mubr.f32.mxu0 0.0
        %3481 = vmatmul.mubr.f32.gmra.mrb[0].mxu0 %v3385
        %v3482 = vpop.f32.mrb[0].mxu0
        %v3483 = vadd.f32 %v3368, %v3482
        %v3484 = vpop.f32.mrb[0].mxu0
        %3485 = vmatprep.mubr.f32.mxu0 0.0
        %3486 = vmatmul.mubr.f32.gmra.mrb[0].mxu0 %v3388
        %v3487 = vpop.f32.mrb[0].mxu0
        %v3488 = vadd.f32 %v3369, %v3487
        %v3489 = vpop.f32.mrb[0].mxu0
        %3490 = vmatprep.mubr.f32.mxu0 0.0
        %3491 = vmatmul.mubr.f32.gmra.mrb[0].mxu0 %v3391
        %v3492 = vpop.f32.mrb[0].mxu0
        %v3493 = vadd.f32 %v3370, %v3492
        %v3494 = vpop.f32.mrb[0].mxu0
        %3495 = vmatprep.mubr.f32.mxu0 0.0
        %3496 = vmatmul.mubr.f32.gmra.mrb[0].mxu0 %v3394
        %v3497 = vpop.f32.mrb[0].mxu0
        %v3498 = vadd.f32 %v3371, %v3497
        %v3499 = vpop.f32.mrb[0].mxu0
        %3500 = vdwg.mxu0
        %v3501 = vld [vmem:[#allocation25] sm:$0xff]
        %v3502 = vld [vmem:[#allocation25 + $0x8] sm:$0xff]
        %v3503 = vld [vmem:[#allocation25 + $0x10] sm:$0xff]
        %v3504 = vld [vmem:[#allocation25 + $0x18] sm:$0xff]
        %v3505 = vld [vmem:[#allocation25 + $0x20] sm:$0xff]
        %v3506 = vld [vmem:[#allocation25 + $0x28] sm:$0xff]
        %v3507 = vld [vmem:[#allocation25 + $0x30] sm:$0xff]
        %v3508 = vld [vmem:[#allocation25 + $0x38] sm:$0xff]
        %v3509 = vld [vmem:[#allocation26] sm:$0xff]
        %v3510 = vld [vmem:[#allocation26 + $0x8] sm:$0xff]
        %v3511 = vld [vmem:[#allocation26 + $0x10] sm:$0xff]
        %v3512 = vld [vmem:[#allocation26 + $0x18] sm:$0xff]
        %v3513 = vld [vmem:[#allocation26 + $0x20] sm:$0xff]
        %v3514 = vld [vmem:[#allocation26 + $0x28] sm:$0xff]
        %v3515 = vld [vmem:[#allocation26 + $0x30] sm:$0xff]
        %v3516 = vld [vmem:[#allocation26 + $0x38] sm:$0xff]
        %v3518 = vsel %vm1079, %v3501, 0
        %v3521 = vsel %vm1079, %v3502, 0
        %v3524 = vsel %vm1079, %v3503, 0
        %v3527 = vsel %vm1079, %v3504, 0
        %v3530 = vsel %vm1079, %v3505, 0
        %v3533 = vsel %vm1079, %v3506, 0
        %v3536 = vsel %vm1079, %v3507, 0
        %v3539 = vsel %vm1079, %v3508, 0
        %3541 = vmatprep.subr.mxu0 0.0
        %3542 = vmatpush1.msra.mxu0 %v3463
        %3543 = vmatprep.subr.mxu0 0.0
        %3544 = vmatpush1.msra.mxu0 %v3468
        %3545 = vmatprep.subr.mxu0 0.0
        %3546 = vmatpush1.msra.mxu0 %v3473
        %3547 = vmatprep.subr.mxu0 0.0
        %3548 = vmatpush1.msra.mxu0 %v3478
        %3549 = vmatprep.subr.mxu0 0.0
        %3550 = vmatpush1.msra.mxu0 %v3483
        %3551 = vmatprep.subr.mxu0 0.0
        %3552 = vmatpush1.msra.mxu0 %v3488
        %3553 = vmatprep.subr.mxu0 0.0
        %3554 = vmatpush1.msra.mxu0 %v3493
        %3555 = vmatprep.subr.mxu0 0.0
        %3556 = vmatpush1.msra.mxu0 %v3498
        %3557 = vmatprep.subr.mxu0 0.0
        %3558 = vmatpush1.msra.mxu0 0.0
        %3559 = vmatprep.subr.mxu0 0.0
        %3560 = vmatpush1.msra.mxu0 0.0
        %3561 = vmatprep.subr.mxu0 0.0
        %3562 = vmatpush1.msra.mxu0 0.0
        %3563 = vmatprep.subr.mxu0 0.0
        %3564 = vmatpush1.msra.mxu0 0.0
        %3565 = vmatprep.subr.mxu0 0.0
        %3566 = vmatpush1.msra.mxu0 0.0
        %3567 = vmatprep.subr.mxu0 0.0
        %3568 = vmatpush1.msra.mxu0 0.0
        %3569 = vmatprep.subr.mxu0 0.0
        %3570 = vmatpush1.msra.mxu0 0.0
        %3571 = vmatprep.subr.mxu0 0.0
        %3572 = vmatpush1.msra.mxu0 0.0
        %3573 = vmatprep.subr.mxu0 0.0
        %3574 = vmatpush1.msra.mxu0 0.0
        %3575 = vmatprep.subr.mxu0 0.0
        %3576 = vmatpush1.msra.mxu0 0.0
        %3577 = vmatprep.subr.mxu0 0.0
        %3578 = vmatpush1.msra.mxu0 0.0
        %3579 = vmatprep.subr.mxu0 0.0
        %3580 = vmatpush1.msra.mxu0 0.0
        %3581 = vmatprep.subr.mxu0 0.0
        %3582 = vmatpush1.msra.mxu0 0.0
        %3583 = vmatprep.subr.mxu0 0.0
        %3584 = vmatpush1.msra.mxu0 0.0
        %3585 = vmatprep.subr.mxu0 0.0
        %3586 = vmatpush1.msra.mxu0 0.0
        %3587 = vmatprep.subr.mxu0 0.0
        %3588 = vmatpush1.msra.mxu0 0.0
        %3589 = vmatprep.subr.mxu0 0.0
        %3590 = vmatpush1.msra.mxu0 0.0
        %3591 = vmatprep.subr.mxu0 0.0
        %3592 = vmatpush1.msra.mxu0 0.0
        %3593 = vmatprep.subr.mxu0 0.0
        %3594 = vmatpush1.msra.mxu0 0.0
        %3595 = vmatprep.subr.mxu0 0.0
        %3596 = vmatpush1.msra.mxu0 0.0
        %3597 = vmatprep.subr.mxu0 0.0
        %3598 = vmatpush1.msra.mxu0 0.0
        %3599 = vmatprep.subr.mxu0 0.0
        %3600 = vmatpush1.msra.mxu0 0.0
        %3601 = vmatprep.subr.mxu0 0.0
        %3602 = vmatpush1.msra.mxu0 0.0
        %3603 = vmatprep.subr.mxu0 0.0
        %3604 = vmatpush1.msra.mxu0 0.0
        %3605 = vmatprep.mubr.f32.mxu0 0.0
        %3606 = vmatmul.mubr.f32.gmra.mrb[0].mxu0 %v3518
        %v3607 = vpop.f32.mrb[0].mxu0
        %v3608 = vadd.f32 %v3509, %v3607
        %v3609 = vpop.f32.mrb[0].mxu0
        %3610 = vmatprep.mubr.f32.mxu0 0.0
        %3611 = vmatmul.mubr.f32.gmra.mrb[0].mxu0 %v3521
        %v3612 = vpop.f32.mrb[0].mxu0
        %v3613 = vadd.f32 %v3510, %v3612
        %v3614 = vpop.f32.mrb[0].mxu0
        %3615 = vmatprep.mubr.f32.mxu0 0.0
        %3616 = vmatmul.mubr.f32.gmra.mrb[0].mxu0 %v3524
        %v3617 = vpop.f32.mrb[0].mxu0
        %v3618 = vadd.f32 %v3511, %v3617
        %v3619 = vpop.f32.mrb[0].mxu0
        %3620 = vmatprep.mubr.f32.mxu0 0.0
        %3621 = vmatmul.mubr.f32.gmra.mrb[0].mxu0 %v3527
        %v3622 = vpop.f32.mrb[0].mxu0
        %v3623 = vadd.f32 %v3512, %v3622
        %v3624 = vpop.f32.mrb[0].mxu0
        %3625 = vmatprep.mubr.f32.mxu0 0.0
        %3626 = vmatmul.mubr.f32.gmra.mrb[0].mxu0 %v3530
        %v3627 = vpop.f32.mrb[0].mxu0
        %v3628 = vadd.f32 %v3513, %v3627
        %v3629 = vpop.f32.mrb[0].mxu0
        %3630 = vmatprep.mubr.f32.mxu0 0.0
        %3631 = vmatmul.mubr.f32.gmra.mrb[0].mxu0 %v3533
        %v3632 = vpop.f32.mrb[0].mxu0
        %v3633 = vadd.f32 %v3514, %v3632
        %v3634 = vpop.f32.mrb[0].mxu0
        %3635 = vmatprep.mubr.f32.mxu0 0.0
        %3636 = vmatmul.mubr.f32.gmra.mrb[0].mxu0 %v3536
        %v3637 = vpop.f32.mrb[0].mxu0
        %v3638 = vadd.f32 %v3515, %v3637
        %v3639 = vpop.f32.mrb[0].mxu0
        %3640 = vmatprep.mubr.f32.mxu0 0.0
        %3641 = vmatmul.mubr.f32.gmra.mrb[0].mxu0 %v3539
        %v3642 = vpop.f32.mrb[0].mxu0
        %v3643 = vadd.f32 %v3516, %v3642
        %v3644 = vpop.f32.mrb[0].mxu0
        %3645 = vdwg.mxu0
        %3646 = vmatprep.subr.mxu0 %v3309
        %3647 = vmatpush1.xpose.msra.mxu0 %v3308
        %3648 = vmatprep.subr.mxu0 %v3311
        %3649 = vmatpush1.xpose.msra.mxu0 %v3310
        %3650 = vmatprep.subr.mxu0 %v3313
        %3651 = vmatpush1.xpose.msra.mxu0 %v3312
        %3652 = vmatprep.subr.mxu0 %v3315
        %3653 = vmatpush1.xpose.msra.mxu0 %v3314
        %3654 = vmatprep.subr.mxu0 %v3317
        %3655 = vmatpush1.xpose.msra.mxu0 %v3316
        %3656 = vmatprep.subr.mxu0 %v3319
        %3657 = vmatpush1.xpose.msra.mxu0 %v3318
        %3658 = vmatprep.subr.mxu0 %v3321
        %3659 = vmatpush1.xpose.msra.mxu0 %v3320
        %3660 = vmatprep.subr.mxu0 %v3323
        %3661 = vmatpush1.xpose.msra.mxu0 %v3322
        %3662 = vmatprep.subr.mxu0 0.0
        %3663 = vmatpush1.xpose.msra.mxu0 0.0
        %3664 = vmatprep.subr.mxu0 0.0
        %3665 = vmatpush1.xpose.msra.mxu0 0.0
        %3666 = vmatprep.subr.mxu0 0.0
        %3667 = vmatpush1.xpose.msra.mxu0 0.0
        %3668 = vmatprep.subr.mxu0 0.0
        %3669 = vmatpush1.xpose.msra.mxu0 0.0
        %3670 = vmatprep.subr.mxu0 0.0
        %3671 = vmatpush1.xpose.msra.mxu0 0.0
        %3672 = vmatprep.subr.mxu0 0.0
        %3673 = vmatpush1.xpose.msra.mxu0 0.0
        %3674 = vmatprep.subr.mxu0 0.0
        %3675 = vmatpush1.xpose.msra.mxu0 0.0
        %3676 = vmatprep.subr.mxu0 0.0
        %3677 = vmatpush1.xpose.msra.mxu0 0.0
        %3678 = vmatprep.subr.mxu0 0.0
        %3679 = vmatpush1.xpose.msra.mxu0 0.0
        %3680 = vmatprep.subr.mxu0 0.0
        %3681 = vmatpush1.xpose.msra.mxu0 0.0
        %3682 = vmatprep.subr.mxu0 0.0
        %3683 = vmatpush1.xpose.msra.mxu0 0.0
        %3684 = vmatprep.subr.mxu0 0.0
        %3685 = vmatpush1.xpose.msra.mxu0 0.0
        %3686 = vmatprep.subr.mxu0 0.0
        %3687 = vmatpush1.xpose.msra.mxu0 0.0
        %3688 = vmatprep.subr.mxu0 0.0
        %3689 = vmatpush1.xpose.msra.mxu0 0.0
        %3690 = vmatprep.subr.mxu0 0.0
        %3691 = vmatpush1.xpose.msra.mxu0 0.0
        %3692 = vmatprep.subr.mxu0 0.0
        %3693 = vmatpush1.xpose.msra.mxu0 0.0
        %3694 = vmatprep.subr.mxu0 0.0
        %3695 = vmatpush1.xpose.msra.mxu0 0.0
        %3696 = vmatprep.subr.mxu0 0.0
        %3697 = vmatpush1.xpose.msra.mxu0 0.0
        %3698 = vmatprep.subr.mxu0 0.0
        %3699 = vmatpush1.xpose.msra.mxu0 0.0
        %3700 = vmatprep.subr.mxu0 0.0
        %3701 = vmatpush1.xpose.msra.mxu0 0.0
        %3702 = vmatprep.subr.mxu0 0.0
        %3703 = vmatpush1.xpose.msra.mxu0 0.0
        %3704 = vmatprep.subr.mxu0 0.0
        %3705 = vmatpush1.xpose.msra.mxu0 0.0
        %3706 = vmatprep.subr.mxu0 0.0
        %3707 = vmatpush1.xpose.msra.mxu0 0.0
        %3708 = vmatprep.subr.mxu0 0.0
        %3709 = vmatpush1.xpose.msra.mxu0 0.0
        %3710 = vmatprep.mubr.f32.mxu0 %v3309
        %3711 = vmatmul.mubr.f32.gmra.mrb[0].mxu0 %v3308
        %v3712 = vpop.f32.mrb[0].mxu0
        %v3713 = vadd.f32 0.0, %v3712
        %v3714 = vpop.f32.mrb[0].mxu0
        %3715 = vmatprep.mubr.f32.mxu0 %v3311
        %3716 = vmatmul.mubr.f32.gmra.mrb[0].mxu0 %v3310
        %v3717 = vpop.f32.mrb[0].mxu0
        %v3718 = vadd.f32 0.0, %v3717
        %v3719 = vpop.f32.mrb[0].mxu0
        %3720 = vmatprep.mubr.f32.mxu0 %v3313
        %3721 = vmatmul.mubr.f32.gmra.mrb[0].mxu0 %v3312
        %v3722 = vpop.f32.mrb[0].mxu0
        %v3723 = vadd.f32 0.0, %v3722
        %v3724 = vpop.f32.mrb[0].mxu0
        %3725 = vmatprep.mubr.f32.mxu0 %v3315
        %3726 = vmatmul.mubr.f32.gmra.mrb[0].mxu0 %v3314
        %v3727 = vpop.f32.mrb[0].mxu0
        %v3728 = vadd.f32 0.0, %v3727
        %v3729 = vpop.f32.mrb[0].mxu0
        %3730 = vmatprep.mubr.f32.mxu0 %v3317
        %3731 = vmatmul.mubr.f32.gmra.mrb[0].mxu0 %v3316
        %v3732 = vpop.f32.mrb[0].mxu0
        %v3733 = vadd.f32 0.0, %v3732
        %v3734 = vpop.f32.mrb[0].mxu0
        %3735 = vmatprep.mubr.f32.mxu0 %v3319
        %3736 = vmatmul.mubr.f32.gmra.mrb[0].mxu0 %v3318
        %v3737 = vpop.f32.mrb[0].mxu0
        %v3738 = vadd.f32 0.0, %v3737
        %v3739 = vpop.f32.mrb[0].mxu0
        %3740 = vmatprep.mubr.f32.mxu0 %v3321
        %3741 = vmatmul.mubr.f32.gmra.mrb[0].mxu0 %v3320
        %v3742 = vpop.f32.mrb[0].mxu0
        %v3743 = vadd.f32 0.0, %v3742
        %v3744 = vpop.f32.mrb[0].mxu0
        %3745 = vmatprep.mubr.f32.mxu0 %v3323
        %3746 = vmatmul.mubr.f32.gmra.mrb[0].mxu0 %v3322
        %v3747 = vpop.f32.mrb[0].mxu0
        %v3748 = vadd.f32 0.0, %v3747
        %v3749 = vpop.f32.mrb[0].mxu0
        %3750 = vdwg.mxu0
        %vm3751 = vcmask 7168
        %v3753 = vsel %vm3751, %v3326, 0
        %v3756 = vsel %vm3751, %v3329, 0
        %v3759 = vsel %vm3751, %v3332, 0
        %v3762 = vsel %vm3751, %v3335, 0
        %v3765 = vsel %vm3751, %v3338, 0
        %v3768 = vsel %vm3751, %v3341, 0
        %v3771 = vsel %vm3751, %v3344, 0
        %v3774 = vsel %vm3751, %v3347, 0
        %3776 = vmatprep.subr.mxu0 0.0
        %3777 = vmatpush1.xpose.msra.mxu0 %v3753
        %3778 = vmatprep.subr.mxu0 0.0
        %3779 = vmatpush1.xpose.msra.mxu0 %v3756
        %3780 = vmatprep.subr.mxu0 0.0
        %3781 = vmatpush1.xpose.msra.mxu0 %v3759
        %3782 = vmatprep.subr.mxu0 0.0
        %3783 = vmatpush1.xpose.msra.mxu0 %v3762
        %3784 = vmatprep.subr.mxu0 0.0
        %3785 = vmatpush1.xpose.msra.mxu0 %v3765
        %3786 = vmatprep.subr.mxu0 0.0
        %3787 = vmatpush1.xpose.msra.mxu0 %v3768
        %3788 = vmatprep.subr.mxu0 0.0
        %3789 = vmatpush1.xpose.msra.mxu0 %v3771
        %3790 = vmatprep.subr.mxu0 0.0
        %3791 = vmatpush1.xpose.msra.mxu0 %v3774
        %3792 = vmatprep.subr.mxu0 0.0
        %3793 = vmatpush1.xpose.msra.mxu0 0.0
        %3794 = vmatprep.subr.mxu0 0.0
        %3795 = vmatpush1.xpose.msra.mxu0 0.0
        %3796 = vmatprep.subr.mxu0 0.0
        %3797 = vmatpush1.xpose.msra.mxu0 0.0
        %3798 = vmatprep.subr.mxu0 0.0
        %3799 = vmatpush1.xpose.msra.mxu0 0.0
        %3800 = vmatprep.subr.mxu0 0.0
        %3801 = vmatpush1.xpose.msra.mxu0 0.0
        %3802 = vmatprep.subr.mxu0 0.0
        %3803 = vmatpush1.xpose.msra.mxu0 0.0
        %3804 = vmatprep.subr.mxu0 0.0
        %3805 = vmatpush1.xpose.msra.mxu0 0.0
        %3806 = vmatprep.subr.mxu0 0.0
        %3807 = vmatpush1.xpose.msra.mxu0 0.0
        %3808 = vmatprep.subr.mxu0 0.0
        %3809 = vmatpush1.xpose.msra.mxu0 0.0
        %3810 = vmatprep.subr.mxu0 0.0
        %3811 = vmatpush1.xpose.msra.mxu0 0.0
        %3812 = vmatprep.subr.mxu0 0.0
        %3813 = vmatpush1.xpose.msra.mxu0 0.0
        %3814 = vmatprep.subr.mxu0 0.0
        %3815 = vmatpush1.xpose.msra.mxu0 0.0
        %3816 = vmatprep.subr.mxu0 0.0
        %3817 = vmatpush1.xpose.msra.mxu0 0.0
        %3818 = vmatprep.subr.mxu0 0.0
        %3819 = vmatpush1.xpose.msra.mxu0 0.0
        %3820 = vmatprep.subr.mxu0 0.0
        %3821 = vmatpush1.xpose.msra.mxu0 0.0
        %3822 = vmatprep.subr.mxu0 0.0
        %3823 = vmatpush1.xpose.msra.mxu0 0.0
        %3824 = vmatprep.subr.mxu0 0.0
        %3825 = vmatpush1.xpose.msra.mxu0 0.0
        %3826 = vmatprep.subr.mxu0 0.0
        %3827 = vmatpush1.xpose.msra.mxu0 0.0
        %3828 = vmatprep.subr.mxu0 0.0
        %3829 = vmatpush1.xpose.msra.mxu0 0.0
        %3830 = vmatprep.subr.mxu0 0.0
        %3831 = vmatpush1.xpose.msra.mxu0 0.0
        %3832 = vmatprep.subr.mxu0 0.0
        %3833 = vmatpush1.xpose.msra.mxu0 0.0
        %3834 = vmatprep.subr.mxu0 0.0
        %3835 = vmatpush1.xpose.msra.mxu0 0.0
        %3836 = vmatprep.subr.mxu0 0.0
        %3837 = vmatpush1.xpose.msra.mxu0 0.0
        %3838 = vmatprep.subr.mxu0 0.0
        %3839 = vmatpush1.xpose.msra.mxu0 0.0
        %3840 = vmatprep.mubr.f32.mxu0 0.0
        %3841 = vmatmul.mubr.f32.gmra.mrb[0].mxu0 %v3753
        %v3842 = vpop.f32.mrb[0].mxu0
        %v3843 = vadd.f32 0.0, %v3842
        %v3844 = vpop.f32.mrb[0].mxu0
        %3845 = vmatprep.mubr.f32.mxu0 0.0
        %3846 = vmatmul.mubr.f32.gmra.mrb[0].mxu0 %v3756
        %v3847 = vpop.f32.mrb[0].mxu0
        %v3848 = vadd.f32 0.0, %v3847
        %v3849 = vpop.f32.mrb[0].mxu0
        %3850 = vmatprep.mubr.f32.mxu0 0.0
        %3851 = vmatmul.mubr.f32.gmra.mrb[0].mxu0 %v3759
        %v3852 = vpop.f32.mrb[0].mxu0
        %v3853 = vadd.f32 0.0, %v3852
        %v3854 = vpop.f32.mrb[0].mxu0
        %3855 = vmatprep.mubr.f32.mxu0 0.0
        %3856 = vmatmul.mubr.f32.gmra.mrb[0].mxu0 %v3762
        %v3857 = vpop.f32.mrb[0].mxu0
        %v3858 = vadd.f32 0.0, %v3857
        %v3859 = vpop.f32.mrb[0].mxu0
        %3860 = vmatprep.mubr.f32.mxu0 0.0
        %3861 = vmatmul.mubr.f32.gmra.mrb[0].mxu0 %v3765
        %v3862 = vpop.f32.mrb[0].mxu0
        %v3863 = vadd.f32 0.0, %v3862
        %v3864 = vpop.f32.mrb[0].mxu0
        %3865 = vmatprep.mubr.f32.mxu0 0.0
        %3866 = vmatmul.mubr.f32.gmra.mrb[0].mxu0 %v3768
        %v3867 = vpop.f32.mrb[0].mxu0
        %v3868 = vadd.f32 0.0, %v3867
        %v3869 = vpop.f32.mrb[0].mxu0
        %3870 = vmatprep.mubr.f32.mxu0 0.0
        %3871 = vmatmul.mubr.f32.gmra.mrb[0].mxu0 %v3771
        %v3872 = vpop.f32.mrb[0].mxu0
        %v3873 = vadd.f32 0.0, %v3872
        %v3874 = vpop.f32.mrb[0].mxu0
        %3875 = vmatprep.mubr.f32.mxu0 0.0
        %3876 = vmatmul.mubr.f32.gmra.mrb[0].mxu0 %v3774
        %v3877 = vpop.f32.mrb[0].mxu0
        %v3878 = vadd.f32 0.0, %v3877
        %v3879 = vpop.f32.mrb[0].mxu0
        %3880 = vdwg.mxu0
        %v3881 = vmul.f32 %v3713, 0.00390625
        %v3882 = vmul.f32 %v3718, 0.00390625
        %v3883 = vmul.f32 %v3723, 0.00390625
        %v3884 = vmul.f32 %v3728, 0.00390625
        %v3885 = vmul.f32 %v3733, 0.00390625
        %v3886 = vmul.f32 %v3738, 0.00390625
        %v3887 = vmul.f32 %v3743, 0.00390625
        %v3888 = vmul.f32 %v3748, 0.00390625
        %v3889 = vmul.f32 %v3843, 1.5258789e-05
        %v3890 = vmul.f32 %v3848, 1.5258789e-05
        %v3891 = vmul.f32 %v3853, 1.5258789e-05
        %v3892 = vmul.f32 %v3858, 1.5258789e-05
        %v3893 = vmul.f32 %v3863, 1.5258789e-05
        %v3894 = vmul.f32 %v3868, 1.5258789e-05
        %v3895 = vmul.f32 %v3873, 1.5258789e-05
        %v3896 = vmul.f32 %v3878, 1.5258789e-05
        %v3897 = vsub.f32 %v3881, %v3889
        %v3898 = vsub.f32 %v3882, %v3890
        %v3899 = vsub.f32 %v3883, %v3891
        %v3900 = vsub.f32 %v3884, %v3892
        %v3901 = vsub.f32 %v3885, %v3893
        %v3902 = vsub.f32 %v3886, %v3894
        %v3903 = vsub.f32 %v3887, %v3895
        %v3904 = vsub.f32 %v3888, %v3896
        %v3905 = vlaneseq
        %v3906 = vshrl.u32 %v3905, 7
        %v3907 = vadd.s32 %v3906, 8
        %v3908 = vadd.s32 %v3906, 16
        %v3909 = vadd.s32 %v3906, 24
        %v3910 = vadd.s32 %v3906, 32
        %v3911 = vadd.s32 %v3906, 40
        %v3912 = vadd.s32 %v3906, 48
        %v3913 = vadd.s32 %v3906, 56
        %vm3914 = vcmp.eq.s32.totalorder %v3906, %v1242
        %vm3915 = vcmp.eq.s32.totalorder %v3907, %v1242
        %vm3916 = vcmp.eq.s32.totalorder %v3908, %v1242
        %vm3917 = vcmp.eq.s32.totalorder %v3909, %v1242
        %vm3918 = vcmp.eq.s32.totalorder %v3910, %v1242
        %vm3919 = vcmp.eq.s32.totalorder %v3911, %v1242
        %vm3920 = vcmp.eq.s32.totalorder %v3912, %v1242
        %vm3921 = vcmp.eq.s32.totalorder %v3913, %v1242
        %v3922 = vsel %vm3914, 1, 0
        %v3923 = vsel %vm3915, 1, 0
        %v3924 = vsel %vm3916, 1, 0
        %v3925 = vsel %vm3917, 1, 0
        %v3926 = vsel %vm3918, 1, 0
        %v3927 = vsel %vm3919, 1, 0
        %v3928 = vsel %vm3920, 1, 0
        %v3929 = vsel %vm3921, 1, 0
        %v3930 = vcvt.s32.f32 %v3922
        %v3931 = vcvt.s32.f32 %v3923
        %v3932 = vcvt.s32.f32 %v3924
        %v3933 = vcvt.s32.f32 %v3925
        %v3934 = vcvt.s32.f32 %v3926
        %v3935 = vcvt.s32.f32 %v3927
        %v3936 = vcvt.s32.f32 %v3928
        %v3937 = vcvt.s32.f32 %v3929
        %v3938 = vmul.f32 %v3930, 3.0
        %v3939 = vmul.f32 %v3931, 3.0
        %v3940 = vmul.f32 %v3932, 3.0
        %v3941 = vmul.f32 %v3933, 3.0
        %v3942 = vmul.f32 %v3934, 3.0
        %v3943 = vmul.f32 %v3935, 3.0
        %v3944 = vmul.f32 %v3936, 3.0
        %v3945 = vmul.f32 %v3937, 3.0
        %v3946 = vmul.f32 %v3897, %v3930
        %v3947 = vmul.f32 %v3898, %v3931
        %v3948 = vmul.f32 %v3899, %v3932
        %v3949 = vmul.f32 %v3900, %v3933
        %v3950 = vmul.f32 %v3901, %v3934
        %v3951 = vmul.f32 %v3902, %v3935
        %v3952 = vmul.f32 %v3903, %v3936
        %v3953 = vmul.f32 %v3904, %v3937
        %v3954 = vsel %vm1079, %v3946, 0.0
        %v3955 = vsel %vm1079, %v3947, 0.0
        %v3956 = vadd.f32 %v3954, %v3955
        %v3957 = vsel %vm1079, %v3948, 0.0
        %v3958 = vadd.f32 %v3956, %v3957
        %v3959 = vsel %vm1079, %v3949, 0.0
        %v3960 = vadd.f32 %v3958, %v3959
        %v3961 = vsel %vm1079, %v3950, 0.0
        %v3962 = vadd.f32 %v3960, %v3961
        %v3963 = vsel %vm1079, %v3951, 0.0
        %v3964 = vadd.f32 %v3962, %v3963
        %v3965 = vsel %vm1079, %v3952, 0.0
        %v3966 = vadd.f32 %v3964, %v3965
        %v3967 = vsel %vm1079, %v3953, 0.0
        %v3968 = vadd.f32 %v3966, %v3967
        %3969 = vadd.xlane.f32.xlu0 %v3968
        %v3970 = vpop.xlane.xlu0 %3969
        %v3971 = vrot.slane %v3970, 4
        %v3972 = vadd.f32 %v3970, %v3971
        %v3973 = vrot.slane %v3972, 2
        %v3974 = vadd.f32 %v3972, %v3973
        %v3975 = vrot.slane %v3974, 1
        %v3976 = vadd.f32 %v3974, %v3975
        %s3977 = vtos %v3976
        %s3978 = sadd.f32 %s3977, 1e-12
        %v3979 = vstv %s3978
        %v3980 = vrcp.pop %v3979
        %s3981 = vtos %v3980
        %v3982 = vstv %s3981
        %v3983 = vmul.f32 %v3897, %v3982
        %v3984 = vmul.f32 %v3898, %v3982
        %v3985 = vmul.f32 %v3899, %v3982
        %v3986 = vmul.f32 %v3900, %v3982
        %v3987 = vmul.f32 %v3901, %v3982
        %v3988 = vmul.f32 %v3902, %v3982
        %v3989 = vmul.f32 %v3903, %v3982
        %v3990 = vmul.f32 %v3904, %v3982
        %v3991 = vsub.f32 %v3938, %v3983
        %v3992 = vsub.f32 %v3939, %v3984
        %v3993 = vsub.f32 %v3940, %v3985
        %v3994 = vsub.f32 %v3941, %v3986
        %v3995 = vsub.f32 %v3942, %v3987
        %v3996 = vsub.f32 %v3943, %v3988
        %v3997 = vsub.f32 %v3944, %v3989
        %v3998 = vsub.f32 %v3945, %v3990
        %v3999 = vmul.f32 %v3991, 0.5
        %v4000 = vmul.f32 %v3992, 0.5
        %v4001 = vmul.f32 %v3993, 0.5
        %v4002 = vmul.f32 %v3994, 0.5
        %v4003 = vmul.f32 %v3995, 0.5
        %v4004 = vmul.f32 %v3996, 0.5
        %v4005 = vmul.f32 %v3997, 0.5
        %v4006 = vmul.f32 %v3998, 0.5
        %v4008 = vsel %vm1079, %v3983, 0
        %v4011 = vsel %vm1079, %v3984, 0
        %v4014 = vsel %vm1079, %v3985, 0
        %v4017 = vsel %vm1079, %v3986, 0
        %v4020 = vsel %vm1079, %v3987, 0
        %v4023 = vsel %vm1079, %v3988, 0
        %v4026 = vsel %vm1079, %v3989, 0
        %v4029 = vsel %vm1079, %v3990, 0
        %4031 = vmatprep.subr.mxu0 0.0
        %4032 = vmatpush1.msra.mxu0 %v3999
        %4033 = vmatprep.subr.mxu0 0.0
        %4034 = vmatpush1.msra.mxu0 %v4000
        %4035 = vmatprep.subr.mxu0 0.0
        %4036 = vmatpush1.msra.mxu0 %v4001
        %4037 = vmatprep.subr.mxu0 0.0
        %4038 = vmatpush1.msra.mxu0 %v4002
        %4039 = vmatprep.subr.mxu0 0.0
        %4040 = vmatpush1.msra.mxu0 %v4003
        %4041 = vmatprep.subr.mxu0 0.0
        %4042 = vmatpush1.msra.mxu0 %v4004
        %4043 = vmatprep.subr.mxu0 0.0
        %4044 = vmatpush1.msra.mxu0 %v4005
        %4045 = vmatprep.subr.mxu0 0.0
        %4046 = vmatpush1.msra.mxu0 %v4006
        %4047 = vmatprep.subr.mxu0 0.0
        %4048 = vmatpush1.msra.mxu0 0.0
        %4049 = vmatprep.subr.mxu0 0.0
        %4050 = vmatpush1.msra.mxu0 0.0
        %4051 = vmatprep.subr.mxu0 0.0
        %4052 = vmatpush1.msra.mxu0 0.0
        %4053 = vmatprep.subr.mxu0 0.0
        %4054 = vmatpush1.msra.mxu0 0.0
        %4055 = vmatprep.subr.mxu0 0.0
        %4056 = vmatpush1.msra.mxu0 0.0
        %4057 = vmatprep.subr.mxu0 0.0
        %4058 = vmatpush1.msra.mxu0 0.0
        %4059 = vmatprep.subr.mxu0 0.0
        %4060 = vmatpush1.msra.mxu0 0.0
        %4061 = vmatprep.subr.mxu0 0.0
        %4062 = vmatpush1.msra.mxu0 0.0
        %4063 = vmatprep.subr.mxu0 0.0
        %4064 = vmatpush1.msra.mxu0 0.0
        %4065 = vmatprep.subr.mxu0 0.0
        %4066 = vmatpush1.msra.mxu0 0.0
        %4067 = vmatprep.subr.mxu0 0.0
        %4068 = vmatpush1.msra.mxu0 0.0
        %4069 = vmatprep.subr.mxu0 0.0
        %4070 = vmatpush1.msra.mxu0 0.0
        %4071 = vmatprep.subr.mxu0 0.0
        %4072 = vmatpush1.msra.mxu0 0.0
        %4073 = vmatprep.subr.mxu0 0.0
        %4074 = vmatpush1.msra.mxu0 0.0
        %4075 = vmatprep.subr.mxu0 0.0
        %4076 = vmatpush1.msra.mxu0 0.0
        %4077 = vmatprep.subr.mxu0 0.0
        %4078 = vmatpush1.msra.mxu0 0.0
        %4079 = vmatprep.subr.mxu0 0.0
        %4080 = vmatpush1.msra.mxu0 0.0
        %4081 = vmatprep.subr.mxu0 0.0
        %4082 = vmatpush1.msra.mxu0 0.0
        %4083 = vmatprep.subr.mxu0 0.0
        %4084 = vmatpush1.msra.mxu0 0.0
        %4085 = vmatprep.subr.mxu0 0.0
        %4086 = vmatpush1.msra.mxu0 0.0
        %4087 = vmatprep.subr.mxu0 0.0
        %4088 = vmatpush1.msra.mxu0 0.0
        %4089 = vmatprep.subr.mxu0 0.0
        %4090 = vmatpush1.msra.mxu0 0.0
        %4091 = vmatprep.subr.mxu0 0.0
        %4092 = vmatpush1.msra.mxu0 0.0
        %4093 = vmatprep.subr.mxu0 0.0
        %4094 = vmatpush1.msra.mxu0 0.0
        %4095 = vmatprep.mubr.f32.mxu0 0.0
        %4096 = vmatmul.mubr.f32.gmra.mrb[0].mxu0 %v4008
        %v4097 = vpop.f32.mrb[0].mxu0
        %v4098 = vadd.f32 0.0, %v4097
        %v4099 = vpop.f32.mrb[0].mxu0
        %4100 = vmatprep.mubr.f32.mxu0 0.0
        %4101 = vmatmul.mubr.f32.gmra.mrb[0].mxu0 %v4011
        %v4102 = vpop.f32.mrb[0].mxu0
        %v4103 = vadd.f32 0.0, %v4102
        %v4104 = vpop.f32.mrb[0].mxu0
        %4105 = vmatprep.mubr.f32.mxu0 0.0
        %4106 = vmatmul.mubr.f32.gmra.mrb[0].mxu0 %v4014
        %v4107 = vpop.f32.mrb[0].mxu0
        %v4108 = vadd.f32 0.0, %v4107
        %v4109 = vpop.f32.mrb[0].mxu0
        %4110 = vmatprep.mubr.f32.mxu0 0.0
        %4111 = vmatmul.mubr.f32.gmra.mrb[0].mxu0 %v4017
        %v4112 = vpop.f32.mrb[0].mxu0
        %v4113 = vadd.f32 0.0, %v4112
        %v4114 = vpop.f32.mrb[0].mxu0
        %4115 = vmatprep.mubr.f32.mxu0 0.0
        %4116 = vmatmul.mubr.f32.gmra.mrb[0].mxu0 %v4020
        %v4117 = vpop.f32.mrb[0].mxu0
        %v4118 = vadd.f32 0.0, %v4117
        %v4119 = vpop.f32.mrb[0].mxu0
        %4120 = vmatprep.mubr.f32.mxu0 0.0
        %4121 = vmatmul.mubr.f32.gmra.mrb[0].mxu0 %v4023
        %v4122 = vpop.f32.mrb[0].mxu0
        %v4123 = vadd.f32 0.0, %v4122
        %v4124 = vpop.f32.mrb[0].mxu0
        %4125 = vmatprep.mubr.f32.mxu0 0.0
        %4126 = vmatmul.mubr.f32.gmra.mrb[0].mxu0 %v4026
        %v4127 = vpop.f32.mrb[0].mxu0
        %v4128 = vadd.f32 0.0, %v4127
        %v4129 = vpop.f32.mrb[0].mxu0
        %4130 = vmatprep.mubr.f32.mxu0 0.0
        %4131 = vmatmul.mubr.f32.gmra.mrb[0].mxu0 %v4029
        %v4132 = vpop.f32.mrb[0].mxu0
        %v4133 = vadd.f32 0.0, %v4132
        %v4134 = vpop.f32.mrb[0].mxu0
        %4135 = vdwg.mxu0
        %v4137 = vsel %vm1079, %v3999, 0
        %v4140 = vsel %vm1079, %v4000, 0
        %v4143 = vsel %vm1079, %v4001, 0
        %v4146 = vsel %vm1079, %v4002, 0
        %v4149 = vsel %vm1079, %v4003, 0
        %v4152 = vsel %vm1079, %v4004, 0
        %v4155 = vsel %vm1079, %v4005, 0
        %v4158 = vsel %vm1079, %v4006, 0
        %4160 = vmatprep.subr.mxu0 0.0
        %4161 = vmatpush1.msra.mxu0 %v4098
        %4162 = vmatprep.subr.mxu0 0.0
        %4163 = vmatpush1.msra.mxu0 %v4103
        %4164 = vmatprep.subr.mxu0 0.0
        %4165 = vmatpush1.msra.mxu0 %v4108
        %4166 = vmatprep.subr.mxu0 0.0
        %4167 = vmatpush1.msra.mxu0 %v4113
        %4168 = vmatprep.subr.mxu0 0.0
        %4169 = vmatpush1.msra.mxu0 %v4118
        %4170 = vmatprep.subr.mxu0 0.0
        %4171 = vmatpush1.msra.mxu0 %v4123
        %4172 = vmatprep.subr.mxu0 0.0
        %4173 = vmatpush1.msra.mxu0 %v4128
        %4174 = vmatprep.subr.mxu0 0.0
        %4175 = vmatpush1.msra.mxu0 %v4133
        %4176 = vmatprep.subr.mxu0 0.0
        %4177 = vmatpush1.msra.mxu0 0.0
        %4178 = vmatprep.subr.mxu0 0.0
        %4179 = vmatpush1.msra.mxu0 0.0
        %4180 = vmatprep.subr.mxu0 0.0
        %4181 = vmatpush1.msra.mxu0 0.0
        %4182 = vmatprep.subr.mxu0 0.0
        %4183 = vmatpush1.msra.mxu0 0.0
        %4184 = vmatprep.subr.mxu0 0.0
        %4185 = vmatpush1.msra.mxu0 0.0
        %4186 = vmatprep.subr.mxu0 0.0
        %4187 = vmatpush1.msra.mxu0 0.0
        %4188 = vmatprep.subr.mxu0 0.0
        %4189 = vmatpush1.msra.mxu0 0.0
        %4190 = vmatprep.subr.mxu0 0.0
        %4191 = vmatpush1.msra.mxu0 0.0
        %4192 = vmatprep.subr.mxu0 0.0
        %4193 = vmatpush1.msra.mxu0 0.0
        %4194 = vmatprep.subr.mxu0 0.0
        %4195 = vmatpush1.msra.mxu0 0.0
        %4196 = vmatprep.subr.mxu0 0.0
        %4197 = vmatpush1.msra.mxu0 0.0
        %4198 = vmatprep.subr.mxu0 0.0
        %4199 = vmatpush1.msra.mxu0 0.0
        %4200 = vmatprep.subr.mxu0 0.0
        %4201 = vmatpush1.msra.mxu0 0.0
        %4202 = vmatprep.subr.mxu0 0.0
        %4203 = vmatpush1.msra.mxu0 0.0
        %4204 = vmatprep.subr.mxu0 0.0
        %4205 = vmatpush1.msra.mxu0 0.0
        %4206 = vmatprep.subr.mxu0 0.0
        %4207 = vmatpush1.msra.mxu0 0.0
        %4208 = vmatprep.subr.mxu0 0.0
        %4209 = vmatpush1.msra.mxu0 0.0
        %4210 = vmatprep.subr.mxu0 0.0
        %4211 = vmatpush1.msra.mxu0 0.0
        %4212 = vmatprep.subr.mxu0 0.0
        %4213 = vmatpush1.msra.mxu0 0.0
        %4214 = vmatprep.subr.mxu0 0.0
        %4215 = vmatpush1.msra.mxu0 0.0
        %4216 = vmatprep.subr.mxu0 0.0
        %4217 = vmatpush1.msra.mxu0 0.0
        %4218 = vmatprep.subr.mxu0 0.0
        %4219 = vmatpush1.msra.mxu0 0.0
        %4220 = vmatprep.subr.mxu0 0.0
        %4221 = vmatpush1.msra.mxu0 0.0
        %4222 = vmatprep.subr.mxu0 0.0
        %4223 = vmatpush1.msra.mxu0 0.0
        %4224 = vmatprep.mubr.f32.mxu0 0.0
        %4225 = vmatmul.mubr.f32.gmra.mrb[0].mxu0 %v4137
        %v4226 = vpop.f32.mrb[0].mxu0
        %v4227 = vadd.f32 0.0, %v4226
        %v4228 = vpop.f32.mrb[0].mxu0
        %4229 = vmatprep.mubr.f32.mxu0 0.0
        %4230 = vmatmul.mubr.f32.gmra.mrb[0].mxu0 %v4140
        %v4231 = vpop.f32.mrb[0].mxu0
        %v4232 = vadd.f32 0.0, %v4231
        %v4233 = vpop.f32.mrb[0].mxu0
        %4234 = vmatprep.mubr.f32.mxu0 0.0
        %4235 = vmatmul.mubr.f32.gmra.mrb[0].mxu0 %v4143
        %v4236 = vpop.f32.mrb[0].mxu0
        %v4237 = vadd.f32 0.0, %v4236
        %v4238 = vpop.f32.mrb[0].mxu0
        %4239 = vmatprep.mubr.f32.mxu0 0.0
        %4240 = vmatmul.mubr.f32.gmra.mrb[0].mxu0 %v4146
        %v4241 = vpop.f32.mrb[0].mxu0
        %v4242 = vadd.f32 0.0, %v4241
        %v4243 = vpop.f32.mrb[0].mxu0
        %4244 = vmatprep.mubr.f32.mxu0 0.0
        %4245 = vmatmul.mubr.f32.gmra.mrb[0].mxu0 %v4149
        %v4246 = vpop.f32.mrb[0].mxu0
        %v4247 = vadd.f32 0.0, %v4246
        %v4248 = vpop.f32.mrb[0].mxu0
        %4249 = vmatprep.mubr.f32.mxu0 0.0
        %4250 = vmatmul.mubr.f32.gmra.mrb[0].mxu0 %v4152
        %v4251 = vpop.f32.mrb[0].mxu0
        %v4252 = vadd.f32 0.0, %v4251
        %v4253 = vpop.f32.mrb[0].mxu0
        %4254 = vmatprep.mubr.f32.mxu0 0.0
        %4255 = vmatmul.mubr.f32.gmra.mrb[0].mxu0 %v4155
        %v4256 = vpop.f32.mrb[0].mxu0
        %v4257 = vadd.f32 0.0, %v4256
        %v4258 = vpop.f32.mrb[0].mxu0
        %4259 = vmatprep.mubr.f32.mxu0 0.0
        %4260 = vmatmul.mubr.f32.gmra.mrb[0].mxu0 %v4158
        %v4261 = vpop.f32.mrb[0].mxu0
        %v4262 = vadd.f32 0.0, %v4261
        %v4263 = vpop.f32.mrb[0].mxu0
        %4264 = vdwg.mxu0
        %v4265 = vsub.f32 %v3938, %v4227
        %v4266 = vsub.f32 %v3939, %v4232
        %v4267 = vsub.f32 %v3940, %v4237
        %v4268 = vsub.f32 %v3941, %v4242
        %v4269 = vsub.f32 %v3942, %v4247
        %v4270 = vsub.f32 %v3943, %v4252
        %v4271 = vsub.f32 %v3944, %v4257
        %v4272 = vsub.f32 %v3945, %v4262
        %v4273 = vmul.f32 %v4265, 0.5
        %v4274 = vmul.f32 %v4266, 0.5
        %v4275 = vmul.f32 %v4267, 0.5
        %v4276 = vmul.f32 %v4268, 0.5
        %v4277 = vmul.f32 %v4269, 0.5
        %v4278 = vmul.f32 %v4270, 0.5
        %v4279 = vmul.f32 %v4271, 0.5
        %v4280 = vmul.f32 %v4272, 0.5
        %v4282 = vsel %vm1079, %v4098, 0
        %v4285 = vsel %vm1079, %v4103, 0
        %v4288 = vsel %vm1079, %v4108, 0
        %v4291 = vsel %vm1079, %v4113, 0
        %v4294 = vsel %vm1079, %v4118, 0
        %v4297 = vsel %vm1079, %v4123, 0
        %v4300 = vsel %vm1079, %v4128, 0
        %v4303 = vsel %vm1079, %v4133, 0
        %4305 = vmatprep.subr.mxu0 0.0
        %4306 = vmatpush1.msra.mxu0 %v4273
        %4307 = vmatprep.subr.mxu0 0.0
        %4308 = vmatpush1.msra.mxu0 %v4274
        %4309 = vmatprep.subr.mxu0 0.0
        %4310 = vmatpush1.msra.mxu0 %v4275
        %4311 = vmatprep.subr.mxu0 0.0
        %4312 = vmatpush1.msra.mxu0 %v4276
        %4313 = vmatprep.subr.mxu0 0.0
        %4314 = vmatpush1.msra.mxu0 %v4277
        %4315 = vmatprep.subr.mxu0 0.0
        %4316 = vmatpush1.msra.mxu0 %v4278
        %4317 = vmatprep.subr.mxu0 0.0
        %4318 = vmatpush1.msra.mxu0 %v4279
        %4319 = vmatprep.subr.mxu0 0.0
        %4320 = vmatpush1.msra.mxu0 %v4280
        %4321 = vmatprep.subr.mxu0 0.0
        %4322 = vmatpush1.msra.mxu0 0.0
        %4323 = vmatprep.subr.mxu0 0.0
        %4324 = vmatpush1.msra.mxu0 0.0
        %4325 = vmatprep.subr.mxu0 0.0
        %4326 = vmatpush1.msra.mxu0 0.0
        %4327 = vmatprep.subr.mxu0 0.0
        %4328 = vmatpush1.msra.mxu0 0.0
        %4329 = vmatprep.subr.mxu0 0.0
        %4330 = vmatpush1.msra.mxu0 0.0
        %4331 = vmatprep.subr.mxu0 0.0
        %4332 = vmatpush1.msra.mxu0 0.0
        %4333 = vmatprep.subr.mxu0 0.0
        %4334 = vmatpush1.msra.mxu0 0.0
        %4335 = vmatprep.subr.mxu0 0.0
        %4336 = vmatpush1.msra.mxu0 0.0
        %4337 = vmatprep.subr.mxu0 0.0
        %4338 = vmatpush1.msra.mxu0 0.0
        %4339 = vmatprep.subr.mxu0 0.0
        %4340 = vmatpush1.msra.mxu0 0.0
        %4341 = vmatprep.subr.mxu0 0.0
        %4342 = vmatpush1.msra.mxu0 0.0
        %4343 = vmatprep.subr.mxu0 0.0
        %4344 = vmatpush1.msra.mxu0 0.0
        %4345 = vmatprep.subr.mxu0 0.0
        %4346 = vmatpush1.msra.mxu0 0.0
        %4347 = vmatprep.subr.mxu0 0.0
        %4348 = vmatpush1.msra.mxu0 0.0
        %4349 = vmatprep.subr.mxu0 0.0
        %4350 = vmatpush1.msra.mxu0 0.0
        %4351 = vmatprep.subr.mxu0 0.0
        %4352 = vmatpush1.msra.mxu0 0.0
        %4353 = vmatprep.subr.mxu0 0.0
        %4354 = vmatpush1.msra.mxu0 0.0
        %4355 = vmatprep.subr.mxu0 0.0
        %4356 = vmatpush1.msra.mxu0 0.0
        %4357 = vmatprep.subr.mxu0 0.0
        %4358 = vmatpush1.msra.mxu0 0.0
        %4359 = vmatprep.subr.mxu0 0.0
        %4360 = vmatpush1.msra.mxu0 0.0
        %4361 = vmatprep.subr.mxu0 0.0
        %4362 = vmatpush1.msra.mxu0 0.0
        %4363 = vmatprep.subr.mxu0 0.0
        %4364 = vmatpush1.msra.mxu0 0.0
        %4365 = vmatprep.subr.mxu0 0.0
        %4366 = vmatpush1.msra.mxu0 0.0
        %4367 = vmatprep.subr.mxu0 0.0
        %4368 = vmatpush1.msra.mxu0 0.0
        %4369 = vmatprep.mubr.f32.mxu0 0.0
        %4370 = vmatmul.mubr.f32.gmra.mrb[0].mxu0 %v4282
        %v4371 = vpop.f32.mrb[0].mxu0
        %v4372 = vadd.f32 0.0, %v4371
        %v4373 = vpop.f32.mrb[0].mxu0
        %4374 = vmatprep.mubr.f32.mxu0 0.0
        %4375 = vmatmul.mubr.f32.gmra.mrb[0].mxu0 %v4285
        %v4376 = vpop.f32.mrb[0].mxu0
        %v4377 = vadd.f32 0.0, %v4376
        %v4378 = vpop.f32.mrb[0].mxu0
        %4379 = vmatprep.mubr.f32.mxu0 0.0
        %4380 = vmatmul.mubr.f32.gmra.mrb[0].mxu0 %v4288
        %v4381 = vpop.f32.mrb[0].mxu0
        %v4382 = vadd.f32 0.0, %v4381
        %v4383 = vpop.f32.mrb[0].mxu0
        %4384 = vmatprep.mubr.f32.mxu0 0.0
        %4385 = vmatmul.mubr.f32.gmra.mrb[0].mxu0 %v4291
        %v4386 = vpop.f32.mrb[0].mxu0
        %v4387 = vadd.f32 0.0, %v4386
        %v4388 = vpop.f32.mrb[0].mxu0
        %4389 = vmatprep.mubr.f32.mxu0 0.0
        %4390 = vmatmul.mubr.f32.gmra.mrb[0].mxu0 %v4294
        %v4391 = vpop.f32.mrb[0].mxu0
        %v4392 = vadd.f32 0.0, %v4391
        %v4393 = vpop.f32.mrb[0].mxu0
        %4394 = vmatprep.mubr.f32.mxu0 0.0
        %4395 = vmatmul.mubr.f32.gmra.mrb[0].mxu0 %v4297
        %v4396 = vpop.f32.mrb[0].mxu0
        %v4397 = vadd.f32 0.0, %v4396
        %v4398 = vpop.f32.mrb[0].mxu0
        %4399 = vmatprep.mubr.f32.mxu0 0.0
        %4400 = vmatmul.mubr.f32.gmra.mrb[0].mxu0 %v4300
        %v4401 = vpop.f32.mrb[0].mxu0
        %v4402 = vadd.f32 0.0, %v4401
        %v4403 = vpop.f32.mrb[0].mxu0
        %4404 = vmatprep.mubr.f32.mxu0 0.0
        %4405 = vmatmul.mubr.f32.gmra.mrb[0].mxu0 %v4303
        %v4406 = vpop.f32.mrb[0].mxu0
        %v4407 = vadd.f32 0.0, %v4406
        %v4408 = vpop.f32.mrb[0].mxu0
        %4409 = vdwg.mxu0
        %v4411 = vsel %vm1079, %v4273, 0
        %v4414 = vsel %vm1079, %v4274, 0
        %v4417 = vsel %vm1079, %v4275, 0
        %v4420 = vsel %vm1079, %v4276, 0
        %v4423 = vsel %vm1079, %v4277, 0
        %v4426 = vsel %vm1079, %v4278, 0
        %v4429 = vsel %vm1079, %v4279, 0
        %v4432 = vsel %vm1079, %v4280, 0
        %4434 = vmatprep.subr.mxu0 0.0
        %4435 = vmatpush1.msra.mxu0 %v3999
        %4436 = vmatprep.subr.mxu0 0.0
        %4437 = vmatpush1.msra.mxu0 %v4000
        %4438 = vmatprep.subr.mxu0 0.0
        %4439 = vmatpush1.msra.mxu0 %v4001
        %4440 = vmatprep.subr.mxu0 0.0
        %4441 = vmatpush1.msra.mxu0 %v4002
        %4442 = vmatprep.subr.mxu0 0.0
        %4443 = vmatpush1.msra.mxu0 %v4003
        %4444 = vmatprep.subr.mxu0 0.0
        %4445 = vmatpush1.msra.mxu0 %v4004
        %4446 = vmatprep.subr.mxu0 0.0
        %4447 = vmatpush1.msra.mxu0 %v4005
        %4448 = vmatprep.subr.mxu0 0.0
        %4449 = vmatpush1.msra.mxu0 %v4006
        %4450 = vmatprep.subr.mxu0 0.0
        %4451 = vmatpush1.msra.mxu0 0.0
        %4452 = vmatprep.subr.mxu0 0.0
        %4453 = vmatpush1.msra.mxu0 0.0
        %4454 = vmatprep.subr.mxu0 0.0
        %4455 = vmatpush1.msra.mxu0 0.0
        %4456 = vmatprep.subr.mxu0 0.0
        %4457 = vmatpush1.msra.mxu0 0.0
        %4458 = vmatprep.subr.mxu0 0.0
        %4459 = vmatpush1.msra.mxu0 0.0
        %4460 = vmatprep.subr.mxu0 0.0
        %4461 = vmatpush1.msra.mxu0 0.0
        %4462 = vmatprep.subr.mxu0 0.0
        %4463 = vmatpush1.msra.mxu0 0.0
        %4464 = vmatprep.subr.mxu0 0.0
        %4465 = vmatpush1.msra.mxu0 0.0
        %4466 = vmatprep.subr.mxu0 0.0
        %4467 = vmatpush1.msra.mxu0 0.0
        %4468 = vmatprep.subr.mxu0 0.0
        %4469 = vmatpush1.msra.mxu0 0.0
        %4470 = vmatprep.subr.mxu0 0.0
        %4471 = vmatpush1.msra.mxu0 0.0
        %4472 = vmatprep.subr.mxu0 0.0
        %4473 = vmatpush1.msra.mxu0 0.0
        %4474 = vmatprep.subr.mxu0 0.0
        %4475 = vmatpush1.msra.mxu0 0.0
        %4476 = vmatprep.subr.mxu0 0.0
        %4477 = vmatpush1.msra.mxu0 0.0
        %4478 = vmatprep.subr.mxu0 0.0
        %4479 = vmatpush1.msra.mxu0 0.0
        %4480 = vmatprep.subr.mxu0 0.0
        %4481 = vmatpush1.msra.mxu0 0.0
        %4482 = vmatprep.subr.mxu0 0.0
        %4483 = vmatpush1.msra.mxu0 0.0
        %4484 = vmatprep.subr.mxu0 0.0
        %4485 = vmatpush1.msra.mxu0 0.0
        %4486 = vmatprep.subr.mxu0 0.0
        %4487 = vmatpush1.msra.mxu0 0.0
        %4488 = vmatprep.subr.mxu0 0.0
        %4489 = vmatpush1.msra.mxu0 0.0
        %4490 = vmatprep.subr.mxu0 0.0
        %4491 = vmatpush1.msra.mxu0 0.0
        %4492 = vmatprep.subr.mxu0 0.0
        %4493 = vmatpush1.msra.mxu0 0.0
        %4494 = vmatprep.subr.mxu0 0.0
        %4495 = vmatpush1.msra.mxu0 0.0
        %4496 = vmatprep.subr.mxu0 0.0
        %4497 = vmatpush1.msra.mxu0 0.0
        %4498 = vmatprep.mubr.f32.mxu0 0.0
        %4499 = vmatmul.mubr.f32.gmra.mrb[0].mxu0 %v4411
        %v4500 = vpop.f32.mrb[0].mxu0
        %v4501 = vadd.f32 0.0, %v4500
        %v4502 = vpop.f32.mrb[0].mxu0
        %4503 = vmatprep.mubr.f32.mxu0 0.0
        %4504 = vmatmul.mubr.f32.gmra.mrb[0].mxu0 %v4414
        %v4505 = vpop.f32.mrb[0].mxu0
        %v4506 = vadd.f32 0.0, %v4505
        %v4507 = vpop.f32.mrb[0].mxu0
        %4508 = vmatprep.mubr.f32.mxu0 0.0
        %4509 = vmatmul.mubr.f32.gmra.mrb[0].mxu0 %v4417
        %v4510 = vpop.f32.mrb[0].mxu0
        %v4511 = vadd.f32 0.0, %v4510
        %v4512 = vpop.f32.mrb[0].mxu0
        %4513 = vmatprep.mubr.f32.mxu0 0.0
        %4514 = vmatmul.mubr.f32.gmra.mrb[0].mxu0 %v4420
        %v4515 = vpop.f32.mrb[0].mxu0
        %v4516 = vadd.f32 0.0, %v4515
        %v4517 = vpop.f32.mrb[0].mxu0
        %4518 = vmatprep.mubr.f32.mxu0 0.0
        %4519 = vmatmul.mubr.f32.gmra.mrb[0].mxu0 %v4423
        %v4520 = vpop.f32.mrb[0].mxu0
        %v4521 = vadd.f32 0.0, %v4520
        %v4522 = vpop.f32.mrb[0].mxu0
        %4523 = vmatprep.mubr.f32.mxu0 0.0
        %4524 = vmatmul.mubr.f32.gmra.mrb[0].mxu0 %v4426
        %v4525 = vpop.f32.mrb[0].mxu0
        %v4526 = vadd.f32 0.0, %v4525
        %v4527 = vpop.f32.mrb[0].mxu0
        %4528 = vmatprep.mubr.f32.mxu0 0.0
        %4529 = vmatmul.mubr.f32.gmra.mrb[0].mxu0 %v4429
        %v4530 = vpop.f32.mrb[0].mxu0
        %v4531 = vadd.f32 0.0, %v4530
        %v4532 = vpop.f32.mrb[0].mxu0
        %4533 = vmatprep.mubr.f32.mxu0 0.0
        %4534 = vmatmul.mubr.f32.gmra.mrb[0].mxu0 %v4432
        %v4535 = vpop.f32.mrb[0].mxu0
        %v4536 = vadd.f32 0.0, %v4535
        %v4537 = vpop.f32.mrb[0].mxu0
        %4538 = vdwg.mxu0
        %v4540 = vsel %vm1079, %v4501, 0
        %v4543 = vsel %vm1079, %v4506, 0
        %v4546 = vsel %vm1079, %v4511, 0
        %v4549 = vsel %vm1079, %v4516, 0
        %v4552 = vsel %vm1079, %v4521, 0
        %v4555 = vsel %vm1079, %v4526, 0
        %v4558 = vsel %vm1079, %v4531, 0
        %v4561 = vsel %vm1079, %v4536, 0
        %4563 = vmatprep.subr.mxu0 0.0
        %4564 = vmatpush1.msra.mxu0 %v4372
        %4565 = vmatprep.subr.mxu0 0.0
        %4566 = vmatpush1.msra.mxu0 %v4377
        %4567 = vmatprep.subr.mxu0 0.0
        %4568 = vmatpush1.msra.mxu0 %v4382
        %4569 = vmatprep.subr.mxu0 0.0
        %4570 = vmatpush1.msra.mxu0 %v4387
        %4571 = vmatprep.subr.mxu0 0.0
        %4572 = vmatpush1.msra.mxu0 %v4392
        %4573 = vmatprep.subr.mxu0 0.0
        %4574 = vmatpush1.msra.mxu0 %v4397
        %4575 = vmatprep.subr.mxu0 0.0
        %4576 = vmatpush1.msra.mxu0 %v4402
        %4577 = vmatprep.subr.mxu0 0.0
        %4578 = vmatpush1.msra.mxu0 %v4407
        %4579 = vmatprep.subr.mxu0 0.0
        %4580 = vmatpush1.msra.mxu0 0.0
        %4581 = vmatprep.subr.mxu0 0.0
        %4582 = vmatpush1.msra.mxu0 0.0
        %4583 = vmatprep.subr.mxu0 0.0
        %4584 = vmatpush1.msra.mxu0 0.0
        %4585 = vmatprep.subr.mxu0 0.0
        %4586 = vmatpush1.msra.mxu0 0.0
        %4587 = vmatprep.subr.mxu0 0.0
        %4588 = vmatpush1.msra.mxu0 0.0
        %4589 = vmatprep.subr.mxu0 0.0
        %4590 = vmatpush1.msra.mxu0 0.0
        %4591 = vmatprep.subr.mxu0 0.0
        %4592 = vmatpush1.msra.mxu0 0.0
        %4593 = vmatprep.subr.mxu0 0.0
        %4594 = vmatpush1.msra.mxu0 0.0
        %4595 = vmatprep.subr.mxu0 0.0
        %4596 = vmatpush1.msra.mxu0 0.0
        %4597 = vmatprep.subr.mxu0 0.0
        %4598 = vmatpush1.msra.mxu0 0.0
        %4599 = vmatprep.subr.mxu0 0.0
        %4600 = vmatpush1.msra.mxu0 0.0
        %4601 = vmatprep.subr.mxu0 0.0
        %4602 = vmatpush1.msra.mxu0 0.0
        %4603 = vmatprep.subr.mxu0 0.0
        %4604 = vmatpush1.msra.mxu0 0.0
        %4605 = vmatprep.subr.mxu0 0.0
        %4606 = vmatpush1.msra.mxu0 0.0
        %4607 = vmatprep.subr.mxu0 0.0
        %4608 = vmatpush1.msra.mxu0 0.0
        %4609 = vmatprep.subr.mxu0 0.0
        %4610 = vmatpush1.msra.mxu0 0.0
        %4611 = vmatprep.subr.mxu0 0.0
        %4612 = vmatpush1.msra.mxu0 0.0
        %4613 = vmatprep.subr.mxu0 0.0
        %4614 = vmatpush1.msra.mxu0 0.0
        %4615 = vmatprep.subr.mxu0 0.0
        %4616 = vmatpush1.msra.mxu0 0.0
        %4617 = vmatprep.subr.mxu0 0.0
        %4618 = vmatpush1.msra.mxu0 0.0
        %4619 = vmatprep.subr.mxu0 0.0
        %4620 = vmatpush1.msra.mxu0 0.0
        %4621 = vmatprep.subr.mxu0 0.0
        %4622 = vmatpush1.msra.mxu0 0.0
        %4623 = vmatprep.subr.mxu0 0.0
        %4624 = vmatpush1.msra.mxu0 0.0
        %4625 = vmatprep.subr.mxu0 0.0
        %4626 = vmatpush1.msra.mxu0 0.0
        %4627 = vmatprep.mubr.f32.mxu0 0.0
        %4628 = vmatmul.mubr.f32.gmra.mrb[0].mxu0 %v4540
        %v4629 = vpop.f32.mrb[0].mxu0
        %v4630 = vadd.f32 0.0, %v4629
        %v4631 = vpop.f32.mrb[0].mxu0
        %4632 = vmatprep.mubr.f32.mxu0 0.0
        %4633 = vmatmul.mubr.f32.gmra.mrb[0].mxu0 %v4543
        %v4634 = vpop.f32.mrb[0].mxu0
        %v4635 = vadd.f32 0.0, %v4634
        %v4636 = vpop.f32.mrb[0].mxu0
        %4637 = vmatprep.mubr.f32.mxu0 0.0
        %4638 = vmatmul.mubr.f32.gmra.mrb[0].mxu0 %v4546
        %v4639 = vpop.f32.mrb[0].mxu0
        %v4640 = vadd.f32 0.0, %v4639
        %v4641 = vpop.f32.mrb[0].mxu0
        %4642 = vmatprep.mubr.f32.mxu0 0.0
        %4643 = vmatmul.mubr.f32.gmra.mrb[0].mxu0 %v4549
        %v4644 = vpop.f32.mrb[0].mxu0
        %v4645 = vadd.f32 0.0, %v4644
        %v4646 = vpop.f32.mrb[0].mxu0
        %4647 = vmatprep.mubr.f32.mxu0 0.0
        %4648 = vmatmul.mubr.f32.gmra.mrb[0].mxu0 %v4552
        %v4649 = vpop.f32.mrb[0].mxu0
        %v4650 = vadd.f32 0.0, %v4649
        %v4651 = vpop.f32.mrb[0].mxu0
        %4652 = vmatprep.mubr.f32.mxu0 0.0
        %4653 = vmatmul.mubr.f32.gmra.mrb[0].mxu0 %v4555
        %v4654 = vpop.f32.mrb[0].mxu0
        %v4655 = vadd.f32 0.0, %v4654
        %v4656 = vpop.f32.mrb[0].mxu0
        %4657 = vmatprep.mubr.f32.mxu0 0.0
        %4658 = vmatmul.mubr.f32.gmra.mrb[0].mxu0 %v4558
        %v4659 = vpop.f32.mrb[0].mxu0
        %v4660 = vadd.f32 0.0, %v4659
        %v4661 = vpop.f32.mrb[0].mxu0
        %4662 = vmatprep.mubr.f32.mxu0 0.0
        %4663 = vmatmul.mubr.f32.gmra.mrb[0].mxu0 %v4561
        %v4664 = vpop.f32.mrb[0].mxu0
        %v4665 = vadd.f32 0.0, %v4664
        %v4666 = vpop.f32.mrb[0].mxu0
        %4667 = vdwg.mxu0
        %v4668 = vsub.f32 %v3938, %v4630
        %v4669 = vsub.f32 %v3939, %v4635
        %v4670 = vsub.f32 %v3940, %v4640
        %v4671 = vsub.f32 %v3941, %v4645
        %v4672 = vsub.f32 %v3942, %v4650
        %v4673 = vsub.f32 %v3943, %v4655
        %v4674 = vsub.f32 %v3944, %v4660
        %v4675 = vsub.f32 %v3945, %v4665
        %v4676 = vmul.f32 %v4668, 0.5
        %v4677 = vmul.f32 %v4669, 0.5
        %v4678 = vmul.f32 %v4670, 0.5
        %v4679 = vmul.f32 %v4671, 0.5
        %v4680 = vmul.f32 %v4672, 0.5
        %v4681 = vmul.f32 %v4673, 0.5
        %v4682 = vmul.f32 %v4674, 0.5
        %v4683 = vmul.f32 %v4675, 0.5
        %v4685 = vsel %vm1079, %v4372, 0
        %v4688 = vsel %vm1079, %v4377, 0
        %v4691 = vsel %vm1079, %v4382, 0
        %v4694 = vsel %vm1079, %v4387, 0
        %v4697 = vsel %vm1079, %v4392, 0
        %v4700 = vsel %vm1079, %v4397, 0
        %v4703 = vsel %vm1079, %v4402, 0
        %v4706 = vsel %vm1079, %v4407, 0
        %4708 = vmatprep.subr.mxu0 0.0
        %4709 = vmatpush1.msra.mxu0 %v4676
        %4710 = vmatprep.subr.mxu0 0.0
        %4711 = vmatpush1.msra.mxu0 %v4677
        %4712 = vmatprep.subr.mxu0 0.0
        %4713 = vmatpush1.msra.mxu0 %v4678
        %4714 = vmatprep.subr.mxu0 0.0
        %4715 = vmatpush1.msra.mxu0 %v4679
        %4716 = vmatprep.subr.mxu0 0.0
        %4717 = vmatpush1.msra.mxu0 %v4680
        %4718 = vmatprep.subr.mxu0 0.0
        %4719 = vmatpush1.msra.mxu0 %v4681
        %4720 = vmatprep.subr.mxu0 0.0
        %4721 = vmatpush1.msra.mxu0 %v4682
        %4722 = vmatprep.subr.mxu0 0.0
        %4723 = vmatpush1.msra.mxu0 %v4683
        %4724 = vmatprep.subr.mxu0 0.0
        %4725 = vmatpush1.msra.mxu0 0.0
        %4726 = vmatprep.subr.mxu0 0.0
        %4727 = vmatpush1.msra.mxu0 0.0
        %4728 = vmatprep.subr.mxu0 0.0
        %4729 = vmatpush1.msra.mxu0 0.0
        %4730 = vmatprep.subr.mxu0 0.0
        %4731 = vmatpush1.msra.mxu0 0.0
        %4732 = vmatprep.subr.mxu0 0.0
        %4733 = vmatpush1.msra.mxu0 0.0
        %4734 = vmatprep.subr.mxu0 0.0
        %4735 = vmatpush1.msra.mxu0 0.0
        %4736 = vmatprep.subr.mxu0 0.0
        %4737 = vmatpush1.msra.mxu0 0.0
        %4738 = vmatprep.subr.mxu0 0.0
        %4739 = vmatpush1.msra.mxu0 0.0
        %4740 = vmatprep.subr.mxu0 0.0
        %4741 = vmatpush1.msra.mxu0 0.0
        %4742 = vmatprep.subr.mxu0 0.0
        %4743 = vmatpush1.msra.mxu0 0.0
        %4744 = vmatprep.subr.mxu0 0.0
        %4745 = vmatpush1.msra.mxu0 0.0
        %4746 = vmatprep.subr.mxu0 0.0
        %4747 = vmatpush1.msra.mxu0 0.0
        %4748 = vmatprep.subr.mxu0 0.0
        %4749 = vmatpush1.msra.mxu0 0.0
        %4750 = vmatprep.subr.mxu0 0.0
        %4751 = vmatpush1.msra.mxu0 0.0
        %4752 = vmatprep.subr.mxu0 0.0
        %4753 = vmatpush1.msra.mxu0 0.0
        %4754 = vmatprep.subr.mxu0 0.0
        %4755 = vmatpush1.msra.mxu0 0.0
        %4756 = vmatprep.subr.mxu0 0.0
        %4757 = vmatpush1.msra.mxu0 0.0
        %4758 = vmatprep.subr.mxu0 0.0
        %4759 = vmatpush1.msra.mxu0 0.0
        %4760 = vmatprep.subr.mxu0 0.0
        %4761 = vmatpush1.msra.mxu0 0.0
        %4762 = vmatprep.subr.mxu0 0.0
        %4763 = vmatpush1.msra.mxu0 0.0
        %4764 = vmatprep.subr.mxu0 0.0
        %4765 = vmatpush1.msra.mxu0 0.0
        %4766 = vmatprep.subr.mxu0 0.0
        %4767 = vmatpush1.msra.mxu0 0.0
        %4768 = vmatprep.subr.mxu0 0.0
        %4769 = vmatpush1.msra.mxu0 0.0
        %4770 = vmatprep.subr.mxu0 0.0
        %4771 = vmatpush1.msra.mxu0 0.0
        %4772 = vmatprep.mubr.f32.mxu0 0.0
        %4773 = vmatmul.mubr.f32.gmra.mrb[0].mxu0 %v4685
        %v4774 = vpop.f32.mrb[0].mxu0
        %v4775 = vadd.f32 0.0, %v4774
        %v4776 = vpop.f32.mrb[0].mxu0
        %4777 = vmatprep.mubr.f32.mxu0 0.0
        %4778 = vmatmul.mubr.f32.gmra.mrb[0].mxu0 %v4688
        %v4779 = vpop.f32.mrb[0].mxu0
        %v4780 = vadd.f32 0.0, %v4779
        %v4781 = vpop.f32.mrb[0].mxu0
        %4782 = vmatprep.mubr.f32.mxu0 0.0
        %4783 = vmatmul.mubr.f32.gmra.mrb[0].mxu0 %v4691
        %v4784 = vpop.f32.mrb[0].mxu0
        %v4785 = vadd.f32 0.0, %v4784
        %v4786 = vpop.f32.mrb[0].mxu0
        %4787 = vmatprep.mubr.f32.mxu0 0.0
        %4788 = vmatmul.mubr.f32.gmra.mrb[0].mxu0 %v4694
        %v4789 = vpop.f32.mrb[0].mxu0
        %v4790 = vadd.f32 0.0, %v4789
        %v4791 = vpop.f32.mrb[0].mxu0
        %4792 = vmatprep.mubr.f32.mxu0 0.0
        %4793 = vmatmul.mubr.f32.gmra.mrb[0].mxu0 %v4697
        %v4794 = vpop.f32.mrb[0].mxu0
        %v4795 = vadd.f32 0.0, %v4794
        %v4796 = vpop.f32.mrb[0].mxu0
        %4797 = vmatprep.mubr.f32.mxu0 0.0
        %4798 = vmatmul.mubr.f32.gmra.mrb[0].mxu0 %v4700
        %v4799 = vpop.f32.mrb[0].mxu0
        %v4800 = vadd.f32 0.0, %v4799
        %v4801 = vpop.f32.mrb[0].mxu0
        %4802 = vmatprep.mubr.f32.mxu0 0.0
        %4803 = vmatmul.mubr.f32.gmra.mrb[0].mxu0 %v4703
        %v4804 = vpop.f32.mrb[0].mxu0
        %v4805 = vadd.f32 0.0, %v4804
        %v4806 = vpop.f32.mrb[0].mxu0
        %4807 = vmatprep.mubr.f32.mxu0 0.0
        %4808 = vmatmul.mubr.f32.gmra.mrb[0].mxu0 %v4706
        %v4809 = vpop.f32.mrb[0].mxu0
        %v4810 = vadd.f32 0.0, %v4809
        %v4811 = vpop.f32.mrb[0].mxu0
        %4812 = vdwg.mxu0
        %v4814 = vsel %vm1079, %v4676, 0
        %v4817 = vsel %vm1079, %v4677, 0
        %v4820 = vsel %vm1079, %v4678, 0
        %v4823 = vsel %vm1079, %v4679, 0
        %v4826 = vsel %vm1079, %v4680, 0
        %v4829 = vsel %vm1079, %v4681, 0
        %v4832 = vsel %vm1079, %v4682, 0
        %v4835 = vsel %vm1079, %v4683, 0
        %4837 = vmatprep.subr.mxu0 0.0
        %4838 = vmatpush1.msra.mxu0 %v4501
        %4839 = vmatprep.subr.mxu0 0.0
        %4840 = vmatpush1.msra.mxu0 %v4506
        %4841 = vmatprep.subr.mxu0 0.0
        %4842 = vmatpush1.msra.mxu0 %v4511
        %4843 = vmatprep.subr.mxu0 0.0
        %4844 = vmatpush1.msra.mxu0 %v4516
        %4845 = vmatprep.subr.mxu0 0.0
        %4846 = vmatpush1.msra.mxu0 %v4521
        %4847 = vmatprep.subr.mxu0 0.0
        %4848 = vmatpush1.msra.mxu0 %v4526
        %4849 = vmatprep.subr.mxu0 0.0
        %4850 = vmatpush1.msra.mxu0 %v4531
        %4851 = vmatprep.subr.mxu0 0.0
        %4852 = vmatpush1.msra.mxu0 %v4536
        %4853 = vmatprep.subr.mxu0 0.0
        %4854 = vmatpush1.msra.mxu0 0.0
        %4855 = vmatprep.subr.mxu0 0.0
        %4856 = vmatpush1.msra.mxu0 0.0
        %4857 = vmatprep.subr.mxu0 0.0
        %4858 = vmatpush1.msra.mxu0 0.0
        %4859 = vmatprep.subr.mxu0 0.0
        %4860 = vmatpush1.msra.mxu0 0.0
        %4861 = vmatprep.subr.mxu0 0.0
        %4862 = vmatpush1.msra.mxu0 0.0
        %4863 = vmatprep.subr.mxu0 0.0
        %4864 = vmatpush1.msra.mxu0 0.0
        %4865 = vmatprep.subr.mxu0 0.0
        %4866 = vmatpush1.msra.mxu0 0.0
        %4867 = vmatprep.subr.mxu0 0.0
        %4868 = vmatpush1.msra.mxu0 0.0
        %4869 = vmatprep.subr.mxu0 0.0
        %4870 = vmatpush1.msra.mxu0 0.0
        %4871 = vmatprep.subr.mxu0 0.0
        %4872 = vmatpush1.msra.mxu0 0.0
        %4873 = vmatprep.subr.mxu0 0.0
        %4874 = vmatpush1.msra.mxu0 0.0
        %4875 = vmatprep.subr.mxu0 0.0
        %4876 = vmatpush1.msra.mxu0 0.0
        %4877 = vmatprep.subr.mxu0 0.0
        %4878 = vmatpush1.msra.mxu0 0.0
        %4879 = vmatprep.subr.mxu0 0.0
        %4880 = vmatpush1.msra.mxu0 0.0
        %4881 = vmatprep.subr.mxu0 0.0
        %4882 = vmatpush1.msra.mxu0 0.0
        %4883 = vmatprep.subr.mxu0 0.0
        %4884 = vmatpush1.msra.mxu0 0.0
        %4885 = vmatprep.subr.mxu0 0.0
        %4886 = vmatpush1.msra.mxu0 0.0
        %4887 = vmatprep.subr.mxu0 0.0
        %4888 = vmatpush1.msra.mxu0 0.0
        %4889 = vmatprep.subr.mxu0 0.0
        %4890 = vmatpush1.msra.mxu0 0.0
        %4891 = vmatprep.subr.mxu0 0.0
        %4892 = vmatpush1.msra.mxu0 0.0
        %4893 = vmatprep.subr.mxu0 0.0
        %4894 = vmatpush1.msra.mxu0 0.0
        %4895 = vmatprep.subr.mxu0 0.0
        %4896 = vmatpush1.msra.mxu0 0.0
        %4897 = vmatprep.subr.mxu0 0.0
        %4898 = vmatpush1.msra.mxu0 0.0
        %4899 = vmatprep.subr.mxu0 0.0
        %4900 = vmatpush1.msra.mxu0 0.0
        %4901 = vmatprep.mubr.f32.mxu0 0.0
        %4902 = vmatmul.mubr.f32.gmra.mrb[0].mxu0 %v4814
        %v4903 = vpop.f32.mrb[0].mxu0
        %v4904 = vadd.f32 0.0, %v4903
        %v4905 = vpop.f32.mrb[0].mxu0
        %4906 = vmatprep.mubr.f32.mxu0 0.0
        %4907 = vmatmul.mubr.f32.gmra.mrb[0].mxu0 %v4817
        %v4908 = vpop.f32.mrb[0].mxu0
        %v4909 = vadd.f32 0.0, %v4908
        %v4910 = vpop.f32.mrb[0].mxu0
        %4911 = vmatprep.mubr.f32.mxu0 0.0
        %4912 = vmatmul.mubr.f32.gmra.mrb[0].mxu0 %v4820
        %v4913 = vpop.f32.mrb[0].mxu0
        %v4914 = vadd.f32 0.0, %v4913
        %v4915 = vpop.f32.mrb[0].mxu0
        %4916 = vmatprep.mubr.f32.mxu0 0.0
        %4917 = vmatmul.mubr.f32.gmra.mrb[0].mxu0 %v4823
        %v4918 = vpop.f32.mrb[0].mxu0
        %v4919 = vadd.f32 0.0, %v4918
        %v4920 = vpop.f32.mrb[0].mxu0
        %4921 = vmatprep.mubr.f32.mxu0 0.0
        %4922 = vmatmul.mubr.f32.gmra.mrb[0].mxu0 %v4826
        %v4923 = vpop.f32.mrb[0].mxu0
        %v4924 = vadd.f32 0.0, %v4923
        %v4925 = vpop.f32.mrb[0].mxu0
        %4926 = vmatprep.mubr.f32.mxu0 0.0
        %4927 = vmatmul.mubr.f32.gmra.mrb[0].mxu0 %v4829
        %v4928 = vpop.f32.mrb[0].mxu0
        %v4929 = vadd.f32 0.0, %v4928
        %v4930 = vpop.f32.mrb[0].mxu0
        %4931 = vmatprep.mubr.f32.mxu0 0.0
        %4932 = vmatmul.mubr.f32.gmra.mrb[0].mxu0 %v4832
        %v4933 = vpop.f32.mrb[0].mxu0
        %v4934 = vadd.f32 0.0, %v4933
        %v4935 = vpop.f32.mrb[0].mxu0
        %4936 = vmatprep.mubr.f32.mxu0 0.0
        %4937 = vmatmul.mubr.f32.gmra.mrb[0].mxu0 %v4835
        %v4938 = vpop.f32.mrb[0].mxu0
        %v4939 = vadd.f32 0.0, %v4938
        %v4940 = vpop.f32.mrb[0].mxu0
        %4941 = vdwg.mxu0
        %v4943 = vsel %vm1079, %v4904, 0
        %v4946 = vsel %vm1079, %v4909, 0
        %v4949 = vsel %vm1079, %v4914, 0
        %v4952 = vsel %vm1079, %v4919, 0
        %v4955 = vsel %vm1079, %v4924, 0
        %v4958 = vsel %vm1079, %v4929, 0
        %v4961 = vsel %vm1079, %v4934, 0
        %v4964 = vsel %vm1079, %v4939, 0
        %4966 = vmatprep.subr.mxu0 0.0
        %4967 = vmatpush1.msra.mxu0 %v4775
        %4968 = vmatprep.subr.mxu0 0.0
        %4969 = vmatpush1.msra.mxu0 %v4780
        %4970 = vmatprep.subr.mxu0 0.0
        %4971 = vmatpush1.msra.mxu0 %v4785
        %4972 = vmatprep.subr.mxu0 0.0
        %4973 = vmatpush1.msra.mxu0 %v4790
        %4974 = vmatprep.subr.mxu0 0.0
        %4975 = vmatpush1.msra.mxu0 %v4795
        %4976 = vmatprep.subr.mxu0 0.0
        %4977 = vmatpush1.msra.mxu0 %v4800
        %4978 = vmatprep.subr.mxu0 0.0
        %4979 = vmatpush1.msra.mxu0 %v4805
        %4980 = vmatprep.subr.mxu0 0.0
        %4981 = vmatpush1.msra.mxu0 %v4810
        %4982 = vmatprep.subr.mxu0 0.0
        %4983 = vmatpush1.msra.mxu0 0.0
        %4984 = vmatprep.subr.mxu0 0.0
        %4985 = vmatpush1.msra.mxu0 0.0
        %4986 = vmatprep.subr.mxu0 0.0
        %4987 = vmatpush1.msra.mxu0 0.0
        %4988 = vmatprep.subr.mxu0 0.0
        %4989 = vmatpush1.msra.mxu0 0.0
        %4990 = vmatprep.subr.mxu0 0.0
        %4991 = vmatpush1.msra.mxu0 0.0
        %4992 = vmatprep.subr.mxu0 0.0
        %4993 = vmatpush1.msra.mxu0 0.0
        %4994 = vmatprep.subr.mxu0 0.0
        %4995 = vmatpush1.msra.mxu0 0.0
        %4996 = vmatprep.subr.mxu0 0.0
        %4997 = vmatpush1.msra.mxu0 0.0
        %4998 = vmatprep.subr.mxu0 0.0
        %4999 = vmatpush1.msra.mxu0 0.0
        %5000 = vmatprep.subr.mxu0 0.0
        %5001 = vmatpush1.msra.mxu0 0.0
        %5002 = vmatprep.subr.mxu0 0.0
        %5003 = vmatpush1.msra.mxu0 0.0
        %5004 = vmatprep.subr.mxu0 0.0
        %5005 = vmatpush1.msra.mxu0 0.0
        %5006 = vmatprep.subr.mxu0 0.0
        %5007 = vmatpush1.msra.mxu0 0.0
        %5008 = vmatprep.subr.mxu0 0.0
        %5009 = vmatpush1.msra.mxu0 0.0
        %5010 = vmatprep.subr.mxu0 0.0
        %5011 = vmatpush1.msra.mxu0 0.0
        %5012 = vmatprep.subr.mxu0 0.0
        %5013 = vmatpush1.msra.mxu0 0.0
        %5014 = vmatprep.subr.mxu0 0.0
        %5015 = vmatpush1.msra.mxu0 0.0
        %5016 = vmatprep.subr.mxu0 0.0
        %5017 = vmatpush1.msra.mxu0 0.0
        %5018 = vmatprep.subr.mxu0 0.0
        %5019 = vmatpush1.msra.mxu0 0.0
        %5020 = vmatprep.subr.mxu0 0.0
        %5021 = vmatpush1.msra.mxu0 0.0
        %5022 = vmatprep.subr.mxu0 0.0
        %5023 = vmatpush1.msra.mxu0 0.0
        %5024 = vmatprep.subr.mxu0 0.0
        %5025 = vmatpush1.msra.mxu0 0.0
        %5026 = vmatprep.subr.mxu0 0.0
        %5027 = vmatpush1.msra.mxu0 0.0
        %5028 = vmatprep.subr.mxu0 0.0
        %5029 = vmatpush1.msra.mxu0 0.0
        %5030 = vmatprep.mubr.f32.mxu0 0.0
        %5031 = vmatmul.mubr.f32.gmra.mrb[0].mxu0 %v4943
        %v5032 = vpop.f32.mrb[0].mxu0
        %v5033 = vadd.f32 0.0, %v5032
        %v5034 = vpop.f32.mrb[0].mxu0
        %5035 = vmatprep.mubr.f32.mxu0 0.0
        %5036 = vmatmul.mubr.f32.gmra.mrb[0].mxu0 %v4946
        %v5037 = vpop.f32.mrb[0].mxu0
        %v5038 = vadd.f32 0.0, %v5037
        %v5039 = vpop.f32.mrb[0].mxu0
        %5040 = vmatprep.mubr.f32.mxu0 0.0
        %5041 = vmatmul.mubr.f32.gmra.mrb[0].mxu0 %v4949
        %v5042 = vpop.f32.mrb[0].mxu0
        %v5043 = vadd.f32 0.0, %v5042
        %v5044 = vpop.f32.mrb[0].mxu0
        %5045 = vmatprep.mubr.f32.mxu0 0.0
        %5046 = vmatmul.mubr.f32.gmra.mrb[0].mxu0 %v4952
        %v5047 = vpop.f32.mrb[0].mxu0
        %v5048 = vadd.f32 0.0, %v5047
        %v5049 = vpop.f32.mrb[0].mxu0
        %5050 = vmatprep.mubr.f32.mxu0 0.0
        %5051 = vmatmul.mubr.f32.gmra.mrb[0].mxu0 %v4955
        %v5052 = vpop.f32.mrb[0].mxu0
        %v5053 = vadd.f32 0.0, %v5052
        %v5054 = vpop.f32.mrb[0].mxu0
        %5055 = vmatprep.mubr.f32.mxu0 0.0
        %5056 = vmatmul.mubr.f32.gmra.mrb[0].mxu0 %v4958
        %v5057 = vpop.f32.mrb[0].mxu0
        %v5058 = vadd.f32 0.0, %v5057
        %v5059 = vpop.f32.mrb[0].mxu0
        %5060 = vmatprep.mubr.f32.mxu0 0.0
        %5061 = vmatmul.mubr.f32.gmra.mrb[0].mxu0 %v4961
        %v5062 = vpop.f32.mrb[0].mxu0
        %v5063 = vadd.f32 0.0, %v5062
        %v5064 = vpop.f32.mrb[0].mxu0
        %5065 = vmatprep.mubr.f32.mxu0 0.0
        %5066 = vmatmul.mubr.f32.gmra.mrb[0].mxu0 %v4964
        %v5067 = vpop.f32.mrb[0].mxu0
        %v5068 = vadd.f32 0.0, %v5067
        %v5069 = vpop.f32.mrb[0].mxu0
        %5070 = vdwg.mxu0
        %v5071 = vsub.f32 %v3938, %v5033
        %v5072 = vsub.f32 %v3939, %v5038
        %v5073 = vsub.f32 %v3940, %v5043
        %v5074 = vsub.f32 %v3941, %v5048
        %v5075 = vsub.f32 %v3942, %v5053
        %v5076 = vsub.f32 %v3943, %v5058
        %v5077 = vsub.f32 %v3944, %v5063
        %v5078 = vsub.f32 %v3945, %v5068
        %v5079 = vmul.f32 %v5071, 0.5
        %v5080 = vmul.f32 %v5072, 0.5
        %v5081 = vmul.f32 %v5073, 0.5
        %v5082 = vmul.f32 %v5074, 0.5
        %v5083 = vmul.f32 %v5075, 0.5
        %v5084 = vmul.f32 %v5076, 0.5
        %v5085 = vmul.f32 %v5077, 0.5
        %v5086 = vmul.f32 %v5078, 0.5
        %v5088 = vsel %vm1079, %v4775, 0
        %v5091 = vsel %vm1079, %v4780, 0
        %v5094 = vsel %vm1079, %v4785, 0
        %v5097 = vsel %vm1079, %v4790, 0
        %v5100 = vsel %vm1079, %v4795, 0
        %v5103 = vsel %vm1079, %v4800, 0
        %v5106 = vsel %vm1079, %v4805, 0
        %v5109 = vsel %vm1079, %v4810, 0
        %5111 = vmatprep.subr.mxu0 0.0
        %5112 = vmatpush1.msra.mxu0 %v5079
        %5113 = vmatprep.subr.mxu0 0.0
        %5114 = vmatpush1.msra.mxu0 %v5080
        %5115 = vmatprep.subr.mxu0 0.0
        %5116 = vmatpush1.msra.mxu0 %v5081
        %5117 = vmatprep.subr.mxu0 0.0
        %5118 = vmatpush1.msra.mxu0 %v5082
        %5119 = vmatprep.subr.mxu0 0.0
        %5120 = vmatpush1.msra.mxu0 %v5083
        %5121 = vmatprep.subr.mxu0 0.0
        %5122 = vmatpush1.msra.mxu0 %v5084
        %5123 = vmatprep.subr.mxu0 0.0
        %5124 = vmatpush1.msra.mxu0 %v5085
        %5125 = vmatprep.subr.mxu0 0.0
        %5126 = vmatpush1.msra.mxu0 %v5086
        %5127 = vmatprep.subr.mxu0 0.0
        %5128 = vmatpush1.msra.mxu0 0.0
        %5129 = vmatprep.subr.mxu0 0.0
        %5130 = vmatpush1.msra.mxu0 0.0
        %5131 = vmatprep.subr.mxu0 0.0
        %5132 = vmatpush1.msra.mxu0 0.0
        %5133 = vmatprep.subr.mxu0 0.0
        %5134 = vmatpush1.msra.mxu0 0.0
        %5135 = vmatprep.subr.mxu0 0.0
        %5136 = vmatpush1.msra.mxu0 0.0
        %5137 = vmatprep.subr.mxu0 0.0
        %5138 = vmatpush1.msra.mxu0 0.0
        %5139 = vmatprep.subr.mxu0 0.0
        %5140 = vmatpush1.msra.mxu0 0.0
        %5141 = vmatprep.subr.mxu0 0.0
        %5142 = vmatpush1.msra.mxu0 0.0
        %5143 = vmatprep.subr.mxu0 0.0
        %5144 = vmatpush1.msra.mxu0 0.0
        %5145 = vmatprep.subr.mxu0 0.0
        %5146 = vmatpush1.msra.mxu0 0.0
        %5147 = vmatprep.subr.mxu0 0.0
        %5148 = vmatpush1.msra.mxu0 0.0
        %5149 = vmatprep.subr.mxu0 0.0
        %5150 = vmatpush1.msra.mxu0 0.0
        %5151 = vmatprep.subr.mxu0 0.0
        %5152 = vmatpush1.msra.mxu0 0.0
        %5153 = vmatprep.subr.mxu0 0.0
        %5154 = vmatpush1.msra.mxu0 0.0
        %5155 = vmatprep.subr.mxu0 0.0
        %5156 = vmatpush1.msra.mxu0 0.0
        %5157 = vmatprep.subr.mxu0 0.0
        %5158 = vmatpush1.msra.mxu0 0.0
        %5159 = vmatprep.subr.mxu0 0.0
        %5160 = vmatpush1.msra.mxu0 0.0
        %5161 = vmatprep.subr.mxu0 0.0
        %5162 = vmatpush1.msra.mxu0 0.0
        %5163 = vmatprep.subr.mxu0 0.0
        %5164 = vmatpush1.msra.mxu0 0.0
        %5165 = vmatprep.subr.mxu0 0.0
        %5166 = vmatpush1.msra.mxu0 0.0
        %5167 = vmatprep.subr.mxu0 0.0
        %5168 = vmatpush1.msra.mxu0 0.0
        %5169 = vmatprep.subr.mxu0 0.0
        %5170 = vmatpush1.msra.mxu0 0.0
        %5171 = vmatprep.subr.mxu0 0.0
        %5172 = vmatpush1.msra.mxu0 0.0
        %5173 = vmatprep.subr.mxu0 0.0
        %5174 = vmatpush1.msra.mxu0 0.0
        %5175 = vmatprep.mubr.f32.mxu0 0.0
        %5176 = vmatmul.mubr.f32.gmra.mrb[0].mxu0 %v5088
        %v5177 = vpop.f32.mrb[0].mxu0
        %v5178 = vadd.f32 0.0, %v5177
        %v5179 = vpop.f32.mrb[0].mxu0
        %5180 = vmatprep.mubr.f32.mxu0 0.0
        %5181 = vmatmul.mubr.f32.gmra.mrb[0].mxu0 %v5091
        %v5182 = vpop.f32.mrb[0].mxu0
        %v5183 = vadd.f32 0.0, %v5182
        %v5184 = vpop.f32.mrb[0].mxu0
        %5185 = vmatprep.mubr.f32.mxu0 0.0
        %5186 = vmatmul.mubr.f32.gmra.mrb[0].mxu0 %v5094
        %v5187 = vpop.f32.mrb[0].mxu0
        %v5188 = vadd.f32 0.0, %v5187
        %v5189 = vpop.f32.mrb[0].mxu0
        %5190 = vmatprep.mubr.f32.mxu0 0.0
        %5191 = vmatmul.mubr.f32.gmra.mrb[0].mxu0 %v5097
        %v5192 = vpop.f32.mrb[0].mxu0
        %v5193 = vadd.f32 0.0, %v5192
        %v5194 = vpop.f32.mrb[0].mxu0
        %5195 = vmatprep.mubr.f32.mxu0 0.0
        %5196 = vmatmul.mubr.f32.gmra.mrb[0].mxu0 %v5100
        %v5197 = vpop.f32.mrb[0].mxu0
        %v5198 = vadd.f32 0.0, %v5197
        %v5199 = vpop.f32.mrb[0].mxu0
        %5200 = vmatprep.mubr.f32.mxu0 0.0
        %5201 = vmatmul.mubr.f32.gmra.mrb[0].mxu0 %v5103
        %v5202 = vpop.f32.mrb[0].mxu0
        %v5203 = vadd.f32 0.0, %v5202
        %v5204 = vpop.f32.mrb[0].mxu0
        %5205 = vmatprep.mubr.f32.mxu0 0.0
        %5206 = vmatmul.mubr.f32.gmra.mrb[0].mxu0 %v5106
        %v5207 = vpop.f32.mrb[0].mxu0
        %v5208 = vadd.f32 0.0, %v5207
        %v5209 = vpop.f32.mrb[0].mxu0
        %5210 = vmatprep.mubr.f32.mxu0 0.0
        %5211 = vmatmul.mubr.f32.gmra.mrb[0].mxu0 %v5109
        %v5212 = vpop.f32.mrb[0].mxu0
        %v5213 = vadd.f32 0.0, %v5212
        %v5214 = vpop.f32.mrb[0].mxu0
        %5215 = vdwg.mxu0
        %v5217 = vsel %vm1079, %v5079, 0
        %v5220 = vsel %vm1079, %v5080, 0
        %v5223 = vsel %vm1079, %v5081, 0
        %v5226 = vsel %vm1079, %v5082, 0
        %v5229 = vsel %vm1079, %v5083, 0
        %v5232 = vsel %vm1079, %v5084, 0
        %v5235 = vsel %vm1079, %v5085, 0
        %v5238 = vsel %vm1079, %v5086, 0
        %5240 = vmatprep.subr.mxu0 0.0
        %5241 = vmatpush1.msra.mxu0 %v4904
        %5242 = vmatprep.subr.mxu0 0.0
        %5243 = vmatpush1.msra.mxu0 %v4909
        %5244 = vmatprep.subr.mxu0 0.0
        %5245 = vmatpush1.msra.mxu0 %v4914
        %5246 = vmatprep.subr.mxu0 0.0
        %5247 = vmatpush1.msra.mxu0 %v4919
        %5248 = vmatprep.subr.mxu0 0.0
        %5249 = vmatpush1.msra.mxu0 %v4924
        %5250 = vmatprep.subr.mxu0 0.0
        %5251 = vmatpush1.msra.mxu0 %v4929
        %5252 = vmatprep.subr.mxu0 0.0
        %5253 = vmatpush1.msra.mxu0 %v4934
        %5254 = vmatprep.subr.mxu0 0.0
        %5255 = vmatpush1.msra.mxu0 %v4939
        %5256 = vmatprep.subr.mxu0 0.0
        %5257 = vmatpush1.msra.mxu0 0.0
        %5258 = vmatprep.subr.mxu0 0.0
        %5259 = vmatpush1.msra.mxu0 0.0
        %5260 = vmatprep.subr.mxu0 0.0
        %5261 = vmatpush1.msra.mxu0 0.0
        %5262 = vmatprep.subr.mxu0 0.0
        %5263 = vmatpush1.msra.mxu0 0.0
        %5264 = vmatprep.subr.mxu0 0.0
        %5265 = vmatpush1.msra.mxu0 0.0
        %5266 = vmatprep.subr.mxu0 0.0
        %5267 = vmatpush1.msra.mxu0 0.0
        %5268 = vmatprep.subr.mxu0 0.0
        %5269 = vmatpush1.msra.mxu0 0.0
        %5270 = vmatprep.subr.mxu0 0.0
        %5271 = vmatpush1.msra.mxu0 0.0
        %5272 = vmatprep.subr.mxu0 0.0
        %5273 = vmatpush1.msra.mxu0 0.0
        %5274 = vmatprep.subr.mxu0 0.0
        %5275 = vmatpush1.msra.mxu0 0.0
        %5276 = vmatprep.subr.mxu0 0.0
        %5277 = vmatpush1.msra.mxu0 0.0
        %5278 = vmatprep.subr.mxu0 0.0
        %5279 = vmatpush1.msra.mxu0 0.0
        %5280 = vmatprep.subr.mxu0 0.0
        %5281 = vmatpush1.msra.mxu0 0.0
        %5282 = vmatprep.subr.mxu0 0.0
        %5283 = vmatpush1.msra.mxu0 0.0
        %5284 = vmatprep.subr.mxu0 0.0
        %5285 = vmatpush1.msra.mxu0 0.0
        %5286 = vmatprep.subr.mxu0 0.0
        %5287 = vmatpush1.msra.mxu0 0.0
        %5288 = vmatprep.subr.mxu0 0.0
        %5289 = vmatpush1.msra.mxu0 0.0
        %5290 = vmatprep.subr.mxu0 0.0
        %5291 = vmatpush1.msra.mxu0 0.0
        %5292 = vmatprep.subr.mxu0 0.0
        %5293 = vmatpush1.msra.mxu0 0.0
        %5294 = vmatprep.subr.mxu0 0.0
        %5295 = vmatpush1.msra.mxu0 0.0
        %5296 = vmatprep.subr.mxu0 0.0
        %5297 = vmatpush1.msra.mxu0 0.0
        %5298 = vmatprep.subr.mxu0 0.0
        %5299 = vmatpush1.msra.mxu0 0.0
        %5300 = vmatprep.subr.mxu0 0.0
        %5301 = vmatpush1.msra.mxu0 0.0
        %5302 = vmatprep.subr.mxu0 0.0
        %5303 = vmatpush1.msra.mxu0 0.0
        %5304 = vmatprep.mubr.f32.mxu0 0.0
        %5305 = vmatmul.mubr.f32.gmra.mrb[0].mxu0 %v5217
        %v5306 = vpop.f32.mrb[0].mxu0
        %v5307 = vadd.f32 0.0, %v5306
        %v5308 = vpop.f32.mrb[0].mxu0
        %5309 = vmatprep.mubr.f32.mxu0 0.0
        %5310 = vmatmul.mubr.f32.gmra.mrb[0].mxu0 %v5220
        %v5311 = vpop.f32.mrb[0].mxu0
        %v5312 = vadd.f32 0.0, %v5311
        %v5313 = vpop.f32.mrb[0].mxu0
        %5314 = vmatprep.mubr.f32.mxu0 0.0
        %5315 = vmatmul.mubr.f32.gmra.mrb[0].mxu0 %v5223
        %v5316 = vpop.f32.mrb[0].mxu0
        %v5317 = vadd.f32 0.0, %v5316
        %v5318 = vpop.f32.mrb[0].mxu0
        %5319 = vmatprep.mubr.f32.mxu0 0.0
        %5320 = vmatmul.mubr.f32.gmra.mrb[0].mxu0 %v5226
        %v5321 = vpop.f32.mrb[0].mxu0
        %v5322 = vadd.f32 0.0, %v5321
        %v5323 = vpop.f32.mrb[0].mxu0
        %5324 = vmatprep.mubr.f32.mxu0 0.0
        %5325 = vmatmul.mubr.f32.gmra.mrb[0].mxu0 %v5229
        %v5326 = vpop.f32.mrb[0].mxu0
        %v5327 = vadd.f32 0.0, %v5326
        %v5328 = vpop.f32.mrb[0].mxu0
        %5329 = vmatprep.mubr.f32.mxu0 0.0
        %5330 = vmatmul.mubr.f32.gmra.mrb[0].mxu0 %v5232
        %v5331 = vpop.f32.mrb[0].mxu0
        %v5332 = vadd.f32 0.0, %v5331
        %v5333 = vpop.f32.mrb[0].mxu0
        %5334 = vmatprep.mubr.f32.mxu0 0.0
        %5335 = vmatmul.mubr.f32.gmra.mrb[0].mxu0 %v5235
        %v5336 = vpop.f32.mrb[0].mxu0
        %v5337 = vadd.f32 0.0, %v5336
        %v5338 = vpop.f32.mrb[0].mxu0
        %5339 = vmatprep.mubr.f32.mxu0 0.0
        %5340 = vmatmul.mubr.f32.gmra.mrb[0].mxu0 %v5238
        %v5341 = vpop.f32.mrb[0].mxu0
        %v5342 = vadd.f32 0.0, %v5341
        %v5343 = vpop.f32.mrb[0].mxu0
        %5344 = vdwg.mxu0
        %v5346 = vsel %vm1079, %v5307, 0
        %v5349 = vsel %vm1079, %v5312, 0
        %v5352 = vsel %vm1079, %v5317, 0
        %v5355 = vsel %vm1079, %v5322, 0
        %v5358 = vsel %vm1079, %v5327, 0
        %v5361 = vsel %vm1079, %v5332, 0
        %v5364 = vsel %vm1079, %v5337, 0
        %v5367 = vsel %vm1079, %v5342, 0
        %5369 = vmatprep.subr.mxu0 0.0
        %5370 = vmatpush1.msra.mxu0 %v5178
        %5371 = vmatprep.subr.mxu0 0.0
        %5372 = vmatpush1.msra.mxu0 %v5183
        %5373 = vmatprep.subr.mxu0 0.0
        %5374 = vmatpush1.msra.mxu0 %v5188
        %5375 = vmatprep.subr.mxu0 0.0
        %5376 = vmatpush1.msra.mxu0 %v5193
        %5377 = vmatprep.subr.mxu0 0.0
        %5378 = vmatpush1.msra.mxu0 %v5198
        %5379 = vmatprep.subr.mxu0 0.0
        %5380 = vmatpush1.msra.mxu0 %v5203
        %5381 = vmatprep.subr.mxu0 0.0
        %5382 = vmatpush1.msra.mxu0 %v5208
        %5383 = vmatprep.subr.mxu0 0.0
        %5384 = vmatpush1.msra.mxu0 %v5213
        %5385 = vmatprep.subr.mxu0 0.0
        %5386 = vmatpush1.msra.mxu0 0.0
        %5387 = vmatprep.subr.mxu0 0.0
        %5388 = vmatpush1.msra.mxu0 0.0
        %5389 = vmatprep.subr.mxu0 0.0
        %5390 = vmatpush1.msra.mxu0 0.0
        %5391 = vmatprep.subr.mxu0 0.0
        %5392 = vmatpush1.msra.mxu0 0.0
        %5393 = vmatprep.subr.mxu0 0.0
        %5394 = vmatpush1.msra.mxu0 0.0
        %5395 = vmatprep.subr.mxu0 0.0
        %5396 = vmatpush1.msra.mxu0 0.0
        %5397 = vmatprep.subr.mxu0 0.0
        %5398 = vmatpush1.msra.mxu0 0.0
        %5399 = vmatprep.subr.mxu0 0.0
        %5400 = vmatpush1.msra.mxu0 0.0
        %5401 = vmatprep.subr.mxu0 0.0
        %5402 = vmatpush1.msra.mxu0 0.0
        %5403 = vmatprep.subr.mxu0 0.0
        %5404 = vmatpush1.msra.mxu0 0.0
        %5405 = vmatprep.subr.mxu0 0.0
        %5406 = vmatpush1.msra.mxu0 0.0
        %5407 = vmatprep.subr.mxu0 0.0
        %5408 = vmatpush1.msra.mxu0 0.0
        %5409 = vmatprep.subr.mxu0 0.0
        %5410 = vmatpush1.msra.mxu0 0.0
        %5411 = vmatprep.subr.mxu0 0.0
        %5412 = vmatpush1.msra.mxu0 0.0
        %5413 = vmatprep.subr.mxu0 0.0
        %5414 = vmatpush1.msra.mxu0 0.0
        %5415 = vmatprep.subr.mxu0 0.0
        %5416 = vmatpush1.msra.mxu0 0.0
        %5417 = vmatprep.subr.mxu0 0.0
        %5418 = vmatpush1.msra.mxu0 0.0
        %5419 = vmatprep.subr.mxu0 0.0
        %5420 = vmatpush1.msra.mxu0 0.0
        %5421 = vmatprep.subr.mxu0 0.0
        %5422 = vmatpush1.msra.mxu0 0.0
        %5423 = vmatprep.subr.mxu0 0.0
        %5424 = vmatpush1.msra.mxu0 0.0
        %5425 = vmatprep.subr.mxu0 0.0
        %5426 = vmatpush1.msra.mxu0 0.0
        %5427 = vmatprep.subr.mxu0 0.0
        %5428 = vmatpush1.msra.mxu0 0.0
        %5429 = vmatprep.subr.mxu0 0.0
        %5430 = vmatpush1.msra.mxu0 0.0
        %5431 = vmatprep.subr.mxu0 0.0
        %5432 = vmatpush1.msra.mxu0 0.0
        %5433 = vmatprep.mubr.f32.mxu0 0.0
        %5434 = vmatmul.mubr.f32.gmra.mrb[0].mxu0 %v5346
        %v5435 = vpop.f32.mrb[0].mxu0
        %v5436 = vadd.f32 0.0, %v5435
        %v5437 = vpop.f32.mrb[0].mxu0
        %5438 = vmatprep.mubr.f32.mxu0 0.0
        %5439 = vmatmul.mubr.f32.gmra.mrb[0].mxu0 %v5349
        %v5440 = vpop.f32.mrb[0].mxu0
        %v5441 = vadd.f32 0.0, %v5440
        %v5442 = vpop.f32.mrb[0].mxu0
        %5443 = vmatprep.mubr.f32.mxu0 0.0
        %5444 = vmatmul.mubr.f32.gmra.mrb[0].mxu0 %v5352
        %v5445 = vpop.f32.mrb[0].mxu0
        %v5446 = vadd.f32 0.0, %v5445
        %v5447 = vpop.f32.mrb[0].mxu0
        %5448 = vmatprep.mubr.f32.mxu0 0.0
        %5449 = vmatmul.mubr.f32.gmra.mrb[0].mxu0 %v5355
        %v5450 = vpop.f32.mrb[0].mxu0
        %v5451 = vadd.f32 0.0, %v5450
        %v5452 = vpop.f32.mrb[0].mxu0
        %5453 = vmatprep.mubr.f32.mxu0 0.0
        %5454 = vmatmul.mubr.f32.gmra.mrb[0].mxu0 %v5358
        %v5455 = vpop.f32.mrb[0].mxu0
        %v5456 = vadd.f32 0.0, %v5455
        %v5457 = vpop.f32.mrb[0].mxu0
        %5458 = vmatprep.mubr.f32.mxu0 0.0
        %5459 = vmatmul.mubr.f32.gmra.mrb[0].mxu0 %v5361
        %v5460 = vpop.f32.mrb[0].mxu0
        %v5461 = vadd.f32 0.0, %v5460
        %v5462 = vpop.f32.mrb[0].mxu0
        %5463 = vmatprep.mubr.f32.mxu0 0.0
        %5464 = vmatmul.mubr.f32.gmra.mrb[0].mxu0 %v5364
        %v5465 = vpop.f32.mrb[0].mxu0
        %v5466 = vadd.f32 0.0, %v5465
        %v5467 = vpop.f32.mrb[0].mxu0
        %5468 = vmatprep.mubr.f32.mxu0 0.0
        %5469 = vmatmul.mubr.f32.gmra.mrb[0].mxu0 %v5367
        %v5470 = vpop.f32.mrb[0].mxu0
        %v5471 = vadd.f32 0.0, %v5470
        %v5472 = vpop.f32.mrb[0].mxu0
        %5473 = vdwg.mxu0
        %v5474 = vsub.f32 %v3938, %v5436
        %v5475 = vsub.f32 %v3939, %v5441
        %v5476 = vsub.f32 %v3940, %v5446
        %v5477 = vsub.f32 %v3941, %v5451
        %v5478 = vsub.f32 %v3942, %v5456
        %v5479 = vsub.f32 %v3943, %v5461
        %v5480 = vsub.f32 %v3944, %v5466
        %v5481 = vsub.f32 %v3945, %v5471
        %v5483 = vsel %vm1079, %v5178, 0
        %v5486 = vsel %vm1079, %v5183, 0
        %v5489 = vsel %vm1079, %v5188, 0
        %v5492 = vsel %vm1079, %v5193, 0
        %v5495 = vsel %vm1079, %v5198, 0
        %v5498 = vsel %vm1079, %v5203, 0
        %v5501 = vsel %vm1079, %v5208, 0
        %v5504 = vsel %vm1079, %v5213, 0
        %5506 = vmatprep.subr.mxu0 0.0
        %5507 = vmatpush1.msra.mxu0 %v5474
        %5508 = vmatprep.subr.mxu0 0.0
        %5509 = vmatpush1.msra.mxu0 %v5475
        %5510 = vmatprep.subr.mxu0 0.0
        %5511 = vmatpush1.msra.mxu0 %v5476
        %5512 = vmatprep.subr.mxu0 0.0
        %5513 = vmatpush1.msra.mxu0 %v5477
        %5514 = vmatprep.subr.mxu0 0.0
        %5515 = vmatpush1.msra.mxu0 %v5478
        %5516 = vmatprep.subr.mxu0 0.0
        %5517 = vmatpush1.msra.mxu0 %v5479
        %5518 = vmatprep.subr.mxu0 0.0
        %5519 = vmatpush1.msra.mxu0 %v5480
        %5520 = vmatprep.subr.mxu0 0.0
        %5521 = vmatpush1.msra.mxu0 %v5481
        %5522 = vmatprep.subr.mxu0 0.0
        %5523 = vmatpush1.msra.mxu0 0.0
        %5524 = vmatprep.subr.mxu0 0.0
        %5525 = vmatpush1.msra.mxu0 0.0
        %5526 = vmatprep.subr.mxu0 0.0
        %5527 = vmatpush1.msra.mxu0 0.0
        %5528 = vmatprep.subr.mxu0 0.0
        %5529 = vmatpush1.msra.mxu0 0.0
        %5530 = vmatprep.subr.mxu0 0.0
        %5531 = vmatpush1.msra.mxu0 0.0
        %5532 = vmatprep.subr.mxu0 0.0
        %5533 = vmatpush1.msra.mxu0 0.0
        %5534 = vmatprep.subr.mxu0 0.0
        %5535 = vmatpush1.msra.mxu0 0.0
        %5536 = vmatprep.subr.mxu0 0.0
        %5537 = vmatpush1.msra.mxu0 0.0
        %5538 = vmatprep.subr.mxu0 0.0
        %5539 = vmatpush1.msra.mxu0 0.0
        %5540 = vmatprep.subr.mxu0 0.0
        %5541 = vmatpush1.msra.mxu0 0.0
        %5542 = vmatprep.subr.mxu0 0.0
        %5543 = vmatpush1.msra.mxu0 0.0
        %5544 = vmatprep.subr.mxu0 0.0
        %5545 = vmatpush1.msra.mxu0 0.0
        %5546 = vmatprep.subr.mxu0 0.0
        %5547 = vmatpush1.msra.mxu0 0.0
        %5548 = vmatprep.subr.mxu0 0.0
        %5549 = vmatpush1.msra.mxu0 0.0
        %5550 = vmatprep.subr.mxu0 0.0
        %5551 = vmatpush1.msra.mxu0 0.0
        %5552 = vmatprep.subr.mxu0 0.0
        %5553 = vmatpush1.msra.mxu0 0.0
        %5554 = vmatprep.subr.mxu0 0.0
        %5555 = vmatpush1.msra.mxu0 0.0
        %5556 = vmatprep.subr.mxu0 0.0
        %5557 = vmatpush1.msra.mxu0 0.0
        %5558 = vmatprep.subr.mxu0 0.0
        %5559 = vmatpush1.msra.mxu0 0.0
        %5560 = vmatprep.subr.mxu0 0.0
        %5561 = vmatpush1.msra.mxu0 0.0
        %5562 = vmatprep.subr.mxu0 0.0
        %5563 = vmatpush1.msra.mxu0 0.0
        %5564 = vmatprep.subr.mxu0 0.0
        %5565 = vmatpush1.msra.mxu0 0.0
        %5566 = vmatprep.subr.mxu0 0.0
        %5567 = vmatpush1.msra.mxu0 0.0
        %5568 = vmatprep.subr.mxu0 0.0
        %5569 = vmatpush1.msra.mxu0 0.0
        %5570 = vmatprep.mubr.f32.mxu0 0.0
        %5571 = vmatmul.mubr.f32.gmra.mrb[0].mxu0 %v5483
        %v5572 = vpop.f32.mrb[0].mxu0
        %v5573 = vadd.f32 0.0, %v5572
        %v5574 = vpop.f32.mrb[0].mxu0
        %5575 = vmatprep.mubr.f32.mxu0 0.0
        %5576 = vmatmul.mubr.f32.gmra.mrb[0].mxu0 %v5486
        %v5577 = vpop.f32.mrb[0].mxu0
        %v5578 = vadd.f32 0.0, %v5577
        %v5579 = vpop.f32.mrb[0].mxu0
        %5580 = vmatprep.mubr.f32.mxu0 0.0
        %5581 = vmatmul.mubr.f32.gmra.mrb[0].mxu0 %v5489
        %v5582 = vpop.f32.mrb[0].mxu0
        %v5583 = vadd.f32 0.0, %v5582
        %v5584 = vpop.f32.mrb[0].mxu0
        %5585 = vmatprep.mubr.f32.mxu0 0.0
        %5586 = vmatmul.mubr.f32.gmra.mrb[0].mxu0 %v5492
        %v5587 = vpop.f32.mrb[0].mxu0
        %v5588 = vadd.f32 0.0, %v5587
        %v5589 = vpop.f32.mrb[0].mxu0
        %5590 = vmatprep.mubr.f32.mxu0 0.0
        %5591 = vmatmul.mubr.f32.gmra.mrb[0].mxu0 %v5495
        %v5592 = vpop.f32.mrb[0].mxu0
        %v5593 = vadd.f32 0.0, %v5592
        %v5594 = vpop.f32.mrb[0].mxu0
        %5595 = vmatprep.mubr.f32.mxu0 0.0
        %5596 = vmatmul.mubr.f32.gmra.mrb[0].mxu0 %v5498
        %v5597 = vpop.f32.mrb[0].mxu0
        %v5598 = vadd.f32 0.0, %v5597
        %v5599 = vpop.f32.mrb[0].mxu0
        %5600 = vmatprep.mubr.f32.mxu0 0.0
        %5601 = vmatmul.mubr.f32.gmra.mrb[0].mxu0 %v5501
        %v5602 = vpop.f32.mrb[0].mxu0
        %v5603 = vadd.f32 0.0, %v5602
        %v5604 = vpop.f32.mrb[0].mxu0
        %5605 = vmatprep.mubr.f32.mxu0 0.0
        %5606 = vmatmul.mubr.f32.gmra.mrb[0].mxu0 %v5504
        %v5607 = vpop.f32.mrb[0].mxu0
        %v5608 = vadd.f32 0.0, %v5607
        %v5609 = vpop.f32.mrb[0].mxu0
        %5610 = vdwg.mxu0
        %v5611 = vmul.f32 %v5573, 0.5
        %v5612 = vmul.f32 %v5578, 0.5
        %v5613 = vmul.f32 %v5583, 0.5
        %v5614 = vmul.f32 %v5588, 0.5
        %v5615 = vmul.f32 %v5593, 0.5
        %v5616 = vmul.f32 %v5598, 0.5
        %v5617 = vmul.f32 %v5603, 0.5
        %v5618 = vmul.f32 %v5608, 0.5
        %v5619 = vstv %s3978
        %v5620 = vrsqrt.pop %v5619
        %v5621 = vmul.f32 %v5619, %v5620
        %vm5622 = vcmp.eq.f32.partialorder %v5619, inf
        %v5623 = vsel %vm5622, %v5619, %v5621
        %vm5624 = vcmp.eq.f32.partialorder %v5619, 0.0
        %v5625 = vand.u32 %v5619, 2147483648
        %v5626 = vsel %vm5624, %v5625, %v5623
        %s5627 = vtos %v5626
        %v5628 = vstv %s5627
        %v5629 = vmul.f32 %v5611, %v5628
        %v5630 = vmul.f32 %v5612, %v5628
        %v5631 = vmul.f32 %v5613, %v5628
        %v5632 = vmul.f32 %v5614, %v5628
        %v5633 = vmul.f32 %v5615, %v5628
        %v5634 = vmul.f32 %v5616, %v5628
        %v5635 = vmul.f32 %v5617, %v5628
        %v5636 = vmul.f32 %v5618, %v5628
        %5637 = vxpose.xlu0.b32.start [1/16] %v5629, 128
        %5638 = vxpose.xlu0.b32.cont [2/16] %v5630, 128
        %5639 = vxpose.xlu0.b32.cont [3/16] %v5631, 128
        %5640 = vxpose.xlu0.b32.cont [4/16] %v5632, 128
        %5641 = vxpose.xlu0.b32.cont [5/16] %v5633, 128
        %5642 = vxpose.xlu0.b32.cont [6/16] %v5634, 128
        %5643 = vxpose.xlu0.b32.cont [7/16] %v5635, 128
        %5644 = vxpose.xlu0.b32.cont [8/16] %v5636, 128
        %5645 = vxpose.xlu0.b32.cont [9/16] 0.0, 128
        %5646 = vxpose.xlu0.b32.cont [10/16] 0.0, 128
        %5647 = vxpose.xlu0.b32.cont [11/16] 0.0, 128
        %5648 = vxpose.xlu0.b32.cont [12/16] 0.0, 128
        %5649 = vxpose.xlu0.b32.cont [13/16] 0.0, 128
        %5650 = vxpose.xlu0.b32.cont [14/16] 0.0, 128
        %5651 = vxpose.xlu0.b32.cont [15/16] 0.0, 128
        %5652 = vxpose.xlu0.b32.end [16/16] 0.0, 128
        %v5653 = vpop.trf.xlu0
        %v5654 = vpop.trf.xlu0
        %v5655 = vpop.trf.xlu0
        %v5656 = vpop.trf.xlu0
        %v5657 = vpop.trf.xlu0
        %v5658 = vpop.trf.xlu0
        %v5659 = vpop.trf.xlu0
        %v5660 = vpop.trf.xlu0
        %v5661 = vpop.trf.xlu0
        %v5662 = vpop.trf.xlu0
        %v5663 = vpop.trf.xlu0
        %v5664 = vpop.trf.xlu0
        %v5665 = vpop.trf.xlu0
        %v5666 = vpop.trf.xlu0
        %v5667 = vpop.trf.xlu0
        %v5668 = vpop.trf.xlu0
        %v5670 = vsel %vm1079, %v5653, 0
        %v5673 = vsel %vm1079, %v5654, 0
        %v5676 = vsel %vm1079, %v5655, 0
        %v5679 = vsel %vm1079, %v5656, 0
        %v5682 = vsel %vm1079, %v5657, 0
        %v5685 = vsel %vm1079, %v5658, 0
        %v5688 = vsel %vm1079, %v5659, 0
        %v5691 = vsel %vm1079, %v5660, 0
        %5693 = vmatprep.subr.mxu0 0.0
        %5694 = vmatpush1.msra.mxu0 1.0
        %5695 = vmatprep.subr.mxu0 0.0
        %5696 = vmatpush1.msra.mxu0 1.0
        %5697 = vmatprep.subr.mxu0 0.0
        %5698 = vmatpush1.msra.mxu0 1.0
        %5699 = vmatprep.subr.mxu0 0.0
        %5700 = vmatpush1.msra.mxu0 1.0
        %5701 = vmatprep.subr.mxu0 0.0
        %5702 = vmatpush1.msra.mxu0 1.0
        %5703 = vmatprep.subr.mxu0 0.0
        %5704 = vmatpush1.msra.mxu0 1.0
        %5705 = vmatprep.subr.mxu0 0.0
        %5706 = vmatpush1.msra.mxu0 1.0
        %5707 = vmatprep.subr.mxu0 0.0
        %5708 = vmatpush1.msra.mxu0 1.0
        %5709 = vmatprep.subr.mxu0 0.0
        %5710 = vmatpush1.msra.mxu0 0.0
        %5711 = vmatprep.subr.mxu0 0.0
        %5712 = vmatpush1.msra.mxu0 0.0
        %5713 = vmatprep.subr.mxu0 0.0
        %5714 = vmatpush1.msra.mxu0 0.0
        %5715 = vmatprep.subr.mxu0 0.0
        %5716 = vmatpush1.msra.mxu0 0.0
        %5717 = vmatprep.subr.mxu0 0.0
        %5718 = vmatpush1.msra.mxu0 0.0
        %5719 = vmatprep.subr.mxu0 0.0
        %5720 = vmatpush1.msra.mxu0 0.0
        %5721 = vmatprep.subr.mxu0 0.0
        %5722 = vmatpush1.msra.mxu0 0.0
        %5723 = vmatprep.subr.mxu0 0.0
        %5724 = vmatpush1.msra.mxu0 0.0
        %5725 = vmatprep.subr.mxu0 0.0
        %5726 = vmatpush1.msra.mxu0 0.0
        %5727 = vmatprep.subr.mxu0 0.0
        %5728 = vmatpush1.msra.mxu0 0.0
        %5729 = vmatprep.subr.mxu0 0.0
        %5730 = vmatpush1.msra.mxu0 0.0
        %5731 = vmatprep.subr.mxu0 0.0
        %5732 = vmatpush1.msra.mxu0 0.0
        %5733 = vmatprep.subr.mxu0 0.0
        %5734 = vmatpush1.msra.mxu0 0.0
        %5735 = vmatprep.subr.mxu0 0.0
        %5736 = vmatpush1.msra.mxu0 0.0
        %5737 = vmatprep.subr.mxu0 0.0
        %5738 = vmatpush1.msra.mxu0 0.0
        %5739 = vmatprep.subr.mxu0 0.0
        %5740 = vmatpush1.msra.mxu0 0.0
        %5741 = vmatprep.subr.mxu0 0.0
        %5742 = vmatpush1.msra.mxu0 0.0
        %5743 = vmatprep.subr.mxu0 0.0
        %5744 = vmatpush1.msra.mxu0 0.0
        %5745 = vmatprep.subr.mxu0 0.0
        %5746 = vmatpush1.msra.mxu0 0.0
        %5747 = vmatprep.subr.mxu0 0.0
        %5748 = vmatpush1.msra.mxu0 0.0
        %5749 = vmatprep.subr.mxu0 0.0
        %5750 = vmatpush1.msra.mxu0 0.0
        %5751 = vmatprep.subr.mxu0 0.0
        %5752 = vmatpush1.msra.mxu0 0.0
        %5753 = vmatprep.subr.mxu0 0.0
        %5754 = vmatpush1.msra.mxu0 0.0
        %5755 = vmatprep.subr.mxu0 0.0
        %5756 = vmatpush1.msra.mxu0 0.0
        %5757 = vmatprep.mubr.f32.mxu0 0.0
        %5758 = vmatmul.mubr.f32.gmra.mrb[0].mxu0 %v5670
        %v5759 = vpop.f32.mrb[0].mxu0
        %v5760 = vadd.f32 0.0, %v5759
        %v5761 = vpop.f32.mrb[0].mxu0
        %5762 = vmatprep.mubr.f32.mxu0 0.0
        %5763 = vmatmul.mubr.f32.gmra.mrb[0].mxu0 %v5673
        %v5764 = vpop.f32.mrb[0].mxu0
        %v5765 = vadd.f32 0.0, %v5764
        %v5766 = vpop.f32.mrb[0].mxu0
        %5767 = vmatprep.mubr.f32.mxu0 0.0
        %5768 = vmatmul.mubr.f32.gmra.mrb[0].mxu0 %v5676
        %v5769 = vpop.f32.mrb[0].mxu0
        %v5770 = vadd.f32 0.0, %v5769
        %v5771 = vpop.f32.mrb[0].mxu0
        %5772 = vmatprep.mubr.f32.mxu0 0.0
        %5773 = vmatmul.mubr.f32.gmra.mrb[0].mxu0 %v5679
        %v5774 = vpop.f32.mrb[0].mxu0
        %v5775 = vadd.f32 0.0, %v5774
        %v5776 = vpop.f32.mrb[0].mxu0
        %5777 = vmatprep.mubr.f32.mxu0 0.0
        %5778 = vmatmul.mubr.f32.gmra.mrb[0].mxu0 %v5682
        %v5779 = vpop.f32.mrb[0].mxu0
        %v5780 = vadd.f32 0.0, %v5779
        %v5781 = vpop.f32.mrb[0].mxu0
        %5782 = vmatprep.mubr.f32.mxu0 0.0
        %5783 = vmatmul.mubr.f32.gmra.mrb[0].mxu0 %v5685
        %v5784 = vpop.f32.mrb[0].mxu0
        %v5785 = vadd.f32 0.0, %v5784
        %v5786 = vpop.f32.mrb[0].mxu0
        %5787 = vmatprep.mubr.f32.mxu0 0.0
        %5788 = vmatmul.mubr.f32.gmra.mrb[0].mxu0 %v5688
        %v5789 = vpop.f32.mrb[0].mxu0
        %v5790 = vadd.f32 0.0, %v5789
        %v5791 = vpop.f32.mrb[0].mxu0
        %5792 = vmatprep.mubr.f32.mxu0 0.0
        %5793 = vmatmul.mubr.f32.gmra.mrb[0].mxu0 %v5691
        %v5794 = vpop.f32.mrb[0].mxu0
        %v5795 = vadd.f32 0.0, %v5794
        %v5796 = vpop.f32.mrb[0].mxu0
        %5797 = vdwg.mxu0
        %v5798 = vmul.f32 %v5760, 0.015625
        %v5799 = vmul.f32 %v5765, 0.015625
        %v5800 = vmul.f32 %v5770, 0.015625
        %v5801 = vmul.f32 %v5775, 0.015625
        %v5802 = vmul.f32 %v5780, 0.015625
        %v5803 = vmul.f32 %v5785, 0.015625
        %v5804 = vmul.f32 %v5790, 0.015625
        %v5805 = vmul.f32 %v5795, 0.015625
        %v5806 = vld [vmem:[#allocation28] sm:$0xff]
        %v5807 = vld [vmem:[#allocation28 + $0x8] sm:$0xff]
        %v5808 = vld [vmem:[#allocation28 + $0x10] sm:$0xff]
        %v5809 = vld [vmem:[#allocation28 + $0x18] sm:$0xff]
        %v5810 = vld [vmem:[#allocation28 + $0x20] sm:$0xff]
        %v5811 = vld [vmem:[#allocation28 + $0x28] sm:$0xff]
        %v5812 = vld [vmem:[#allocation28 + $0x30] sm:$0xff]
        %v5813 = vld [vmem:[#allocation28 + $0x38] sm:$0xff]
        %v5814 = vld [vmem:[#allocation29] sm:$0xff]
        %v5815 = vld [vmem:[#allocation29 + $0x8] sm:$0xff]
        %v5816 = vld [vmem:[#allocation29 + $0x10] sm:$0xff]
        %v5817 = vld [vmem:[#allocation29 + $0x18] sm:$0xff]
        %v5818 = vld [vmem:[#allocation29 + $0x20] sm:$0xff]
        %v5819 = vld [vmem:[#allocation29 + $0x28] sm:$0xff]
        %v5820 = vld [vmem:[#allocation29 + $0x30] sm:$0xff]
        %v5821 = vld [vmem:[#allocation29 + $0x38] sm:$0xff]
        %v5823 = vsel %vm1079, %v5806, 0
        %v5826 = vsel %vm1079, %v5807, 0
        %v5829 = vsel %vm1079, %v5808, 0
        %v5832 = vsel %vm1079, %v5809, 0
        %v5835 = vsel %vm1079, %v5810, 0
        %v5838 = vsel %vm1079, %v5811, 0
        %v5841 = vsel %vm1079, %v5812, 0
        %v5844 = vsel %vm1079, %v5813, 0
        %5846 = vmatprep.subr.mxu0 0.0
        %5847 = vmatpush1.msra.mxu0 %v5798
        %5848 = vmatprep.subr.mxu0 0.0
        %5849 = vmatpush1.msra.mxu0 %v5799
        %5850 = vmatprep.subr.mxu0 0.0
        %5851 = vmatpush1.msra.mxu0 %v5800
        %5852 = vmatprep.subr.mxu0 0.0
        %5853 = vmatpush1.msra.mxu0 %v5801
        %5854 = vmatprep.subr.mxu0 0.0
        %5855 = vmatpush1.msra.mxu0 %v5802
        %5856 = vmatprep.subr.mxu0 0.0
        %5857 = vmatpush1.msra.mxu0 %v5803
        %5858 = vmatprep.subr.mxu0 0.0
        %5859 = vmatpush1.msra.mxu0 %v5804
        %5860 = vmatprep.subr.mxu0 0.0
        %5861 = vmatpush1.msra.mxu0 %v5805
        %5862 = vmatprep.subr.mxu0 0.0
        %5863 = vmatpush1.msra.mxu0 0.0
        %5864 = vmatprep.subr.mxu0 0.0
        %5865 = vmatpush1.msra.mxu0 0.0
        %5866 = vmatprep.subr.mxu0 0.0
        %5867 = vmatpush1.msra.mxu0 0.0
        %5868 = vmatprep.subr.mxu0 0.0
        %5869 = vmatpush1.msra.mxu0 0.0
        %5870 = vmatprep.subr.mxu0 0.0
        %5871 = vmatpush1.msra.mxu0 0.0
        %5872 = vmatprep.subr.mxu0 0.0
        %5873 = vmatpush1.msra.mxu0 0.0
        %5874 = vmatprep.subr.mxu0 0.0
        %5875 = vmatpush1.msra.mxu0 0.0
        %5876 = vmatprep.subr.mxu0 0.0
        %5877 = vmatpush1.msra.mxu0 0.0
        %5878 = vmatprep.subr.mxu0 0.0
        %5879 = vmatpush1.msra.mxu0 0.0
        %5880 = vmatprep.subr.mxu0 0.0
        %5881 = vmatpush1.msra.mxu0 0.0
        %5882 = vmatprep.subr.mxu0 0.0
        %5883 = vmatpush1.msra.mxu0 0.0
        %5884 = vmatprep.subr.mxu0 0.0
        %5885 = vmatpush1.msra.mxu0 0.0
        %5886 = vmatprep.subr.mxu0 0.0
        %5887 = vmatpush1.msra.mxu0 0.0
        %5888 = vmatprep.subr.mxu0 0.0
        %5889 = vmatpush1.msra.mxu0 0.0
        %5890 = vmatprep.subr.mxu0 0.0
        %5891 = vmatpush1.msra.mxu0 0.0
        %5892 = vmatprep.subr.mxu0 0.0
        %5893 = vmatpush1.msra.mxu0 0.0
        %5894 = vmatprep.subr.mxu0 0.0
        %5895 = vmatpush1.msra.mxu0 0.0
        %5896 = vmatprep.subr.mxu0 0.0
        %5897 = vmatpush1.msra.mxu0 0.0
        %5898 = vmatprep.subr.mxu0 0.0
        %5899 = vmatpush1.msra.mxu0 0.0
        %5900 = vmatprep.subr.mxu0 0.0
        %5901 = vmatpush1.msra.mxu0 0.0
        %5902 = vmatprep.subr.mxu0 0.0
        %5903 = vmatpush1.msra.mxu0 0.0
        %5904 = vmatprep.subr.mxu0 0.0
        %5905 = vmatpush1.msra.mxu0 0.0
        %5906 = vmatprep.subr.mxu0 0.0
        %5907 = vmatpush1.msra.mxu0 0.0
        %5908 = vmatprep.subr.mxu0 0.0
        %5909 = vmatpush1.msra.mxu0 0.0
        %5910 = vmatprep.mubr.f32.mxu0 0.0
        %5911 = vmatmul.mubr.f32.gmra.mrb[0].mxu0 %v5823
        %v5912 = vpop.f32.mrb[0].mxu0
        %v5913 = vadd.f32 %v5814, %v5912
        %v5914 = vpop.f32.mrb[0].mxu0
        %5915 = vmatprep.mubr.f32.mxu0 0.0
        %5916 = vmatmul.mubr.f32.gmra.mrb[0].mxu0 %v5826
        %v5917 = vpop.f32.mrb[0].mxu0
        %v5918 = vadd.f32 %v5815, %v5917
        %v5919 = vpop.f32.mrb[0].mxu0
        %5920 = vmatprep.mubr.f32.mxu0 0.0
        %5921 = vmatmul.mubr.f32.gmra.mrb[0].mxu0 %v5829
        %v5922 = vpop.f32.mrb[0].mxu0
        %v5923 = vadd.f32 %v5816, %v5922
        %v5924 = vpop.f32.mrb[0].mxu0
        %5925 = vmatprep.mubr.f32.mxu0 0.0
        %5926 = vmatmul.mubr.f32.gmra.mrb[0].mxu0 %v5832
        %v5927 = vpop.f32.mrb[0].mxu0
        %v5928 = vadd.f32 %v5817, %v5927
        %v5929 = vpop.f32.mrb[0].mxu0
        %5930 = vmatprep.mubr.f32.mxu0 0.0
        %5931 = vmatmul.mubr.f32.gmra.mrb[0].mxu0 %v5835
        %v5932 = vpop.f32.mrb[0].mxu0
        %v5933 = vadd.f32 %v5818, %v5932
        %v5934 = vpop.f32.mrb[0].mxu0
        %5935 = vmatprep.mubr.f32.mxu0 0.0
        %5936 = vmatmul.mubr.f32.gmra.mrb[0].mxu0 %v5838
        %v5937 = vpop.f32.mrb[0].mxu0
        %v5938 = vadd.f32 %v5819, %v5937
        %v5939 = vpop.f32.mrb[0].mxu0
        %5940 = vmatprep.mubr.f32.mxu0 0.0
        %5941 = vmatmul.mubr.f32.gmra.mrb[0].mxu0 %v5841
        %v5942 = vpop.f32.mrb[0].mxu0
        %v5943 = vadd.f32 %v5820, %v5942
        %v5944 = vpop.f32.mrb[0].mxu0
        %5945 = vmatprep.mubr.f32.mxu0 0.0
        %5946 = vmatmul.mubr.f32.gmra.mrb[0].mxu0 %v5844
        %v5947 = vpop.f32.mrb[0].mxu0
        %v5948 = vadd.f32 %v5821, %v5947
        %v5949 = vpop.f32.mrb[0].mxu0
        %5950 = vdwg.mxu0
        %v5951 = vld [vmem:[#allocation31] sm:$0xff]
        %v5952 = vld [vmem:[#allocation31 + $0x8] sm:$0xff]
        %v5953 = vld [vmem:[#allocation31 + $0x10] sm:$0xff]
        %v5954 = vld [vmem:[#allocation31 + $0x18] sm:$0xff]
        %v5955 = vld [vmem:[#allocation31 + $0x20] sm:$0xff]
        %v5956 = vld [vmem:[#allocation31 + $0x28] sm:$0xff]
        %v5957 = vld [vmem:[#allocation31 + $0x30] sm:$0xff]
        %v5958 = vld [vmem:[#allocation31 + $0x38] sm:$0xff]
        %v5959 = vld [vmem:[#allocation32] sm:$0xff]
        %v5960 = vld [vmem:[#allocation32 + $0x8] sm:$0xff]
        %v5961 = vld [vmem:[#allocation32 + $0x10] sm:$0xff]
        %v5962 = vld [vmem:[#allocation32 + $0x18] sm:$0xff]
        %v5963 = vld [vmem:[#allocation32 + $0x20] sm:$0xff]
        %v5964 = vld [vmem:[#allocation32 + $0x28] sm:$0xff]
        %v5965 = vld [vmem:[#allocation32 + $0x30] sm:$0xff]
        %v5966 = vld [vmem:[#allocation32 + $0x38] sm:$0xff]
        %v5968 = vsel %vm1079, %v5951, 0
        %v5971 = vsel %vm1079, %v5952, 0
        %v5974 = vsel %vm1079, %v5953, 0
        %v5977 = vsel %vm1079, %v5954, 0
        %v5980 = vsel %vm1079, %v5955, 0
        %v5983 = vsel %vm1079, %v5956, 0
        %v5986 = vsel %vm1079, %v5957, 0
        %v5989 = vsel %vm1079, %v5958, 0
        %5991 = vmatprep.subr.mxu0 0.0
        %5992 = vmatpush1.msra.mxu0 %v5913
        %5993 = vmatprep.subr.mxu0 0.0
        %5994 = vmatpush1.msra.mxu0 %v5918
        %5995 = vmatprep.subr.mxu0 0.0
        %5996 = vmatpush1.msra.mxu0 %v5923
        %5997 = vmatprep.subr.mxu0 0.0
        %5998 = vmatpush1.msra.mxu0 %v5928
        %5999 = vmatprep.subr.mxu0 0.0
        %6000 = vmatpush1.msra.mxu0 %v5933
        %6001 = vmatprep.subr.mxu0 0.0
        %6002 = vmatpush1.msra.mxu0 %v5938
        %6003 = vmatprep.subr.mxu0 0.0
        %6004 = vmatpush1.msra.mxu0 %v5943
        %6005 = vmatprep.subr.mxu0 0.0
        %6006 = vmatpush1.msra.mxu0 %v5948
        %6007 = vmatprep.subr.mxu0 0.0
        %6008 = vmatpush1.msra.mxu0 0.0
        %6009 = vmatprep.subr.mxu0 0.0
        %6010 = vmatpush1.msra.mxu0 0.0
        %6011 = vmatprep.subr.mxu0 0.0
        %6012 = vmatpush1.msra.mxu0 0.0
        %6013 = vmatprep.subr.mxu0 0.0
        %6014 = vmatpush1.msra.mxu0 0.0
        %6015 = vmatprep.subr.mxu0 0.0
        %6016 = vmatpush1.msra.mxu0 0.0
        %6017 = vmatprep.subr.mxu0 0.0
        %6018 = vmatpush1.msra.mxu0 0.0
        %6019 = vmatprep.subr.mxu0 0.0
        %6020 = vmatpush1.msra.mxu0 0.0
        %6021 = vmatprep.subr.mxu0 0.0
        %6022 = vmatpush1.msra.mxu0 0.0
        %6023 = vmatprep.subr.mxu0 0.0
        %6024 = vmatpush1.msra.mxu0 0.0
        %6025 = vmatprep.subr.mxu0 0.0
        %6026 = vmatpush1.msra.mxu0 0.0
        %6027 = vmatprep.subr.mxu0 0.0
        %6028 = vmatpush1.msra.mxu0 0.0
        %6029 = vmatprep.subr.mxu0 0.0
        %6030 = vmatpush1.msra.mxu0 0.0
        %6031 = vmatprep.subr.mxu0 0.0
        %6032 = vmatpush1.msra.mxu0 0.0
        %6033 = vmatprep.subr.mxu0 0.0
        %6034 = vmatpush1.msra.mxu0 0.0
        %6035 = vmatprep.subr.mxu0 0.0
        %6036 = vmatpush1.msra.mxu0 0.0
        %6037 = vmatprep.subr.mxu0 0.0
        %6038 = vmatpush1.msra.mxu0 0.0
        %6039 = vmatprep.subr.mxu0 0.0
        %6040 = vmatpush1.msra.mxu0 0.0
        %6041 = vmatprep.subr.mxu0 0.0
        %6042 = vmatpush1.msra.mxu0 0.0
        %6043 = vmatprep.subr.mxu0 0.0
        %6044 = vmatpush1.msra.mxu0 0.0
        %6045 = vmatprep.subr.mxu0 0.0
        %6046 = vmatpush1.msra.mxu0 0.0
        %6047 = vmatprep.subr.mxu0 0.0
        %6048 = vmatpush1.msra.mxu0 0.0
        %6049 = vmatprep.subr.mxu0 0.0
        %6050 = vmatpush1.msra.mxu0 0.0
        %6051 = vmatprep.subr.mxu0 0.0
        %6052 = vmatpush1.msra.mxu0 0.0
        %6053 = vmatprep.subr.mxu0 0.0
        %6054 = vmatpush1.msra.mxu0 0.0
        %6055 = vmatprep.mubr.f32.mxu0 0.0
        %6056 = vmatmul.mubr.f32.gmra.mrb[0].mxu0 %v5968
        %v6057 = vpop.f32.mrb[0].mxu0
        %v6058 = vadd.f32 %v5959, %v6057
        %v6059 = vpop.f32.mrb[0].mxu0
        %6060 = vmatprep.mubr.f32.mxu0 0.0
        %6061 = vmatmul.mubr.f32.gmra.mrb[0].mxu0 %v5971
        %v6062 = vpop.f32.mrb[0].mxu0
        %v6063 = vadd.f32 %v5960, %v6062
        %v6064 = vpop.f32.mrb[0].mxu0
        %6065 = vmatprep.mubr.f32.mxu0 0.0
        %6066 = vmatmul.mubr.f32.gmra.mrb[0].mxu0 %v5974
        %v6067 = vpop.f32.mrb[0].mxu0
        %v6068 = vadd.f32 %v5961, %v6067
        %v6069 = vpop.f32.mrb[0].mxu0
        %6070 = vmatprep.mubr.f32.mxu0 0.0
        %6071 = vmatmul.mubr.f32.gmra.mrb[0].mxu0 %v5977
        %v6072 = vpop.f32.mrb[0].mxu0
        %v6073 = vadd.f32 %v5962, %v6072
        %v6074 = vpop.f32.mrb[0].mxu0
        %6075 = vmatprep.mubr.f32.mxu0 0.0
        %6076 = vmatmul.mubr.f32.gmra.mrb[0].mxu0 %v5980
        %v6077 = vpop.f32.mrb[0].mxu0
        %v6078 = vadd.f32 %v5963, %v6077
        %v6079 = vpop.f32.mrb[0].mxu0
        %6080 = vmatprep.mubr.f32.mxu0 0.0
        %6081 = vmatmul.mubr.f32.gmra.mrb[0].mxu0 %v5983
        %v6082 = vpop.f32.mrb[0].mxu0
        %v6083 = vadd.f32 %v5964, %v6082
        %v6084 = vpop.f32.mrb[0].mxu0
        %6085 = vmatprep.mubr.f32.mxu0 0.0
        %6086 = vmatmul.mubr.f32.gmra.mrb[0].mxu0 %v5986
        %v6087 = vpop.f32.mrb[0].mxu0
        %v6088 = vadd.f32 %v5965, %v6087
        %v6089 = vpop.f32.mrb[0].mxu0
        %6090 = vmatprep.mubr.f32.mxu0 0.0
        %6091 = vmatmul.mubr.f32.gmra.mrb[0].mxu0 %v5989
        %v6092 = vpop.f32.mrb[0].mxu0
        %v6093 = vadd.f32 %v5966, %v6092
        %v6094 = vpop.f32.mrb[0].mxu0
        %6095 = vdwg.mxu0
        %v6096 = vld [vmem:[#allocation34] sm:$0xff]
        %v6097 = vld [vmem:[#allocation34 + $0x8] sm:$0xff]
        %v6098 = vld [vmem:[#allocation34 + $0x10] sm:$0xff]
        %v6099 = vld [vmem:[#allocation34 + $0x18] sm:$0xff]
        %v6100 = vld [vmem:[#allocation34 + $0x20] sm:$0xff]
        %v6101 = vld [vmem:[#allocation34 + $0x28] sm:$0xff]
        %v6102 = vld [vmem:[#allocation34 + $0x30] sm:$0xff]
        %v6103 = vld [vmem:[#allocation34 + $0x38] sm:$0xff]
        %v6104 = vld [vmem:[#allocation35] sm:$0xff]
        %v6105 = vld [vmem:[#allocation35 + $0x8] sm:$0xff]
        %v6106 = vld [vmem:[#allocation35 + $0x10] sm:$0xff]
        %v6107 = vld [vmem:[#allocation35 + $0x18] sm:$0xff]
        %v6108 = vld [vmem:[#allocation35 + $0x20] sm:$0xff]
        %v6109 = vld [vmem:[#allocation35 + $0x28] sm:$0xff]
        %v6110 = vld [vmem:[#allocation35 + $0x30] sm:$0xff]
        %v6111 = vld [vmem:[#allocation35 + $0x38] sm:$0xff]
        %6112 = vmatprep.subr.mxu0 0.0
        %6113 = vmatpush1.msra.mxu0 %v3608
        %6114 = vmatprep.subr.mxu0 0.0
        %6115 = vmatpush1.msra.mxu0 %v3613
        %6116 = vmatprep.subr.mxu0 0.0
        %6117 = vmatpush1.msra.mxu0 %v3618
        %6118 = vmatprep.subr.mxu0 0.0
        %6119 = vmatpush1.msra.mxu0 %v3623
        %6120 = vmatprep.subr.mxu0 0.0
        %6121 = vmatpush1.msra.mxu0 %v3628
        %6122 = vmatprep.subr.mxu0 0.0
        %6123 = vmatpush1.msra.mxu0 %v3633
        %6124 = vmatprep.subr.mxu0 0.0
        %6125 = vmatpush1.msra.mxu0 %v3638
        %6126 = vmatprep.subr.mxu0 0.0
        %6127 = vmatpush1.msra.mxu0 %v3643
        %6128 = vmatprep.subr.mxu0 0.0
        %6129 = vmatpush1.msra.mxu0 %v6058
        %6130 = vmatprep.subr.mxu0 0.0
        %6131 = vmatpush1.msra.mxu0 %v6063
        %6132 = vmatprep.subr.mxu0 0.0
        %6133 = vmatpush1.msra.mxu0 %v6068
        %6134 = vmatprep.subr.mxu0 0.0
        %6135 = vmatpush1.msra.mxu0 %v6073
        %6136 = vmatprep.subr.mxu0 0.0
        %6137 = vmatpush1.msra.mxu0 %v6078
        %6138 = vmatprep.subr.mxu0 0.0
        %6139 = vmatpush1.msra.mxu0 %v6083
        %6140 = vmatprep.subr.mxu0 0.0
        %6141 = vmatpush1.msra.mxu0 %v6088
        %6142 = vmatprep.subr.mxu0 0.0
        %6143 = vmatpush1.msra.mxu0 %v6093
        %6144 = vmatprep.subr.mxu0 0.0
        %6145 = vmatpush1.msra.mxu0 0.0
        %6146 = vmatprep.subr.mxu0 0.0
        %6147 = vmatpush1.msra.mxu0 0.0
        %6148 = vmatprep.subr.mxu0 0.0
        %6149 = vmatpush1.msra.mxu0 0.0
        %6150 = vmatprep.subr.mxu0 0.0
        %6151 = vmatpush1.msra.mxu0 0.0
        %6152 = vmatprep.subr.mxu0 0.0
        %6153 = vmatpush1.msra.mxu0 0.0
        %6154 = vmatprep.subr.mxu0 0.0
        %6155 = vmatpush1.msra.mxu0 0.0
        %6156 = vmatprep.subr.mxu0 0.0
        %6157 = vmatpush1.msra.mxu0 0.0
        %6158 = vmatprep.subr.mxu0 0.0
        %6159 = vmatpush1.msra.mxu0 0.0
        %6160 = vmatprep.subr.mxu0 0.0
        %6161 = vmatpush1.msra.mxu0 0.0
        %6162 = vmatprep.subr.mxu0 0.0
        %6163 = vmatpush1.msra.mxu0 0.0
        %6164 = vmatprep.subr.mxu0 0.0
        %6165 = vmatpush1.msra.mxu0 0.0
        %6166 = vmatprep.subr.mxu0 0.0
        %6167 = vmatpush1.msra.mxu0 0.0
        %6168 = vmatprep.subr.mxu0 0.0
        %6169 = vmatpush1.msra.mxu0 0.0
        %6170 = vmatprep.subr.mxu0 0.0
        %6171 = vmatpush1.msra.mxu0 0.0
        %6172 = vmatprep.subr.mxu0 0.0
        %6173 = vmatpush1.msra.mxu0 0.0
        %6174 = vmatprep.subr.mxu0 0.0
        %6175 = vmatpush1.msra.mxu0 0.0
        %6176 = vmatprep.mubr.f32.mxu0 0.0
        %6177 = vmatmul.mubr.f32.gmra.mrb[0].mxu0 %v6096
        %v6178 = vpop.f32.mrb[0].mxu0
        %v6179 = vadd.f32 %v6104, %v6178
        %v6180 = vpop.f32.mrb[0].mxu0
        %6181 = vmatprep.mubr.f32.mxu0 0.0
        %6182 = vmatmul.mubr.f32.gmra.mrb[0].mxu0 %v6097
        %v6183 = vpop.f32.mrb[0].mxu0
        %v6184 = vadd.f32 %v6105, %v6183
        %v6185 = vpop.f32.mrb[0].mxu0
        %6186 = vmatprep.mubr.f32.mxu0 0.0
        %6187 = vmatmul.mubr.f32.gmra.mrb[0].mxu0 %v6098
        %v6188 = vpop.f32.mrb[0].mxu0
        %v6189 = vadd.f32 %v6106, %v6188
        %v6190 = vpop.f32.mrb[0].mxu0
        %6191 = vmatprep.mubr.f32.mxu0 0.0
        %6192 = vmatmul.mubr.f32.gmra.mrb[0].mxu0 %v6099
        %v6193 = vpop.f32.mrb[0].mxu0
        %v6194 = vadd.f32 %v6107, %v6193
        %v6195 = vpop.f32.mrb[0].mxu0
        %6196 = vmatprep.mubr.f32.mxu0 0.0
        %6197 = vmatmul.mubr.f32.gmra.mrb[0].mxu0 %v6100
        %v6198 = vpop.f32.mrb[0].mxu0
        %v6199 = vadd.f32 %v6108, %v6198
        %v6200 = vpop.f32.mrb[0].mxu0
        %6201 = vmatprep.mubr.f32.mxu0 0.0
        %6202 = vmatmul.mubr.f32.gmra.mrb[0].mxu0 %v6101
        %v6203 = vpop.f32.mrb[0].mxu0
        %v6204 = vadd.f32 %v6109, %v6203
        %v6205 = vpop.f32.mrb[0].mxu0
        %6206 = vmatprep.mubr.f32.mxu0 0.0
        %6207 = vmatmul.mubr.f32.gmra.mrb[0].mxu0 %v6102
        %v6208 = vpop.f32.mrb[0].mxu0
        %v6209 = vadd.f32 %v6110, %v6208
        %v6210 = vpop.f32.mrb[0].mxu0
        %6211 = vmatprep.mubr.f32.mxu0 0.0
        %6212 = vmatmul.mubr.f32.gmra.mrb[0].mxu0 %v6103
        %v6213 = vpop.f32.mrb[0].mxu0
        %v6214 = vadd.f32 %v6111, %v6213
        %v6215 = vpop.f32.mrb[0].mxu0
        %6216 = vdwg.mxu0
        %v6217 = vxor.u32 %v6179, 2147483648
        %v6218 = vxor.u32 %v6184, 2147483648
        %v6219 = vxor.u32 %v6189, 2147483648
        %v6220 = vxor.u32 %v6194, 2147483648
        %v6221 = vxor.u32 %v6199, 2147483648
        %v6222 = vxor.u32 %v6204, 2147483648
        %v6223 = vxor.u32 %v6209, 2147483648
        %v6224 = vxor.u32 %v6214, 2147483648
        %v6225 = vmul.f32 %v6217, 1.442695
        %v6226 = vpow.pop %v6225
        %v6227 = vmul.f32 %v6218, 1.442695
        %v6228 = vpow.pop %v6227
        %v6229 = vmul.f32 %v6219, 1.442695
        %v6230 = vpow.pop %v6229
        %v6231 = vmul.f32 %v6220, 1.442695
        %v6232 = vpow.pop %v6231
        %v6233 = vmul.f32 %v6221, 1.442695
        %v6234 = vpow.pop %v6233
        %v6235 = vmul.f32 %v6222, 1.442695
        %v6236 = vpow.pop %v6235
        %v6237 = vmul.f32 %v6223, 1.442695
        %v6238 = vpow.pop %v6237
        %v6239 = vmul.f32 %v6224, 1.442695
        %v6240 = vpow.pop %v6239
        %v6241 = vadd.f32 %v6226, 1.0
        %v6242 = vadd.f32 %v6228, 1.0
        %v6243 = vadd.f32 %v6230, 1.0
        %v6244 = vadd.f32 %v6232, 1.0
        %v6245 = vadd.f32 %v6234, 1.0
        %v6246 = vadd.f32 %v6236, 1.0
        %v6247 = vadd.f32 %v6238, 1.0
        %v6248 = vadd.f32 %v6240, 1.0
        %v6249 = vrcp.pop %v6241
        %v6250 = vmul.f32 1.0, %v6249
        %v6251 = vrcp.pop %v6242
        %v6252 = vmul.f32 1.0, %v6251
        %v6253 = vrcp.pop %v6243
        %v6254 = vmul.f32 1.0, %v6253
        %v6255 = vrcp.pop %v6244
        %v6256 = vmul.f32 1.0, %v6255
        %v6257 = vrcp.pop %v6245
        %v6258 = vmul.f32 1.0, %v6257
        %v6259 = vrcp.pop %v6246
        %v6260 = vmul.f32 1.0, %v6259
        %v6261 = vrcp.pop %v6247
        %v6262 = vmul.f32 1.0, %v6261
        %v6263 = vrcp.pop %v6248
        %v6264 = vmul.f32 1.0, %v6263
        %6266 = vset.pattern.permute.xlu0 0
        %6267 = vperm.xlu0 %6266, %v6250
        %v6268 = vpop.permute.xlu0 %6267
        %6271 = vset.pattern.permute.xlu0 0
        %6272 = vperm.xlu0 %6271, %v6252
        %v6273 = vpop.permute.xlu0 %6272
        %6276 = vset.pattern.permute.xlu0 0
        %6277 = vperm.xlu0 %6276, %v6254
        %v6278 = vpop.permute.xlu0 %6277
        %6281 = vset.pattern.permute.xlu0 0
        %6282 = vperm.xlu0 %6281, %v6256
        %v6283 = vpop.permute.xlu0 %6282
        %6286 = vset.pattern.permute.xlu0 0
        %6287 = vperm.xlu0 %6286, %v6258
        %v6288 = vpop.permute.xlu0 %6287
        %6291 = vset.pattern.permute.xlu0 0
        %6292 = vperm.xlu0 %6291, %v6260
        %v6293 = vpop.permute.xlu0 %6292
        %6296 = vset.pattern.permute.xlu0 0
        %6297 = vperm.xlu0 %6296, %v6262
        %v6298 = vpop.permute.xlu0 %6297
        %6301 = vset.pattern.permute.xlu0 0
        %6302 = vperm.xlu0 %6301, %v6264
        %v6303 = vpop.permute.xlu0 %6302
        %v6305 = vmul.f32 %v3308, %v6268
        %v6306 = vmul.f32 %v3309, %v6268
        %v6307 = vmul.f32 %v3310, %v6273
        %v6308 = vmul.f32 %v3311, %v6273
        %v6309 = vmul.f32 %v3312, %v6278
        %v6310 = vmul.f32 %v3313, %v6278
        %v6311 = vmul.f32 %v3314, %v6283
        %v6312 = vmul.f32 %v3315, %v6283
        %v6313 = vmul.f32 %v3316, %v6288
        %v6314 = vmul.f32 %v3317, %v6288
        %v6315 = vmul.f32 %v3318, %v6293
        %v6316 = vmul.f32 %v3319, %v6293
        %v6317 = vmul.f32 %v3320, %v6298
        %v6318 = vmul.f32 %v3321, %v6298
        %v6319 = vmul.f32 %v3322, %v6303
        %v6320 = vmul.f32 %v3323, %v6303
        %6321 = vst [vmem:[%s1006] sm:$0xff] %v6305
        %6322 = vst [vmem:[%s1006 + $0x8] sm:$0xff] %v6306
        %6323 = vst [vmem:[%s1006 + $0x10] sm:$0xff] %v6307
        %6324 = vst [vmem:[%s1006 + $0x18] sm:$0xff] %v6308
        %6325 = vst [vmem:[%s1006 + $0x20] sm:$0xff] %v6309
        %6326 = vst [vmem:[%s1006 + $0x28] sm:$0xff] %v6310
        %6327 = vst [vmem:[%s1006 + $0x30] sm:$0xff] %v6311
        %6328 = vst [vmem:[%s1006 + $0x38] sm:$0xff] %v6312
        %6329 = vst [vmem:[%s1006 + $0x40] sm:$0xff] %v6313
        %6330 = vst [vmem:[%s1006 + $0x48] sm:$0xff] %v6314
        %6331 = vst [vmem:[%s1006 + $0x50] sm:$0xff] %v6315
        %6332 = vst [vmem:[%s1006 + $0x58] sm:$0xff] %v6316
        %6333 = vst [vmem:[%s1006 + $0x60] sm:$0xff] %v6317
        %6334 = vst [vmem:[%s1006 + $0x68] sm:$0xff] %v6318
        %6335 = vst [vmem:[%s1006 + $0x70] sm:$0xff] %v6319
        %6336 = vst [vmem:[%s1006 + $0x78] sm:$0xff] %v6320
        %s6337 = sand.u32 %s525, 1
        %s6338 = scalar_lea.sflag [#allocation4], %s6337
        %s6339 = sand.u32 %s525, 1
        %s6340 = smul.addr %s6339, 128
        %s6341 = scalar_lea.vmem [#allocation37], %s6340
        // Predicated region
        $region197: #{res2net1_forward.1} parent=107 // pred_check
          %p6342 = pneg %p535
        $region198: #{res2net1_forward.1} parent=107 // pred_check_branch
          %6344 = sbr.rel (%p6342) target = $region200
        $region199: #{res2net1_forward.1} parent=107 // pred_region
          %s6346 = ssub.s32 2048, 2048
          %6347 = vsyncadd %s6338, %s6346
          %s6348 = smul.addr %s50, 16
          %s6349 = smul.addr %s6348, 128
          %s6350 = scalar_lea.hbm %s22, %s6349
          %s6351 = sshll.u32 %s6341, 4
          %s6352 = int_to_ptr.vmem [resolvable:$true] %s6351
          %6357 = dma.vmem_to_hbm [thread:$0]  %s6352, 2048, %s6350, %s6338, 256, 256, 16
        $region200: #{res2net1_forward.1} parent=107 // pred_fallthru
          _
      $region108: #{res2net1_forward.1} parent=5 // pred_fallthru
        _
      %p6358 = scmp.le.s32.totalorder 2, %s45
      // Predicated region
      $region201: #{res2net1_forward.1} parent=5 // pred_check
        %p6359 = pneg %p6358
      $region202: #{res2net1_forward.1} parent=5 // pred_check_branch
        %6361 = sbr.rel (%p6359) target = $region204
      $region203: #{res2net1_forward.1} parent=5 // pred_region
        %s6362 = ssub.s32 %s45, 2
        // Predicated region
        $region205: #{res2net1_forward.1} parent=203 // pred_check
          %p6363 = pneg %p541
        $region206: #{res2net1_forward.1} parent=203 // pred_check_branch
          %6365 = sbr.rel (%p6363) target = $region208
        $region207: #{res2net1_forward.1} parent=203 // pred_region
          %s6366 = sand.u32 %s526, 1
          %s6367 = scalar_lea.sflag [#allocation4], %s6366
          %s6368 = sand.u32 %s526, 1
          %s6369 = smul.addr %s6368, 128
          %s6370 = scalar_lea.vmem [#allocation37], %s6369
          %6371 = dma.done %s6367, 2048
        $region208: #{res2net1_forward.1} parent=203 // pred_fallthru
          _
      $region204: #{res2net1_forward.1} parent=5 // pred_fallthru
        _
    $region6: #{res2net1_forward.1} parent=1 // loop_footer
      %s49 = sadd.s32 1, %s45
    $region7: #{res2net1_forward.1} parent=1 // loop_footer_branch
      %44 = sbr.rel target = $region3
    $region8: #{res2net1_forward.1} parent=1 // loop_exit
      _
    %6372 = vsyncpa [#allocation3], 1
    %s6373 = scalar_lea.sflag [#allocation3], 1
    %6374 = vsyncpa %s6373, 1
    %6375 = vsyncpa [#allocation6], 1
    %6376 = vsyncpa [#allocation9], 1
    %6377 = vsyncpa [#allocation12], 1
    %6378 = vsyncpa [#allocation15], 1
    %6379 = vsyncpa [#allocation18], 1
    %6380 = vsyncpa [#allocation21], 1
    %6381 = vsyncpa [#allocation24], 1
    %6382 = vsyncpa [#allocation27], 1
    %6383 = vsyncpa [#allocation30], 1
    %6384 = vsyncpa [#allocation33], 1
    %6385 = vsyncpa [#allocation36], 1
    %6386 = vsyncpa [#allocation4], 1
    %s6387 = scalar_lea.sflag [#allocation4], 1
    %6388 = vsyncpa %s6387, 1

</llo_original>
